<compile_context>
chip_gen: v7x
topology: tpu7x:2x2x1
jax: 0.10.0
libtpu: 0.0.40
codegen_flags: <defaults>
</compile_context>

<pallas_src>
import jax
import jax.numpy as jnp
from jax.experimental import pallas as pl
from jax.experimental.pallas import tpu as pltpu

EPS = 1e-5


def _pair(v):
    return (v, v) if isinstance(v, int) else tuple(v)


# ----------------------------- Pallas kernel -------------------------------

def _make_fused_kernel(final):
    """matmul -> centered single-kernel train-mode BatchNorm -> ReLU (-> Tanh)."""

    def kernel(p_ref, w_ref, gb_ref, o_ref):
        # p: [M, K] bf16, w: [K, C] bf16, gb: [2, C] f32 (gamma;beta),
        # o: [M, C] bf16 (intermediate) or f32 (final).
        y = jnp.dot(p_ref[...], w_ref[...],
                    preferred_element_type=jnp.float32)          # MXU
        m = y.shape[0]                                           # true batch*H*W
        inv_m = 1.0 / float(m)
        mean = jnp.sum(y, axis=0, keepdims=True) * inv_m
        d = y - mean
        var = jnp.sum(d * d, axis=0, keepdims=True) * inv_m      # biased var
        gb = gb_ref[...]
        scale = gb[0:1, :] * jax.lax.rsqrt(var + EPS)            # EUP rsqrt
        z = jnp.maximum(d * scale + gb[1:2, :], 0.0)             # BN + ReLU
        if final:
            z = jnp.tanh(z)                                      # trailing Tanh
        o_ref[...] = z.astype(o_ref.dtype)

    return kernel


def _fused_block(patches, w_mat, gb, final):
    """patches [M, K] bf16, w_mat [K, C] bf16, gb [2, C] f32."""
    M, K = patches.shape
    C = w_mat.shape[1]
    out_dtype = jnp.float32 if final else jnp.bfloat16
    out_bytes = 4 if final else 2
    cost = pl.CostEstimate(
        flops=2 * M * K * C + 8 * M * C,
        transcendentals=C + (M * C if final else 0),
        bytes_accessed=(M * K + K * C) * 2 + 2 * C * 4 + M * C * out_bytes,
    )
    return pl.pallas_call(
        _make_fused_kernel(final),
        out_shape=jax.ShapeDtypeStruct((M, C), out_dtype),
        grid=(1,),
        in_specs=[
            pl.BlockSpec((M, K), lambda i: (0, 0)),
            pl.BlockSpec((K, C), lambda i: (0, 0)),
            pl.BlockSpec((2, C), lambda i: (0, 0)),
        ],
        out_specs=pl.BlockSpec((M, C), lambda i: (0, 0)),
        compiler_params=pltpu.CompilerParams(
            dimension_semantics=("arbitrary",),
            vmem_limit_bytes=32 * 1024 * 1024),
        cost_estimate=cost,
    )(patches, w_mat, gb)


# ------------------------------ JAX glue -----------------------------------

def _convt_im2col_nhwc(x, kernel_size, stride, padding):
    """ConvTranspose2d == stride-1 valid conv (flipped kernel) over the
    zero-dilated, edge-padded input.  x: [N, H, W, Cin] (NHWC, bf16).
    Returns patches [N*Ho*Wo, kh*kw*Cin] with (i, j, c) ordering, (N,Ho,Wo)."""
    kh, kw = _pair(kernel_size)
    sh, sw = _pair(stride)
    ph, pw = _pair(padding)
    x_pad = jax.lax.pad(
        x, jnp.array(0.0, x.dtype),
        [(0, 0, 0),
         (kh - 1 - ph, kh - 1 - ph, sh - 1),
         (kw - 1 - pw, kw - 1 - pw, sw - 1),
         (0, 0, 0)])
    N, Hp, Wp, Cin = x_pad.shape
    Ho, Wo = Hp - kh + 1, Wp - kw + 1
    cols = [x_pad[:, i:i + Ho, j:j + Wo, :]
            for i in range(kh) for j in range(kw)]
    p = jnp.concatenate(cols, axis=-1)           # [N, Ho, Wo, kh*kw*Cin]
    return p.reshape(N * Ho * Wo, kh * kw * Cin), (N, Ho, Wo)


def _convt_weight_to_matmul(wt):
    """PyTorch ConvTranspose2d weight [Cin, Cout, kh, kw] -> matmul weight
    [kh*kw*Cin, Cout] (flipped kernel, matching the (i, j, c) patch order)."""
    Cin, Cout, kh, kw = wt.shape
    w = wt[:, :, ::-1, ::-1]                     # spatial flip
    w = jnp.transpose(w, (2, 3, 0, 1))           # [kh, kw, Cin, Cout]
    return w.reshape(kh * kw * Cin, Cout)


class GeneratorPallas:
    """JAX/Pallas equivalent of the PyTorch `Generator` forward pass.
    Every stage is ConvTranspose2d(bias=False) + BatchNorm2d (per-forward
    batch statistics, biased variance == train-mode nn.BatchNorm2d) + ReLU;
    the final stage additionally applies Tanh, mirroring the reference
    nn.Sequential(_block, ..., _block, nn.Tanh())."""

    def __init__(self, channels_noise, channels_img, features_g,
                 num_classes=2, key=None):
        if key is None:
            key = jax.random.PRNGKey(0)
        fg = features_g
        self.configs = [
            # (Cin, Cout, kernel, stride, padding) — mirrors nn.Sequential
            (channels_noise + 20, fg * 16, (4, 4), 1, 0),
            (fg * 16, fg * 8, (4, 4), 2, 1),
            (fg * 8, fg * 4, (4, 4), 2, 1),
            (fg * 4, fg * 2, (6, 6), 1, 0),
            (fg * 2, channels_img, (10, 1), 1, 0),
        ]
        keys = jax.random.split(key, len(self.configs) + 1)
        # nn.Embedding(num_classes, 20): N(0,1) init
        self.emb = jax.random.normal(keys[0], (num_classes, 20), jnp.float32)
        self.layers = []
        for k, (cin, cout, ks, st, pad) in zip(keys[1:], self.configs):
            kh, kw = ks
            K = cin * kh * kw
            w = jax.random.normal(k, (cin, cout, kh, kw), jnp.float32)
            w = w * (1.0 / jnp.sqrt(jnp.float32(K)))            # conv weight
            w_mat = _convt_weight_to_matmul(w)                  # [K, Cout]
            w_mat = w_mat.astype(jnp.bfloat16)                  # MXU operand
            # Packed BatchNorm affine params: row 0 = gamma, row 1 = beta.
            gb = jnp.concatenate([jnp.ones((1, cout), jnp.float32),
                                  jnp.zeros((1, cout), jnp.float32)], axis=0)
            self.layers.append(dict(cout=cout, ks=ks, st=st, pad=pad,
                                    w=w_mat, gb=gb))

    def __call__(self, x, label):
        # x: [N, channels_noise, 1, 1]; label: int array (e.g. [N, 1, 1])
        label = label.reshape(-1)                      # squeeze().squeeze()
        emb = jnp.take(self.emb, label, axis=0)        # [N, 20]
        emb = emb[:, :, None, None]                    # [N, 20, 1, 1]
        h = jnp.concatenate([x, emb], axis=1)          # NCHW channel concat
        h = jnp.transpose(h, (0, 2, 3, 1))             # -> NHWC (trivial 1x1)
        h = h.astype(jnp.bfloat16)                     # single cast; im2col runs bf16
        n_blocks = len(self.layers)
        for idx, lyr in enumerate(self.layers):
            patches, (N, Ho, Wo) = _convt_im2col_nhwc(
                h, lyr["ks"], lyr["st"], lyr["pad"])
            out = _fused_block(patches, lyr["w"], lyr["gb"],
                               final=(idx == n_blocks - 1))
            # intermediate layers: bf16 [M, Cout]; final: f32 [M, Cout]
            h = out.reshape(N, Ho, Wo, lyr["cout"])
        return jnp.transpose(h, (0, 3, 1, 2))          # NCHW at the boundary


if __name__ == "__main__":
    key = jax.random.PRNGKey(0)
    kx, kl, kp = jax.random.split(key, 3)

    channels_noise = 8
    channels_img = 4
    features_g = 4
    batch = 2

    gen = GeneratorPallas(channels_noise, channels_img, features_g,
                          num_classes=2, key=kp)

    x = jax.random.normal(kx, (batch, channels_noise, 1, 1), jnp.float32)
    label = jax.random.randint(kl, (batch, 1, 1), 0, 2, dtype=jnp.int32)

    fwd = jax.jit(lambda xx, ll: gen(xx, ll))
    out = jax.block_until_ready(fwd(x, label))

    # spatial trace for 1x1 input: 1 -> 4 -> 8 -> 16 -> 21 -> (30, 21)
    assert out.shape == (batch, channels_img, 30, 21), out.shape
    assert out.dtype == jnp.float32
    assert bool(jnp.all(jnp.isfinite(out)))
    assert float(jnp.max(jnp.abs(out))) <= 1.0 + 1e-5  # tanh(relu(.)) range
    print("KERNEL_OK")
</pallas_src>

<mosaic_0001>
module attributes {stable_mosaic.version = 11 : i64} {
  func.func @kernel(%arg0: i32, %arg1: memref<32x448xbf16, #tpu.memory_space<vmem>>, %arg2: memref<448x64xbf16, #tpu.memory_space<vmem>>, %arg3: memref<2x64xf32, #tpu.memory_space<vmem>>, %arg4: memref<32x64xbf16, #tpu.memory_space<vmem>>) attributes {dimension_semantics = [#tpu.dimension_semantics<arbitrary>], iteration_bounds = array<i64: 1>, scalar_prefetch = 0 : i64, scratch_operands = 0 : i64, tpu.core_type = #tpu.core_type<tc>, window_params = [{pipeline_mode = #tpu.pipeline_mode<synchronous>, transform_indices = @transform_0, window_bounds = array<i64: 32, 448>}, {pipeline_mode = #tpu.pipeline_mode<synchronous>, transform_indices = @transform_1, window_bounds = array<i64: 448, 64>}, {pipeline_mode = #tpu.pipeline_mode<synchronous>, transform_indices = @transform_2, window_bounds = array<i64: 2, 64>}, {pipeline_mode = #tpu.pipeline_mode<synchronous>, transform_indices = @transform_3, window_bounds = array<i64: 32, 64>}]} {
    %c0 = arith.constant 0 : index
    %c0_0 = arith.constant 0 : index
    %0 = vector.load %arg1[%c0, %c0_0] : memref<32x448xbf16, #tpu.memory_space<vmem>>, vector<32x448xbf16>
    %c0_1 = arith.constant 0 : index
    %c0_2 = arith.constant 0 : index
    %1 = vector.load %arg2[%c0_1, %c0_2] : memref<448x64xbf16, #tpu.memory_space<vmem>>, vector<448x64xbf16>
    %cst = arith.constant dense<0.000000e+00> : vector<32x64xf32>
    %2 = tpu.matmul %0, %1, %cst {dimension_numbers = #tpu.dot_dimension_numbers<[1], [0], [0], [1], [0, 0, 1, 1], [], []>} : vector<32x448xbf16>, vector<448x64xbf16>, vector<32x64xf32> -> vector<32x64xf32>
    %cst_3 = arith.constant dense<0.000000e+00> : vector<64xf32>
    %3 = vector.multi_reduction <add>, %2, %cst_3 [0] : vector<32x64xf32> to vector<64xf32>
    %4 = vector.shape_cast %3 : vector<64xf32> to vector<1x64xf32>
    %cst_4 = arith.constant 3.125000e-02 : f32
    %5 = vector.broadcast %cst_4 : f32 to vector<1x64xf32>
    %6 = arith.mulf %4, %5 : vector<1x64xf32>
    %7 = vector.broadcast %6 : vector<1x64xf32> to vector<32x64xf32>
    %8 = arith.subf %2, %7 : vector<32x64xf32>
    %9 = arith.mulf %8, %8 : vector<32x64xf32>
    %cst_5 = arith.constant dense<0.000000e+00> : vector<64xf32>
    %10 = vector.multi_reduction <add>, %9, %cst_5 [0] : vector<32x64xf32> to vector<64xf32>
    %11 = vector.shape_cast %10 : vector<64xf32> to vector<1x64xf32>
    %cst_6 = arith.constant 3.125000e-02 : f32
    %12 = vector.broadcast %cst_6 : f32 to vector<1x64xf32>
    %13 = arith.mulf %11, %12 : vector<1x64xf32>
    %c0_7 = arith.constant 0 : index
    %c0_8 = arith.constant 0 : index
    %14 = vector.load %arg3[%c0_7, %c0_8] : memref<2x64xf32, #tpu.memory_space<vmem>>, vector<2x64xf32>
    %15 = vector.extract_strided_slice %14 {offsets = [0, 0], sizes = [1, 64], strides = [1, 1]} : vector<2x64xf32> to vector<1x64xf32>
    %cst_9 = arith.constant 9.99999974E-6 : f32
    %16 = vector.broadcast %cst_9 : f32 to vector<1x64xf32>
    %17 = arith.addf %13, %16 : vector<1x64xf32>
    %18 = math.rsqrt %17 : vector<1x64xf32>
    %19 = arith.mulf %15, %18 : vector<1x64xf32>
    %20 = vector.broadcast %19 : vector<1x64xf32> to vector<32x64xf32>
    %21 = arith.mulf %8, %20 : vector<32x64xf32>
    %22 = vector.extract_strided_slice %14 {offsets = [1, 0], sizes = [1, 64], strides = [1, 1]} : vector<2x64xf32> to vector<1x64xf32>
    %23 = vector.broadcast %22 : vector<1x64xf32> to vector<32x64xf32>
    %24 = arith.addf %21, %23 : vector<32x64xf32>
    %cst_10 = arith.constant 0.000000e+00 : f32
    %25 = vector.broadcast %cst_10 : f32 to vector<32x64xf32>
    %26 = arith.maximumf %24, %25 : vector<32x64xf32>
    %27 = arith.truncf %26 : vector<32x64xf32> to vector<32x64xbf16>
    %c0_11 = arith.constant 0 : index
    %c0_12 = arith.constant 0 : index
    %28 = vector.load %arg4[%c0_11, %c0_12] : memref<32x64xbf16, #tpu.memory_space<vmem>>, vector<32x64xbf16>
    tpu.vector_store %arg4[%c0_11, %c0_12], %27 {strides = array<i32>} : memref<32x64xbf16, #tpu.memory_space<vmem>>, vector<32x64xbf16>,
    return
  }
  func.func @transform_0(%arg0: i32) -> (i32, i32) {
    %c0_i32 = arith.constant 0 : i32
    %c0_i32_0 = arith.constant 0 : i32
    %c0_i32_1 = arith.constant 0 : i32
    return %c0_i32, %c0_i32_0 : i32, i32
  }
  func.func @transform_1(%arg0: i32) -> (i32, i32) {
    %c0_i32 = arith.constant 0 : i32
    %c0_i32_0 = arith.constant 0 : i32
    %c0_i32_1 = arith.constant 0 : i32
    return %c0_i32, %c0_i32_0 : i32, i32
  }
  func.func @transform_2(%arg0: i32) -> (i32, i32) {
    %c0_i32 = arith.constant 0 : i32
    %c0_i32_0 = arith.constant 0 : i32
    %c0_i32_1 = arith.constant 0 : i32
    return %c0_i32, %c0_i32_0 : i32, i32
  }
  func.func @transform_3(%arg0: i32) -> (i32, i32) {
    %c0_i32 = arith.constant 0 : i32
    %c0_i32_0 = arith.constant 0 : i32
    %c0_i32_1 = arith.constant 0 : i32
    return %c0_i32, %c0_i32_0 : i32, i32
  }
}

module attributes {stable_mosaic.version = 11 : i64} {
  func.func @kernel(%arg0: i32, %arg1: memref<128x1024xbf16, #tpu.memory_space<vmem>>, %arg2: memref<1024x32xbf16, #tpu.memory_space<vmem>>, %arg3: memref<2x32xf32, #tpu.memory_space<vmem>>, %arg4: memref<128x32xbf16, #tpu.memory_space<vmem>>) attributes {dimension_semantics = [#tpu.dimension_semantics<arbitrary>], iteration_bounds = array<i64: 1>, scalar_prefetch = 0 : i64, scratch_operands = 0 : i64, tpu.core_type = #tpu.core_type<tc>, window_params = [{pipeline_mode = #tpu.pipeline_mode<synchronous>, transform_indices = @transform_0, window_bounds = array<i64: 128, 1024>}, {pipeline_mode = #tpu.pipeline_mode<synchronous>, transform_indices = @transform_1, window_bounds = array<i64: 1024, 32>}, {pipeline_mode = #tpu.pipeline_mode<synchronous>, transform_indices = @transform_2, window_bounds = array<i64: 2, 32>}, {pipeline_mode = #tpu.pipeline_mode<synchronous>, transform_indices = @transform_3, window_bounds = array<i64: 128, 32>}]} {
    %c0 = arith.constant 0 : index
    %c0_0 = arith.constant 0 : index
    %0 = vector.load %arg1[%c0, %c0_0] : memref<128x1024xbf16, #tpu.memory_space<vmem>>, vector<128x1024xbf16>
    %c0_1 = arith.constant 0 : index
    %c0_2 = arith.constant 0 : index
    %1 = vector.load %arg2[%c0_1, %c0_2] : memref<1024x32xbf16, #tpu.memory_space<vmem>>, vector<1024x32xbf16>
    %cst = arith.constant dense<0.000000e+00> : vector<128x32xf32>
    %2 = tpu.matmul %0, %1, %cst {dimension_numbers = #tpu.dot_dimension_numbers<[1], [0], [0], [1], [0, 0, 1, 1], [], []>} : vector<128x1024xbf16>, vector<1024x32xbf16>, vector<128x32xf32> -> vector<128x32xf32>
    %cst_3 = arith.constant dense<0.000000e+00> : vector<32xf32>
    %3 = vector.multi_reduction <add>, %2, %cst_3 [0] : vector<128x32xf32> to vector<32xf32>
    %4 = vector.shape_cast %3 : vector<32xf32> to vector<1x32xf32>
    %cst_4 = arith.constant 7.812500e-03 : f32
    %5 = vector.broadcast %cst_4 : f32 to vector<1x32xf32>
    %6 = arith.mulf %4, %5 : vector<1x32xf32>
    %7 = vector.broadcast %6 : vector<1x32xf32> to vector<128x32xf32>
    %8 = arith.subf %2, %7 : vector<128x32xf32>
    %9 = arith.mulf %8, %8 : vector<128x32xf32>
    %cst_5 = arith.constant dense<0.000000e+00> : vector<32xf32>
    %10 = vector.multi_reduction <add>, %9, %cst_5 [0] : vector<128x32xf32> to vector<32xf32>
    %11 = vector.shape_cast %10 : vector<32xf32> to vector<1x32xf32>
    %cst_6 = arith.constant 7.812500e-03 : f32
    %12 = vector.broadcast %cst_6 : f32 to vector<1x32xf32>
    %13 = arith.mulf %11, %12 : vector<1x32xf32>
    %c0_7 = arith.constant 0 : index
    %c0_8 = arith.constant 0 : index
    %14 = vector.load %arg3[%c0_7, %c0_8] : memref<2x32xf32, #tpu.memory_space<vmem>>, vector<2x32xf32>
    %15 = vector.extract_strided_slice %14 {offsets = [0, 0], sizes = [1, 32], strides = [1, 1]} : vector<2x32xf32> to vector<1x32xf32>
    %cst_9 = arith.constant 9.99999974E-6 : f32
    %16 = vector.broadcast %cst_9 : f32 to vector<1x32xf32>
    %17 = arith.addf %13, %16 : vector<1x32xf32>
    %18 = math.rsqrt %17 : vector<1x32xf32>
    %19 = arith.mulf %15, %18 : vector<1x32xf32>
    %20 = vector.broadcast %19 : vector<1x32xf32> to vector<128x32xf32>
    %21 = arith.mulf %8, %20 : vector<128x32xf32>
    %22 = vector.extract_strided_slice %14 {offsets = [1, 0], sizes = [1, 32], strides = [1, 1]} : vector<2x32xf32> to vector<1x32xf32>
    %23 = vector.broadcast %22 : vector<1x32xf32> to vector<128x32xf32>
    %24 = arith.addf %21, %23 : vector<128x32xf32>
    %cst_10 = arith.constant 0.000000e+00 : f32
    %25 = vector.broadcast %cst_10 : f32 to vector<128x32xf32>
    %26 = arith.maximumf %24, %25 : vector<128x32xf32>
    %27 = arith.truncf %26 : vector<128x32xf32> to vector<128x32xbf16>
    %c0_11 = arith.constant 0 : index
    %c0_12 = arith.constant 0 : index
    %28 = vector.load %arg4[%c0_11, %c0_12] : memref<128x32xbf16, #tpu.memory_space<vmem>>, vector<128x32xbf16>
    tpu.vector_store %arg4[%c0_11, %c0_12], %27 {strides = array<i32>} : memref<128x32xbf16, #tpu.memory_space<vmem>>, vector<128x32xbf16>,
    return
  }
  func.func @transform_0(%arg0: i32) -> (i32, i32) {
    %c0_i32 = arith.constant 0 : i32
    %c0_i32_0 = arith.constant 0 : i32
    %c0_i32_1 = arith.constant 0 : i32
    return %c0_i32, %c0_i32_0 : i32, i32
  }
  func.func @transform_1(%arg0: i32) -> (i32, i32) {
    %c0_i32 = arith.constant 0 : i32
    %c0_i32_0 = arith.constant 0 : i32
    %c0_i32_1 = arith.constant 0 : i32
    return %c0_i32, %c0_i32_0 : i32, i32
  }
  func.func @transform_2(%arg0: i32) -> (i32, i32) {
    %c0_i32 = arith.constant 0 : i32
    %c0_i32_0 = arith.constant 0 : i32
    %c0_i32_1 = arith.constant 0 : i32
    return %c0_i32, %c0_i32_0 : i32, i32
  }
  func.func @transform_3(%arg0: i32) -> (i32, i32) {
    %c0_i32 = arith.constant 0 : i32
    %c0_i32_0 = arith.constant 0 : i32
    %c0_i32_1 = arith.constant 0 : i32
    return %c0_i32, %c0_i32_0 : i32, i32
  }
}

module attributes {stable_mosaic.version = 11 : i64} {
  func.func @kernel(%arg0: i32, %arg1: memref<512x512xbf16, #tpu.memory_space<vmem>>, %arg2: memref<512x16xbf16, #tpu.memory_space<vmem>>, %arg3: memref<2x16xf32, #tpu.memory_space<vmem>>, %arg4: memref<512x16xbf16, #tpu.memory_space<vmem>>) attributes {dimension_semantics = [#tpu.dimension_semantics<arbitrary>], iteration_bounds = array<i64: 1>, scalar_prefetch = 0 : i64, scratch_operands = 0 : i64, tpu.core_type = #tpu.core_type<tc>, window_params = [{pipeline_mode = #tpu.pipeline_mode<synchronous>, transform_indices = @transform_0, window_bounds = array<i64: 512, 512>}, {pipeline_mode = #tpu.pipeline_mode<synchronous>, transform_indices = @transform_1, window_bounds = array<i64: 512, 16>}, {pipeline_mode = #tpu.pipeline_mode<synchronous>, transform_indices = @transform_2, window_bounds = array<i64: 2, 16>}, {pipeline_mode = #tpu.pipeline_mode<synchronous>, transform_indices = @transform_3, window_bounds = array<i64: 512, 16>}]} {
    %c0 = arith.constant 0 : index
    %c0_0 = arith.constant 0 : index
    %0 = vector.load %arg1[%c0, %c0_0] : memref<512x512xbf16, #tpu.memory_space<vmem>>, vector<512x512xbf16>
    %c0_1 = arith.constant 0 : index
    %c0_2 = arith.constant 0 : index
    %1 = vector.load %arg2[%c0_1, %c0_2] : memref<512x16xbf16, #tpu.memory_space<vmem>>, vector<512x16xbf16>
    %cst = arith.constant dense<0.000000e+00> : vector<512x16xf32>
    %2 = tpu.matmul %0, %1, %cst {dimension_numbers = #tpu.dot_dimension_numbers<[1], [0], [0], [1], [0, 0, 1, 1], [], []>} : vector<512x512xbf16>, vector<512x16xbf16>, vector<512x16xf32> -> vector<512x16xf32>
    %cst_3 = arith.constant dense<0.000000e+00> : vector<16xf32>
    %3 = vector.multi_reduction <add>, %2, %cst_3 [0] : vector<512x16xf32> to vector<16xf32>
    %4 = vector.shape_cast %3 : vector<16xf32> to vector<1x16xf32>
    %cst_4 = arith.constant 0.001953125 : f32
    %5 = vector.broadcast %cst_4 : f32 to vector<1x16xf32>
    %6 = arith.mulf %4, %5 : vector<1x16xf32>
    %7 = vector.broadcast %6 : vector<1x16xf32> to vector<512x16xf32>
    %8 = arith.subf %2, %7 : vector<512x16xf32>
    %9 = arith.mulf %8, %8 : vector<512x16xf32>
    %cst_5 = arith.constant dense<0.000000e+00> : vector<16xf32>
    %10 = vector.multi_reduction <add>, %9, %cst_5 [0] : vector<512x16xf32> to vector<16xf32>
    %11 = vector.shape_cast %10 : vector<16xf32> to vector<1x16xf32>
    %cst_6 = arith.constant 0.001953125 : f32
    %12 = vector.broadcast %cst_6 : f32 to vector<1x16xf32>
    %13 = arith.mulf %11, %12 : vector<1x16xf32>
    %c0_7 = arith.constant 0 : index
    %c0_8 = arith.constant 0 : index
    %14 = vector.load %arg3[%c0_7, %c0_8] : memref<2x16xf32, #tpu.memory_space<vmem>>, vector<2x16xf32>
    %15 = vector.extract_strided_slice %14 {offsets = [0, 0], sizes = [1, 16], strides = [1, 1]} : vector<2x16xf32> to vector<1x16xf32>
    %cst_9 = arith.constant 9.99999974E-6 : f32
    %16 = vector.broadcast %cst_9 : f32 to vector<1x16xf32>
    %17 = arith.addf %13, %16 : vector<1x16xf32>
    %18 = math.rsqrt %17 : vector<1x16xf32>
    %19 = arith.mulf %15, %18 : vector<1x16xf32>
    %20 = vector.broadcast %19 : vector<1x16xf32> to vector<512x16xf32>
    %21 = arith.mulf %8, %20 : vector<512x16xf32>
    %22 = vector.extract_strided_slice %14 {offsets = [1, 0], sizes = [1, 16], strides = [1, 1]} : vector<2x16xf32> to vector<1x16xf32>
    %23 = vector.broadcast %22 : vector<1x16xf32> to vector<512x16xf32>
    %24 = arith.addf %21, %23 : vector<512x16xf32>
    %cst_10 = arith.constant 0.000000e+00 : f32
    %25 = vector.broadcast %cst_10 : f32 to vector<512x16xf32>
    %26 = arith.maximumf %24, %25 : vector<512x16xf32>
    %27 = arith.truncf %26 : vector<512x16xf32> to vector<512x16xbf16>
    %c0_11 = arith.constant 0 : index
    %c0_12 = arith.constant 0 : index
    %28 = vector.load %arg4[%c0_11, %c0_12] : memref<512x16xbf16, #tpu.memory_space<vmem>>, vector<512x16xbf16>
    tpu.vector_store %arg4[%c0_11, %c0_12], %27 {strides = array<i32>} : memref<512x16xbf16, #tpu.memory_space<vmem>>, vector<512x16xbf16>,
    return
  }
  func.func @transform_0(%arg0: i32) -> (i32, i32) {
    %c0_i32 = arith.constant 0 : i32
    %c0_i32_0 = arith.constant 0 : i32
    %c0_i32_1 = arith.constant 0 : i32
    return %c0_i32, %c0_i32_0 : i32, i32
  }
  func.func @transform_1(%arg0: i32) -> (i32, i32) {
    %c0_i32 = arith.constant 0 : i32
    %c0_i32_0 = arith.constant 0 : i32
    %c0_i32_1 = arith.constant 0 : i32
    return %c0_i32, %c0_i32_0 : i32, i32
  }
  func.func @transform_2(%arg0: i32) -> (i32, i32) {
    %c0_i32 = arith.constant 0 : i32
    %c0_i32_0 = arith.constant 0 : i32
    %c0_i32_1 = arith.constant 0 : i32
    return %c0_i32, %c0_i32_0 : i32, i32
  }
  func.func @transform_3(%arg0: i32) -> (i32, i32) {
    %c0_i32 = arith.constant 0 : i32
    %c0_i32_0 = arith.constant 0 : i32
    %c0_i32_1 = arith.constant 0 : i32
    return %c0_i32, %c0_i32_0 : i32, i32
  }
}

module attributes {stable_mosaic.version = 11 : i64} {
  func.func @kernel(%arg0: i32, %arg1: memref<882x576xbf16, #tpu.memory_space<vmem>>, %arg2: memref<576x8xbf16, #tpu.memory_space<vmem>>, %arg3: memref<2x8xf32, #tpu.memory_space<vmem>>, %arg4: memref<882x8xbf16, #tpu.memory_space<vmem>>) attributes {dimension_semantics = [#tpu.dimension_semantics<arbitrary>], iteration_bounds = array<i64: 1>, scalar_prefetch = 0 : i64, scratch_operands = 0 : i64, tpu.core_type = #tpu.core_type<tc>, window_params = [{pipeline_mode = #tpu.pipeline_mode<synchronous>, transform_indices = @transform_0, window_bounds = array<i64: 882, 576>}, {pipeline_mode = #tpu.pipeline_mode<synchronous>, transform_indices = @transform_1, window_bounds = array<i64: 576, 8>}, {pipeline_mode = #tpu.pipeline_mode<synchronous>, transform_indices = @transform_2, window_bounds = array<i64: 2, 8>}, {pipeline_mode = #tpu.pipeline_mode<synchronous>, transform_indices = @transform_3, window_bounds = array<i64: 882, 8>}]} {
    %c0 = arith.constant 0 : index
    %c0_0 = arith.constant 0 : index
    %0 = vector.load %arg1[%c0, %c0_0] : memref<882x576xbf16, #tpu.memory_space<vmem>>, vector<882x576xbf16>
    %c0_1 = arith.constant 0 : index
    %c0_2 = arith.constant 0 : index
    %1 = vector.load %arg2[%c0_1, %c0_2] : memref<576x8xbf16, #tpu.memory_space<vmem>>, vector<576x8xbf16>
    %cst = arith.constant dense<0.000000e+00> : vector<882x8xf32>
    %2 = tpu.matmul %0, %1, %cst {dimension_numbers = #tpu.dot_dimension_numbers<[1], [0], [0], [1], [0, 0, 1, 1], [], []>} : vector<882x576xbf16>, vector<576x8xbf16>, vector<882x8xf32> -> vector<882x8xf32>
    %cst_3 = arith.constant dense<0.000000e+00> : vector<8xf32>
    %3 = vector.multi_reduction <add>, %2, %cst_3 [0] : vector<882x8xf32> to vector<8xf32>
    %4 = vector.shape_cast %3 : vector<8xf32> to vector<1x8xf32>
    %cst_4 = arith.constant 0.00113378686 : f32
    %5 = vector.broadcast %cst_4 : f32 to vector<1x8xf32>
    %6 = arith.mulf %4, %5 : vector<1x8xf32>
    %7 = vector.broadcast %6 : vector<1x8xf32> to vector<882x8xf32>
    %8 = arith.subf %2, %7 : vector<882x8xf32>
    %9 = arith.mulf %8, %8 : vector<882x8xf32>
    %cst_5 = arith.constant dense<0.000000e+00> : vector<8xf32>
    %10 = vector.multi_reduction <add>, %9, %cst_5 [0] : vector<882x8xf32> to vector<8xf32>
    %11 = vector.shape_cast %10 : vector<8xf32> to vector<1x8xf32>
    %cst_6 = arith.constant 0.00113378686 : f32
    %12 = vector.broadcast %cst_6 : f32 to vector<1x8xf32>
    %13 = arith.mulf %11, %12 : vector<1x8xf32>
    %c0_7 = arith.constant 0 : index
    %c0_8 = arith.constant 0 : index
    %14 = vector.load %arg3[%c0_7, %c0_8] : memref<2x8xf32, #tpu.memory_space<vmem>>, vector<2x8xf32>
    %15 = vector.extract_strided_slice %14 {offsets = [0, 0], sizes = [1, 8], strides = [1, 1]} : vector<2x8xf32> to vector<1x8xf32>
    %cst_9 = arith.constant 9.99999974E-6 : f32
    %16 = vector.broadcast %cst_9 : f32 to vector<1x8xf32>
    %17 = arith.addf %13, %16 : vector<1x8xf32>
    %18 = math.rsqrt %17 : vector<1x8xf32>
    %19 = arith.mulf %15, %18 : vector<1x8xf32>
    %20 = vector.broadcast %19 : vector<1x8xf32> to vector<882x8xf32>
    %21 = arith.mulf %8, %20 : vector<882x8xf32>
    %22 = vector.extract_strided_slice %14 {offsets = [1, 0], sizes = [1, 8], strides = [1, 1]} : vector<2x8xf32> to vector<1x8xf32>
    %23 = vector.broadcast %22 : vector<1x8xf32> to vector<882x8xf32>
    %24 = arith.addf %21, %23 : vector<882x8xf32>
    %cst_10 = arith.constant 0.000000e+00 : f32
    %25 = vector.broadcast %cst_10 : f32 to vector<882x8xf32>
    %26 = arith.maximumf %24, %25 : vector<882x8xf32>
    %27 = arith.truncf %26 : vector<882x8xf32> to vector<882x8xbf16>
    %c0_11 = arith.constant 0 : index
    %c0_12 = arith.constant 0 : index
    %28 = vector.load %arg4[%c0_11, %c0_12] : memref<882x8xbf16, #tpu.memory_space<vmem>>, vector<882x8xbf16>
    tpu.vector_store %arg4[%c0_11, %c0_12], %27 {strides = array<i32>} : memref<882x8xbf16, #tpu.memory_space<vmem>>, vector<882x8xbf16>,
    return
  }
  func.func @transform_0(%arg0: i32) -> (i32, i32) {
    %c0_i32 = arith.constant 0 : i32
    %c0_i32_0 = arith.constant 0 : i32
    %c0_i32_1 = arith.constant 0 : i32
    return %c0_i32, %c0_i32_0 : i32, i32
  }
  func.func @transform_1(%arg0: i32) -> (i32, i32) {
    %c0_i32 = arith.constant 0 : i32
    %c0_i32_0 = arith.constant 0 : i32
    %c0_i32_1 = arith.constant 0 : i32
    return %c0_i32, %c0_i32_0 : i32, i32
  }
  func.func @transform_2(%arg0: i32) -> (i32, i32) {
    %c0_i32 = arith.constant 0 : i32
    %c0_i32_0 = arith.constant 0 : i32
    %c0_i32_1 = arith.constant 0 : i32
    return %c0_i32, %c0_i32_0 : i32, i32
  }
  func.func @transform_3(%arg0: i32) -> (i32, i32) {
    %c0_i32 = arith.constant 0 : i32
    %c0_i32_0 = arith.constant 0 : i32
    %c0_i32_1 = arith.constant 0 : i32
    return %c0_i32, %c0_i32_0 : i32, i32
  }
}

module attributes {stable_mosaic.version = 11 : i64} {
  func.func @kernel(%arg0: i32, %arg1: memref<1260x80xbf16, #tpu.memory_space<vmem>>, %arg2: memref<80x4xbf16, #tpu.memory_space<vmem>>, %arg3: memref<2x4xf32, #tpu.memory_space<vmem>>, %arg4: memref<1260x4xf32, #tpu.memory_space<vmem>>) attributes {dimension_semantics = [#tpu.dimension_semantics<arbitrary>], iteration_bounds = array<i64: 1>, scalar_prefetch = 0 : i64, scratch_operands = 0 : i64, tpu.core_type = #tpu.core_type<tc>, window_params = [{pipeline_mode = #tpu.pipeline_mode<synchronous>, transform_indices = @transform_0, window_bounds = array<i64: 1260, 80>}, {pipeline_mode = #tpu.pipeline_mode<synchronous>, transform_indices = @transform_1, window_bounds = array<i64: 80, 4>}, {pipeline_mode = #tpu.pipeline_mode<synchronous>, transform_indices = @transform_2, window_bounds = array<i64: 2, 4>}, {pipeline_mode = #tpu.pipeline_mode<synchronous>, transform_indices = @transform_3, window_bounds = array<i64: 1260, 4>}]} {
    %c0 = arith.constant 0 : index
    %c0_0 = arith.constant 0 : index
    %0 = vector.load %arg1[%c0, %c0_0] : memref<1260x80xbf16, #tpu.memory_space<vmem>>, vector<1260x80xbf16>
    %c0_1 = arith.constant 0 : index
    %c0_2 = arith.constant 0 : index
    %1 = vector.load %arg2[%c0_1, %c0_2] : memref<80x4xbf16, #tpu.memory_space<vmem>>, vector<80x4xbf16>
    %cst = arith.constant dense<0.000000e+00> : vector<1260x4xf32>
    %2 = tpu.matmul %0, %1, %cst {dimension_numbers = #tpu.dot_dimension_numbers<[1], [0], [0], [1], [0, 0, 1, 1], [], []>} : vector<1260x80xbf16>, vector<80x4xbf16>, vector<1260x4xf32> -> vector<1260x4xf32>
    %cst_3 = arith.constant dense<0.000000e+00> : vector<4xf32>
    %3 = vector.multi_reduction <add>, %2, %cst_3 [0] : vector<1260x4xf32> to vector<4xf32>
    %4 = vector.shape_cast %3 : vector<4xf32> to vector<1x4xf32>
    %cst_4 = arith.constant 7.93650805E-4 : f32
    %5 = vector.broadcast %cst_4 : f32 to vector<1x4xf32>
    %6 = arith.mulf %4, %5 : vector<1x4xf32>
    %7 = vector.broadcast %6 : vector<1x4xf32> to vector<1260x4xf32>
    %8 = arith.subf %2, %7 : vector<1260x4xf32>
    %9 = arith.mulf %8, %8 : vector<1260x4xf32>
    %cst_5 = arith.constant dense<0.000000e+00> : vector<4xf32>
    %10 = vector.multi_reduction <add>, %9, %cst_5 [0] : vector<1260x4xf32> to vector<4xf32>
    %11 = vector.shape_cast %10 : vector<4xf32> to vector<1x4xf32>
    %cst_6 = arith.constant 7.93650805E-4 : f32
    %12 = vector.broadcast %cst_6 : f32 to vector<1x4xf32>
    %13 = arith.mulf %11, %12 : vector<1x4xf32>
    %c0_7 = arith.constant 0 : index
    %c0_8 = arith.constant 0 : index
    %14 = vector.load %arg3[%c0_7, %c0_8] : memref<2x4xf32, #tpu.memory_space<vmem>>, vector<2x4xf32>
    %15 = vector.extract_strided_slice %14 {offsets = [0, 0], sizes = [1, 4], strides = [1, 1]} : vector<2x4xf32> to vector<1x4xf32>
    %cst_9 = arith.constant 9.99999974E-6 : f32
    %16 = vector.broadcast %cst_9 : f32 to vector<1x4xf32>
    %17 = arith.addf %13, %16 : vector<1x4xf32>
    %18 = math.rsqrt %17 : vector<1x4xf32>
    %19 = arith.mulf %15, %18 : vector<1x4xf32>
    %20 = vector.broadcast %19 : vector<1x4xf32> to vector<1260x4xf32>
    %21 = arith.mulf %8, %20 : vector<1260x4xf32>
    %22 = vector.extract_strided_slice %14 {offsets = [1, 0], sizes = [1, 4], strides = [1, 1]} : vector<2x4xf32> to vector<1x4xf32>
    %23 = vector.broadcast %22 : vector<1x4xf32> to vector<1260x4xf32>
    %24 = arith.addf %21, %23 : vector<1260x4xf32>
    %cst_10 = arith.constant 0.000000e+00 : f32
    %25 = vector.broadcast %cst_10 : f32 to vector<1260x4xf32>
    %26 = arith.maximumf %24, %25 : vector<1260x4xf32>
    %27 = math.tanh %26 : vector<1260x4xf32>
    %c0_11 = arith.constant 0 : index
    %c0_12 = arith.constant 0 : index
    %28 = vector.load %arg4[%c0_11, %c0_12] : memref<1260x4xf32, #tpu.memory_space<vmem>>, vector<1260x4xf32>
    tpu.vector_store %arg4[%c0_11, %c0_12], %27 {strides = array<i32>} : memref<1260x4xf32, #tpu.memory_space<vmem>>, vector<1260x4xf32>,
    return
  }
  func.func @transform_0(%arg0: i32) -> (i32, i32) {
    %c0_i32 = arith.constant 0 : i32
    %c0_i32_0 = arith.constant 0 : i32
    %c0_i32_1 = arith.constant 0 : i32
    return %c0_i32, %c0_i32_0 : i32, i32
  }
  func.func @transform_1(%arg0: i32) -> (i32, i32) {
    %c0_i32 = arith.constant 0 : i32
    %c0_i32_0 = arith.constant 0 : i32
    %c0_i32_1 = arith.constant 0 : i32
    return %c0_i32, %c0_i32_0 : i32, i32
  }
  func.func @transform_2(%arg0: i32) -> (i32, i32) {
    %c0_i32 = arith.constant 0 : i32
    %c0_i32_0 = arith.constant 0 : i32
    %c0_i32_1 = arith.constant 0 : i32
    return %c0_i32, %c0_i32_0 : i32, i32
  }
  func.func @transform_3(%arg0: i32) -> (i32, i32) {
    %c0_i32 = arith.constant 0 : i32
    %c0_i32_0 = arith.constant 0 : i32
    %c0_i32_1 = arith.constant 0 : i32
    return %c0_i32, %c0_i32_0 : i32, i32
  }
}

</mosaic_0001>

<llo_original>
// kernel: _lambda_.5
$region0: #{_lambda_.5}
  #allocation0 [shape = 'u32[]', space=smem, size = 0x4, offset = 0x4, fixed_abs, tag = 'smem constant byte address 0x4 - core index']
  #allocation1 [shape = 'u32[144,128]{1,0:T(1,128)}', space=vmem, size = 0x12000, scoped, tag = 'internal scratch']
  %s0 = inlined_call_operand.vmem [shape: bf16[32,448], index: 0, kind: input, shape index: {}]
  %s1 = inlined_call_operand.hbm [shape: bf16[448,64], index: 1, kind: input, shape index: {}]
  %s2 = inlined_call_operand.hbm [shape: f32[2,64], index: 2, kind: input, shape index: {}]
  %s3 = inlined_call_operand.vmem [shape: bf16[32,64], index: 3, kind: output, shape index: {}]
  %s4 = sld [smem:[#allocation0]]
  $region30: #{_lambda_.5} parent=0
    _
  %s6 = ssub.s32 1, %s4
  %s7 = scalar_select 0, %s6, %s4
  $region1: #{_lambda_.5} parent=0
    #allocation2 [shape = 'u8[114688]{0}', space=vmem, size = 0x1c000, scoped, tag = 'input window, operand 1, single buffered']
    #allocation3 [shape = 's32[1]{0}', space=sflag, size = 0x4, scoped, tag = 'scoped memory for _lambda_.5']
    #allocation4 [shape = 'u8[1024]{0}', space=vmem, size = 0x400, scoped, tag = 'input window, operand 2, single buffered']
    #allocation5 [shape = 's32[1]{0}', space=sflag, size = 0x4, scoped, tag = 'scoped memory for _lambda_.5']
    %8 = vsyncpa [#allocation3], 0
    %9 = vsyncpa [#allocation5], 0
    // Predicated region
    $region2: #{_lambda_.5} parent=1 // pred_check
      _
    $region3: #{_lambda_.5} parent=1 // pred_check_branch
      %11 = sbr.rel (0) target = $region5
    $region4: #{_lambda_.5} parent=1 // pred_region
      _
    $region5: #{_lambda_.5} parent=1 // pred_fallthru
      _
    // Predicated region
    $region6: #{_lambda_.5} parent=1 // pred_check
      _
    $region7: #{_lambda_.5} parent=1 // pred_check_branch
      %13 = sbr.rel (0) target = $region9
    $region8: #{_lambda_.5} parent=1 // pred_region
      %s15 = ssub.s32 3584, 3584
      %16 = vsyncadd [#allocation3], %s15
      %s17 = sshll.u32 [#allocation2], 4
      %s18 = int_to_ptr.vmem [resolvable:$true] %s17
      %23 = dma.hbm_to_vmem [thread:$0]  %s1, 3584, %s18, [#allocation3], 64, 64, 4
    $region9: #{_lambda_.5} parent=1 // pred_fallthru
      _
    // Predicated region
    $region10: #{_lambda_.5} parent=1 // pred_check
      _
    $region11: #{_lambda_.5} parent=1 // pred_check_branch
      %25 = sbr.rel (0) target = $region13
    $region12: #{_lambda_.5} parent=1 // pred_region
      %s27 = ssub.s32 32, 32
      %28 = vsyncadd [#allocation5], %s27
      %s30 = sshll.u32 [#allocation4], 4
      %s31 = int_to_ptr.vmem [resolvable:$true] %s30
      %33 = dma.hbm_to_vmem [thread:$0]  %s2, 32, %s31, [#allocation5]
    $region13: #{_lambda_.5} parent=1 // pred_fallthru
      _
    // Predicated region
    $region14: #{_lambda_.5} parent=1 // pred_check
      _
    $region15: #{_lambda_.5} parent=1 // pred_check_branch
      %35 = sbr.rel (0) target = $region17
    $region16: #{_lambda_.5} parent=1 // pred_region
      %36 = dma.done [#allocation3], 3584
    $region17: #{_lambda_.5} parent=1 // pred_fallthru
      _
    // Predicated region
    $region18: #{_lambda_.5} parent=1 // pred_check
      _
    $region19: #{_lambda_.5} parent=1 // pred_check_branch
      %38 = sbr.rel (0) target = $region21
    $region20: #{_lambda_.5} parent=1 // pred_region
      %39 = dma.done [#allocation5], 32
    $region21: #{_lambda_.5} parent=1 // pred_fallthru
      _
    %v41 = vld [vmem:[%s0] sm:$0xff]
    %v42 = vld [vmem:[%s0 + $0x8] sm:$0xff]
    %v43 = vld [vmem:[%s0 + $0x10] sm:$0xff]
    %v44 = vld [vmem:[%s0 + $0x18] sm:$0xff]
    %v45 = vld [vmem:[%s0 + $0x20] sm:$0xff]
    %v46 = vld [vmem:[%s0 + $0x28] sm:$0xff]
    %v47 = vld [vmem:[%s0 + $0x30] sm:$0xff]
    %v48 = vld [vmem:[%s0 + $0x38] sm:$0xff]
    %v49 = vld [vmem:[#allocation2] sm:$0xf]
    %v50 = vld [vmem:[#allocation2 + $0x4] sm:$0xf]
    %v51 = vld [vmem:[#allocation2 + $0x8] sm:$0xf]
    %v52 = vld [vmem:[#allocation2 + $0xc] sm:$0xf]
    %v53 = vld [vmem:[#allocation2 + $0x10] sm:$0xf]
    %v54 = vld [vmem:[#allocation2 + $0x14] sm:$0xf]
    %v55 = vld [vmem:[#allocation2 + $0x18] sm:$0xf]
    %v56 = vld [vmem:[#allocation2 + $0x1c] sm:$0xf]
    %v57 = vld [vmem:[#allocation2 + $0x20] sm:$0xf]
    %v58 = vld [vmem:[#allocation2 + $0x24] sm:$0xf]
    %v59 = vld [vmem:[#allocation2 + $0x28] sm:$0xf]
    %v60 = vld [vmem:[#allocation2 + $0x2c] sm:$0xf]
    %v61 = vld [vmem:[#allocation2 + $0x30] sm:$0xf]
    %v62 = vld [vmem:[#allocation2 + $0x34] sm:$0xf]
    %v63 = vld [vmem:[#allocation2 + $0x38] sm:$0xf]
    %v64 = vld [vmem:[#allocation2 + $0x3c] sm:$0xf]
    %v65 = vld [vmem:[#allocation2 + $0x40] sm:$0xf]
    %v66 = vld [vmem:[#allocation2 + $0x44] sm:$0xf]
    %v67 = vld [vmem:[#allocation2 + $0x48] sm:$0xf]
    %v68 = vld [vmem:[#allocation2 + $0x4c] sm:$0xf]
    %v69 = vld [vmem:[#allocation2 + $0x50] sm:$0xf]
    %v70 = vld [vmem:[#allocation2 + $0x54] sm:$0xf]
    %v71 = vld [vmem:[#allocation2 + $0x58] sm:$0xf]
    %v72 = vld [vmem:[#allocation2 + $0x5c] sm:$0xf]
    %v73 = vld [vmem:[#allocation2 + $0x60] sm:$0xf]
    %v74 = vld [vmem:[#allocation2 + $0x64] sm:$0xf]
    %v75 = vld [vmem:[#allocation2 + $0x68] sm:$0xf]
    %v76 = vld [vmem:[#allocation2 + $0x6c] sm:$0xf]
    %v77 = vld [vmem:[#allocation2 + $0x70] sm:$0xf]
    %v78 = vld [vmem:[#allocation2 + $0x74] sm:$0xf]
    %v79 = vld [vmem:[#allocation2 + $0x78] sm:$0xf]
    %v80 = vld [vmem:[#allocation2 + $0x7c] sm:$0xf]
    %v81 = vld [vmem:[#allocation2 + $0x80] sm:$0xf]
    %v82 = vld [vmem:[#allocation2 + $0x84] sm:$0xf]
    %v83 = vld [vmem:[#allocation2 + $0x88] sm:$0xf]
    %v84 = vld [vmem:[#allocation2 + $0x8c] sm:$0xf]
    %v85 = vld [vmem:[#allocation2 + $0x90] sm:$0xf]
    %v86 = vld [vmem:[#allocation2 + $0x94] sm:$0xf]
    %v87 = vld [vmem:[#allocation2 + $0x98] sm:$0xf]
    %v88 = vld [vmem:[#allocation2 + $0x9c] sm:$0xf]
    %v89 = vld [vmem:[#allocation2 + $0xa0] sm:$0xf]
    %v90 = vld [vmem:[#allocation2 + $0xa4] sm:$0xf]
    %v91 = vld [vmem:[#allocation2 + $0xa8] sm:$0xf]
    %v92 = vld [vmem:[#allocation2 + $0xac] sm:$0xf]
    %v93 = vld [vmem:[#allocation2 + $0xb0] sm:$0xf]
    %v94 = vld [vmem:[#allocation2 + $0xb4] sm:$0xf]
    %v95 = vld [vmem:[#allocation2 + $0xb8] sm:$0xf]
    %v96 = vld [vmem:[#allocation2 + $0xbc] sm:$0xf]
    %v97 = vld [vmem:[#allocation2 + $0xc0] sm:$0xf]
    %v98 = vld [vmem:[#allocation2 + $0xc4] sm:$0xf]
    %v99 = vld [vmem:[#allocation2 + $0xc8] sm:$0xf]
    %v100 = vld [vmem:[#allocation2 + $0xcc] sm:$0xf]
    %v101 = vld [vmem:[#allocation2 + $0xd0] sm:$0xf]
    %v102 = vld [vmem:[#allocation2 + $0xd4] sm:$0xf]
    %v103 = vld [vmem:[#allocation2 + $0xd8] sm:$0xf]
    %v104 = vld [vmem:[#allocation2 + $0xdc] sm:$0xf]
    %v113 = vunpack.c.l.b16 %v41
    %v114 = vunpack.c.h.b16 %v41
    %v115 = vunpack.c.l.b16 %v42
    %v116 = vunpack.c.h.b16 %v42
    %v117 = vunpack.c.l.b16 %v43
    %v118 = vunpack.c.h.b16 %v43
    %v119 = vunpack.c.l.b16 %v44
    %v120 = vunpack.c.h.b16 %v44
    %v121 = vunpack.c.l.b16 %v45
    %v122 = vunpack.c.h.b16 %v45
    %v123 = vunpack.c.l.b16 %v46
    %v124 = vunpack.c.h.b16 %v46
    %v125 = vunpack.c.l.b16 %v47
    %v126 = vunpack.c.h.b16 %v47
    %v127 = vunpack.c.l.b16 %v48
    %v128 = vunpack.c.h.b16 %v48
    %v129 = vpack.c.b16 %v117, %v113
    %v130 = vpack.c.b16 %v118, %v114
    %v131 = vpack.c.b16 %v119, %v115
    %v132 = vpack.c.b16 %v120, %v116
    %v133 = vpack.c.b16 %v125, %v121
    %v134 = vpack.c.b16 %v126, %v122
    %v135 = vpack.c.b16 %v127, %v123
    %v136 = vpack.c.b16 %v128, %v124
    %v199 = vunpack.c.l.b16 %v49
    %v200 = vunpack.c.l.b16 %v50
    %v201 = vunpack.c.l.b16 %v51
    %v202 = vunpack.c.l.b16 %v52
    %v203 = vunpack.c.l.b16 %v53
    %v204 = vunpack.c.l.b16 %v54
    %v205 = vunpack.c.l.b16 %v55
    %v206 = vunpack.c.l.b16 %v56
    %v207 = vunpack.c.l.b16 %v57
    %v208 = vunpack.c.l.b16 %v58
    %v209 = vunpack.c.l.b16 %v59
    %v210 = vunpack.c.l.b16 %v60
    %v211 = vunpack.c.l.b16 %v61
    %v212 = vunpack.c.l.b16 %v62
    %v213 = vunpack.c.l.b16 %v63
    %v214 = vunpack.c.l.b16 %v64
    %v215 = vunpack.c.l.b16 %v65
    %v216 = vunpack.c.l.b16 %v66
    %v217 = vunpack.c.l.b16 %v67
    %v218 = vunpack.c.l.b16 %v68
    %v219 = vunpack.c.l.b16 %v69
    %v220 = vunpack.c.l.b16 %v70
    %v221 = vunpack.c.l.b16 %v71
    %v222 = vunpack.c.l.b16 %v72
    %v223 = vunpack.c.l.b16 %v73
    %v224 = vunpack.c.l.b16 %v74
    %v225 = vunpack.c.l.b16 %v75
    %v226 = vunpack.c.l.b16 %v76
    %v227 = vunpack.c.l.b16 %v77
    %v228 = vunpack.c.l.b16 %v78
    %v229 = vunpack.c.l.b16 %v79
    %v230 = vunpack.c.l.b16 %v80
    %v231 = vunpack.c.l.b16 %v81
    %v232 = vunpack.c.l.b16 %v82
    %v233 = vunpack.c.l.b16 %v83
    %v234 = vunpack.c.l.b16 %v84
    %v235 = vunpack.c.l.b16 %v85
    %v236 = vunpack.c.l.b16 %v86
    %v237 = vunpack.c.l.b16 %v87
    %v238 = vunpack.c.l.b16 %v88
    %v239 = vunpack.c.l.b16 %v89
    %v240 = vunpack.c.l.b16 %v90
    %v241 = vunpack.c.l.b16 %v91
    %v242 = vunpack.c.l.b16 %v92
    %v243 = vunpack.c.l.b16 %v93
    %v244 = vunpack.c.l.b16 %v94
    %v245 = vunpack.c.l.b16 %v95
    %v246 = vunpack.c.l.b16 %v96
    %v247 = vunpack.c.l.b16 %v97
    %v248 = vunpack.c.l.b16 %v98
    %v249 = vunpack.c.l.b16 %v99
    %v250 = vunpack.c.l.b16 %v100
    %v251 = vunpack.c.l.b16 %v101
    %v252 = vunpack.c.l.b16 %v102
    %v253 = vunpack.c.l.b16 %v103
    %v254 = vunpack.c.l.b16 %v104
    %v255 = vpack.c.b16 %v200, %v199
    %v256 = vpack.c.b16 %v202, %v201
    %v257 = vpack.c.b16 %v204, %v203
    %v258 = vpack.c.b16 %v206, %v205
    %v259 = vpack.c.b16 %v208, %v207
    %v260 = vpack.c.b16 %v210, %v209
    %v261 = vpack.c.b16 %v212, %v211
    %v262 = vpack.c.b16 %v214, %v213
    %v263 = vpack.c.b16 %v216, %v215
    %v264 = vpack.c.b16 %v218, %v217
    %v265 = vpack.c.b16 %v220, %v219
    %v266 = vpack.c.b16 %v222, %v221
    %v267 = vpack.c.b16 %v224, %v223
    %v268 = vpack.c.b16 %v226, %v225
    %v269 = vpack.c.b16 %v228, %v227
    %v270 = vpack.c.b16 %v230, %v229
    %v271 = vpack.c.b16 %v232, %v231
    %v272 = vpack.c.b16 %v234, %v233
    %v273 = vpack.c.b16 %v236, %v235
    %v274 = vpack.c.b16 %v238, %v237
    %v275 = vpack.c.b16 %v240, %v239
    %v276 = vpack.c.b16 %v242, %v241
    %v277 = vpack.c.b16 %v244, %v243
    %v278 = vpack.c.b16 %v246, %v245
    %v279 = vpack.c.b16 %v248, %v247
    %v280 = vpack.c.b16 %v250, %v249
    %v281 = vpack.c.b16 %v252, %v251
    %v282 = vpack.c.b16 %v254, %v253
    %vm311 = vcmask 523264
    %v313 = vsel %vm311, %v132, 0
    %v316 = vsel %vm311, %v136, 0
    %318 = vmatprep.subr.bf16.mxu0 0
    %319 = vmatpush1.bf16.msra.mxu0 %v255
    %320 = vmatprep.subr.bf16.mxu0 0
    %321 = vmatpush1.bf16.msra.mxu0 %v256
    %322 = vmatprep.subr.bf16.mxu0 0
    %323 = vmatpush1.bf16.msra.mxu0 %v257
    %324 = vmatprep.subr.bf16.mxu0 0
    %325 = vmatpush1.bf16.msra.mxu0 %v258
    %326 = vmatprep.subr.bf16.mxu0 0
    %327 = vmatpush1.bf16.msra.mxu0 %v259
    %328 = vmatprep.subr.bf16.mxu0 0
    %329 = vmatpush1.bf16.msra.mxu0 %v260
    %330 = vmatprep.subr.bf16.mxu0 0
    %331 = vmatpush1.bf16.msra.mxu0 %v261
    %332 = vmatprep.subr.bf16.mxu0 0
    %333 = vmatpush1.bf16.msra.mxu0 %v262
    %334 = vmatprep.subr.bf16.mxu0 0
    %335 = vmatpush1.bf16.msra.mxu0 %v263
    %336 = vmatprep.subr.bf16.mxu0 0
    %337 = vmatpush1.bf16.msra.mxu0 %v264
    %338 = vmatprep.subr.bf16.mxu0 0
    %339 = vmatpush1.bf16.msra.mxu0 %v265
    %340 = vmatprep.subr.bf16.mxu0 0
    %341 = vmatpush1.bf16.msra.mxu0 %v266
    %342 = vmatprep.subr.bf16.mxu0 0
    %343 = vmatpush1.bf16.msra.mxu0 %v267
    %344 = vmatprep.subr.bf16.mxu0 0
    %345 = vmatpush1.bf16.msra.mxu0 %v268
    %346 = vmatprep.subr.bf16.mxu0 0
    %347 = vmatpush1.bf16.msra.mxu0 %v269
    %348 = vmatprep.subr.bf16.mxu0 0
    %349 = vmatpush1.bf16.msra.mxu0 %v270
    %350 = vmatprep.mubr.bf16.mxu0 %v130
    %351 = vmatmul.mubr.bf16.gmra.mrb[0].mxu0 %v129
    %v352 = vpop.f32.mrb[0].mxu0
    %v353 = vadd.f32 0.0, %v352
    %v354 = vpop.f32.mrb[0].mxu0
    %v355 = vpop.f32.mrb[0].mxu0
    %v356 = vadd.f32 0.0, %v355
    %v357 = vpop.f32.mrb[0].mxu0
    %358 = vmatprep.mubr.bf16.mxu0 %v134
    %359 = vmatmul.mubr.bf16.gmra.mrb[0].mxu0 %v133
    %v360 = vpop.f32.mrb[0].mxu0
    %v361 = vadd.f32 0.0, %v360
    %v362 = vpop.f32.mrb[0].mxu0
    %v363 = vpop.f32.mrb[0].mxu0
    %v364 = vadd.f32 0.0, %v363
    %v365 = vpop.f32.mrb[0].mxu0
    %366 = vdwg.mxu0
    %367 = vmatprep.subr.bf16.mxu0 0
    %368 = vmatpush1.bf16.msra.mxu0 %v271
    %369 = vmatprep.subr.bf16.mxu0 0
    %370 = vmatpush1.bf16.msra.mxu0 %v272
    %371 = vmatprep.subr.bf16.mxu0 0
    %372 = vmatpush1.bf16.msra.mxu0 %v273
    %373 = vmatprep.subr.bf16.mxu0 0
    %374 = vmatpush1.bf16.msra.mxu0 %v274
    %375 = vmatprep.subr.bf16.mxu0 0
    %376 = vmatpush1.bf16.msra.mxu0 %v275
    %377 = vmatprep.subr.bf16.mxu0 0
    %378 = vmatpush1.bf16.msra.mxu0 %v276
    %379 = vmatprep.subr.bf16.mxu0 0
    %380 = vmatpush1.bf16.msra.mxu0 %v277
    %381 = vmatprep.subr.bf16.mxu0 0
    %382 = vmatpush1.bf16.msra.mxu0 %v278
    %383 = vmatprep.subr.bf16.mxu0 0
    %384 = vmatpush1.bf16.msra.mxu0 %v279
    %385 = vmatprep.subr.bf16.mxu0 0
    %386 = vmatpush1.bf16.msra.mxu0 %v280
    %387 = vmatprep.subr.bf16.mxu0 0
    %388 = vmatpush1.bf16.msra.mxu0 %v281
    %389 = vmatprep.subr.bf16.mxu0 0
    %390 = vmatpush1.bf16.msra.mxu0 %v282
    %391 = vmatprep.subr.bf16.mxu0 0
    %392 = vmatpush1.bf16.msra.mxu0 0
    %393 = vmatprep.subr.bf16.mxu0 0
    %394 = vmatpush1.bf16.msra.mxu0 0
    %395 = vmatprep.subr.bf16.mxu0 0
    %396 = vmatpush1.bf16.msra.mxu0 0
    %397 = vmatprep.subr.bf16.mxu0 0
    %398 = vmatpush1.bf16.msra.mxu0 0
    %399 = vmatprep.mubr.bf16.mxu0 %v313
    %400 = vmatmul.mubr.bf16.gmra.mrb[0].mxu0 %v131
    %v401 = vpop.f32.mrb[0].mxu0
    %v402 = vadd.f32 %v353, %v401
    %v403 = vpop.f32.mrb[0].mxu0
    %v404 = vpop.f32.mrb[0].mxu0
    %v405 = vadd.f32 %v356, %v404
    %v406 = vpop.f32.mrb[0].mxu0
    %407 = vmatprep.mubr.bf16.mxu0 %v316
    %408 = vmatmul.mubr.bf16.gmra.mrb[0].mxu0 %v135
    %v409 = vpop.f32.mrb[0].mxu0
    %v410 = vadd.f32 %v361, %v409
    %v411 = vpop.f32.mrb[0].mxu0
    %v412 = vpop.f32.mrb[0].mxu0
    %v413 = vadd.f32 %v364, %v412
    %v414 = vpop.f32.mrb[0].mxu0
    %415 = vdwg.mxu0
    %v416 = vsel %vm311, %v402, 0.0
    %v417 = vsel %vm311, %v405, 0.0
    %v418 = vadd.f32 %v416, %v417
    %v419 = vsel %vm311, %v410, 0.0
    %v420 = vadd.f32 %v418, %v419
    %v421 = vsel %vm311, %v413, 0.0
    %v422 = vadd.f32 %v420, %v421
    %v423 = vrot.slane %v422, 4
    %v424 = vadd.f32 %v422, %v423
    %v425 = vrot.slane %v424, 2
    %v426 = vadd.f32 %v424, %v425
    %v427 = vrot.slane %v426, 1
    %v428 = vadd.f32 %v426, %v427
    %v429 = vmul.f32 %v428, 0.03125
    %v430 = vsub.f32 %v402, %v429
    %v431 = vsub.f32 %v405, %v429
    %v432 = vsub.f32 %v410, %v429
    %v433 = vsub.f32 %v413, %v429
    %v434 = vmul.f32 %v430, %v430
    %v435 = vmul.f32 %v431, %v431
    %v436 = vmul.f32 %v432, %v432
    %v437 = vmul.f32 %v433, %v433
    %v438 = vsel %vm311, %v434, 0.0
    %v439 = vsel %vm311, %v435, 0.0
    %v440 = vadd.f32 %v438, %v439
    %v441 = vsel %vm311, %v436, 0.0
    %v442 = vadd.f32 %v440, %v441
    %v443 = vsel %vm311, %v437, 0.0
    %v444 = vadd.f32 %v442, %v443
    %v445 = vrot.slane %v444, 4
    %v446 = vadd.f32 %v444, %v445
    %v447 = vrot.slane %v446, 2
    %v448 = vadd.f32 %v446, %v447
    %v449 = vrot.slane %v448, 1
    %v450 = vadd.f32 %v448, %v449
    %v451 = vmul.f32 %v450, 0.03125
    %v452 = vld [vmem:[#allocation4] sm:$0x3]
    %v453 = vadd.f32 %v451, 1e-05
    %v454 = vrsqrt.pop %v453
    %v455 = vmul.f32 %v452, %v454
    %v456 = vlaneseq
    %v457 = vshrl.u32 %v456, 7
    %v458 = vsub.s32 0, %v457
    %v459 = vrot.slane %v455, %v458
    %v460 = vmul.f32 %v430, %v459
    %v461 = vmul.f32 %v431, %v459
    %v462 = vmul.f32 %v432, %v459
    %v463 = vmul.f32 %v433, %v459
    %v464 = vlaneseq
    %v465 = vshrl.u32 %v464, 7
    %v466 = vsub.s32 1, %v465
    %v467 = vrot.slane %v452, %v466
    %v468 = vadd.f32 %v460, %v467
    %v469 = vadd.f32 %v461, %v467
    %v470 = vadd.f32 %v462, %v467
    %v471 = vadd.f32 %v463, %v467
    %v472 = vmax.f32 %v468, 0.0
    %v473 = vmax.f32 %v469, 0.0
    %v474 = vmax.f32 %v470, 0.0
    %v475 = vmax.f32 %v471, 0.0
    %v476 = vpack.c.bf16 %v473, %v472
    %v477 = vpack.c.bf16 %v475, %v474
    %v480 = vunpack.c.l.b16 %v476
    %v481 = vunpack.c.h.b16 %v476
    %v482 = vunpack.c.l.b16 %v477
    %v483 = vunpack.c.h.b16 %v477
    %v484 = vpack.c.b16 %v480, %v480
    %v485 = vpack.c.b16 %v481, %v481
    %v486 = vpack.c.b16 %v482, %v482
    %v487 = vpack.c.b16 %v483, %v483
    %vm492 = vcmask 519168
    %493 = vst.msk [vmem:[%s3] sm:$0xf] %vm492, %v484
    %494 = vst.msk [vmem:[%s3 + $0x4] sm:$0xf] %vm492, %v485
    %495 = vst.msk [vmem:[%s3 + $0x8] sm:$0xf] %vm492, %v486
    %496 = vst.msk [vmem:[%s3 + $0xc] sm:$0xf] %vm492, %v487
    // Predicated region
    $region22: #{_lambda_.5} parent=1 // pred_check
      _
    $region23: #{_lambda_.5} parent=1 // pred_check_branch
      %498 = sbr.rel (0) target = $region25
    $region24: #{_lambda_.5} parent=1 // pred_region
      _
    $region25: #{_lambda_.5} parent=1 // pred_fallthru
      _
    // Predicated region
    $region26: #{_lambda_.5} parent=1 // pred_check
      _
    $region27: #{_lambda_.5} parent=1 // pred_check_branch
      %500 = sbr.rel (0) target = $region29
    $region28: #{_lambda_.5} parent=1 // pred_region
      _
    $region29: #{_lambda_.5} parent=1 // pred_fallthru
      _
    %501 = vsyncpa [#allocation3], 1
    %502 = vsyncpa [#allocation5], 1

// kernel: _lambda_.6
$region0: #{_lambda_.6}
  #allocation0 [shape = 'u32[]', space=smem, size = 0x4, offset = 0x4, fixed_abs, tag = 'smem constant byte address 0x4 - core index']
  #allocation1 [shape = 'u32[144,128]{1,0:T(1,128)}', space=vmem, size = 0x12000, scoped, tag = 'internal scratch']
  %s0 = inlined_call_operand.vmem [shape: bf16[128,1024], index: 0, kind: input, shape index: {}]
  %s1 = inlined_call_operand.vmem [shape: bf16[1024,32], index: 1, kind: input, shape index: {}]
  %s2 = inlined_call_operand.vmem [shape: f32[2,32], index: 2, kind: input, shape index: {}]
  %s3 = inlined_call_operand.vmem [shape: bf16[128,32], index: 3, kind: output, shape index: {}]
  %s4 = sld [smem:[#allocation0]]
  $region22: #{_lambda_.6} parent=0
    _
  %s6 = ssub.s32 1, %s4
  %s7 = scalar_select 0, %s6, %s4
  // Predicated region
  $region2: #{_lambda_.6} parent=0 // pred_check
    _
  $region3: #{_lambda_.6} parent=0 // pred_check_branch
    %9 = sbr.rel (0) target = $region5
  $region4: #{_lambda_.6} parent=0 // pred_region
    _
  $region5: #{_lambda_.6} parent=0 // pred_fallthru
    _
  // Predicated region
  $region6: #{_lambda_.6} parent=0 // pred_check
    _
  $region7: #{_lambda_.6} parent=0 // pred_check_branch
    %11 = sbr.rel (0) target = $region9
  $region8: #{_lambda_.6} parent=0 // pred_region
    _
  $region9: #{_lambda_.6} parent=0 // pred_fallthru
    _
  // Predicated region
  $region10: #{_lambda_.6} parent=0 // pred_check
    _
  $region11: #{_lambda_.6} parent=0 // pred_check_branch
    %13 = sbr.rel (0) target = $region13
  $region12: #{_lambda_.6} parent=0 // pred_region
    _
  $region13: #{_lambda_.6} parent=0 // pred_fallthru
    _
  %v15 = vld [vmem:[%s0] sm:$0xff]
  %v16 = vld [vmem:[%s0 + $0x8] sm:$0xff]
  %v17 = vld [vmem:[%s0 + $0x10] sm:$0xff]
  %v18 = vld [vmem:[%s0 + $0x18] sm:$0xff]
  %v19 = vld [vmem:[%s0 + $0x20] sm:$0xff]
  %v20 = vld [vmem:[%s0 + $0x28] sm:$0xff]
  %v21 = vld [vmem:[%s0 + $0x30] sm:$0xff]
  %v22 = vld [vmem:[%s0 + $0x38] sm:$0xff]
  %v23 = vld [vmem:[%s0 + $0x40] sm:$0xff]
  %v24 = vld [vmem:[%s0 + $0x48] sm:$0xff]
  %v25 = vld [vmem:[%s0 + $0x50] sm:$0xff]
  %v26 = vld [vmem:[%s0 + $0x58] sm:$0xff]
  %v27 = vld [vmem:[%s0 + $0x60] sm:$0xff]
  %v28 = vld [vmem:[%s0 + $0x68] sm:$0xff]
  %v29 = vld [vmem:[%s0 + $0x70] sm:$0xff]
  %v30 = vld [vmem:[%s0 + $0x78] sm:$0xff]
  %v31 = vld [vmem:[%s0 + $0x80] sm:$0xff]
  %v32 = vld [vmem:[%s0 + $0x88] sm:$0xff]
  %v33 = vld [vmem:[%s0 + $0x90] sm:$0xff]
  %v34 = vld [vmem:[%s0 + $0x98] sm:$0xff]
  %v35 = vld [vmem:[%s0 + $0xa0] sm:$0xff]
  %v36 = vld [vmem:[%s0 + $0xa8] sm:$0xff]
  %v37 = vld [vmem:[%s0 + $0xb0] sm:$0xff]
  %v38 = vld [vmem:[%s0 + $0xb8] sm:$0xff]
  %v39 = vld [vmem:[%s0 + $0xc0] sm:$0xff]
  %v40 = vld [vmem:[%s0 + $0xc8] sm:$0xff]
  %v41 = vld [vmem:[%s0 + $0xd0] sm:$0xff]
  %v42 = vld [vmem:[%s0 + $0xd8] sm:$0xff]
  %v43 = vld [vmem:[%s0 + $0xe0] sm:$0xff]
  %v44 = vld [vmem:[%s0 + $0xe8] sm:$0xff]
  %v45 = vld [vmem:[%s0 + $0xf0] sm:$0xff]
  %v46 = vld [vmem:[%s0 + $0xf8] sm:$0xff]
  %v47 = vld [vmem:[%s0 + $0x100] sm:$0xff]
  %v48 = vld [vmem:[%s0 + $0x108] sm:$0xff]
  %v49 = vld [vmem:[%s0 + $0x110] sm:$0xff]
  %v50 = vld [vmem:[%s0 + $0x118] sm:$0xff]
  %v51 = vld [vmem:[%s0 + $0x120] sm:$0xff]
  %v52 = vld [vmem:[%s0 + $0x128] sm:$0xff]
  %v53 = vld [vmem:[%s0 + $0x130] sm:$0xff]
  %v54 = vld [vmem:[%s0 + $0x138] sm:$0xff]
  %v55 = vld [vmem:[%s0 + $0x140] sm:$0xff]
  %v56 = vld [vmem:[%s0 + $0x148] sm:$0xff]
  %v57 = vld [vmem:[%s0 + $0x150] sm:$0xff]
  %v58 = vld [vmem:[%s0 + $0x158] sm:$0xff]
  %v59 = vld [vmem:[%s0 + $0x160] sm:$0xff]
  %v60 = vld [vmem:[%s0 + $0x168] sm:$0xff]
  %v61 = vld [vmem:[%s0 + $0x170] sm:$0xff]
  %v62 = vld [vmem:[%s0 + $0x178] sm:$0xff]
  %v63 = vld [vmem:[%s0 + $0x180] sm:$0xff]
  %v64 = vld [vmem:[%s0 + $0x188] sm:$0xff]
  %v65 = vld [vmem:[%s0 + $0x190] sm:$0xff]
  %v66 = vld [vmem:[%s0 + $0x198] sm:$0xff]
  %v67 = vld [vmem:[%s0 + $0x1a0] sm:$0xff]
  %v68 = vld [vmem:[%s0 + $0x1a8] sm:$0xff]
  %v69 = vld [vmem:[%s0 + $0x1b0] sm:$0xff]
  %v70 = vld [vmem:[%s0 + $0x1b8] sm:$0xff]
  %v71 = vld [vmem:[%s0 + $0x1c0] sm:$0xff]
  %v72 = vld [vmem:[%s0 + $0x1c8] sm:$0xff]
  %v73 = vld [vmem:[%s0 + $0x1d0] sm:$0xff]
  %v74 = vld [vmem:[%s0 + $0x1d8] sm:$0xff]
  %v75 = vld [vmem:[%s0 + $0x1e0] sm:$0xff]
  %v76 = vld [vmem:[%s0 + $0x1e8] sm:$0xff]
  %v77 = vld [vmem:[%s0 + $0x1f0] sm:$0xff]
  %v78 = vld [vmem:[%s0 + $0x1f8] sm:$0xff]
  %v79 = vld [vmem:[%s1] sm:$0xf]
  %v80 = vld [vmem:[%s1 + $0x4] sm:$0xf]
  %v81 = vld [vmem:[%s1 + $0x8] sm:$0xf]
  %v82 = vld [vmem:[%s1 + $0xc] sm:$0xf]
  %v83 = vld [vmem:[%s1 + $0x10] sm:$0xf]
  %v84 = vld [vmem:[%s1 + $0x14] sm:$0xf]
  %v85 = vld [vmem:[%s1 + $0x18] sm:$0xf]
  %v86 = vld [vmem:[%s1 + $0x1c] sm:$0xf]
  %v87 = vld [vmem:[%s1 + $0x20] sm:$0xf]
  %v88 = vld [vmem:[%s1 + $0x24] sm:$0xf]
  %v89 = vld [vmem:[%s1 + $0x28] sm:$0xf]
  %v90 = vld [vmem:[%s1 + $0x2c] sm:$0xf]
  %v91 = vld [vmem:[%s1 + $0x30] sm:$0xf]
  %v92 = vld [vmem:[%s1 + $0x34] sm:$0xf]
  %v93 = vld [vmem:[%s1 + $0x38] sm:$0xf]
  %v94 = vld [vmem:[%s1 + $0x3c] sm:$0xf]
  %v95 = vld [vmem:[%s1 + $0x40] sm:$0xf]
  %v96 = vld [vmem:[%s1 + $0x44] sm:$0xf]
  %v97 = vld [vmem:[%s1 + $0x48] sm:$0xf]
  %v98 = vld [vmem:[%s1 + $0x4c] sm:$0xf]
  %v99 = vld [vmem:[%s1 + $0x50] sm:$0xf]
  %v100 = vld [vmem:[%s1 + $0x54] sm:$0xf]
  %v101 = vld [vmem:[%s1 + $0x58] sm:$0xf]
  %v102 = vld [vmem:[%s1 + $0x5c] sm:$0xf]
  %v103 = vld [vmem:[%s1 + $0x60] sm:$0xf]
  %v104 = vld [vmem:[%s1 + $0x64] sm:$0xf]
  %v105 = vld [vmem:[%s1 + $0x68] sm:$0xf]
  %v106 = vld [vmem:[%s1 + $0x6c] sm:$0xf]
  %v107 = vld [vmem:[%s1 + $0x70] sm:$0xf]
  %v108 = vld [vmem:[%s1 + $0x74] sm:$0xf]
  %v109 = vld [vmem:[%s1 + $0x78] sm:$0xf]
  %v110 = vld [vmem:[%s1 + $0x7c] sm:$0xf]
  %v111 = vld [vmem:[%s1 + $0x80] sm:$0xf]
  %v112 = vld [vmem:[%s1 + $0x84] sm:$0xf]
  %v113 = vld [vmem:[%s1 + $0x88] sm:$0xf]
  %v114 = vld [vmem:[%s1 + $0x8c] sm:$0xf]
  %v115 = vld [vmem:[%s1 + $0x90] sm:$0xf]
  %v116 = vld [vmem:[%s1 + $0x94] sm:$0xf]
  %v117 = vld [vmem:[%s1 + $0x98] sm:$0xf]
  %v118 = vld [vmem:[%s1 + $0x9c] sm:$0xf]
  %v119 = vld [vmem:[%s1 + $0xa0] sm:$0xf]
  %v120 = vld [vmem:[%s1 + $0xa4] sm:$0xf]
  %v121 = vld [vmem:[%s1 + $0xa8] sm:$0xf]
  %v122 = vld [vmem:[%s1 + $0xac] sm:$0xf]
  %v123 = vld [vmem:[%s1 + $0xb0] sm:$0xf]
  %v124 = vld [vmem:[%s1 + $0xb4] sm:$0xf]
  %v125 = vld [vmem:[%s1 + $0xb8] sm:$0xf]
  %v126 = vld [vmem:[%s1 + $0xbc] sm:$0xf]
  %v127 = vld [vmem:[%s1 + $0xc0] sm:$0xf]
  %v128 = vld [vmem:[%s1 + $0xc4] sm:$0xf]
  %v129 = vld [vmem:[%s1 + $0xc8] sm:$0xf]
  %v130 = vld [vmem:[%s1 + $0xcc] sm:$0xf]
  %v131 = vld [vmem:[%s1 + $0xd0] sm:$0xf]
  %v132 = vld [vmem:[%s1 + $0xd4] sm:$0xf]
  %v133 = vld [vmem:[%s1 + $0xd8] sm:$0xf]
  %v134 = vld [vmem:[%s1 + $0xdc] sm:$0xf]
  %v135 = vld [vmem:[%s1 + $0xe0] sm:$0xf]
  %v136 = vld [vmem:[%s1 + $0xe4] sm:$0xf]
  %v137 = vld [vmem:[%s1 + $0xe8] sm:$0xf]
  %v138 = vld [vmem:[%s1 + $0xec] sm:$0xf]
  %v139 = vld [vmem:[%s1 + $0xf0] sm:$0xf]
  %v140 = vld [vmem:[%s1 + $0xf4] sm:$0xf]
  %v141 = vld [vmem:[%s1 + $0xf8] sm:$0xf]
  %v142 = vld [vmem:[%s1 + $0xfc] sm:$0xf]
  %v143 = vld [vmem:[%s1 + $0x100] sm:$0xf]
  %v144 = vld [vmem:[%s1 + $0x104] sm:$0xf]
  %v145 = vld [vmem:[%s1 + $0x108] sm:$0xf]
  %v146 = vld [vmem:[%s1 + $0x10c] sm:$0xf]
  %v147 = vld [vmem:[%s1 + $0x110] sm:$0xf]
  %v148 = vld [vmem:[%s1 + $0x114] sm:$0xf]
  %v149 = vld [vmem:[%s1 + $0x118] sm:$0xf]
  %v150 = vld [vmem:[%s1 + $0x11c] sm:$0xf]
  %v151 = vld [vmem:[%s1 + $0x120] sm:$0xf]
  %v152 = vld [vmem:[%s1 + $0x124] sm:$0xf]
  %v153 = vld [vmem:[%s1 + $0x128] sm:$0xf]
  %v154 = vld [vmem:[%s1 + $0x12c] sm:$0xf]
  %v155 = vld [vmem:[%s1 + $0x130] sm:$0xf]
  %v156 = vld [vmem:[%s1 + $0x134] sm:$0xf]
  %v157 = vld [vmem:[%s1 + $0x138] sm:$0xf]
  %v158 = vld [vmem:[%s1 + $0x13c] sm:$0xf]
  %v159 = vld [vmem:[%s1 + $0x140] sm:$0xf]
  %v160 = vld [vmem:[%s1 + $0x144] sm:$0xf]
  %v161 = vld [vmem:[%s1 + $0x148] sm:$0xf]
  %v162 = vld [vmem:[%s1 + $0x14c] sm:$0xf]
  %v163 = vld [vmem:[%s1 + $0x150] sm:$0xf]
  %v164 = vld [vmem:[%s1 + $0x154] sm:$0xf]
  %v165 = vld [vmem:[%s1 + $0x158] sm:$0xf]
  %v166 = vld [vmem:[%s1 + $0x15c] sm:$0xf]
  %v167 = vld [vmem:[%s1 + $0x160] sm:$0xf]
  %v168 = vld [vmem:[%s1 + $0x164] sm:$0xf]
  %v169 = vld [vmem:[%s1 + $0x168] sm:$0xf]
  %v170 = vld [vmem:[%s1 + $0x16c] sm:$0xf]
  %v171 = vld [vmem:[%s1 + $0x170] sm:$0xf]
  %v172 = vld [vmem:[%s1 + $0x174] sm:$0xf]
  %v173 = vld [vmem:[%s1 + $0x178] sm:$0xf]
  %v174 = vld [vmem:[%s1 + $0x17c] sm:$0xf]
  %v175 = vld [vmem:[%s1 + $0x180] sm:$0xf]
  %v176 = vld [vmem:[%s1 + $0x184] sm:$0xf]
  %v177 = vld [vmem:[%s1 + $0x188] sm:$0xf]
  %v178 = vld [vmem:[%s1 + $0x18c] sm:$0xf]
  %v179 = vld [vmem:[%s1 + $0x190] sm:$0xf]
  %v180 = vld [vmem:[%s1 + $0x194] sm:$0xf]
  %v181 = vld [vmem:[%s1 + $0x198] sm:$0xf]
  %v182 = vld [vmem:[%s1 + $0x19c] sm:$0xf]
  %v183 = vld [vmem:[%s1 + $0x1a0] sm:$0xf]
  %v184 = vld [vmem:[%s1 + $0x1a4] sm:$0xf]
  %v185 = vld [vmem:[%s1 + $0x1a8] sm:$0xf]
  %v186 = vld [vmem:[%s1 + $0x1ac] sm:$0xf]
  %v187 = vld [vmem:[%s1 + $0x1b0] sm:$0xf]
  %v188 = vld [vmem:[%s1 + $0x1b4] sm:$0xf]
  %v189 = vld [vmem:[%s1 + $0x1b8] sm:$0xf]
  %v190 = vld [vmem:[%s1 + $0x1bc] sm:$0xf]
  %v191 = vld [vmem:[%s1 + $0x1c0] sm:$0xf]
  %v192 = vld [vmem:[%s1 + $0x1c4] sm:$0xf]
  %v193 = vld [vmem:[%s1 + $0x1c8] sm:$0xf]
  %v194 = vld [vmem:[%s1 + $0x1cc] sm:$0xf]
  %v195 = vld [vmem:[%s1 + $0x1d0] sm:$0xf]
  %v196 = vld [vmem:[%s1 + $0x1d4] sm:$0xf]
  %v197 = vld [vmem:[%s1 + $0x1d8] sm:$0xf]
  %v198 = vld [vmem:[%s1 + $0x1dc] sm:$0xf]
  %v199 = vld [vmem:[%s1 + $0x1e0] sm:$0xf]
  %v200 = vld [vmem:[%s1 + $0x1e4] sm:$0xf]
  %v201 = vld [vmem:[%s1 + $0x1e8] sm:$0xf]
  %v202 = vld [vmem:[%s1 + $0x1ec] sm:$0xf]
  %v203 = vld [vmem:[%s1 + $0x1f0] sm:$0xf]
  %v204 = vld [vmem:[%s1 + $0x1f4] sm:$0xf]
  %v205 = vld [vmem:[%s1 + $0x1f8] sm:$0xf]
  %v206 = vld [vmem:[%s1 + $0x1fc] sm:$0xf]
  %v271 = vunpack.c.l.b16 %v15
  %v272 = vunpack.c.h.b16 %v15
  %v273 = vunpack.c.l.b16 %v16
  %v274 = vunpack.c.h.b16 %v16
  %v275 = vunpack.c.l.b16 %v17
  %v276 = vunpack.c.h.b16 %v17
  %v277 = vunpack.c.l.b16 %v18
  %v278 = vunpack.c.h.b16 %v18
  %v279 = vunpack.c.l.b16 %v19
  %v280 = vunpack.c.h.b16 %v19
  %v281 = vunpack.c.l.b16 %v20
  %v282 = vunpack.c.h.b16 %v20
  %v283 = vunpack.c.l.b16 %v21
  %v284 = vunpack.c.h.b16 %v21
  %v285 = vunpack.c.l.b16 %v22
  %v286 = vunpack.c.h.b16 %v22
  %v287 = vunpack.c.l.b16 %v23
  %v288 = vunpack.c.h.b16 %v23
  %v289 = vunpack.c.l.b16 %v24
  %v290 = vunpack.c.h.b16 %v24
  %v291 = vunpack.c.l.b16 %v25
  %v292 = vunpack.c.h.b16 %v25
  %v293 = vunpack.c.l.b16 %v26
  %v294 = vunpack.c.h.b16 %v26
  %v295 = vunpack.c.l.b16 %v27
  %v296 = vunpack.c.h.b16 %v27
  %v297 = vunpack.c.l.b16 %v28
  %v298 = vunpack.c.h.b16 %v28
  %v299 = vunpack.c.l.b16 %v29
  %v300 = vunpack.c.h.b16 %v29
  %v301 = vunpack.c.l.b16 %v30
  %v302 = vunpack.c.h.b16 %v30
  %v303 = vunpack.c.l.b16 %v31
  %v304 = vunpack.c.h.b16 %v31
  %v305 = vunpack.c.l.b16 %v32
  %v306 = vunpack.c.h.b16 %v32
  %v307 = vunpack.c.l.b16 %v33
  %v308 = vunpack.c.h.b16 %v33
  %v309 = vunpack.c.l.b16 %v34
  %v310 = vunpack.c.h.b16 %v34
  %v311 = vunpack.c.l.b16 %v35
  %v312 = vunpack.c.h.b16 %v35
  %v313 = vunpack.c.l.b16 %v36
  %v314 = vunpack.c.h.b16 %v36
  %v315 = vunpack.c.l.b16 %v37
  %v316 = vunpack.c.h.b16 %v37
  %v317 = vunpack.c.l.b16 %v38
  %v318 = vunpack.c.h.b16 %v38
  %v319 = vunpack.c.l.b16 %v39
  %v320 = vunpack.c.h.b16 %v39
  %v321 = vunpack.c.l.b16 %v40
  %v322 = vunpack.c.h.b16 %v40
  %v323 = vunpack.c.l.b16 %v41
  %v324 = vunpack.c.h.b16 %v41
  %v325 = vunpack.c.l.b16 %v42
  %v326 = vunpack.c.h.b16 %v42
  %v327 = vunpack.c.l.b16 %v43
  %v328 = vunpack.c.h.b16 %v43
  %v329 = vunpack.c.l.b16 %v44
  %v330 = vunpack.c.h.b16 %v44
  %v331 = vunpack.c.l.b16 %v45
  %v332 = vunpack.c.h.b16 %v45
  %v333 = vunpack.c.l.b16 %v46
  %v334 = vunpack.c.h.b16 %v46
  %v335 = vunpack.c.l.b16 %v47
  %v336 = vunpack.c.h.b16 %v47
  %v337 = vunpack.c.l.b16 %v48
  %v338 = vunpack.c.h.b16 %v48
  %v339 = vunpack.c.l.b16 %v49
  %v340 = vunpack.c.h.b16 %v49
  %v341 = vunpack.c.l.b16 %v50
  %v342 = vunpack.c.h.b16 %v50
  %v343 = vunpack.c.l.b16 %v51
  %v344 = vunpack.c.h.b16 %v51
  %v345 = vunpack.c.l.b16 %v52
  %v346 = vunpack.c.h.b16 %v52
  %v347 = vunpack.c.l.b16 %v53
  %v348 = vunpack.c.h.b16 %v53
  %v349 = vunpack.c.l.b16 %v54
  %v350 = vunpack.c.h.b16 %v54
  %v351 = vunpack.c.l.b16 %v55
  %v352 = vunpack.c.h.b16 %v55
  %v353 = vunpack.c.l.b16 %v56
  %v354 = vunpack.c.h.b16 %v56
  %v355 = vunpack.c.l.b16 %v57
  %v356 = vunpack.c.h.b16 %v57
  %v357 = vunpack.c.l.b16 %v58
  %v358 = vunpack.c.h.b16 %v58
  %v359 = vunpack.c.l.b16 %v59
  %v360 = vunpack.c.h.b16 %v59
  %v361 = vunpack.c.l.b16 %v60
  %v362 = vunpack.c.h.b16 %v60
  %v363 = vunpack.c.l.b16 %v61
  %v364 = vunpack.c.h.b16 %v61
  %v365 = vunpack.c.l.b16 %v62
  %v366 = vunpack.c.h.b16 %v62
  %v367 = vunpack.c.l.b16 %v63
  %v368 = vunpack.c.h.b16 %v63
  %v369 = vunpack.c.l.b16 %v64
  %v370 = vunpack.c.h.b16 %v64
  %v371 = vunpack.c.l.b16 %v65
  %v372 = vunpack.c.h.b16 %v65
  %v373 = vunpack.c.l.b16 %v66
  %v374 = vunpack.c.h.b16 %v66
  %v375 = vunpack.c.l.b16 %v67
  %v376 = vunpack.c.h.b16 %v67
  %v377 = vunpack.c.l.b16 %v68
  %v378 = vunpack.c.h.b16 %v68
  %v379 = vunpack.c.l.b16 %v69
  %v380 = vunpack.c.h.b16 %v69
  %v381 = vunpack.c.l.b16 %v70
  %v382 = vunpack.c.h.b16 %v70
  %v383 = vunpack.c.l.b16 %v71
  %v384 = vunpack.c.h.b16 %v71
  %v385 = vunpack.c.l.b16 %v72
  %v386 = vunpack.c.h.b16 %v72
  %v387 = vunpack.c.l.b16 %v73
  %v388 = vunpack.c.h.b16 %v73
  %v389 = vunpack.c.l.b16 %v74
  %v390 = vunpack.c.h.b16 %v74
  %v391 = vunpack.c.l.b16 %v75
  %v392 = vunpack.c.h.b16 %v75
  %v393 = vunpack.c.l.b16 %v76
  %v394 = vunpack.c.h.b16 %v76
  %v395 = vunpack.c.l.b16 %v77
  %v396 = vunpack.c.h.b16 %v77
  %v397 = vunpack.c.l.b16 %v78
  %v398 = vunpack.c.h.b16 %v78
  %v399 = vpack.c.b16 %v279, %v271
  %v400 = vpack.c.b16 %v280, %v272
  %v401 = vpack.c.b16 %v281, %v273
  %v402 = vpack.c.b16 %v282, %v274
  %v403 = vpack.c.b16 %v283, %v275
  %v404 = vpack.c.b16 %v284, %v276
  %v405 = vpack.c.b16 %v285, %v277
  %v406 = vpack.c.b16 %v286, %v278
  %v407 = vpack.c.b16 %v295, %v287
  %v408 = vpack.c.b16 %v296, %v288
  %v409 = vpack.c.b16 %v297, %v289
  %v410 = vpack.c.b16 %v298, %v290
  %v411 = vpack.c.b16 %v299, %v291
  %v412 = vpack.c.b16 %v300, %v292
  %v413 = vpack.c.b16 %v301, %v293
  %v414 = vpack.c.b16 %v302, %v294
  %v415 = vpack.c.b16 %v311, %v303
  %v416 = vpack.c.b16 %v312, %v304
  %v417 = vpack.c.b16 %v313, %v305
  %v418 = vpack.c.b16 %v314, %v306
  %v419 = vpack.c.b16 %v315, %v307
  %v420 = vpack.c.b16 %v316, %v308
  %v421 = vpack.c.b16 %v317, %v309
  %v422 = vpack.c.b16 %v318, %v310
  %v423 = vpack.c.b16 %v327, %v319
  %v424 = vpack.c.b16 %v328, %v320
  %v425 = vpack.c.b16 %v329, %v321
  %v426 = vpack.c.b16 %v330, %v322
  %v427 = vpack.c.b16 %v331, %v323
  %v428 = vpack.c.b16 %v332, %v324
  %v429 = vpack.c.b16 %v333, %v325
  %v430 = vpack.c.b16 %v334, %v326
  %v431 = vpack.c.b16 %v343, %v335
  %v432 = vpack.c.b16 %v344, %v336
  %v433 = vpack.c.b16 %v345, %v337
  %v434 = vpack.c.b16 %v346, %v338
  %v435 = vpack.c.b16 %v347, %v339
  %v436 = vpack.c.b16 %v348, %v340
  %v437 = vpack.c.b16 %v349, %v341
  %v438 = vpack.c.b16 %v350, %v342
  %v439 = vpack.c.b16 %v359, %v351
  %v440 = vpack.c.b16 %v360, %v352
  %v441 = vpack.c.b16 %v361, %v353
  %v442 = vpack.c.b16 %v362, %v354
  %v443 = vpack.c.b16 %v363, %v355
  %v444 = vpack.c.b16 %v364, %v356
  %v445 = vpack.c.b16 %v365, %v357
  %v446 = vpack.c.b16 %v366, %v358
  %v447 = vpack.c.b16 %v375, %v367
  %v448 = vpack.c.b16 %v376, %v368
  %v449 = vpack.c.b16 %v377, %v369
  %v450 = vpack.c.b16 %v378, %v370
  %v451 = vpack.c.b16 %v379, %v371
  %v452 = vpack.c.b16 %v380, %v372
  %v453 = vpack.c.b16 %v381, %v373
  %v454 = vpack.c.b16 %v382, %v374
  %v455 = vpack.c.b16 %v391, %v383
  %v456 = vpack.c.b16 %v392, %v384
  %v457 = vpack.c.b16 %v393, %v385
  %v458 = vpack.c.b16 %v394, %v386
  %v459 = vpack.c.b16 %v395, %v387
  %v460 = vpack.c.b16 %v396, %v388
  %v461 = vpack.c.b16 %v397, %v389
  %v462 = vpack.c.b16 %v398, %v390
  %v655 = vunpack.c.l.b16 %v79
  %v656 = vunpack.c.l.b16 %v80
  %v657 = vunpack.c.l.b16 %v81
  %v658 = vunpack.c.l.b16 %v82
  %v659 = vunpack.c.l.b16 %v83
  %v660 = vunpack.c.l.b16 %v84
  %v661 = vunpack.c.l.b16 %v85
  %v662 = vunpack.c.l.b16 %v86
  %v663 = vunpack.c.l.b16 %v87
  %v664 = vunpack.c.l.b16 %v88
  %v665 = vunpack.c.l.b16 %v89
  %v666 = vunpack.c.l.b16 %v90
  %v667 = vunpack.c.l.b16 %v91
  %v668 = vunpack.c.l.b16 %v92
  %v669 = vunpack.c.l.b16 %v93
  %v670 = vunpack.c.l.b16 %v94
  %v671 = vunpack.c.l.b16 %v95
  %v672 = vunpack.c.l.b16 %v96
  %v673 = vunpack.c.l.b16 %v97
  %v674 = vunpack.c.l.b16 %v98
  %v675 = vunpack.c.l.b16 %v99
  %v676 = vunpack.c.l.b16 %v100
  %v677 = vunpack.c.l.b16 %v101
  %v678 = vunpack.c.l.b16 %v102
  %v679 = vunpack.c.l.b16 %v103
  %v680 = vunpack.c.l.b16 %v104
  %v681 = vunpack.c.l.b16 %v105
  %v682 = vunpack.c.l.b16 %v106
  %v683 = vunpack.c.l.b16 %v107
  %v684 = vunpack.c.l.b16 %v108
  %v685 = vunpack.c.l.b16 %v109
  %v686 = vunpack.c.l.b16 %v110
  %v687 = vunpack.c.l.b16 %v111
  %v688 = vunpack.c.l.b16 %v112
  %v689 = vunpack.c.l.b16 %v113
  %v690 = vunpack.c.l.b16 %v114
  %v691 = vunpack.c.l.b16 %v115
  %v692 = vunpack.c.l.b16 %v116
  %v693 = vunpack.c.l.b16 %v117
  %v694 = vunpack.c.l.b16 %v118
  %v695 = vunpack.c.l.b16 %v119
  %v696 = vunpack.c.l.b16 %v120
  %v697 = vunpack.c.l.b16 %v121
  %v698 = vunpack.c.l.b16 %v122
  %v699 = vunpack.c.l.b16 %v123
  %v700 = vunpack.c.l.b16 %v124
  %v701 = vunpack.c.l.b16 %v125
  %v702 = vunpack.c.l.b16 %v126
  %v703 = vunpack.c.l.b16 %v127
  %v704 = vunpack.c.l.b16 %v128
  %v705 = vunpack.c.l.b16 %v129
  %v706 = vunpack.c.l.b16 %v130
  %v707 = vunpack.c.l.b16 %v131
  %v708 = vunpack.c.l.b16 %v132
  %v709 = vunpack.c.l.b16 %v133
  %v710 = vunpack.c.l.b16 %v134
  %v711 = vunpack.c.l.b16 %v135
  %v712 = vunpack.c.l.b16 %v136
  %v713 = vunpack.c.l.b16 %v137
  %v714 = vunpack.c.l.b16 %v138
  %v715 = vunpack.c.l.b16 %v139
  %v716 = vunpack.c.l.b16 %v140
  %v717 = vunpack.c.l.b16 %v141
  %v718 = vunpack.c.l.b16 %v142
  %v719 = vunpack.c.l.b16 %v143
  %v720 = vunpack.c.l.b16 %v144
  %v721 = vunpack.c.l.b16 %v145
  %v722 = vunpack.c.l.b16 %v146
  %v723 = vunpack.c.l.b16 %v147
  %v724 = vunpack.c.l.b16 %v148
  %v725 = vunpack.c.l.b16 %v149
  %v726 = vunpack.c.l.b16 %v150
  %v727 = vunpack.c.l.b16 %v151
  %v728 = vunpack.c.l.b16 %v152
  %v729 = vunpack.c.l.b16 %v153
  %v730 = vunpack.c.l.b16 %v154
  %v731 = vunpack.c.l.b16 %v155
  %v732 = vunpack.c.l.b16 %v156
  %v733 = vunpack.c.l.b16 %v157
  %v734 = vunpack.c.l.b16 %v158
  %v735 = vunpack.c.l.b16 %v159
  %v736 = vunpack.c.l.b16 %v160
  %v737 = vunpack.c.l.b16 %v161
  %v738 = vunpack.c.l.b16 %v162
  %v739 = vunpack.c.l.b16 %v163
  %v740 = vunpack.c.l.b16 %v164
  %v741 = vunpack.c.l.b16 %v165
  %v742 = vunpack.c.l.b16 %v166
  %v743 = vunpack.c.l.b16 %v167
  %v744 = vunpack.c.l.b16 %v168
  %v745 = vunpack.c.l.b16 %v169
  %v746 = vunpack.c.l.b16 %v170
  %v747 = vunpack.c.l.b16 %v171
  %v748 = vunpack.c.l.b16 %v172
  %v749 = vunpack.c.l.b16 %v173
  %v750 = vunpack.c.l.b16 %v174
  %v751 = vunpack.c.l.b16 %v175
  %v752 = vunpack.c.l.b16 %v176
  %v753 = vunpack.c.l.b16 %v177
  %v754 = vunpack.c.l.b16 %v178
  %v755 = vunpack.c.l.b16 %v179
  %v756 = vunpack.c.l.b16 %v180
  %v757 = vunpack.c.l.b16 %v181
  %v758 = vunpack.c.l.b16 %v182
  %v759 = vunpack.c.l.b16 %v183
  %v760 = vunpack.c.l.b16 %v184
  %v761 = vunpack.c.l.b16 %v185
  %v762 = vunpack.c.l.b16 %v186
  %v763 = vunpack.c.l.b16 %v187
  %v764 = vunpack.c.l.b16 %v188
  %v765 = vunpack.c.l.b16 %v189
  %v766 = vunpack.c.l.b16 %v190
  %v767 = vunpack.c.l.b16 %v191
  %v768 = vunpack.c.l.b16 %v192
  %v769 = vunpack.c.l.b16 %v193
  %v770 = vunpack.c.l.b16 %v194
  %v771 = vunpack.c.l.b16 %v195
  %v772 = vunpack.c.l.b16 %v196
  %v773 = vunpack.c.l.b16 %v197
  %v774 = vunpack.c.l.b16 %v198
  %v775 = vunpack.c.l.b16 %v199
  %v776 = vunpack.c.l.b16 %v200
  %v777 = vunpack.c.l.b16 %v201
  %v778 = vunpack.c.l.b16 %v202
  %v779 = vunpack.c.l.b16 %v203
  %v780 = vunpack.c.l.b16 %v204
  %v781 = vunpack.c.l.b16 %v205
  %v782 = vunpack.c.l.b16 %v206
  %v783 = vpack.c.b16 %v656, %v655
  %v784 = vpack.c.b16 %v658, %v657
  %v785 = vpack.c.b16 %v660, %v659
  %v786 = vpack.c.b16 %v662, %v661
  %v787 = vpack.c.b16 %v664, %v663
  %v788 = vpack.c.b16 %v666, %v665
  %v789 = vpack.c.b16 %v668, %v667
  %v790 = vpack.c.b16 %v670, %v669
  %v791 = vpack.c.b16 %v672, %v671
  %v792 = vpack.c.b16 %v674, %v673
  %v793 = vpack.c.b16 %v676, %v675
  %v794 = vpack.c.b16 %v678, %v677
  %v795 = vpack.c.b16 %v680, %v679
  %v796 = vpack.c.b16 %v682, %v681
  %v797 = vpack.c.b16 %v684, %v683
  %v798 = vpack.c.b16 %v686, %v685
  %v799 = vpack.c.b16 %v688, %v687
  %v800 = vpack.c.b16 %v690, %v689
  %v801 = vpack.c.b16 %v692, %v691
  %v802 = vpack.c.b16 %v694, %v693
  %v803 = vpack.c.b16 %v696, %v695
  %v804 = vpack.c.b16 %v698, %v697
  %v805 = vpack.c.b16 %v700, %v699
  %v806 = vpack.c.b16 %v702, %v701
  %v807 = vpack.c.b16 %v704, %v703
  %v808 = vpack.c.b16 %v706, %v705
  %v809 = vpack.c.b16 %v708, %v707
  %v810 = vpack.c.b16 %v710, %v709
  %v811 = vpack.c.b16 %v712, %v711
  %v812 = vpack.c.b16 %v714, %v713
  %v813 = vpack.c.b16 %v716, %v715
  %v814 = vpack.c.b16 %v718, %v717
  %v815 = vpack.c.b16 %v720, %v719
  %v816 = vpack.c.b16 %v722, %v721
  %v817 = vpack.c.b16 %v724, %v723
  %v818 = vpack.c.b16 %v726, %v725
  %v819 = vpack.c.b16 %v728, %v727
  %v820 = vpack.c.b16 %v730, %v729
  %v821 = vpack.c.b16 %v732, %v731
  %v822 = vpack.c.b16 %v734, %v733
  %v823 = vpack.c.b16 %v736, %v735
  %v824 = vpack.c.b16 %v738, %v737
  %v825 = vpack.c.b16 %v740, %v739
  %v826 = vpack.c.b16 %v742, %v741
  %v827 = vpack.c.b16 %v744, %v743
  %v828 = vpack.c.b16 %v746, %v745
  %v829 = vpack.c.b16 %v748, %v747
  %v830 = vpack.c.b16 %v750, %v749
  %v831 = vpack.c.b16 %v752, %v751
  %v832 = vpack.c.b16 %v754, %v753
  %v833 = vpack.c.b16 %v756, %v755
  %v834 = vpack.c.b16 %v758, %v757
  %v835 = vpack.c.b16 %v760, %v759
  %v836 = vpack.c.b16 %v762, %v761
  %v837 = vpack.c.b16 %v764, %v763
  %v838 = vpack.c.b16 %v766, %v765
  %v839 = vpack.c.b16 %v768, %v767
  %v840 = vpack.c.b16 %v770, %v769
  %v841 = vpack.c.b16 %v772, %v771
  %v842 = vpack.c.b16 %v774, %v773
  %v843 = vpack.c.b16 %v776, %v775
  %v844 = vpack.c.b16 %v778, %v777
  %v845 = vpack.c.b16 %v780, %v779
  %v846 = vpack.c.b16 %v782, %v781
  %911 = vmatprep.subr.bf16.mxu0 0
  %912 = vmatpush1.bf16.msra.mxu0 %v783
  %913 = vmatprep.subr.bf16.mxu0 0
  %914 = vmatpush1.bf16.msra.mxu0 %v784
  %915 = vmatprep.subr.bf16.mxu0 0
  %916 = vmatpush1.bf16.msra.mxu0 %v785
  %917 = vmatprep.subr.bf16.mxu0 0
  %918 = vmatpush1.bf16.msra.mxu0 %v786
  %919 = vmatprep.subr.bf16.mxu0 0
  %920 = vmatpush1.bf16.msra.mxu0 %v787
  %921 = vmatprep.subr.bf16.mxu0 0
  %922 = vmatpush1.bf16.msra.mxu0 %v788
  %923 = vmatprep.subr.bf16.mxu0 0
  %924 = vmatpush1.bf16.msra.mxu0 %v789
  %925 = vmatprep.subr.bf16.mxu0 0
  %926 = vmatpush1.bf16.msra.mxu0 %v790
  %927 = vmatprep.subr.bf16.mxu0 0
  %928 = vmatpush1.bf16.msra.mxu0 %v791
  %929 = vmatprep.subr.bf16.mxu0 0
  %930 = vmatpush1.bf16.msra.mxu0 %v792
  %931 = vmatprep.subr.bf16.mxu0 0
  %932 = vmatpush1.bf16.msra.mxu0 %v793
  %933 = vmatprep.subr.bf16.mxu0 0
  %934 = vmatpush1.bf16.msra.mxu0 %v794
  %935 = vmatprep.subr.bf16.mxu0 0
  %936 = vmatpush1.bf16.msra.mxu0 %v795
  %937 = vmatprep.subr.bf16.mxu0 0
  %938 = vmatpush1.bf16.msra.mxu0 %v796
  %939 = vmatprep.subr.bf16.mxu0 0
  %940 = vmatpush1.bf16.msra.mxu0 %v797
  %941 = vmatprep.subr.bf16.mxu0 0
  %942 = vmatpush1.bf16.msra.mxu0 %v798
  %943 = vmatprep.mubr.bf16.mxu0 %v400
  %944 = vmatmul.mubr.bf16.gmra.mrb[0].mxu0 %v399
  %v945 = vpop.f32.mrb[0].mxu0
  %v946 = vadd.f32 0.0, %v945
  %v947 = vpop.f32.mrb[0].mxu0
  %v948 = vpop.f32.mrb[0].mxu0
  %v949 = vadd.f32 0.0, %v948
  %v950 = vpop.f32.mrb[0].mxu0
  %951 = vmatprep.mubr.bf16.mxu0 %v408
  %952 = vmatmul.mubr.bf16.gmra.mrb[0].mxu0 %v407
  %v953 = vpop.f32.mrb[0].mxu0
  %v954 = vadd.f32 0.0, %v953
  %v955 = vpop.f32.mrb[0].mxu0
  %v956 = vpop.f32.mrb[0].mxu0
  %v957 = vadd.f32 0.0, %v956
  %v958 = vpop.f32.mrb[0].mxu0
  %959 = vmatprep.mubr.bf16.mxu0 %v416
  %960 = vmatmul.mubr.bf16.gmra.mrb[0].mxu0 %v415
  %v961 = vpop.f32.mrb[0].mxu0
  %v962 = vadd.f32 0.0, %v961
  %v963 = vpop.f32.mrb[0].mxu0
  %v964 = vpop.f32.mrb[0].mxu0
  %v965 = vadd.f32 0.0, %v964
  %v966 = vpop.f32.mrb[0].mxu0
  %967 = vmatprep.mubr.bf16.mxu0 %v424
  %968 = vmatmul.mubr.bf16.gmra.mrb[0].mxu0 %v423
  %v969 = vpop.f32.mrb[0].mxu0
  %v970 = vadd.f32 0.0, %v969
  %v971 = vpop.f32.mrb[0].mxu0
  %v972 = vpop.f32.mrb[0].mxu0
  %v973 = vadd.f32 0.0, %v972
  %v974 = vpop.f32.mrb[0].mxu0
  %975 = vmatprep.mubr.bf16.mxu0 %v432
  %976 = vmatmul.mubr.bf16.gmra.mrb[0].mxu0 %v431
  %v977 = vpop.f32.mrb[0].mxu0
  %v978 = vadd.f32 0.0, %v977
  %v979 = vpop.f32.mrb[0].mxu0
  %v980 = vpop.f32.mrb[0].mxu0
  %v981 = vadd.f32 0.0, %v980
  %v982 = vpop.f32.mrb[0].mxu0
  %983 = vmatprep.mubr.bf16.mxu0 %v440
  %984 = vmatmul.mubr.bf16.gmra.mrb[0].mxu0 %v439
  %v985 = vpop.f32.mrb[0].mxu0
  %v986 = vadd.f32 0.0, %v985
  %v987 = vpop.f32.mrb[0].mxu0
  %v988 = vpop.f32.mrb[0].mxu0
  %v989 = vadd.f32 0.0, %v988
  %v990 = vpop.f32.mrb[0].mxu0
  %991 = vmatprep.mubr.bf16.mxu0 %v448
  %992 = vmatmul.mubr.bf16.gmra.mrb[0].mxu0 %v447
  %v993 = vpop.f32.mrb[0].mxu0
  %v994 = vadd.f32 0.0, %v993
  %v995 = vpop.f32.mrb[0].mxu0
  %v996 = vpop.f32.mrb[0].mxu0
  %v997 = vadd.f32 0.0, %v996
  %v998 = vpop.f32.mrb[0].mxu0
  %999 = vmatprep.mubr.bf16.mxu0 %v456
  %1000 = vmatmul.mubr.bf16.gmra.mrb[0].mxu0 %v455
  %v1001 = vpop.f32.mrb[0].mxu0
  %v1002 = vadd.f32 0.0, %v1001
  %v1003 = vpop.f32.mrb[0].mxu0
  %v1004 = vpop.f32.mrb[0].mxu0
  %v1005 = vadd.f32 0.0, %v1004
  %v1006 = vpop.f32.mrb[0].mxu0
  %1007 = vdwg.mxu0
  %1008 = vmatprep.subr.bf16.mxu0 0
  %1009 = vmatpush1.bf16.msra.mxu0 %v799
  %1010 = vmatprep.subr.bf16.mxu0 0
  %1011 = vmatpush1.bf16.msra.mxu0 %v800
  %1012 = vmatprep.subr.bf16.mxu0 0
  %1013 = vmatpush1.bf16.msra.mxu0 %v801
  %1014 = vmatprep.subr.bf16.mxu0 0
  %1015 = vmatpush1.bf16.msra.mxu0 %v802
  %1016 = vmatprep.subr.bf16.mxu0 0
  %1017 = vmatpush1.bf16.msra.mxu0 %v803
  %1018 = vmatprep.subr.bf16.mxu0 0
  %1019 = vmatpush1.bf16.msra.mxu0 %v804
  %1020 = vmatprep.subr.bf16.mxu0 0
  %1021 = vmatpush1.bf16.msra.mxu0 %v805
  %1022 = vmatprep.subr.bf16.mxu0 0
  %1023 = vmatpush1.bf16.msra.mxu0 %v806
  %1024 = vmatprep.subr.bf16.mxu0 0
  %1025 = vmatpush1.bf16.msra.mxu0 %v807
  %1026 = vmatprep.subr.bf16.mxu0 0
  %1027 = vmatpush1.bf16.msra.mxu0 %v808
  %1028 = vmatprep.subr.bf16.mxu0 0
  %1029 = vmatpush1.bf16.msra.mxu0 %v809
  %1030 = vmatprep.subr.bf16.mxu0 0
  %1031 = vmatpush1.bf16.msra.mxu0 %v810
  %1032 = vmatprep.subr.bf16.mxu0 0
  %1033 = vmatpush1.bf16.msra.mxu0 %v811
  %1034 = vmatprep.subr.bf16.mxu0 0
  %1035 = vmatpush1.bf16.msra.mxu0 %v812
  %1036 = vmatprep.subr.bf16.mxu0 0
  %1037 = vmatpush1.bf16.msra.mxu0 %v813
  %1038 = vmatprep.subr.bf16.mxu0 0
  %1039 = vmatpush1.bf16.msra.mxu0 %v814
  %1040 = vmatprep.mubr.bf16.mxu0 %v402
  %1041 = vmatmul.mubr.bf16.gmra.mrb[0].mxu0 %v401
  %v1042 = vpop.f32.mrb[0].mxu0
  %v1043 = vadd.f32 %v946, %v1042
  %v1044 = vpop.f32.mrb[0].mxu0
  %v1045 = vpop.f32.mrb[0].mxu0
  %v1046 = vadd.f32 %v949, %v1045
  %v1047 = vpop.f32.mrb[0].mxu0
  %1048 = vmatprep.mubr.bf16.mxu0 %v410
  %1049 = vmatmul.mubr.bf16.gmra.mrb[0].mxu0 %v409
  %v1050 = vpop.f32.mrb[0].mxu0
  %v1051 = vadd.f32 %v954, %v1050
  %v1052 = vpop.f32.mrb[0].mxu0
  %v1053 = vpop.f32.mrb[0].mxu0
  %v1054 = vadd.f32 %v957, %v1053
  %v1055 = vpop.f32.mrb[0].mxu0
  %1056 = vmatprep.mubr.bf16.mxu0 %v418
  %1057 = vmatmul.mubr.bf16.gmra.mrb[0].mxu0 %v417
  %v1058 = vpop.f32.mrb[0].mxu0
  %v1059 = vadd.f32 %v962, %v1058
  %v1060 = vpop.f32.mrb[0].mxu0
  %v1061 = vpop.f32.mrb[0].mxu0
  %v1062 = vadd.f32 %v965, %v1061
  %v1063 = vpop.f32.mrb[0].mxu0
  %1064 = vmatprep.mubr.bf16.mxu0 %v426
  %1065 = vmatmul.mubr.bf16.gmra.mrb[0].mxu0 %v425
  %v1066 = vpop.f32.mrb[0].mxu0
  %v1067 = vadd.f32 %v970, %v1066
  %v1068 = vpop.f32.mrb[0].mxu0
  %v1069 = vpop.f32.mrb[0].mxu0
  %v1070 = vadd.f32 %v973, %v1069
  %v1071 = vpop.f32.mrb[0].mxu0
  %1072 = vmatprep.mubr.bf16.mxu0 %v434
  %1073 = vmatmul.mubr.bf16.gmra.mrb[0].mxu0 %v433
  %v1074 = vpop.f32.mrb[0].mxu0
  %v1075 = vadd.f32 %v978, %v1074
  %v1076 = vpop.f32.mrb[0].mxu0
  %v1077 = vpop.f32.mrb[0].mxu0
  %v1078 = vadd.f32 %v981, %v1077
  %v1079 = vpop.f32.mrb[0].mxu0
  %1080 = vmatprep.mubr.bf16.mxu0 %v442
  %1081 = vmatmul.mubr.bf16.gmra.mrb[0].mxu0 %v441
  %v1082 = vpop.f32.mrb[0].mxu0
  %v1083 = vadd.f32 %v986, %v1082
  %v1084 = vpop.f32.mrb[0].mxu0
  %v1085 = vpop.f32.mrb[0].mxu0
  %v1086 = vadd.f32 %v989, %v1085
  %v1087 = vpop.f32.mrb[0].mxu0
  %1088 = vmatprep.mubr.bf16.mxu0 %v450
  %1089 = vmatmul.mubr.bf16.gmra.mrb[0].mxu0 %v449
  %v1090 = vpop.f32.mrb[0].mxu0
  %v1091 = vadd.f32 %v994, %v1090
  %v1092 = vpop.f32.mrb[0].mxu0
  %v1093 = vpop.f32.mrb[0].mxu0
  %v1094 = vadd.f32 %v997, %v1093
  %v1095 = vpop.f32.mrb[0].mxu0
  %1096 = vmatprep.mubr.bf16.mxu0 %v458
  %1097 = vmatmul.mubr.bf16.gmra.mrb[0].mxu0 %v457
  %v1098 = vpop.f32.mrb[0].mxu0
  %v1099 = vadd.f32 %v1002, %v1098
  %v1100 = vpop.f32.mrb[0].mxu0
  %v1101 = vpop.f32.mrb[0].mxu0
  %v1102 = vadd.f32 %v1005, %v1101
  %v1103 = vpop.f32.mrb[0].mxu0
  %1104 = vdwg.mxu0
  %1105 = vmatprep.subr.bf16.mxu0 0
  %1106 = vmatpush1.bf16.msra.mxu0 %v815
  %1107 = vmatprep.subr.bf16.mxu0 0
  %1108 = vmatpush1.bf16.msra.mxu0 %v816
  %1109 = vmatprep.subr.bf16.mxu0 0
  %1110 = vmatpush1.bf16.msra.mxu0 %v817
  %1111 = vmatprep.subr.bf16.mxu0 0
  %1112 = vmatpush1.bf16.msra.mxu0 %v818
  %1113 = vmatprep.subr.bf16.mxu0 0
  %1114 = vmatpush1.bf16.msra.mxu0 %v819
  %1115 = vmatprep.subr.bf16.mxu0 0
  %1116 = vmatpush1.bf16.msra.mxu0 %v820
  %1117 = vmatprep.subr.bf16.mxu0 0
  %1118 = vmatpush1.bf16.msra.mxu0 %v821
  %1119 = vmatprep.subr.bf16.mxu0 0
  %1120 = vmatpush1.bf16.msra.mxu0 %v822
  %1121 = vmatprep.subr.bf16.mxu0 0
  %1122 = vmatpush1.bf16.msra.mxu0 %v823
  %1123 = vmatprep.subr.bf16.mxu0 0
  %1124 = vmatpush1.bf16.msra.mxu0 %v824
  %1125 = vmatprep.subr.bf16.mxu0 0
  %1126 = vmatpush1.bf16.msra.mxu0 %v825
  %1127 = vmatprep.subr.bf16.mxu0 0
  %1128 = vmatpush1.bf16.msra.mxu0 %v826
  %1129 = vmatprep.subr.bf16.mxu0 0
  %1130 = vmatpush1.bf16.msra.mxu0 %v827
  %1131 = vmatprep.subr.bf16.mxu0 0
  %1132 = vmatpush1.bf16.msra.mxu0 %v828
  %1133 = vmatprep.subr.bf16.mxu0 0
  %1134 = vmatpush1.bf16.msra.mxu0 %v829
  %1135 = vmatprep.subr.bf16.mxu0 0
  %1136 = vmatpush1.bf16.msra.mxu0 %v830
  %1137 = vmatprep.mubr.bf16.mxu0 %v404
  %1138 = vmatmul.mubr.bf16.gmra.mrb[0].mxu0 %v403
  %v1139 = vpop.f32.mrb[0].mxu0
  %v1140 = vadd.f32 %v1043, %v1139
  %v1141 = vpop.f32.mrb[0].mxu0
  %v1142 = vpop.f32.mrb[0].mxu0
  %v1143 = vadd.f32 %v1046, %v1142
  %v1144 = vpop.f32.mrb[0].mxu0
  %1145 = vmatprep.mubr.bf16.mxu0 %v412
  %1146 = vmatmul.mubr.bf16.gmra.mrb[0].mxu0 %v411
  %v1147 = vpop.f32.mrb[0].mxu0
  %v1148 = vadd.f32 %v1051, %v1147
  %v1149 = vpop.f32.mrb[0].mxu0
  %v1150 = vpop.f32.mrb[0].mxu0
  %v1151 = vadd.f32 %v1054, %v1150
  %v1152 = vpop.f32.mrb[0].mxu0
  %1153 = vmatprep.mubr.bf16.mxu0 %v420
  %1154 = vmatmul.mubr.bf16.gmra.mrb[0].mxu0 %v419
  %v1155 = vpop.f32.mrb[0].mxu0
  %v1156 = vadd.f32 %v1059, %v1155
  %v1157 = vpop.f32.mrb[0].mxu0
  %v1158 = vpop.f32.mrb[0].mxu0
  %v1159 = vadd.f32 %v1062, %v1158
  %v1160 = vpop.f32.mrb[0].mxu0
  %1161 = vmatprep.mubr.bf16.mxu0 %v428
  %1162 = vmatmul.mubr.bf16.gmra.mrb[0].mxu0 %v427
  %v1163 = vpop.f32.mrb[0].mxu0
  %v1164 = vadd.f32 %v1067, %v1163
  %v1165 = vpop.f32.mrb[0].mxu0
  %v1166 = vpop.f32.mrb[0].mxu0
  %v1167 = vadd.f32 %v1070, %v1166
  %v1168 = vpop.f32.mrb[0].mxu0
  %1169 = vmatprep.mubr.bf16.mxu0 %v436
  %1170 = vmatmul.mubr.bf16.gmra.mrb[0].mxu0 %v435
  %v1171 = vpop.f32.mrb[0].mxu0
  %v1172 = vadd.f32 %v1075, %v1171
  %v1173 = vpop.f32.mrb[0].mxu0
  %v1174 = vpop.f32.mrb[0].mxu0
  %v1175 = vadd.f32 %v1078, %v1174
  %v1176 = vpop.f32.mrb[0].mxu0
  %1177 = vmatprep.mubr.bf16.mxu0 %v444
  %1178 = vmatmul.mubr.bf16.gmra.mrb[0].mxu0 %v443
  %v1179 = vpop.f32.mrb[0].mxu0
  %v1180 = vadd.f32 %v1083, %v1179
  %v1181 = vpop.f32.mrb[0].mxu0
  %v1182 = vpop.f32.mrb[0].mxu0
  %v1183 = vadd.f32 %v1086, %v1182
  %v1184 = vpop.f32.mrb[0].mxu0
  %1185 = vmatprep.mubr.bf16.mxu0 %v452
  %1186 = vmatmul.mubr.bf16.gmra.mrb[0].mxu0 %v451
  %v1187 = vpop.f32.mrb[0].mxu0
  %v1188 = vadd.f32 %v1091, %v1187
  %v1189 = vpop.f32.mrb[0].mxu0
  %v1190 = vpop.f32.mrb[0].mxu0
  %v1191 = vadd.f32 %v1094, %v1190
  %v1192 = vpop.f32.mrb[0].mxu0
  %1193 = vmatprep.mubr.bf16.mxu0 %v460
  %1194 = vmatmul.mubr.bf16.gmra.mrb[0].mxu0 %v459
  %v1195 = vpop.f32.mrb[0].mxu0
  %v1196 = vadd.f32 %v1099, %v1195
  %v1197 = vpop.f32.mrb[0].mxu0
  %v1198 = vpop.f32.mrb[0].mxu0
  %v1199 = vadd.f32 %v1102, %v1198
  %v1200 = vpop.f32.mrb[0].mxu0
  %1201 = vdwg.mxu0
  %1202 = vmatprep.subr.bf16.mxu0 0
  %1203 = vmatpush1.bf16.msra.mxu0 %v831
  %1204 = vmatprep.subr.bf16.mxu0 0
  %1205 = vmatpush1.bf16.msra.mxu0 %v832
  %1206 = vmatprep.subr.bf16.mxu0 0
  %1207 = vmatpush1.bf16.msra.mxu0 %v833
  %1208 = vmatprep.subr.bf16.mxu0 0
  %1209 = vmatpush1.bf16.msra.mxu0 %v834
  %1210 = vmatprep.subr.bf16.mxu0 0
  %1211 = vmatpush1.bf16.msra.mxu0 %v835
  %1212 = vmatprep.subr.bf16.mxu0 0
  %1213 = vmatpush1.bf16.msra.mxu0 %v836
  %1214 = vmatprep.subr.bf16.mxu0 0
  %1215 = vmatpush1.bf16.msra.mxu0 %v837
  %1216 = vmatprep.subr.bf16.mxu0 0
  %1217 = vmatpush1.bf16.msra.mxu0 %v838
  %1218 = vmatprep.subr.bf16.mxu0 0
  %1219 = vmatpush1.bf16.msra.mxu0 %v839
  %1220 = vmatprep.subr.bf16.mxu0 0
  %1221 = vmatpush1.bf16.msra.mxu0 %v840
  %1222 = vmatprep.subr.bf16.mxu0 0
  %1223 = vmatpush1.bf16.msra.mxu0 %v841
  %1224 = vmatprep.subr.bf16.mxu0 0
  %1225 = vmatpush1.bf16.msra.mxu0 %v842
  %1226 = vmatprep.subr.bf16.mxu0 0
  %1227 = vmatpush1.bf16.msra.mxu0 %v843
  %1228 = vmatprep.subr.bf16.mxu0 0
  %1229 = vmatpush1.bf16.msra.mxu0 %v844
  %1230 = vmatprep.subr.bf16.mxu0 0
  %1231 = vmatpush1.bf16.msra.mxu0 %v845
  %1232 = vmatprep.subr.bf16.mxu0 0
  %1233 = vmatpush1.bf16.msra.mxu0 %v846
  %1234 = vmatprep.mubr.bf16.mxu0 %v406
  %1235 = vmatmul.mubr.bf16.gmra.mrb[0].mxu0 %v405
  %v1236 = vpop.f32.mrb[0].mxu0
  %v1237 = vadd.f32 %v1140, %v1236
  %v1238 = vpop.f32.mrb[0].mxu0
  %v1239 = vpop.f32.mrb[0].mxu0
  %v1240 = vadd.f32 %v1143, %v1239
  %v1241 = vpop.f32.mrb[0].mxu0
  %1242 = vmatprep.mubr.bf16.mxu0 %v414
  %1243 = vmatmul.mubr.bf16.gmra.mrb[0].mxu0 %v413
  %v1244 = vpop.f32.mrb[0].mxu0
  %v1245 = vadd.f32 %v1148, %v1244
  %v1246 = vpop.f32.mrb[0].mxu0
  %v1247 = vpop.f32.mrb[0].mxu0
  %v1248 = vadd.f32 %v1151, %v1247
  %v1249 = vpop.f32.mrb[0].mxu0
  %1250 = vmatprep.mubr.bf16.mxu0 %v422
  %1251 = vmatmul.mubr.bf16.gmra.mrb[0].mxu0 %v421
  %v1252 = vpop.f32.mrb[0].mxu0
  %v1253 = vadd.f32 %v1156, %v1252
  %v1254 = vpop.f32.mrb[0].mxu0
  %v1255 = vpop.f32.mrb[0].mxu0
  %v1256 = vadd.f32 %v1159, %v1255
  %v1257 = vpop.f32.mrb[0].mxu0
  %1258 = vmatprep.mubr.bf16.mxu0 %v430
  %1259 = vmatmul.mubr.bf16.gmra.mrb[0].mxu0 %v429
  %v1260 = vpop.f32.mrb[0].mxu0
  %v1261 = vadd.f32 %v1164, %v1260
  %v1262 = vpop.f32.mrb[0].mxu0
  %v1263 = vpop.f32.mrb[0].mxu0
  %v1264 = vadd.f32 %v1167, %v1263
  %v1265 = vpop.f32.mrb[0].mxu0
  %1266 = vmatprep.mubr.bf16.mxu0 %v438
  %1267 = vmatmul.mubr.bf16.gmra.mrb[0].mxu0 %v437
  %v1268 = vpop.f32.mrb[0].mxu0
  %v1269 = vadd.f32 %v1172, %v1268
  %v1270 = vpop.f32.mrb[0].mxu0
  %v1271 = vpop.f32.mrb[0].mxu0
  %v1272 = vadd.f32 %v1175, %v1271
  %v1273 = vpop.f32.mrb[0].mxu0
  %1274 = vmatprep.mubr.bf16.mxu0 %v446
  %1275 = vmatmul.mubr.bf16.gmra.mrb[0].mxu0 %v445
  %v1276 = vpop.f32.mrb[0].mxu0
  %v1277 = vadd.f32 %v1180, %v1276
  %v1278 = vpop.f32.mrb[0].mxu0
  %v1279 = vpop.f32.mrb[0].mxu0
  %v1280 = vadd.f32 %v1183, %v1279
  %v1281 = vpop.f32.mrb[0].mxu0
  %1282 = vmatprep.mubr.bf16.mxu0 %v454
  %1283 = vmatmul.mubr.bf16.gmra.mrb[0].mxu0 %v453
  %v1284 = vpop.f32.mrb[0].mxu0
  %v1285 = vadd.f32 %v1188, %v1284
  %v1286 = vpop.f32.mrb[0].mxu0
  %v1287 = vpop.f32.mrb[0].mxu0
  %v1288 = vadd.f32 %v1191, %v1287
  %v1289 = vpop.f32.mrb[0].mxu0
  %1290 = vmatprep.mubr.bf16.mxu0 %v462
  %1291 = vmatmul.mubr.bf16.gmra.mrb[0].mxu0 %v461
  %v1292 = vpop.f32.mrb[0].mxu0
  %v1293 = vadd.f32 %v1196, %v1292
  %v1294 = vpop.f32.mrb[0].mxu0
  %v1295 = vpop.f32.mrb[0].mxu0
  %v1296 = vadd.f32 %v1199, %v1295
  %v1297 = vpop.f32.mrb[0].mxu0
  %1298 = vdwg.mxu0
  %vm1299 = vcmask 261120
  %v1300 = vsel %vm1299, %v1237, 0.0
  %v1301 = vsel %vm1299, %v1240, 0.0
  %v1302 = vadd.f32 %v1300, %v1301
  %v1303 = vsel %vm1299, %v1245, 0.0
  %v1304 = vadd.f32 %v1302, %v1303
  %v1305 = vsel %vm1299, %v1248, 0.0
  %v1306 = vadd.f32 %v1304, %v1305
  %v1307 = vsel %vm1299, %v1253, 0.0
  %v1308 = vadd.f32 %v1306, %v1307
  %v1309 = vsel %vm1299, %v1256, 0.0
  %v1310 = vadd.f32 %v1308, %v1309
  %v1311 = vsel %vm1299, %v1261, 0.0
  %v1312 = vadd.f32 %v1310, %v1311
  %v1313 = vsel %vm1299, %v1264, 0.0
  %v1314 = vadd.f32 %v1312, %v1313
  %v1315 = vsel %vm1299, %v1269, 0.0
  %v1316 = vadd.f32 %v1314, %v1315
  %v1317 = vsel %vm1299, %v1272, 0.0
  %v1318 = vadd.f32 %v1316, %v1317
  %v1319 = vsel %vm1299, %v1277, 0.0
  %v1320 = vadd.f32 %v1318, %v1319
  %v1321 = vsel %vm1299, %v1280, 0.0
  %v1322 = vadd.f32 %v1320, %v1321
  %v1323 = vsel %vm1299, %v1285, 0.0
  %v1324 = vadd.f32 %v1322, %v1323
  %v1325 = vsel %vm1299, %v1288, 0.0
  %v1326 = vadd.f32 %v1324, %v1325
  %v1327 = vsel %vm1299, %v1293, 0.0
  %v1328 = vadd.f32 %v1326, %v1327
  %v1329 = vsel %vm1299, %v1296, 0.0
  %v1330 = vadd.f32 %v1328, %v1329
  %v1331 = vrot.slane %v1330, 4
  %v1332 = vadd.f32 %v1330, %v1331
  %v1333 = vrot.slane %v1332, 2
  %v1334 = vadd.f32 %v1332, %v1333
  %v1335 = vrot.slane %v1334, 1
  %v1336 = vadd.f32 %v1334, %v1335
  %v1337 = vmul.f32 %v1336, 0.0078125
  %v1338 = vsub.f32 %v1237, %v1337
  %v1339 = vsub.f32 %v1240, %v1337
  %v1340 = vsub.f32 %v1245, %v1337
  %v1341 = vsub.f32 %v1248, %v1337
  %v1342 = vsub.f32 %v1253, %v1337
  %v1343 = vsub.f32 %v1256, %v1337
  %v1344 = vsub.f32 %v1261, %v1337
  %v1345 = vsub.f32 %v1264, %v1337
  %v1346 = vsub.f32 %v1269, %v1337
  %v1347 = vsub.f32 %v1272, %v1337
  %v1348 = vsub.f32 %v1277, %v1337
  %v1349 = vsub.f32 %v1280, %v1337
  %v1350 = vsub.f32 %v1285, %v1337
  %v1351 = vsub.f32 %v1288, %v1337
  %v1352 = vsub.f32 %v1293, %v1337
  %v1353 = vsub.f32 %v1296, %v1337
  %v1354 = vmul.f32 %v1338, %v1338
  %v1355 = vmul.f32 %v1339, %v1339
  %v1356 = vmul.f32 %v1340, %v1340
  %v1357 = vmul.f32 %v1341, %v1341
  %v1358 = vmul.f32 %v1342, %v1342
  %v1359 = vmul.f32 %v1343, %v1343
  %v1360 = vmul.f32 %v1344, %v1344
  %v1361 = vmul.f32 %v1345, %v1345
  %v1362 = vmul.f32 %v1346, %v1346
  %v1363 = vmul.f32 %v1347, %v1347
  %v1364 = vmul.f32 %v1348, %v1348
  %v1365 = vmul.f32 %v1349, %v1349
  %v1366 = vmul.f32 %v1350, %v1350
  %v1367 = vmul.f32 %v1351, %v1351
  %v1368 = vmul.f32 %v1352, %v1352
  %v1369 = vmul.f32 %v1353, %v1353
  %v1370 = vsel %vm1299, %v1354, 0.0
  %v1371 = vsel %vm1299, %v1355, 0.0
  %v1372 = vadd.f32 %v1370, %v1371
  %v1373 = vsel %vm1299, %v1356, 0.0
  %v1374 = vadd.f32 %v1372, %v1373
  %v1375 = vsel %vm1299, %v1357, 0.0
  %v1376 = vadd.f32 %v1374, %v1375
  %v1377 = vsel %vm1299, %v1358, 0.0
  %v1378 = vadd.f32 %v1376, %v1377
  %v1379 = vsel %vm1299, %v1359, 0.0
  %v1380 = vadd.f32 %v1378, %v1379
  %v1381 = vsel %vm1299, %v1360, 0.0
  %v1382 = vadd.f32 %v1380, %v1381
  %v1383 = vsel %vm1299, %v1361, 0.0
  %v1384 = vadd.f32 %v1382, %v1383
  %v1385 = vsel %vm1299, %v1362, 0.0
  %v1386 = vadd.f32 %v1384, %v1385
  %v1387 = vsel %vm1299, %v1363, 0.0
  %v1388 = vadd.f32 %v1386, %v1387
  %v1389 = vsel %vm1299, %v1364, 0.0
  %v1390 = vadd.f32 %v1388, %v1389
  %v1391 = vsel %vm1299, %v1365, 0.0
  %v1392 = vadd.f32 %v1390, %v1391
  %v1393 = vsel %vm1299, %v1366, 0.0
  %v1394 = vadd.f32 %v1392, %v1393
  %v1395 = vsel %vm1299, %v1367, 0.0
  %v1396 = vadd.f32 %v1394, %v1395
  %v1397 = vsel %vm1299, %v1368, 0.0
  %v1398 = vadd.f32 %v1396, %v1397
  %v1399 = vsel %vm1299, %v1369, 0.0
  %v1400 = vadd.f32 %v1398, %v1399
  %v1401 = vrot.slane %v1400, 4
  %v1402 = vadd.f32 %v1400, %v1401
  %v1403 = vrot.slane %v1402, 2
  %v1404 = vadd.f32 %v1402, %v1403
  %v1405 = vrot.slane %v1404, 1
  %v1406 = vadd.f32 %v1404, %v1405
  %v1407 = vmul.f32 %v1406, 0.0078125
  %v1408 = vld [vmem:[%s2] sm:$0x3]
  %v1409 = vadd.f32 %v1407, 1e-05
  %v1410 = vrsqrt.pop %v1409
  %v1411 = vmul.f32 %v1408, %v1410
  %v1412 = vlaneseq
  %v1413 = vshrl.u32 %v1412, 7
  %v1414 = vsub.s32 0, %v1413
  %v1415 = vrot.slane %v1411, %v1414
  %v1416 = vmul.f32 %v1338, %v1415
  %v1417 = vmul.f32 %v1339, %v1415
  %v1418 = vmul.f32 %v1340, %v1415
  %v1419 = vmul.f32 %v1341, %v1415
  %v1420 = vmul.f32 %v1342, %v1415
  %v1421 = vmul.f32 %v1343, %v1415
  %v1422 = vmul.f32 %v1344, %v1415
  %v1423 = vmul.f32 %v1345, %v1415
  %v1424 = vmul.f32 %v1346, %v1415
  %v1425 = vmul.f32 %v1347, %v1415
  %v1426 = vmul.f32 %v1348, %v1415
  %v1427 = vmul.f32 %v1349, %v1415
  %v1428 = vmul.f32 %v1350, %v1415
  %v1429 = vmul.f32 %v1351, %v1415
  %v1430 = vmul.f32 %v1352, %v1415
  %v1431 = vmul.f32 %v1353, %v1415
  %v1432 = vlaneseq
  %v1433 = vshrl.u32 %v1432, 7
  %v1434 = vsub.s32 1, %v1433
  %v1435 = vrot.slane %v1408, %v1434
  %v1436 = vadd.f32 %v1416, %v1435
  %v1437 = vadd.f32 %v1417, %v1435
  %v1438 = vadd.f32 %v1418, %v1435
  %v1439 = vadd.f32 %v1419, %v1435
  %v1440 = vadd.f32 %v1420, %v1435
  %v1441 = vadd.f32 %v1421, %v1435
  %v1442 = vadd.f32 %v1422, %v1435
  %v1443 = vadd.f32 %v1423, %v1435
  %v1444 = vadd.f32 %v1424, %v1435
  %v1445 = vadd.f32 %v1425, %v1435
  %v1446 = vadd.f32 %v1426, %v1435
  %v1447 = vadd.f32 %v1427, %v1435
  %v1448 = vadd.f32 %v1428, %v1435
  %v1449 = vadd.f32 %v1429, %v1435
  %v1450 = vadd.f32 %v1430, %v1435
  %v1451 = vadd.f32 %v1431, %v1435
  %v1452 = vmax.f32 %v1436, 0.0
  %v1453 = vmax.f32 %v1437, 0.0
  %v1454 = vmax.f32 %v1438, 0.0
  %v1455 = vmax.f32 %v1439, 0.0
  %v1456 = vmax.f32 %v1440, 0.0
  %v1457 = vmax.f32 %v1441, 0.0
  %v1458 = vmax.f32 %v1442, 0.0
  %v1459 = vmax.f32 %v1443, 0.0
  %v1460 = vmax.f32 %v1444, 0.0
  %v1461 = vmax.f32 %v1445, 0.0
  %v1462 = vmax.f32 %v1446, 0.0
  %v1463 = vmax.f32 %v1447, 0.0
  %v1464 = vmax.f32 %v1448, 0.0
  %v1465 = vmax.f32 %v1449, 0.0
  %v1466 = vmax.f32 %v1450, 0.0
  %v1467 = vmax.f32 %v1451, 0.0
  %v1468 = vpack.c.bf16 %v1453, %v1452
  %v1469 = vpack.c.bf16 %v1455, %v1454
  %v1470 = vpack.c.bf16 %v1457, %v1456
  %v1471 = vpack.c.bf16 %v1459, %v1458
  %v1472 = vpack.c.bf16 %v1461, %v1460
  %v1473 = vpack.c.bf16 %v1463, %v1462
  %v1474 = vpack.c.bf16 %v1465, %v1464
  %v1475 = vpack.c.bf16 %v1467, %v1466
  %v1484 = vunpack.c.l.b16 %v1468
  %v1485 = vunpack.c.h.b16 %v1468
  %v1486 = vunpack.c.l.b16 %v1469
  %v1487 = vunpack.c.h.b16 %v1469
  %v1488 = vunpack.c.l.b16 %v1470
  %v1489 = vunpack.c.h.b16 %v1470
  %v1490 = vunpack.c.l.b16 %v1471
  %v1491 = vunpack.c.h.b16 %v1471
  %v1492 = vunpack.c.l.b16 %v1472
  %v1493 = vunpack.c.h.b16 %v1472
  %v1494 = vunpack.c.l.b16 %v1473
  %v1495 = vunpack.c.h.b16 %v1473
  %v1496 = vunpack.c.l.b16 %v1474
  %v1497 = vunpack.c.h.b16 %v1474
  %v1498 = vunpack.c.l.b16 %v1475
  %v1499 = vunpack.c.h.b16 %v1475
  %v1500 = vpack.c.b16 %v1484, %v1484
  %v1501 = vpack.c.b16 %v1485, %v1485
  %v1502 = vpack.c.b16 %v1486, %v1486
  %v1503 = vpack.c.b16 %v1487, %v1487
  %v1504 = vpack.c.b16 %v1488, %v1488
  %v1505 = vpack.c.b16 %v1489, %v1489
  %v1506 = vpack.c.b16 %v1490, %v1490
  %v1507 = vpack.c.b16 %v1491, %v1491
  %v1508 = vpack.c.b16 %v1492, %v1492
  %v1509 = vpack.c.b16 %v1493, %v1493
  %v1510 = vpack.c.b16 %v1494, %v1494
  %v1511 = vpack.c.b16 %v1495, %v1495
  %v1512 = vpack.c.b16 %v1496, %v1496
  %v1513 = vpack.c.b16 %v1497, %v1497
  %v1514 = vpack.c.b16 %v1498, %v1498
  %v1515 = vpack.c.b16 %v1499, %v1499
  %vm1532 = vcmask 257024
  %1533 = vst.msk [vmem:[%s3] sm:$0xf] %vm1532, %v1500
  %1534 = vst.msk [vmem:[%s3 + $0x4] sm:$0xf] %vm1532, %v1501
  %1535 = vst.msk [vmem:[%s3 + $0x8] sm:$0xf] %vm1532, %v1502
  %1536 = vst.msk [vmem:[%s3 + $0xc] sm:$0xf] %vm1532, %v1503
  %1537 = vst.msk [vmem:[%s3 + $0x10] sm:$0xf] %vm1532, %v1504
  %1538 = vst.msk [vmem:[%s3 + $0x14] sm:$0xf] %vm1532, %v1505
  %1539 = vst.msk [vmem:[%s3 + $0x18] sm:$0xf] %vm1532, %v1506
  %1540 = vst.msk [vmem:[%s3 + $0x1c] sm:$0xf] %vm1532, %v1507
  %1541 = vst.msk [vmem:[%s3 + $0x20] sm:$0xf] %vm1532, %v1508
  %1542 = vst.msk [vmem:[%s3 + $0x24] sm:$0xf] %vm1532, %v1509
  %1543 = vst.msk [vmem:[%s3 + $0x28] sm:$0xf] %vm1532, %v1510
  %1544 = vst.msk [vmem:[%s3 + $0x2c] sm:$0xf] %vm1532, %v1511
  %1545 = vst.msk [vmem:[%s3 + $0x30] sm:$0xf] %vm1532, %v1512
  %1546 = vst.msk [vmem:[%s3 + $0x34] sm:$0xf] %vm1532, %v1513
  %1547 = vst.msk [vmem:[%s3 + $0x38] sm:$0xf] %vm1532, %v1514
  %1548 = vst.msk [vmem:[%s3 + $0x3c] sm:$0xf] %vm1532, %v1515
  // Predicated region
  $region14: #{_lambda_.6} parent=0 // pred_check
    _
  $region15: #{_lambda_.6} parent=0 // pred_check_branch
    %1550 = sbr.rel (0) target = $region17
  $region16: #{_lambda_.6} parent=0 // pred_region
    _
  $region17: #{_lambda_.6} parent=0 // pred_fallthru
    _
  // Predicated region
  $region18: #{_lambda_.6} parent=0 // pred_check
    _
  $region19: #{_lambda_.6} parent=0 // pred_check_branch
    %1552 = sbr.rel (0) target = $region21
  $region20: #{_lambda_.6} parent=0 // pred_region
    _
  $region21: #{_lambda_.6} parent=0 // pred_fallthru
    _

// kernel: _lambda_.7
$region0: #{_lambda_.7}
  #allocation0 [shape = 'u32[]', space=smem, size = 0x4, offset = 0x4, fixed_abs, tag = 'smem constant byte address 0x4 - core index']
  #allocation1 [shape = 'u32[144,128]{1,0:T(1,128)}', space=vmem, size = 0x12000, scoped, tag = 'internal scratch']
  %s0 = inlined_call_operand.vmem [shape: bf16[512,512], index: 0, kind: input, shape index: {}]
  %s1 = inlined_call_operand.vmem [shape: bf16[512,16], index: 1, kind: input, shape index: {}]
  %s2 = inlined_call_operand.vmem [shape: f32[2,16], index: 2, kind: input, shape index: {}]
  %s3 = inlined_call_operand.vmem [shape: bf16[512,16], index: 3, kind: output, shape index: {}]
  %s4 = sld [smem:[#allocation0]]
  $region22: #{_lambda_.7} parent=0
    _
  %s6 = ssub.s32 1, %s4
  %s7 = scalar_select 0, %s6, %s4
  // Predicated region
  $region2: #{_lambda_.7} parent=0 // pred_check
    _
  $region3: #{_lambda_.7} parent=0 // pred_check_branch
    %9 = sbr.rel (0) target = $region5
  $region4: #{_lambda_.7} parent=0 // pred_region
    _
  $region5: #{_lambda_.7} parent=0 // pred_fallthru
    _
  // Predicated region
  $region6: #{_lambda_.7} parent=0 // pred_check
    _
  $region7: #{_lambda_.7} parent=0 // pred_check_branch
    %11 = sbr.rel (0) target = $region9
  $region8: #{_lambda_.7} parent=0 // pred_region
    _
  $region9: #{_lambda_.7} parent=0 // pred_fallthru
    _
  // Predicated region
  $region10: #{_lambda_.7} parent=0 // pred_check
    _
  $region11: #{_lambda_.7} parent=0 // pred_check_branch
    %13 = sbr.rel (0) target = $region13
  $region12: #{_lambda_.7} parent=0 // pred_region
    _
  $region13: #{_lambda_.7} parent=0 // pred_fallthru
    _
  %v15 = vld [vmem:[%s0] sm:$0xff]
  %v16 = vld [vmem:[%s0 + $0x8] sm:$0xff]
  %v17 = vld [vmem:[%s0 + $0x10] sm:$0xff]
  %v18 = vld [vmem:[%s0 + $0x18] sm:$0xff]
  %v19 = vld [vmem:[%s0 + $0x20] sm:$0xff]
  %v20 = vld [vmem:[%s0 + $0x28] sm:$0xff]
  %v21 = vld [vmem:[%s0 + $0x30] sm:$0xff]
  %v22 = vld [vmem:[%s0 + $0x38] sm:$0xff]
  %v23 = vld [vmem:[%s0 + $0x40] sm:$0xff]
  %v24 = vld [vmem:[%s0 + $0x48] sm:$0xff]
  %v25 = vld [vmem:[%s0 + $0x50] sm:$0xff]
  %v26 = vld [vmem:[%s0 + $0x58] sm:$0xff]
  %v27 = vld [vmem:[%s0 + $0x60] sm:$0xff]
  %v28 = vld [vmem:[%s0 + $0x68] sm:$0xff]
  %v29 = vld [vmem:[%s0 + $0x70] sm:$0xff]
  %v30 = vld [vmem:[%s0 + $0x78] sm:$0xff]
  %v31 = vld [vmem:[%s0 + $0x80] sm:$0xff]
  %v32 = vld [vmem:[%s0 + $0x88] sm:$0xff]
  %v33 = vld [vmem:[%s0 + $0x90] sm:$0xff]
  %v34 = vld [vmem:[%s0 + $0x98] sm:$0xff]
  %v35 = vld [vmem:[%s0 + $0xa0] sm:$0xff]
  %v36 = vld [vmem:[%s0 + $0xa8] sm:$0xff]
  %v37 = vld [vmem:[%s0 + $0xb0] sm:$0xff]
  %v38 = vld [vmem:[%s0 + $0xb8] sm:$0xff]
  %v39 = vld [vmem:[%s0 + $0xc0] sm:$0xff]
  %v40 = vld [vmem:[%s0 + $0xc8] sm:$0xff]
  %v41 = vld [vmem:[%s0 + $0xd0] sm:$0xff]
  %v42 = vld [vmem:[%s0 + $0xd8] sm:$0xff]
  %v43 = vld [vmem:[%s0 + $0xe0] sm:$0xff]
  %v44 = vld [vmem:[%s0 + $0xe8] sm:$0xff]
  %v45 = vld [vmem:[%s0 + $0xf0] sm:$0xff]
  %v46 = vld [vmem:[%s0 + $0xf8] sm:$0xff]
  %v47 = vld [vmem:[%s0 + $0x100] sm:$0xff]
  %v48 = vld [vmem:[%s0 + $0x108] sm:$0xff]
  %v49 = vld [vmem:[%s0 + $0x110] sm:$0xff]
  %v50 = vld [vmem:[%s0 + $0x118] sm:$0xff]
  %v51 = vld [vmem:[%s0 + $0x120] sm:$0xff]
  %v52 = vld [vmem:[%s0 + $0x128] sm:$0xff]
  %v53 = vld [vmem:[%s0 + $0x130] sm:$0xff]
  %v54 = vld [vmem:[%s0 + $0x138] sm:$0xff]
  %v55 = vld [vmem:[%s0 + $0x140] sm:$0xff]
  %v56 = vld [vmem:[%s0 + $0x148] sm:$0xff]
  %v57 = vld [vmem:[%s0 + $0x150] sm:$0xff]
  %v58 = vld [vmem:[%s0 + $0x158] sm:$0xff]
  %v59 = vld [vmem:[%s0 + $0x160] sm:$0xff]
  %v60 = vld [vmem:[%s0 + $0x168] sm:$0xff]
  %v61 = vld [vmem:[%s0 + $0x170] sm:$0xff]
  %v62 = vld [vmem:[%s0 + $0x178] sm:$0xff]
  %v63 = vld [vmem:[%s0 + $0x180] sm:$0xff]
  %v64 = vld [vmem:[%s0 + $0x188] sm:$0xff]
  %v65 = vld [vmem:[%s0 + $0x190] sm:$0xff]
  %v66 = vld [vmem:[%s0 + $0x198] sm:$0xff]
  %v67 = vld [vmem:[%s0 + $0x1a0] sm:$0xff]
  %v68 = vld [vmem:[%s0 + $0x1a8] sm:$0xff]
  %v69 = vld [vmem:[%s0 + $0x1b0] sm:$0xff]
  %v70 = vld [vmem:[%s0 + $0x1b8] sm:$0xff]
  %v71 = vld [vmem:[%s0 + $0x1c0] sm:$0xff]
  %v72 = vld [vmem:[%s0 + $0x1c8] sm:$0xff]
  %v73 = vld [vmem:[%s0 + $0x1d0] sm:$0xff]
  %v74 = vld [vmem:[%s0 + $0x1d8] sm:$0xff]
  %v75 = vld [vmem:[%s0 + $0x1e0] sm:$0xff]
  %v76 = vld [vmem:[%s0 + $0x1e8] sm:$0xff]
  %v77 = vld [vmem:[%s0 + $0x1f0] sm:$0xff]
  %v78 = vld [vmem:[%s0 + $0x1f8] sm:$0xff]
  %v79 = vld [vmem:[%s0 + $0x200] sm:$0xff]
  %v80 = vld [vmem:[%s0 + $0x208] sm:$0xff]
  %v81 = vld [vmem:[%s0 + $0x210] sm:$0xff]
  %v82 = vld [vmem:[%s0 + $0x218] sm:$0xff]
  %v83 = vld [vmem:[%s0 + $0x220] sm:$0xff]
  %v84 = vld [vmem:[%s0 + $0x228] sm:$0xff]
  %v85 = vld [vmem:[%s0 + $0x230] sm:$0xff]
  %v86 = vld [vmem:[%s0 + $0x238] sm:$0xff]
  %v87 = vld [vmem:[%s0 + $0x240] sm:$0xff]
  %v88 = vld [vmem:[%s0 + $0x248] sm:$0xff]
  %v89 = vld [vmem:[%s0 + $0x250] sm:$0xff]
  %v90 = vld [vmem:[%s0 + $0x258] sm:$0xff]
  %v91 = vld [vmem:[%s0 + $0x260] sm:$0xff]
  %v92 = vld [vmem:[%s0 + $0x268] sm:$0xff]
  %v93 = vld [vmem:[%s0 + $0x270] sm:$0xff]
  %v94 = vld [vmem:[%s0 + $0x278] sm:$0xff]
  %v95 = vld [vmem:[%s0 + $0x280] sm:$0xff]
  %v96 = vld [vmem:[%s0 + $0x288] sm:$0xff]
  %v97 = vld [vmem:[%s0 + $0x290] sm:$0xff]
  %v98 = vld [vmem:[%s0 + $0x298] sm:$0xff]
  %v99 = vld [vmem:[%s0 + $0x2a0] sm:$0xff]
  %v100 = vld [vmem:[%s0 + $0x2a8] sm:$0xff]
  %v101 = vld [vmem:[%s0 + $0x2b0] sm:$0xff]
  %v102 = vld [vmem:[%s0 + $0x2b8] sm:$0xff]
  %v103 = vld [vmem:[%s0 + $0x2c0] sm:$0xff]
  %v104 = vld [vmem:[%s0 + $0x2c8] sm:$0xff]
  %v105 = vld [vmem:[%s0 + $0x2d0] sm:$0xff]
  %v106 = vld [vmem:[%s0 + $0x2d8] sm:$0xff]
  %v107 = vld [vmem:[%s0 + $0x2e0] sm:$0xff]
  %v108 = vld [vmem:[%s0 + $0x2e8] sm:$0xff]
  %v109 = vld [vmem:[%s0 + $0x2f0] sm:$0xff]
  %v110 = vld [vmem:[%s0 + $0x2f8] sm:$0xff]
  %v111 = vld [vmem:[%s0 + $0x300] sm:$0xff]
  %v112 = vld [vmem:[%s0 + $0x308] sm:$0xff]
  %v113 = vld [vmem:[%s0 + $0x310] sm:$0xff]
  %v114 = vld [vmem:[%s0 + $0x318] sm:$0xff]
  %v115 = vld [vmem:[%s0 + $0x320] sm:$0xff]
  %v116 = vld [vmem:[%s0 + $0x328] sm:$0xff]
  %v117 = vld [vmem:[%s0 + $0x330] sm:$0xff]
  %v118 = vld [vmem:[%s0 + $0x338] sm:$0xff]
  %v119 = vld [vmem:[%s0 + $0x340] sm:$0xff]
  %v120 = vld [vmem:[%s0 + $0x348] sm:$0xff]
  %v121 = vld [vmem:[%s0 + $0x350] sm:$0xff]
  %v122 = vld [vmem:[%s0 + $0x358] sm:$0xff]
  %v123 = vld [vmem:[%s0 + $0x360] sm:$0xff]
  %v124 = vld [vmem:[%s0 + $0x368] sm:$0xff]
  %v125 = vld [vmem:[%s0 + $0x370] sm:$0xff]
  %v126 = vld [vmem:[%s0 + $0x378] sm:$0xff]
  %v127 = vld [vmem:[%s0 + $0x380] sm:$0xff]
  %v128 = vld [vmem:[%s0 + $0x388] sm:$0xff]
  %v129 = vld [vmem:[%s0 + $0x390] sm:$0xff]
  %v130 = vld [vmem:[%s0 + $0x398] sm:$0xff]
  %v131 = vld [vmem:[%s0 + $0x3a0] sm:$0xff]
  %v132 = vld [vmem:[%s0 + $0x3a8] sm:$0xff]
  %v133 = vld [vmem:[%s0 + $0x3b0] sm:$0xff]
  %v134 = vld [vmem:[%s0 + $0x3b8] sm:$0xff]
  %v135 = vld [vmem:[%s0 + $0x3c0] sm:$0xff]
  %v136 = vld [vmem:[%s0 + $0x3c8] sm:$0xff]
  %v137 = vld [vmem:[%s0 + $0x3d0] sm:$0xff]
  %v138 = vld [vmem:[%s0 + $0x3d8] sm:$0xff]
  %v139 = vld [vmem:[%s0 + $0x3e0] sm:$0xff]
  %v140 = vld [vmem:[%s0 + $0x3e8] sm:$0xff]
  %v141 = vld [vmem:[%s0 + $0x3f0] sm:$0xff]
  %v142 = vld [vmem:[%s0 + $0x3f8] sm:$0xff]
  %v143 = vld [vmem:[%s1] sm:$0xf]
  %v144 = vld [vmem:[%s1 + $0x4] sm:$0xf]
  %v145 = vld [vmem:[%s1 + $0x8] sm:$0xf]
  %v146 = vld [vmem:[%s1 + $0xc] sm:$0xf]
  %v147 = vld [vmem:[%s1 + $0x10] sm:$0xf]
  %v148 = vld [vmem:[%s1 + $0x14] sm:$0xf]
  %v149 = vld [vmem:[%s1 + $0x18] sm:$0xf]
  %v150 = vld [vmem:[%s1 + $0x1c] sm:$0xf]
  %v151 = vld [vmem:[%s1 + $0x20] sm:$0xf]
  %v152 = vld [vmem:[%s1 + $0x24] sm:$0xf]
  %v153 = vld [vmem:[%s1 + $0x28] sm:$0xf]
  %v154 = vld [vmem:[%s1 + $0x2c] sm:$0xf]
  %v155 = vld [vmem:[%s1 + $0x30] sm:$0xf]
  %v156 = vld [vmem:[%s1 + $0x34] sm:$0xf]
  %v157 = vld [vmem:[%s1 + $0x38] sm:$0xf]
  %v158 = vld [vmem:[%s1 + $0x3c] sm:$0xf]
  %v159 = vld [vmem:[%s1 + $0x40] sm:$0xf]
  %v160 = vld [vmem:[%s1 + $0x44] sm:$0xf]
  %v161 = vld [vmem:[%s1 + $0x48] sm:$0xf]
  %v162 = vld [vmem:[%s1 + $0x4c] sm:$0xf]
  %v163 = vld [vmem:[%s1 + $0x50] sm:$0xf]
  %v164 = vld [vmem:[%s1 + $0x54] sm:$0xf]
  %v165 = vld [vmem:[%s1 + $0x58] sm:$0xf]
  %v166 = vld [vmem:[%s1 + $0x5c] sm:$0xf]
  %v167 = vld [vmem:[%s1 + $0x60] sm:$0xf]
  %v168 = vld [vmem:[%s1 + $0x64] sm:$0xf]
  %v169 = vld [vmem:[%s1 + $0x68] sm:$0xf]
  %v170 = vld [vmem:[%s1 + $0x6c] sm:$0xf]
  %v171 = vld [vmem:[%s1 + $0x70] sm:$0xf]
  %v172 = vld [vmem:[%s1 + $0x74] sm:$0xf]
  %v173 = vld [vmem:[%s1 + $0x78] sm:$0xf]
  %v174 = vld [vmem:[%s1 + $0x7c] sm:$0xf]
  %v175 = vld [vmem:[%s1 + $0x80] sm:$0xf]
  %v176 = vld [vmem:[%s1 + $0x84] sm:$0xf]
  %v177 = vld [vmem:[%s1 + $0x88] sm:$0xf]
  %v178 = vld [vmem:[%s1 + $0x8c] sm:$0xf]
  %v179 = vld [vmem:[%s1 + $0x90] sm:$0xf]
  %v180 = vld [vmem:[%s1 + $0x94] sm:$0xf]
  %v181 = vld [vmem:[%s1 + $0x98] sm:$0xf]
  %v182 = vld [vmem:[%s1 + $0x9c] sm:$0xf]
  %v183 = vld [vmem:[%s1 + $0xa0] sm:$0xf]
  %v184 = vld [vmem:[%s1 + $0xa4] sm:$0xf]
  %v185 = vld [vmem:[%s1 + $0xa8] sm:$0xf]
  %v186 = vld [vmem:[%s1 + $0xac] sm:$0xf]
  %v187 = vld [vmem:[%s1 + $0xb0] sm:$0xf]
  %v188 = vld [vmem:[%s1 + $0xb4] sm:$0xf]
  %v189 = vld [vmem:[%s1 + $0xb8] sm:$0xf]
  %v190 = vld [vmem:[%s1 + $0xbc] sm:$0xf]
  %v191 = vld [vmem:[%s1 + $0xc0] sm:$0xf]
  %v192 = vld [vmem:[%s1 + $0xc4] sm:$0xf]
  %v193 = vld [vmem:[%s1 + $0xc8] sm:$0xf]
  %v194 = vld [vmem:[%s1 + $0xcc] sm:$0xf]
  %v195 = vld [vmem:[%s1 + $0xd0] sm:$0xf]
  %v196 = vld [vmem:[%s1 + $0xd4] sm:$0xf]
  %v197 = vld [vmem:[%s1 + $0xd8] sm:$0xf]
  %v198 = vld [vmem:[%s1 + $0xdc] sm:$0xf]
  %v199 = vld [vmem:[%s1 + $0xe0] sm:$0xf]
  %v200 = vld [vmem:[%s1 + $0xe4] sm:$0xf]
  %v201 = vld [vmem:[%s1 + $0xe8] sm:$0xf]
  %v202 = vld [vmem:[%s1 + $0xec] sm:$0xf]
  %v203 = vld [vmem:[%s1 + $0xf0] sm:$0xf]
  %v204 = vld [vmem:[%s1 + $0xf4] sm:$0xf]
  %v205 = vld [vmem:[%s1 + $0xf8] sm:$0xf]
  %v206 = vld [vmem:[%s1 + $0xfc] sm:$0xf]
  %v335 = vunpack.c.l.b16 %v15
  %v336 = vunpack.c.h.b16 %v15
  %v337 = vunpack.c.l.b16 %v16
  %v338 = vunpack.c.h.b16 %v16
  %v339 = vunpack.c.l.b16 %v17
  %v340 = vunpack.c.h.b16 %v17
  %v341 = vunpack.c.l.b16 %v18
  %v342 = vunpack.c.h.b16 %v18
  %v343 = vunpack.c.l.b16 %v19
  %v344 = vunpack.c.h.b16 %v19
  %v345 = vunpack.c.l.b16 %v20
  %v346 = vunpack.c.h.b16 %v20
  %v347 = vunpack.c.l.b16 %v21
  %v348 = vunpack.c.h.b16 %v21
  %v349 = vunpack.c.l.b16 %v22
  %v350 = vunpack.c.h.b16 %v22
  %v351 = vunpack.c.l.b16 %v23
  %v352 = vunpack.c.h.b16 %v23
  %v353 = vunpack.c.l.b16 %v24
  %v354 = vunpack.c.h.b16 %v24
  %v355 = vunpack.c.l.b16 %v25
  %v356 = vunpack.c.h.b16 %v25
  %v357 = vunpack.c.l.b16 %v26
  %v358 = vunpack.c.h.b16 %v26
  %v359 = vunpack.c.l.b16 %v27
  %v360 = vunpack.c.h.b16 %v27
  %v361 = vunpack.c.l.b16 %v28
  %v362 = vunpack.c.h.b16 %v28
  %v363 = vunpack.c.l.b16 %v29
  %v364 = vunpack.c.h.b16 %v29
  %v365 = vunpack.c.l.b16 %v30
  %v366 = vunpack.c.h.b16 %v30
  %v367 = vunpack.c.l.b16 %v31
  %v368 = vunpack.c.h.b16 %v31
  %v369 = vunpack.c.l.b16 %v32
  %v370 = vunpack.c.h.b16 %v32
  %v371 = vunpack.c.l.b16 %v33
  %v372 = vunpack.c.h.b16 %v33
  %v373 = vunpack.c.l.b16 %v34
  %v374 = vunpack.c.h.b16 %v34
  %v375 = vunpack.c.l.b16 %v35
  %v376 = vunpack.c.h.b16 %v35
  %v377 = vunpack.c.l.b16 %v36
  %v378 = vunpack.c.h.b16 %v36
  %v379 = vunpack.c.l.b16 %v37
  %v380 = vunpack.c.h.b16 %v37
  %v381 = vunpack.c.l.b16 %v38
  %v382 = vunpack.c.h.b16 %v38
  %v383 = vunpack.c.l.b16 %v39
  %v384 = vunpack.c.h.b16 %v39
  %v385 = vunpack.c.l.b16 %v40
  %v386 = vunpack.c.h.b16 %v40
  %v387 = vunpack.c.l.b16 %v41
  %v388 = vunpack.c.h.b16 %v41
  %v389 = vunpack.c.l.b16 %v42
  %v390 = vunpack.c.h.b16 %v42
  %v391 = vunpack.c.l.b16 %v43
  %v392 = vunpack.c.h.b16 %v43
  %v393 = vunpack.c.l.b16 %v44
  %v394 = vunpack.c.h.b16 %v44
  %v395 = vunpack.c.l.b16 %v45
  %v396 = vunpack.c.h.b16 %v45
  %v397 = vunpack.c.l.b16 %v46
  %v398 = vunpack.c.h.b16 %v46
  %v399 = vunpack.c.l.b16 %v47
  %v400 = vunpack.c.h.b16 %v47
  %v401 = vunpack.c.l.b16 %v48
  %v402 = vunpack.c.h.b16 %v48
  %v403 = vunpack.c.l.b16 %v49
  %v404 = vunpack.c.h.b16 %v49
  %v405 = vunpack.c.l.b16 %v50
  %v406 = vunpack.c.h.b16 %v50
  %v407 = vunpack.c.l.b16 %v51
  %v408 = vunpack.c.h.b16 %v51
  %v409 = vunpack.c.l.b16 %v52
  %v410 = vunpack.c.h.b16 %v52
  %v411 = vunpack.c.l.b16 %v53
  %v412 = vunpack.c.h.b16 %v53
  %v413 = vunpack.c.l.b16 %v54
  %v414 = vunpack.c.h.b16 %v54
  %v415 = vunpack.c.l.b16 %v55
  %v416 = vunpack.c.h.b16 %v55
  %v417 = vunpack.c.l.b16 %v56
  %v418 = vunpack.c.h.b16 %v56
  %v419 = vunpack.c.l.b16 %v57
  %v420 = vunpack.c.h.b16 %v57
  %v421 = vunpack.c.l.b16 %v58
  %v422 = vunpack.c.h.b16 %v58
  %v423 = vunpack.c.l.b16 %v59
  %v424 = vunpack.c.h.b16 %v59
  %v425 = vunpack.c.l.b16 %v60
  %v426 = vunpack.c.h.b16 %v60
  %v427 = vunpack.c.l.b16 %v61
  %v428 = vunpack.c.h.b16 %v61
  %v429 = vunpack.c.l.b16 %v62
  %v430 = vunpack.c.h.b16 %v62
  %v431 = vunpack.c.l.b16 %v63
  %v432 = vunpack.c.h.b16 %v63
  %v433 = vunpack.c.l.b16 %v64
  %v434 = vunpack.c.h.b16 %v64
  %v435 = vunpack.c.l.b16 %v65
  %v436 = vunpack.c.h.b16 %v65
  %v437 = vunpack.c.l.b16 %v66
  %v438 = vunpack.c.h.b16 %v66
  %v439 = vunpack.c.l.b16 %v67
  %v440 = vunpack.c.h.b16 %v67
  %v441 = vunpack.c.l.b16 %v68
  %v442 = vunpack.c.h.b16 %v68
  %v443 = vunpack.c.l.b16 %v69
  %v444 = vunpack.c.h.b16 %v69
  %v445 = vunpack.c.l.b16 %v70
  %v446 = vunpack.c.h.b16 %v70
  %v447 = vunpack.c.l.b16 %v71
  %v448 = vunpack.c.h.b16 %v71
  %v449 = vunpack.c.l.b16 %v72
  %v450 = vunpack.c.h.b16 %v72
  %v451 = vunpack.c.l.b16 %v73
  %v452 = vunpack.c.h.b16 %v73
  %v453 = vunpack.c.l.b16 %v74
  %v454 = vunpack.c.h.b16 %v74
  %v455 = vunpack.c.l.b16 %v75
  %v456 = vunpack.c.h.b16 %v75
  %v457 = vunpack.c.l.b16 %v76
  %v458 = vunpack.c.h.b16 %v76
  %v459 = vunpack.c.l.b16 %v77
  %v460 = vunpack.c.h.b16 %v77
  %v461 = vunpack.c.l.b16 %v78
  %v462 = vunpack.c.h.b16 %v78
  %v463 = vunpack.c.l.b16 %v79
  %v464 = vunpack.c.h.b16 %v79
  %v465 = vunpack.c.l.b16 %v80
  %v466 = vunpack.c.h.b16 %v80
  %v467 = vunpack.c.l.b16 %v81
  %v468 = vunpack.c.h.b16 %v81
  %v469 = vunpack.c.l.b16 %v82
  %v470 = vunpack.c.h.b16 %v82
  %v471 = vunpack.c.l.b16 %v83
  %v472 = vunpack.c.h.b16 %v83
  %v473 = vunpack.c.l.b16 %v84
  %v474 = vunpack.c.h.b16 %v84
  %v475 = vunpack.c.l.b16 %v85
  %v476 = vunpack.c.h.b16 %v85
  %v477 = vunpack.c.l.b16 %v86
  %v478 = vunpack.c.h.b16 %v86
  %v479 = vunpack.c.l.b16 %v87
  %v480 = vunpack.c.h.b16 %v87
  %v481 = vunpack.c.l.b16 %v88
  %v482 = vunpack.c.h.b16 %v88
  %v483 = vunpack.c.l.b16 %v89
  %v484 = vunpack.c.h.b16 %v89
  %v485 = vunpack.c.l.b16 %v90
  %v486 = vunpack.c.h.b16 %v90
  %v487 = vunpack.c.l.b16 %v91
  %v488 = vunpack.c.h.b16 %v91
  %v489 = vunpack.c.l.b16 %v92
  %v490 = vunpack.c.h.b16 %v92
  %v491 = vunpack.c.l.b16 %v93
  %v492 = vunpack.c.h.b16 %v93
  %v493 = vunpack.c.l.b16 %v94
  %v494 = vunpack.c.h.b16 %v94
  %v495 = vunpack.c.l.b16 %v95
  %v496 = vunpack.c.h.b16 %v95
  %v497 = vunpack.c.l.b16 %v96
  %v498 = vunpack.c.h.b16 %v96
  %v499 = vunpack.c.l.b16 %v97
  %v500 = vunpack.c.h.b16 %v97
  %v501 = vunpack.c.l.b16 %v98
  %v502 = vunpack.c.h.b16 %v98
  %v503 = vunpack.c.l.b16 %v99
  %v504 = vunpack.c.h.b16 %v99
  %v505 = vunpack.c.l.b16 %v100
  %v506 = vunpack.c.h.b16 %v100
  %v507 = vunpack.c.l.b16 %v101
  %v508 = vunpack.c.h.b16 %v101
  %v509 = vunpack.c.l.b16 %v102
  %v510 = vunpack.c.h.b16 %v102
  %v511 = vunpack.c.l.b16 %v103
  %v512 = vunpack.c.h.b16 %v103
  %v513 = vunpack.c.l.b16 %v104
  %v514 = vunpack.c.h.b16 %v104
  %v515 = vunpack.c.l.b16 %v105
  %v516 = vunpack.c.h.b16 %v105
  %v517 = vunpack.c.l.b16 %v106
  %v518 = vunpack.c.h.b16 %v106
  %v519 = vunpack.c.l.b16 %v107
  %v520 = vunpack.c.h.b16 %v107
  %v521 = vunpack.c.l.b16 %v108
  %v522 = vunpack.c.h.b16 %v108
  %v523 = vunpack.c.l.b16 %v109
  %v524 = vunpack.c.h.b16 %v109
  %v525 = vunpack.c.l.b16 %v110
  %v526 = vunpack.c.h.b16 %v110
  %v527 = vunpack.c.l.b16 %v111
  %v528 = vunpack.c.h.b16 %v111
  %v529 = vunpack.c.l.b16 %v112
  %v530 = vunpack.c.h.b16 %v112
  %v531 = vunpack.c.l.b16 %v113
  %v532 = vunpack.c.h.b16 %v113
  %v533 = vunpack.c.l.b16 %v114
  %v534 = vunpack.c.h.b16 %v114
  %v535 = vunpack.c.l.b16 %v115
  %v536 = vunpack.c.h.b16 %v115
  %v537 = vunpack.c.l.b16 %v116
  %v538 = vunpack.c.h.b16 %v116
  %v539 = vunpack.c.l.b16 %v117
  %v540 = vunpack.c.h.b16 %v117
  %v541 = vunpack.c.l.b16 %v118
  %v542 = vunpack.c.h.b16 %v118
  %v543 = vunpack.c.l.b16 %v119
  %v544 = vunpack.c.h.b16 %v119
  %v545 = vunpack.c.l.b16 %v120
  %v546 = vunpack.c.h.b16 %v120
  %v547 = vunpack.c.l.b16 %v121
  %v548 = vunpack.c.h.b16 %v121
  %v549 = vunpack.c.l.b16 %v122
  %v550 = vunpack.c.h.b16 %v122
  %v551 = vunpack.c.l.b16 %v123
  %v552 = vunpack.c.h.b16 %v123
  %v553 = vunpack.c.l.b16 %v124
  %v554 = vunpack.c.h.b16 %v124
  %v555 = vunpack.c.l.b16 %v125
  %v556 = vunpack.c.h.b16 %v125
  %v557 = vunpack.c.l.b16 %v126
  %v558 = vunpack.c.h.b16 %v126
  %v559 = vunpack.c.l.b16 %v127
  %v560 = vunpack.c.h.b16 %v127
  %v561 = vunpack.c.l.b16 %v128
  %v562 = vunpack.c.h.b16 %v128
  %v563 = vunpack.c.l.b16 %v129
  %v564 = vunpack.c.h.b16 %v129
  %v565 = vunpack.c.l.b16 %v130
  %v566 = vunpack.c.h.b16 %v130
  %v567 = vunpack.c.l.b16 %v131
  %v568 = vunpack.c.h.b16 %v131
  %v569 = vunpack.c.l.b16 %v132
  %v570 = vunpack.c.h.b16 %v132
  %v571 = vunpack.c.l.b16 %v133
  %v572 = vunpack.c.h.b16 %v133
  %v573 = vunpack.c.l.b16 %v134
  %v574 = vunpack.c.h.b16 %v134
  %v575 = vunpack.c.l.b16 %v135
  %v576 = vunpack.c.h.b16 %v135
  %v577 = vunpack.c.l.b16 %v136
  %v578 = vunpack.c.h.b16 %v136
  %v579 = vunpack.c.l.b16 %v137
  %v580 = vunpack.c.h.b16 %v137
  %v581 = vunpack.c.l.b16 %v138
  %v582 = vunpack.c.h.b16 %v138
  %v583 = vunpack.c.l.b16 %v139
  %v584 = vunpack.c.h.b16 %v139
  %v585 = vunpack.c.l.b16 %v140
  %v586 = vunpack.c.h.b16 %v140
  %v587 = vunpack.c.l.b16 %v141
  %v588 = vunpack.c.h.b16 %v141
  %v589 = vunpack.c.l.b16 %v142
  %v590 = vunpack.c.h.b16 %v142
  %v591 = vpack.c.b16 %v339, %v335
  %v592 = vpack.c.b16 %v340, %v336
  %v593 = vpack.c.b16 %v341, %v337
  %v594 = vpack.c.b16 %v342, %v338
  %v595 = vpack.c.b16 %v347, %v343
  %v596 = vpack.c.b16 %v348, %v344
  %v597 = vpack.c.b16 %v349, %v345
  %v598 = vpack.c.b16 %v350, %v346
  %v599 = vpack.c.b16 %v355, %v351
  %v600 = vpack.c.b16 %v356, %v352
  %v601 = vpack.c.b16 %v357, %v353
  %v602 = vpack.c.b16 %v358, %v354
  %v603 = vpack.c.b16 %v363, %v359
  %v604 = vpack.c.b16 %v364, %v360
  %v605 = vpack.c.b16 %v365, %v361
  %v606 = vpack.c.b16 %v366, %v362
  %v607 = vpack.c.b16 %v371, %v367
  %v608 = vpack.c.b16 %v372, %v368
  %v609 = vpack.c.b16 %v373, %v369
  %v610 = vpack.c.b16 %v374, %v370
  %v611 = vpack.c.b16 %v379, %v375
  %v612 = vpack.c.b16 %v380, %v376
  %v613 = vpack.c.b16 %v381, %v377
  %v614 = vpack.c.b16 %v382, %v378
  %v615 = vpack.c.b16 %v387, %v383
  %v616 = vpack.c.b16 %v388, %v384
  %v617 = vpack.c.b16 %v389, %v385
  %v618 = vpack.c.b16 %v390, %v386
  %v619 = vpack.c.b16 %v395, %v391
  %v620 = vpack.c.b16 %v396, %v392
  %v621 = vpack.c.b16 %v397, %v393
  %v622 = vpack.c.b16 %v398, %v394
  %v623 = vpack.c.b16 %v403, %v399
  %v624 = vpack.c.b16 %v404, %v400
  %v625 = vpack.c.b16 %v405, %v401
  %v626 = vpack.c.b16 %v406, %v402
  %v627 = vpack.c.b16 %v411, %v407
  %v628 = vpack.c.b16 %v412, %v408
  %v629 = vpack.c.b16 %v413, %v409
  %v630 = vpack.c.b16 %v414, %v410
  %v631 = vpack.c.b16 %v419, %v415
  %v632 = vpack.c.b16 %v420, %v416
  %v633 = vpack.c.b16 %v421, %v417
  %v634 = vpack.c.b16 %v422, %v418
  %v635 = vpack.c.b16 %v427, %v423
  %v636 = vpack.c.b16 %v428, %v424
  %v637 = vpack.c.b16 %v429, %v425
  %v638 = vpack.c.b16 %v430, %v426
  %v639 = vpack.c.b16 %v435, %v431
  %v640 = vpack.c.b16 %v436, %v432
  %v641 = vpack.c.b16 %v437, %v433
  %v642 = vpack.c.b16 %v438, %v434
  %v643 = vpack.c.b16 %v443, %v439
  %v644 = vpack.c.b16 %v444, %v440
  %v645 = vpack.c.b16 %v445, %v441
  %v646 = vpack.c.b16 %v446, %v442
  %v647 = vpack.c.b16 %v451, %v447
  %v648 = vpack.c.b16 %v452, %v448
  %v649 = vpack.c.b16 %v453, %v449
  %v650 = vpack.c.b16 %v454, %v450
  %v651 = vpack.c.b16 %v459, %v455
  %v652 = vpack.c.b16 %v460, %v456
  %v653 = vpack.c.b16 %v461, %v457
  %v654 = vpack.c.b16 %v462, %v458
  %v655 = vpack.c.b16 %v467, %v463
  %v656 = vpack.c.b16 %v468, %v464
  %v657 = vpack.c.b16 %v469, %v465
  %v658 = vpack.c.b16 %v470, %v466
  %v659 = vpack.c.b16 %v475, %v471
  %v660 = vpack.c.b16 %v476, %v472
  %v661 = vpack.c.b16 %v477, %v473
  %v662 = vpack.c.b16 %v478, %v474
  %v663 = vpack.c.b16 %v483, %v479
  %v664 = vpack.c.b16 %v484, %v480
  %v665 = vpack.c.b16 %v485, %v481
  %v666 = vpack.c.b16 %v486, %v482
  %v667 = vpack.c.b16 %v491, %v487
  %v668 = vpack.c.b16 %v492, %v488
  %v669 = vpack.c.b16 %v493, %v489
  %v670 = vpack.c.b16 %v494, %v490
  %v671 = vpack.c.b16 %v499, %v495
  %v672 = vpack.c.b16 %v500, %v496
  %v673 = vpack.c.b16 %v501, %v497
  %v674 = vpack.c.b16 %v502, %v498
  %v675 = vpack.c.b16 %v507, %v503
  %v676 = vpack.c.b16 %v508, %v504
  %v677 = vpack.c.b16 %v509, %v505
  %v678 = vpack.c.b16 %v510, %v506
  %v679 = vpack.c.b16 %v515, %v511
  %v680 = vpack.c.b16 %v516, %v512
  %v681 = vpack.c.b16 %v517, %v513
  %v682 = vpack.c.b16 %v518, %v514
  %v683 = vpack.c.b16 %v523, %v519
  %v684 = vpack.c.b16 %v524, %v520
  %v685 = vpack.c.b16 %v525, %v521
  %v686 = vpack.c.b16 %v526, %v522
  %v687 = vpack.c.b16 %v531, %v527
  %v688 = vpack.c.b16 %v532, %v528
  %v689 = vpack.c.b16 %v533, %v529
  %v690 = vpack.c.b16 %v534, %v530
  %v691 = vpack.c.b16 %v539, %v535
  %v692 = vpack.c.b16 %v540, %v536
  %v693 = vpack.c.b16 %v541, %v537
  %v694 = vpack.c.b16 %v542, %v538
  %v695 = vpack.c.b16 %v547, %v543
  %v696 = vpack.c.b16 %v548, %v544
  %v697 = vpack.c.b16 %v549, %v545
  %v698 = vpack.c.b16 %v550, %v546
  %v699 = vpack.c.b16 %v555, %v551
  %v700 = vpack.c.b16 %v556, %v552
  %v701 = vpack.c.b16 %v557, %v553
  %v702 = vpack.c.b16 %v558, %v554
  %v703 = vpack.c.b16 %v563, %v559
  %v704 = vpack.c.b16 %v564, %v560
  %v705 = vpack.c.b16 %v565, %v561
  %v706 = vpack.c.b16 %v566, %v562
  %v707 = vpack.c.b16 %v571, %v567
  %v708 = vpack.c.b16 %v572, %v568
  %v709 = vpack.c.b16 %v573, %v569
  %v710 = vpack.c.b16 %v574, %v570
  %v711 = vpack.c.b16 %v579, %v575
  %v712 = vpack.c.b16 %v580, %v576
  %v713 = vpack.c.b16 %v581, %v577
  %v714 = vpack.c.b16 %v582, %v578
  %v715 = vpack.c.b16 %v587, %v583
  %v716 = vpack.c.b16 %v588, %v584
  %v717 = vpack.c.b16 %v589, %v585
  %v718 = vpack.c.b16 %v590, %v586
  %v911 = vunpack.c.l.b16 %v143
  %v912 = vunpack.c.l.b16 %v144
  %v913 = vunpack.c.l.b16 %v145
  %v914 = vunpack.c.l.b16 %v146
  %v915 = vunpack.c.l.b16 %v147
  %v916 = vunpack.c.l.b16 %v148
  %v917 = vunpack.c.l.b16 %v149
  %v918 = vunpack.c.l.b16 %v150
  %v919 = vunpack.c.l.b16 %v151
  %v920 = vunpack.c.l.b16 %v152
  %v921 = vunpack.c.l.b16 %v153
  %v922 = vunpack.c.l.b16 %v154
  %v923 = vunpack.c.l.b16 %v155
  %v924 = vunpack.c.l.b16 %v156
  %v925 = vunpack.c.l.b16 %v157
  %v926 = vunpack.c.l.b16 %v158
  %v927 = vunpack.c.l.b16 %v159
  %v928 = vunpack.c.l.b16 %v160
  %v929 = vunpack.c.l.b16 %v161
  %v930 = vunpack.c.l.b16 %v162
  %v931 = vunpack.c.l.b16 %v163
  %v932 = vunpack.c.l.b16 %v164
  %v933 = vunpack.c.l.b16 %v165
  %v934 = vunpack.c.l.b16 %v166
  %v935 = vunpack.c.l.b16 %v167
  %v936 = vunpack.c.l.b16 %v168
  %v937 = vunpack.c.l.b16 %v169
  %v938 = vunpack.c.l.b16 %v170
  %v939 = vunpack.c.l.b16 %v171
  %v940 = vunpack.c.l.b16 %v172
  %v941 = vunpack.c.l.b16 %v173
  %v942 = vunpack.c.l.b16 %v174
  %v943 = vunpack.c.l.b16 %v175
  %v944 = vunpack.c.l.b16 %v176
  %v945 = vunpack.c.l.b16 %v177
  %v946 = vunpack.c.l.b16 %v178
  %v947 = vunpack.c.l.b16 %v179
  %v948 = vunpack.c.l.b16 %v180
  %v949 = vunpack.c.l.b16 %v181
  %v950 = vunpack.c.l.b16 %v182
  %v951 = vunpack.c.l.b16 %v183
  %v952 = vunpack.c.l.b16 %v184
  %v953 = vunpack.c.l.b16 %v185
  %v954 = vunpack.c.l.b16 %v186
  %v955 = vunpack.c.l.b16 %v187
  %v956 = vunpack.c.l.b16 %v188
  %v957 = vunpack.c.l.b16 %v189
  %v958 = vunpack.c.l.b16 %v190
  %v959 = vunpack.c.l.b16 %v191
  %v960 = vunpack.c.l.b16 %v192
  %v961 = vunpack.c.l.b16 %v193
  %v962 = vunpack.c.l.b16 %v194
  %v963 = vunpack.c.l.b16 %v195
  %v964 = vunpack.c.l.b16 %v196
  %v965 = vunpack.c.l.b16 %v197
  %v966 = vunpack.c.l.b16 %v198
  %v967 = vunpack.c.l.b16 %v199
  %v968 = vunpack.c.l.b16 %v200
  %v969 = vunpack.c.l.b16 %v201
  %v970 = vunpack.c.l.b16 %v202
  %v971 = vunpack.c.l.b16 %v203
  %v972 = vunpack.c.l.b16 %v204
  %v973 = vunpack.c.l.b16 %v205
  %v974 = vunpack.c.l.b16 %v206
  %v975 = vpack.c.b16 %v912, %v911
  %v976 = vpack.c.b16 %v914, %v913
  %v977 = vpack.c.b16 %v916, %v915
  %v978 = vpack.c.b16 %v918, %v917
  %v979 = vpack.c.b16 %v920, %v919
  %v980 = vpack.c.b16 %v922, %v921
  %v981 = vpack.c.b16 %v924, %v923
  %v982 = vpack.c.b16 %v926, %v925
  %v983 = vpack.c.b16 %v928, %v927
  %v984 = vpack.c.b16 %v930, %v929
  %v985 = vpack.c.b16 %v932, %v931
  %v986 = vpack.c.b16 %v934, %v933
  %v987 = vpack.c.b16 %v936, %v935
  %v988 = vpack.c.b16 %v938, %v937
  %v989 = vpack.c.b16 %v940, %v939
  %v990 = vpack.c.b16 %v942, %v941
  %v991 = vpack.c.b16 %v944, %v943
  %v992 = vpack.c.b16 %v946, %v945
  %v993 = vpack.c.b16 %v948, %v947
  %v994 = vpack.c.b16 %v950, %v949
  %v995 = vpack.c.b16 %v952, %v951
  %v996 = vpack.c.b16 %v954, %v953
  %v997 = vpack.c.b16 %v956, %v955
  %v998 = vpack.c.b16 %v958, %v957
  %v999 = vpack.c.b16 %v960, %v959
  %v1000 = vpack.c.b16 %v962, %v961
  %v1001 = vpack.c.b16 %v964, %v963
  %v1002 = vpack.c.b16 %v966, %v965
  %v1003 = vpack.c.b16 %v968, %v967
  %v1004 = vpack.c.b16 %v970, %v969
  %v1005 = vpack.c.b16 %v972, %v971
  %v1006 = vpack.c.b16 %v974, %v973
  %1039 = vmatprep.subr.bf16.mxu0 0
  %1040 = vmatpush1.bf16.msra.mxu0 %v975
  %1041 = vmatprep.subr.bf16.mxu0 0
  %1042 = vmatpush1.bf16.msra.mxu0 %v976
  %1043 = vmatprep.subr.bf16.mxu0 0
  %1044 = vmatpush1.bf16.msra.mxu0 %v977
  %1045 = vmatprep.subr.bf16.mxu0 0
  %1046 = vmatpush1.bf16.msra.mxu0 %v978
  %1047 = vmatprep.subr.bf16.mxu0 0
  %1048 = vmatpush1.bf16.msra.mxu0 %v979
  %1049 = vmatprep.subr.bf16.mxu0 0
  %1050 = vmatpush1.bf16.msra.mxu0 %v980
  %1051 = vmatprep.subr.bf16.mxu0 0
  %1052 = vmatpush1.bf16.msra.mxu0 %v981
  %1053 = vmatprep.subr.bf16.mxu0 0
  %1054 = vmatpush1.bf16.msra.mxu0 %v982
  %1055 = vmatprep.subr.bf16.mxu0 0
  %1056 = vmatpush1.bf16.msra.mxu0 %v983
  %1057 = vmatprep.subr.bf16.mxu0 0
  %1058 = vmatpush1.bf16.msra.mxu0 %v984
  %1059 = vmatprep.subr.bf16.mxu0 0
  %1060 = vmatpush1.bf16.msra.mxu0 %v985
  %1061 = vmatprep.subr.bf16.mxu0 0
  %1062 = vmatpush1.bf16.msra.mxu0 %v986
  %1063 = vmatprep.subr.bf16.mxu0 0
  %1064 = vmatpush1.bf16.msra.mxu0 %v987
  %1065 = vmatprep.subr.bf16.mxu0 0
  %1066 = vmatpush1.bf16.msra.mxu0 %v988
  %1067 = vmatprep.subr.bf16.mxu0 0
  %1068 = vmatpush1.bf16.msra.mxu0 %v989
  %1069 = vmatprep.subr.bf16.mxu0 0
  %1070 = vmatpush1.bf16.msra.mxu0 %v990
  %1071 = vmatprep.mubr.bf16.mxu0 %v592
  %1072 = vmatmul.mubr.bf16.gmra.mrb[0].mxu0 %v591
  %v1073 = vpop.f32.mrb[0].mxu0
  %v1074 = vadd.f32 0.0, %v1073
  %v1075 = vpop.f32.mrb[0].mxu0
  %v1076 = vpop.f32.mrb[0].mxu0
  %v1077 = vadd.f32 0.0, %v1076
  %v1078 = vpop.f32.mrb[0].mxu0
  %1079 = vmatprep.mubr.bf16.mxu0 %v596
  %1080 = vmatmul.mubr.bf16.gmra.mrb[0].mxu0 %v595
  %v1081 = vpop.f32.mrb[0].mxu0
  %v1082 = vadd.f32 0.0, %v1081
  %v1083 = vpop.f32.mrb[0].mxu0
  %v1084 = vpop.f32.mrb[0].mxu0
  %v1085 = vadd.f32 0.0, %v1084
  %v1086 = vpop.f32.mrb[0].mxu0
  %1087 = vmatprep.mubr.bf16.mxu0 %v600
  %1088 = vmatmul.mubr.bf16.gmra.mrb[0].mxu0 %v599
  %v1089 = vpop.f32.mrb[0].mxu0
  %v1090 = vadd.f32 0.0, %v1089
  %v1091 = vpop.f32.mrb[0].mxu0
  %v1092 = vpop.f32.mrb[0].mxu0
  %v1093 = vadd.f32 0.0, %v1092
  %v1094 = vpop.f32.mrb[0].mxu0
  %1095 = vmatprep.mubr.bf16.mxu0 %v604
  %1096 = vmatmul.mubr.bf16.gmra.mrb[0].mxu0 %v603
  %v1097 = vpop.f32.mrb[0].mxu0
  %v1098 = vadd.f32 0.0, %v1097
  %v1099 = vpop.f32.mrb[0].mxu0
  %v1100 = vpop.f32.mrb[0].mxu0
  %v1101 = vadd.f32 0.0, %v1100
  %v1102 = vpop.f32.mrb[0].mxu0
  %1103 = vmatprep.mubr.bf16.mxu0 %v608
  %1104 = vmatmul.mubr.bf16.gmra.mrb[0].mxu0 %v607
  %v1105 = vpop.f32.mrb[0].mxu0
  %v1106 = vadd.f32 0.0, %v1105
  %v1107 = vpop.f32.mrb[0].mxu0
  %v1108 = vpop.f32.mrb[0].mxu0
  %v1109 = vadd.f32 0.0, %v1108
  %v1110 = vpop.f32.mrb[0].mxu0
  %1111 = vmatprep.mubr.bf16.mxu0 %v612
  %1112 = vmatmul.mubr.bf16.gmra.mrb[0].mxu0 %v611
  %v1113 = vpop.f32.mrb[0].mxu0
  %v1114 = vadd.f32 0.0, %v1113
  %v1115 = vpop.f32.mrb[0].mxu0
  %v1116 = vpop.f32.mrb[0].mxu0
  %v1117 = vadd.f32 0.0, %v1116
  %v1118 = vpop.f32.mrb[0].mxu0
  %1119 = vmatprep.mubr.bf16.mxu0 %v616
  %1120 = vmatmul.mubr.bf16.gmra.mrb[0].mxu0 %v615
  %v1121 = vpop.f32.mrb[0].mxu0
  %v1122 = vadd.f32 0.0, %v1121
  %v1123 = vpop.f32.mrb[0].mxu0
  %v1124 = vpop.f32.mrb[0].mxu0
  %v1125 = vadd.f32 0.0, %v1124
  %v1126 = vpop.f32.mrb[0].mxu0
  %1127 = vmatprep.mubr.bf16.mxu0 %v620
  %1128 = vmatmul.mubr.bf16.gmra.mrb[0].mxu0 %v619
  %v1129 = vpop.f32.mrb[0].mxu0
  %v1130 = vadd.f32 0.0, %v1129
  %v1131 = vpop.f32.mrb[0].mxu0
  %v1132 = vpop.f32.mrb[0].mxu0
  %v1133 = vadd.f32 0.0, %v1132
  %v1134 = vpop.f32.mrb[0].mxu0
  %1135 = vmatprep.mubr.bf16.mxu0 %v624
  %1136 = vmatmul.mubr.bf16.gmra.mrb[0].mxu0 %v623
  %v1137 = vpop.f32.mrb[0].mxu0
  %v1138 = vadd.f32 0.0, %v1137
  %v1139 = vpop.f32.mrb[0].mxu0
  %v1140 = vpop.f32.mrb[0].mxu0
  %v1141 = vadd.f32 0.0, %v1140
  %v1142 = vpop.f32.mrb[0].mxu0
  %1143 = vmatprep.mubr.bf16.mxu0 %v628
  %1144 = vmatmul.mubr.bf16.gmra.mrb[0].mxu0 %v627
  %v1145 = vpop.f32.mrb[0].mxu0
  %v1146 = vadd.f32 0.0, %v1145
  %v1147 = vpop.f32.mrb[0].mxu0
  %v1148 = vpop.f32.mrb[0].mxu0
  %v1149 = vadd.f32 0.0, %v1148
  %v1150 = vpop.f32.mrb[0].mxu0
  %1151 = vmatprep.mubr.bf16.mxu0 %v632
  %1152 = vmatmul.mubr.bf16.gmra.mrb[0].mxu0 %v631
  %v1153 = vpop.f32.mrb[0].mxu0
  %v1154 = vadd.f32 0.0, %v1153
  %v1155 = vpop.f32.mrb[0].mxu0
  %v1156 = vpop.f32.mrb[0].mxu0
  %v1157 = vadd.f32 0.0, %v1156
  %v1158 = vpop.f32.mrb[0].mxu0
  %1159 = vmatprep.mubr.bf16.mxu0 %v636
  %1160 = vmatmul.mubr.bf16.gmra.mrb[0].mxu0 %v635
  %v1161 = vpop.f32.mrb[0].mxu0
  %v1162 = vadd.f32 0.0, %v1161
  %v1163 = vpop.f32.mrb[0].mxu0
  %v1164 = vpop.f32.mrb[0].mxu0
  %v1165 = vadd.f32 0.0, %v1164
  %v1166 = vpop.f32.mrb[0].mxu0
  %1167 = vmatprep.mubr.bf16.mxu0 %v640
  %1168 = vmatmul.mubr.bf16.gmra.mrb[0].mxu0 %v639
  %v1169 = vpop.f32.mrb[0].mxu0
  %v1170 = vadd.f32 0.0, %v1169
  %v1171 = vpop.f32.mrb[0].mxu0
  %v1172 = vpop.f32.mrb[0].mxu0
  %v1173 = vadd.f32 0.0, %v1172
  %v1174 = vpop.f32.mrb[0].mxu0
  %1175 = vmatprep.mubr.bf16.mxu0 %v644
  %1176 = vmatmul.mubr.bf16.gmra.mrb[0].mxu0 %v643
  %v1177 = vpop.f32.mrb[0].mxu0
  %v1178 = vadd.f32 0.0, %v1177
  %v1179 = vpop.f32.mrb[0].mxu0
  %v1180 = vpop.f32.mrb[0].mxu0
  %v1181 = vadd.f32 0.0, %v1180
  %v1182 = vpop.f32.mrb[0].mxu0
  %1183 = vmatprep.mubr.bf16.mxu0 %v648
  %1184 = vmatmul.mubr.bf16.gmra.mrb[0].mxu0 %v647
  %v1185 = vpop.f32.mrb[0].mxu0
  %v1186 = vadd.f32 0.0, %v1185
  %v1187 = vpop.f32.mrb[0].mxu0
  %v1188 = vpop.f32.mrb[0].mxu0
  %v1189 = vadd.f32 0.0, %v1188
  %v1190 = vpop.f32.mrb[0].mxu0
  %1191 = vmatprep.mubr.bf16.mxu0 %v652
  %1192 = vmatmul.mubr.bf16.gmra.mrb[0].mxu0 %v651
  %v1193 = vpop.f32.mrb[0].mxu0
  %v1194 = vadd.f32 0.0, %v1193
  %v1195 = vpop.f32.mrb[0].mxu0
  %v1196 = vpop.f32.mrb[0].mxu0
  %v1197 = vadd.f32 0.0, %v1196
  %v1198 = vpop.f32.mrb[0].mxu0
  %1199 = vmatprep.mubr.bf16.mxu0 %v656
  %1200 = vmatmul.mubr.bf16.gmra.mrb[0].mxu0 %v655
  %v1201 = vpop.f32.mrb[0].mxu0
  %v1202 = vadd.f32 0.0, %v1201
  %v1203 = vpop.f32.mrb[0].mxu0
  %v1204 = vpop.f32.mrb[0].mxu0
  %v1205 = vadd.f32 0.0, %v1204
  %v1206 = vpop.f32.mrb[0].mxu0
  %1207 = vmatprep.mubr.bf16.mxu0 %v660
  %1208 = vmatmul.mubr.bf16.gmra.mrb[0].mxu0 %v659
  %v1209 = vpop.f32.mrb[0].mxu0
  %v1210 = vadd.f32 0.0, %v1209
  %v1211 = vpop.f32.mrb[0].mxu0
  %v1212 = vpop.f32.mrb[0].mxu0
  %v1213 = vadd.f32 0.0, %v1212
  %v1214 = vpop.f32.mrb[0].mxu0
  %1215 = vmatprep.mubr.bf16.mxu0 %v664
  %1216 = vmatmul.mubr.bf16.gmra.mrb[0].mxu0 %v663
  %v1217 = vpop.f32.mrb[0].mxu0
  %v1218 = vadd.f32 0.0, %v1217
  %v1219 = vpop.f32.mrb[0].mxu0
  %v1220 = vpop.f32.mrb[0].mxu0
  %v1221 = vadd.f32 0.0, %v1220
  %v1222 = vpop.f32.mrb[0].mxu0
  %1223 = vmatprep.mubr.bf16.mxu0 %v668
  %1224 = vmatmul.mubr.bf16.gmra.mrb[0].mxu0 %v667
  %v1225 = vpop.f32.mrb[0].mxu0
  %v1226 = vadd.f32 0.0, %v1225
  %v1227 = vpop.f32.mrb[0].mxu0
  %v1228 = vpop.f32.mrb[0].mxu0
  %v1229 = vadd.f32 0.0, %v1228
  %v1230 = vpop.f32.mrb[0].mxu0
  %1231 = vmatprep.mubr.bf16.mxu0 %v672
  %1232 = vmatmul.mubr.bf16.gmra.mrb[0].mxu0 %v671
  %v1233 = vpop.f32.mrb[0].mxu0
  %v1234 = vadd.f32 0.0, %v1233
  %v1235 = vpop.f32.mrb[0].mxu0
  %v1236 = vpop.f32.mrb[0].mxu0
  %v1237 = vadd.f32 0.0, %v1236
  %v1238 = vpop.f32.mrb[0].mxu0
  %1239 = vmatprep.mubr.bf16.mxu0 %v676
  %1240 = vmatmul.mubr.bf16.gmra.mrb[0].mxu0 %v675
  %v1241 = vpop.f32.mrb[0].mxu0
  %v1242 = vadd.f32 0.0, %v1241
  %v1243 = vpop.f32.mrb[0].mxu0
  %v1244 = vpop.f32.mrb[0].mxu0
  %v1245 = vadd.f32 0.0, %v1244
  %v1246 = vpop.f32.mrb[0].mxu0
  %1247 = vmatprep.mubr.bf16.mxu0 %v680
  %1248 = vmatmul.mubr.bf16.gmra.mrb[0].mxu0 %v679
  %v1249 = vpop.f32.mrb[0].mxu0
  %v1250 = vadd.f32 0.0, %v1249
  %v1251 = vpop.f32.mrb[0].mxu0
  %v1252 = vpop.f32.mrb[0].mxu0
  %v1253 = vadd.f32 0.0, %v1252
  %v1254 = vpop.f32.mrb[0].mxu0
  %1255 = vmatprep.mubr.bf16.mxu0 %v684
  %1256 = vmatmul.mubr.bf16.gmra.mrb[0].mxu0 %v683
  %v1257 = vpop.f32.mrb[0].mxu0
  %v1258 = vadd.f32 0.0, %v1257
  %v1259 = vpop.f32.mrb[0].mxu0
  %v1260 = vpop.f32.mrb[0].mxu0
  %v1261 = vadd.f32 0.0, %v1260
  %v1262 = vpop.f32.mrb[0].mxu0
  %1263 = vmatprep.mubr.bf16.mxu0 %v688
  %1264 = vmatmul.mubr.bf16.gmra.mrb[0].mxu0 %v687
  %v1265 = vpop.f32.mrb[0].mxu0
  %v1266 = vadd.f32 0.0, %v1265
  %v1267 = vpop.f32.mrb[0].mxu0
  %v1268 = vpop.f32.mrb[0].mxu0
  %v1269 = vadd.f32 0.0, %v1268
  %v1270 = vpop.f32.mrb[0].mxu0
  %1271 = vmatprep.mubr.bf16.mxu0 %v692
  %1272 = vmatmul.mubr.bf16.gmra.mrb[0].mxu0 %v691
  %v1273 = vpop.f32.mrb[0].mxu0
  %v1274 = vadd.f32 0.0, %v1273
  %v1275 = vpop.f32.mrb[0].mxu0
  %v1276 = vpop.f32.mrb[0].mxu0
  %v1277 = vadd.f32 0.0, %v1276
  %v1278 = vpop.f32.mrb[0].mxu0
  %1279 = vmatprep.mubr.bf16.mxu0 %v696
  %1280 = vmatmul.mubr.bf16.gmra.mrb[0].mxu0 %v695
  %v1281 = vpop.f32.mrb[0].mxu0
  %v1282 = vadd.f32 0.0, %v1281
  %v1283 = vpop.f32.mrb[0].mxu0
  %v1284 = vpop.f32.mrb[0].mxu0
  %v1285 = vadd.f32 0.0, %v1284
  %v1286 = vpop.f32.mrb[0].mxu0
  %1287 = vmatprep.mubr.bf16.mxu0 %v700
  %1288 = vmatmul.mubr.bf16.gmra.mrb[0].mxu0 %v699
  %v1289 = vpop.f32.mrb[0].mxu0
  %v1290 = vadd.f32 0.0, %v1289
  %v1291 = vpop.f32.mrb[0].mxu0
  %v1292 = vpop.f32.mrb[0].mxu0
  %v1293 = vadd.f32 0.0, %v1292
  %v1294 = vpop.f32.mrb[0].mxu0
  %1295 = vmatprep.mubr.bf16.mxu0 %v704
  %1296 = vmatmul.mubr.bf16.gmra.mrb[0].mxu0 %v703
  %v1297 = vpop.f32.mrb[0].mxu0
  %v1298 = vadd.f32 0.0, %v1297
  %v1299 = vpop.f32.mrb[0].mxu0
  %v1300 = vpop.f32.mrb[0].mxu0
  %v1301 = vadd.f32 0.0, %v1300
  %v1302 = vpop.f32.mrb[0].mxu0
  %1303 = vmatprep.mubr.bf16.mxu0 %v708
  %1304 = vmatmul.mubr.bf16.gmra.mrb[0].mxu0 %v707
  %v1305 = vpop.f32.mrb[0].mxu0
  %v1306 = vadd.f32 0.0, %v1305
  %v1307 = vpop.f32.mrb[0].mxu0
  %v1308 = vpop.f32.mrb[0].mxu0
  %v1309 = vadd.f32 0.0, %v1308
  %v1310 = vpop.f32.mrb[0].mxu0
  %1311 = vmatprep.mubr.bf16.mxu0 %v712
  %1312 = vmatmul.mubr.bf16.gmra.mrb[0].mxu0 %v711
  %v1313 = vpop.f32.mrb[0].mxu0
  %v1314 = vadd.f32 0.0, %v1313
  %v1315 = vpop.f32.mrb[0].mxu0
  %v1316 = vpop.f32.mrb[0].mxu0
  %v1317 = vadd.f32 0.0, %v1316
  %v1318 = vpop.f32.mrb[0].mxu0
  %1319 = vmatprep.mubr.bf16.mxu0 %v716
  %1320 = vmatmul.mubr.bf16.gmra.mrb[0].mxu0 %v715
  %v1321 = vpop.f32.mrb[0].mxu0
  %v1322 = vadd.f32 0.0, %v1321
  %v1323 = vpop.f32.mrb[0].mxu0
  %v1324 = vpop.f32.mrb[0].mxu0
  %v1325 = vadd.f32 0.0, %v1324
  %v1326 = vpop.f32.mrb[0].mxu0
  %1327 = vdwg.mxu0
  %1328 = vmatprep.subr.bf16.mxu0 0
  %1329 = vmatpush1.bf16.msra.mxu0 %v991
  %1330 = vmatprep.subr.bf16.mxu0 0
  %1331 = vmatpush1.bf16.msra.mxu0 %v992
  %1332 = vmatprep.subr.bf16.mxu0 0
  %1333 = vmatpush1.bf16.msra.mxu0 %v993
  %1334 = vmatprep.subr.bf16.mxu0 0
  %1335 = vmatpush1.bf16.msra.mxu0 %v994
  %1336 = vmatprep.subr.bf16.mxu0 0
  %1337 = vmatpush1.bf16.msra.mxu0 %v995
  %1338 = vmatprep.subr.bf16.mxu0 0
  %1339 = vmatpush1.bf16.msra.mxu0 %v996
  %1340 = vmatprep.subr.bf16.mxu0 0
  %1341 = vmatpush1.bf16.msra.mxu0 %v997
  %1342 = vmatprep.subr.bf16.mxu0 0
  %1343 = vmatpush1.bf16.msra.mxu0 %v998
  %1344 = vmatprep.subr.bf16.mxu0 0
  %1345 = vmatpush1.bf16.msra.mxu0 %v999
  %1346 = vmatprep.subr.bf16.mxu0 0
  %1347 = vmatpush1.bf16.msra.mxu0 %v1000
  %1348 = vmatprep.subr.bf16.mxu0 0
  %1349 = vmatpush1.bf16.msra.mxu0 %v1001
  %1350 = vmatprep.subr.bf16.mxu0 0
  %1351 = vmatpush1.bf16.msra.mxu0 %v1002
  %1352 = vmatprep.subr.bf16.mxu0 0
  %1353 = vmatpush1.bf16.msra.mxu0 %v1003
  %1354 = vmatprep.subr.bf16.mxu0 0
  %1355 = vmatpush1.bf16.msra.mxu0 %v1004
  %1356 = vmatprep.subr.bf16.mxu0 0
  %1357 = vmatpush1.bf16.msra.mxu0 %v1005
  %1358 = vmatprep.subr.bf16.mxu0 0
  %1359 = vmatpush1.bf16.msra.mxu0 %v1006
  %1360 = vmatprep.mubr.bf16.mxu0 %v594
  %1361 = vmatmul.mubr.bf16.gmra.mrb[0].mxu0 %v593
  %v1362 = vpop.f32.mrb[0].mxu0
  %v1363 = vadd.f32 %v1074, %v1362
  %v1364 = vpop.f32.mrb[0].mxu0
  %v1365 = vpop.f32.mrb[0].mxu0
  %v1366 = vadd.f32 %v1077, %v1365
  %v1367 = vpop.f32.mrb[0].mxu0
  %1368 = vmatprep.mubr.bf16.mxu0 %v598
  %1369 = vmatmul.mubr.bf16.gmra.mrb[0].mxu0 %v597
  %v1370 = vpop.f32.mrb[0].mxu0
  %v1371 = vadd.f32 %v1082, %v1370
  %v1372 = vpop.f32.mrb[0].mxu0
  %v1373 = vpop.f32.mrb[0].mxu0
  %v1374 = vadd.f32 %v1085, %v1373
  %v1375 = vpop.f32.mrb[0].mxu0
  %1376 = vmatprep.mubr.bf16.mxu0 %v602
  %1377 = vmatmul.mubr.bf16.gmra.mrb[0].mxu0 %v601
  %v1378 = vpop.f32.mrb[0].mxu0
  %v1379 = vadd.f32 %v1090, %v1378
  %v1380 = vpop.f32.mrb[0].mxu0
  %v1381 = vpop.f32.mrb[0].mxu0
  %v1382 = vadd.f32 %v1093, %v1381
  %v1383 = vpop.f32.mrb[0].mxu0
  %1384 = vmatprep.mubr.bf16.mxu0 %v606
  %1385 = vmatmul.mubr.bf16.gmra.mrb[0].mxu0 %v605
  %v1386 = vpop.f32.mrb[0].mxu0
  %v1387 = vadd.f32 %v1098, %v1386
  %v1388 = vpop.f32.mrb[0].mxu0
  %v1389 = vpop.f32.mrb[0].mxu0
  %v1390 = vadd.f32 %v1101, %v1389
  %v1391 = vpop.f32.mrb[0].mxu0
  %1392 = vmatprep.mubr.bf16.mxu0 %v610
  %1393 = vmatmul.mubr.bf16.gmra.mrb[0].mxu0 %v609
  %v1394 = vpop.f32.mrb[0].mxu0
  %v1395 = vadd.f32 %v1106, %v1394
  %v1396 = vpop.f32.mrb[0].mxu0
  %v1397 = vpop.f32.mrb[0].mxu0
  %v1398 = vadd.f32 %v1109, %v1397
  %v1399 = vpop.f32.mrb[0].mxu0
  %1400 = vmatprep.mubr.bf16.mxu0 %v614
  %1401 = vmatmul.mubr.bf16.gmra.mrb[0].mxu0 %v613
  %v1402 = vpop.f32.mrb[0].mxu0
  %v1403 = vadd.f32 %v1114, %v1402
  %v1404 = vpop.f32.mrb[0].mxu0
  %v1405 = vpop.f32.mrb[0].mxu0
  %v1406 = vadd.f32 %v1117, %v1405
  %v1407 = vpop.f32.mrb[0].mxu0
  %1408 = vmatprep.mubr.bf16.mxu0 %v618
  %1409 = vmatmul.mubr.bf16.gmra.mrb[0].mxu0 %v617
  %v1410 = vpop.f32.mrb[0].mxu0
  %v1411 = vadd.f32 %v1122, %v1410
  %v1412 = vpop.f32.mrb[0].mxu0
  %v1413 = vpop.f32.mrb[0].mxu0
  %v1414 = vadd.f32 %v1125, %v1413
  %v1415 = vpop.f32.mrb[0].mxu0
  %1416 = vmatprep.mubr.bf16.mxu0 %v622
  %1417 = vmatmul.mubr.bf16.gmra.mrb[0].mxu0 %v621
  %v1418 = vpop.f32.mrb[0].mxu0
  %v1419 = vadd.f32 %v1130, %v1418
  %v1420 = vpop.f32.mrb[0].mxu0
  %v1421 = vpop.f32.mrb[0].mxu0
  %v1422 = vadd.f32 %v1133, %v1421
  %v1423 = vpop.f32.mrb[0].mxu0
  %1424 = vmatprep.mubr.bf16.mxu0 %v626
  %1425 = vmatmul.mubr.bf16.gmra.mrb[0].mxu0 %v625
  %v1426 = vpop.f32.mrb[0].mxu0
  %v1427 = vadd.f32 %v1138, %v1426
  %v1428 = vpop.f32.mrb[0].mxu0
  %v1429 = vpop.f32.mrb[0].mxu0
  %v1430 = vadd.f32 %v1141, %v1429
  %v1431 = vpop.f32.mrb[0].mxu0
  %1432 = vmatprep.mubr.bf16.mxu0 %v630
  %1433 = vmatmul.mubr.bf16.gmra.mrb[0].mxu0 %v629
  %v1434 = vpop.f32.mrb[0].mxu0
  %v1435 = vadd.f32 %v1146, %v1434
  %v1436 = vpop.f32.mrb[0].mxu0
  %v1437 = vpop.f32.mrb[0].mxu0
  %v1438 = vadd.f32 %v1149, %v1437
  %v1439 = vpop.f32.mrb[0].mxu0
  %1440 = vmatprep.mubr.bf16.mxu0 %v634
  %1441 = vmatmul.mubr.bf16.gmra.mrb[0].mxu0 %v633
  %v1442 = vpop.f32.mrb[0].mxu0
  %v1443 = vadd.f32 %v1154, %v1442
  %v1444 = vpop.f32.mrb[0].mxu0
  %v1445 = vpop.f32.mrb[0].mxu0
  %v1446 = vadd.f32 %v1157, %v1445
  %v1447 = vpop.f32.mrb[0].mxu0
  %1448 = vmatprep.mubr.bf16.mxu0 %v638
  %1449 = vmatmul.mubr.bf16.gmra.mrb[0].mxu0 %v637
  %v1450 = vpop.f32.mrb[0].mxu0
  %v1451 = vadd.f32 %v1162, %v1450
  %v1452 = vpop.f32.mrb[0].mxu0
  %v1453 = vpop.f32.mrb[0].mxu0
  %v1454 = vadd.f32 %v1165, %v1453
  %v1455 = vpop.f32.mrb[0].mxu0
  %1456 = vmatprep.mubr.bf16.mxu0 %v642
  %1457 = vmatmul.mubr.bf16.gmra.mrb[0].mxu0 %v641
  %v1458 = vpop.f32.mrb[0].mxu0
  %v1459 = vadd.f32 %v1170, %v1458
  %v1460 = vpop.f32.mrb[0].mxu0
  %v1461 = vpop.f32.mrb[0].mxu0
  %v1462 = vadd.f32 %v1173, %v1461
  %v1463 = vpop.f32.mrb[0].mxu0
  %1464 = vmatprep.mubr.bf16.mxu0 %v646
  %1465 = vmatmul.mubr.bf16.gmra.mrb[0].mxu0 %v645
  %v1466 = vpop.f32.mrb[0].mxu0
  %v1467 = vadd.f32 %v1178, %v1466
  %v1468 = vpop.f32.mrb[0].mxu0
  %v1469 = vpop.f32.mrb[0].mxu0
  %v1470 = vadd.f32 %v1181, %v1469
  %v1471 = vpop.f32.mrb[0].mxu0
  %1472 = vmatprep.mubr.bf16.mxu0 %v650
  %1473 = vmatmul.mubr.bf16.gmra.mrb[0].mxu0 %v649
  %v1474 = vpop.f32.mrb[0].mxu0
  %v1475 = vadd.f32 %v1186, %v1474
  %v1476 = vpop.f32.mrb[0].mxu0
  %v1477 = vpop.f32.mrb[0].mxu0
  %v1478 = vadd.f32 %v1189, %v1477
  %v1479 = vpop.f32.mrb[0].mxu0
  %1480 = vmatprep.mubr.bf16.mxu0 %v654
  %1481 = vmatmul.mubr.bf16.gmra.mrb[0].mxu0 %v653
  %v1482 = vpop.f32.mrb[0].mxu0
  %v1483 = vadd.f32 %v1194, %v1482
  %v1484 = vpop.f32.mrb[0].mxu0
  %v1485 = vpop.f32.mrb[0].mxu0
  %v1486 = vadd.f32 %v1197, %v1485
  %v1487 = vpop.f32.mrb[0].mxu0
  %1488 = vmatprep.mubr.bf16.mxu0 %v658
  %1489 = vmatmul.mubr.bf16.gmra.mrb[0].mxu0 %v657
  %v1490 = vpop.f32.mrb[0].mxu0
  %v1491 = vadd.f32 %v1202, %v1490
  %v1492 = vpop.f32.mrb[0].mxu0
  %v1493 = vpop.f32.mrb[0].mxu0
  %v1494 = vadd.f32 %v1205, %v1493
  %v1495 = vpop.f32.mrb[0].mxu0
  %1496 = vmatprep.mubr.bf16.mxu0 %v662
  %1497 = vmatmul.mubr.bf16.gmra.mrb[0].mxu0 %v661
  %v1498 = vpop.f32.mrb[0].mxu0
  %v1499 = vadd.f32 %v1210, %v1498
  %v1500 = vpop.f32.mrb[0].mxu0
  %v1501 = vpop.f32.mrb[0].mxu0
  %v1502 = vadd.f32 %v1213, %v1501
  %v1503 = vpop.f32.mrb[0].mxu0
  %1504 = vmatprep.mubr.bf16.mxu0 %v666
  %1505 = vmatmul.mubr.bf16.gmra.mrb[0].mxu0 %v665
  %v1506 = vpop.f32.mrb[0].mxu0
  %v1507 = vadd.f32 %v1218, %v1506
  %v1508 = vpop.f32.mrb[0].mxu0
  %v1509 = vpop.f32.mrb[0].mxu0
  %v1510 = vadd.f32 %v1221, %v1509
  %v1511 = vpop.f32.mrb[0].mxu0
  %1512 = vmatprep.mubr.bf16.mxu0 %v670
  %1513 = vmatmul.mubr.bf16.gmra.mrb[0].mxu0 %v669
  %v1514 = vpop.f32.mrb[0].mxu0
  %v1515 = vadd.f32 %v1226, %v1514
  %v1516 = vpop.f32.mrb[0].mxu0
  %v1517 = vpop.f32.mrb[0].mxu0
  %v1518 = vadd.f32 %v1229, %v1517
  %v1519 = vpop.f32.mrb[0].mxu0
  %1520 = vmatprep.mubr.bf16.mxu0 %v674
  %1521 = vmatmul.mubr.bf16.gmra.mrb[0].mxu0 %v673
  %v1522 = vpop.f32.mrb[0].mxu0
  %v1523 = vadd.f32 %v1234, %v1522
  %v1524 = vpop.f32.mrb[0].mxu0
  %v1525 = vpop.f32.mrb[0].mxu0
  %v1526 = vadd.f32 %v1237, %v1525
  %v1527 = vpop.f32.mrb[0].mxu0
  %1528 = vmatprep.mubr.bf16.mxu0 %v678
  %1529 = vmatmul.mubr.bf16.gmra.mrb[0].mxu0 %v677
  %v1530 = vpop.f32.mrb[0].mxu0
  %v1531 = vadd.f32 %v1242, %v1530
  %v1532 = vpop.f32.mrb[0].mxu0
  %v1533 = vpop.f32.mrb[0].mxu0
  %v1534 = vadd.f32 %v1245, %v1533
  %v1535 = vpop.f32.mrb[0].mxu0
  %1536 = vmatprep.mubr.bf16.mxu0 %v682
  %1537 = vmatmul.mubr.bf16.gmra.mrb[0].mxu0 %v681
  %v1538 = vpop.f32.mrb[0].mxu0
  %v1539 = vadd.f32 %v1250, %v1538
  %v1540 = vpop.f32.mrb[0].mxu0
  %v1541 = vpop.f32.mrb[0].mxu0
  %v1542 = vadd.f32 %v1253, %v1541
  %v1543 = vpop.f32.mrb[0].mxu0
  %1544 = vmatprep.mubr.bf16.mxu0 %v686
  %1545 = vmatmul.mubr.bf16.gmra.mrb[0].mxu0 %v685
  %v1546 = vpop.f32.mrb[0].mxu0
  %v1547 = vadd.f32 %v1258, %v1546
  %v1548 = vpop.f32.mrb[0].mxu0
  %v1549 = vpop.f32.mrb[0].mxu0
  %v1550 = vadd.f32 %v1261, %v1549
  %v1551 = vpop.f32.mrb[0].mxu0
  %1552 = vmatprep.mubr.bf16.mxu0 %v690
  %1553 = vmatmul.mubr.bf16.gmra.mrb[0].mxu0 %v689
  %v1554 = vpop.f32.mrb[0].mxu0
  %v1555 = vadd.f32 %v1266, %v1554
  %v1556 = vpop.f32.mrb[0].mxu0
  %v1557 = vpop.f32.mrb[0].mxu0
  %v1558 = vadd.f32 %v1269, %v1557
  %v1559 = vpop.f32.mrb[0].mxu0
  %1560 = vmatprep.mubr.bf16.mxu0 %v694
  %1561 = vmatmul.mubr.bf16.gmra.mrb[0].mxu0 %v693
  %v1562 = vpop.f32.mrb[0].mxu0
  %v1563 = vadd.f32 %v1274, %v1562
  %v1564 = vpop.f32.mrb[0].mxu0
  %v1565 = vpop.f32.mrb[0].mxu0
  %v1566 = vadd.f32 %v1277, %v1565
  %v1567 = vpop.f32.mrb[0].mxu0
  %1568 = vmatprep.mubr.bf16.mxu0 %v698
  %1569 = vmatmul.mubr.bf16.gmra.mrb[0].mxu0 %v697
  %v1570 = vpop.f32.mrb[0].mxu0
  %v1571 = vadd.f32 %v1282, %v1570
  %v1572 = vpop.f32.mrb[0].mxu0
  %v1573 = vpop.f32.mrb[0].mxu0
  %v1574 = vadd.f32 %v1285, %v1573
  %v1575 = vpop.f32.mrb[0].mxu0
  %1576 = vmatprep.mubr.bf16.mxu0 %v702
  %1577 = vmatmul.mubr.bf16.gmra.mrb[0].mxu0 %v701
  %v1578 = vpop.f32.mrb[0].mxu0
  %v1579 = vadd.f32 %v1290, %v1578
  %v1580 = vpop.f32.mrb[0].mxu0
  %v1581 = vpop.f32.mrb[0].mxu0
  %v1582 = vadd.f32 %v1293, %v1581
  %v1583 = vpop.f32.mrb[0].mxu0
  %1584 = vmatprep.mubr.bf16.mxu0 %v706
  %1585 = vmatmul.mubr.bf16.gmra.mrb[0].mxu0 %v705
  %v1586 = vpop.f32.mrb[0].mxu0
  %v1587 = vadd.f32 %v1298, %v1586
  %v1588 = vpop.f32.mrb[0].mxu0
  %v1589 = vpop.f32.mrb[0].mxu0
  %v1590 = vadd.f32 %v1301, %v1589
  %v1591 = vpop.f32.mrb[0].mxu0
  %1592 = vmatprep.mubr.bf16.mxu0 %v710
  %1593 = vmatmul.mubr.bf16.gmra.mrb[0].mxu0 %v709
  %v1594 = vpop.f32.mrb[0].mxu0
  %v1595 = vadd.f32 %v1306, %v1594
  %v1596 = vpop.f32.mrb[0].mxu0
  %v1597 = vpop.f32.mrb[0].mxu0
  %v1598 = vadd.f32 %v1309, %v1597
  %v1599 = vpop.f32.mrb[0].mxu0
  %1600 = vmatprep.mubr.bf16.mxu0 %v714
  %1601 = vmatmul.mubr.bf16.gmra.mrb[0].mxu0 %v713
  %v1602 = vpop.f32.mrb[0].mxu0
  %v1603 = vadd.f32 %v1314, %v1602
  %v1604 = vpop.f32.mrb[0].mxu0
  %v1605 = vpop.f32.mrb[0].mxu0
  %v1606 = vadd.f32 %v1317, %v1605
  %v1607 = vpop.f32.mrb[0].mxu0
  %1608 = vmatprep.mubr.bf16.mxu0 %v718
  %1609 = vmatmul.mubr.bf16.gmra.mrb[0].mxu0 %v717
  %v1610 = vpop.f32.mrb[0].mxu0
  %v1611 = vadd.f32 %v1322, %v1610
  %v1612 = vpop.f32.mrb[0].mxu0
  %v1613 = vpop.f32.mrb[0].mxu0
  %v1614 = vadd.f32 %v1325, %v1613
  %v1615 = vpop.f32.mrb[0].mxu0
  %1616 = vdwg.mxu0
  %vm1617 = vcmask 130048
  %v1618 = vsel %vm1617, %v1363, 0.0
  %v1619 = vsel %vm1617, %v1366, 0.0
  %v1620 = vadd.f32 %v1618, %v1619
  %v1621 = vsel %vm1617, %v1371, 0.0
  %v1622 = vadd.f32 %v1620, %v1621
  %v1623 = vsel %vm1617, %v1374, 0.0
  %v1624 = vadd.f32 %v1622, %v1623
  %v1625 = vsel %vm1617, %v1379, 0.0
  %v1626 = vadd.f32 %v1624, %v1625
  %v1627 = vsel %vm1617, %v1382, 0.0
  %v1628 = vadd.f32 %v1626, %v1627
  %v1629 = vsel %vm1617, %v1387, 0.0
  %v1630 = vadd.f32 %v1628, %v1629
  %v1631 = vsel %vm1617, %v1390, 0.0
  %v1632 = vadd.f32 %v1630, %v1631
  %v1633 = vsel %vm1617, %v1395, 0.0
  %v1634 = vadd.f32 %v1632, %v1633
  %v1635 = vsel %vm1617, %v1398, 0.0
  %v1636 = vadd.f32 %v1634, %v1635
  %v1637 = vsel %vm1617, %v1403, 0.0
  %v1638 = vadd.f32 %v1636, %v1637
  %v1639 = vsel %vm1617, %v1406, 0.0
  %v1640 = vadd.f32 %v1638, %v1639
  %v1641 = vsel %vm1617, %v1411, 0.0
  %v1642 = vadd.f32 %v1640, %v1641
  %v1643 = vsel %vm1617, %v1414, 0.0
  %v1644 = vadd.f32 %v1642, %v1643
  %v1645 = vsel %vm1617, %v1419, 0.0
  %v1646 = vadd.f32 %v1644, %v1645
  %v1647 = vsel %vm1617, %v1422, 0.0
  %v1648 = vadd.f32 %v1646, %v1647
  %v1649 = vsel %vm1617, %v1427, 0.0
  %v1650 = vadd.f32 %v1648, %v1649
  %v1651 = vsel %vm1617, %v1430, 0.0
  %v1652 = vadd.f32 %v1650, %v1651
  %v1653 = vsel %vm1617, %v1435, 0.0
  %v1654 = vadd.f32 %v1652, %v1653
  %v1655 = vsel %vm1617, %v1438, 0.0
  %v1656 = vadd.f32 %v1654, %v1655
  %v1657 = vsel %vm1617, %v1443, 0.0
  %v1658 = vadd.f32 %v1656, %v1657
  %v1659 = vsel %vm1617, %v1446, 0.0
  %v1660 = vadd.f32 %v1658, %v1659
  %v1661 = vsel %vm1617, %v1451, 0.0
  %v1662 = vadd.f32 %v1660, %v1661
  %v1663 = vsel %vm1617, %v1454, 0.0
  %v1664 = vadd.f32 %v1662, %v1663
  %v1665 = vsel %vm1617, %v1459, 0.0
  %v1666 = vadd.f32 %v1664, %v1665
  %v1667 = vsel %vm1617, %v1462, 0.0
  %v1668 = vadd.f32 %v1666, %v1667
  %v1669 = vsel %vm1617, %v1467, 0.0
  %v1670 = vadd.f32 %v1668, %v1669
  %v1671 = vsel %vm1617, %v1470, 0.0
  %v1672 = vadd.f32 %v1670, %v1671
  %v1673 = vsel %vm1617, %v1475, 0.0
  %v1674 = vadd.f32 %v1672, %v1673
  %v1675 = vsel %vm1617, %v1478, 0.0
  %v1676 = vadd.f32 %v1674, %v1675
  %v1677 = vsel %vm1617, %v1483, 0.0
  %v1678 = vadd.f32 %v1676, %v1677
  %v1679 = vsel %vm1617, %v1486, 0.0
  %v1680 = vadd.f32 %v1678, %v1679
  %v1681 = vsel %vm1617, %v1491, 0.0
  %v1682 = vadd.f32 %v1680, %v1681
  %v1683 = vsel %vm1617, %v1494, 0.0
  %v1684 = vadd.f32 %v1682, %v1683
  %v1685 = vsel %vm1617, %v1499, 0.0
  %v1686 = vadd.f32 %v1684, %v1685
  %v1687 = vsel %vm1617, %v1502, 0.0
  %v1688 = vadd.f32 %v1686, %v1687
  %v1689 = vsel %vm1617, %v1507, 0.0
  %v1690 = vadd.f32 %v1688, %v1689
  %v1691 = vsel %vm1617, %v1510, 0.0
  %v1692 = vadd.f32 %v1690, %v1691
  %v1693 = vsel %vm1617, %v1515, 0.0
  %v1694 = vadd.f32 %v1692, %v1693
  %v1695 = vsel %vm1617, %v1518, 0.0
  %v1696 = vadd.f32 %v1694, %v1695
  %v1697 = vsel %vm1617, %v1523, 0.0
  %v1698 = vadd.f32 %v1696, %v1697
  %v1699 = vsel %vm1617, %v1526, 0.0
  %v1700 = vadd.f32 %v1698, %v1699
  %v1701 = vsel %vm1617, %v1531, 0.0
  %v1702 = vadd.f32 %v1700, %v1701
  %v1703 = vsel %vm1617, %v1534, 0.0
  %v1704 = vadd.f32 %v1702, %v1703
  %v1705 = vsel %vm1617, %v1539, 0.0
  %v1706 = vadd.f32 %v1704, %v1705
  %v1707 = vsel %vm1617, %v1542, 0.0
  %v1708 = vadd.f32 %v1706, %v1707
  %v1709 = vsel %vm1617, %v1547, 0.0
  %v1710 = vadd.f32 %v1708, %v1709
  %v1711 = vsel %vm1617, %v1550, 0.0
  %v1712 = vadd.f32 %v1710, %v1711
  %v1713 = vsel %vm1617, %v1555, 0.0
  %v1714 = vadd.f32 %v1712, %v1713
  %v1715 = vsel %vm1617, %v1558, 0.0
  %v1716 = vadd.f32 %v1714, %v1715
  %v1717 = vsel %vm1617, %v1563, 0.0
  %v1718 = vadd.f32 %v1716, %v1717
  %v1719 = vsel %vm1617, %v1566, 0.0
  %v1720 = vadd.f32 %v1718, %v1719
  %v1721 = vsel %vm1617, %v1571, 0.0
  %v1722 = vadd.f32 %v1720, %v1721
  %v1723 = vsel %vm1617, %v1574, 0.0
  %v1724 = vadd.f32 %v1722, %v1723
  %v1725 = vsel %vm1617, %v1579, 0.0
  %v1726 = vadd.f32 %v1724, %v1725
  %v1727 = vsel %vm1617, %v1582, 0.0
  %v1728 = vadd.f32 %v1726, %v1727
  %v1729 = vsel %vm1617, %v1587, 0.0
  %v1730 = vadd.f32 %v1728, %v1729
  %v1731 = vsel %vm1617, %v1590, 0.0
  %v1732 = vadd.f32 %v1730, %v1731
  %v1733 = vsel %vm1617, %v1595, 0.0
  %v1734 = vadd.f32 %v1732, %v1733
  %v1735 = vsel %vm1617, %v1598, 0.0
  %v1736 = vadd.f32 %v1734, %v1735
  %v1737 = vsel %vm1617, %v1603, 0.0
  %v1738 = vadd.f32 %v1736, %v1737
  %v1739 = vsel %vm1617, %v1606, 0.0
  %v1740 = vadd.f32 %v1738, %v1739
  %v1741 = vsel %vm1617, %v1611, 0.0
  %v1742 = vadd.f32 %v1740, %v1741
  %v1743 = vsel %vm1617, %v1614, 0.0
  %v1744 = vadd.f32 %v1742, %v1743
  %v1745 = vrot.slane %v1744, 4
  %v1746 = vadd.f32 %v1744, %v1745
  %v1747 = vrot.slane %v1746, 2
  %v1748 = vadd.f32 %v1746, %v1747
  %v1749 = vrot.slane %v1748, 1
  %v1750 = vadd.f32 %v1748, %v1749
  %v1751 = vmul.f32 %v1750, 0.001953125
  %v1752 = vsub.f32 %v1363, %v1751
  %v1753 = vsub.f32 %v1366, %v1751
  %v1754 = vsub.f32 %v1371, %v1751
  %v1755 = vsub.f32 %v1374, %v1751
  %v1756 = vsub.f32 %v1379, %v1751
  %v1757 = vsub.f32 %v1382, %v1751
  %v1758 = vsub.f32 %v1387, %v1751
  %v1759 = vsub.f32 %v1390, %v1751
  %v1760 = vsub.f32 %v1395, %v1751
  %v1761 = vsub.f32 %v1398, %v1751
  %v1762 = vsub.f32 %v1403, %v1751
  %v1763 = vsub.f32 %v1406, %v1751
  %v1764 = vsub.f32 %v1411, %v1751
  %v1765 = vsub.f32 %v1414, %v1751
  %v1766 = vsub.f32 %v1419, %v1751
  %v1767 = vsub.f32 %v1422, %v1751
  %v1768 = vsub.f32 %v1427, %v1751
  %v1769 = vsub.f32 %v1430, %v1751
  %v1770 = vsub.f32 %v1435, %v1751
  %v1771 = vsub.f32 %v1438, %v1751
  %v1772 = vsub.f32 %v1443, %v1751
  %v1773 = vsub.f32 %v1446, %v1751
  %v1774 = vsub.f32 %v1451, %v1751
  %v1775 = vsub.f32 %v1454, %v1751
  %v1776 = vsub.f32 %v1459, %v1751
  %v1777 = vsub.f32 %v1462, %v1751
  %v1778 = vsub.f32 %v1467, %v1751
  %v1779 = vsub.f32 %v1470, %v1751
  %v1780 = vsub.f32 %v1475, %v1751
  %v1781 = vsub.f32 %v1478, %v1751
  %v1782 = vsub.f32 %v1483, %v1751
  %v1783 = vsub.f32 %v1486, %v1751
  %v1784 = vsub.f32 %v1491, %v1751
  %v1785 = vsub.f32 %v1494, %v1751
  %v1786 = vsub.f32 %v1499, %v1751
  %v1787 = vsub.f32 %v1502, %v1751
  %v1788 = vsub.f32 %v1507, %v1751
  %v1789 = vsub.f32 %v1510, %v1751
  %v1790 = vsub.f32 %v1515, %v1751
  %v1791 = vsub.f32 %v1518, %v1751
  %v1792 = vsub.f32 %v1523, %v1751
  %v1793 = vsub.f32 %v1526, %v1751
  %v1794 = vsub.f32 %v1531, %v1751
  %v1795 = vsub.f32 %v1534, %v1751
  %v1796 = vsub.f32 %v1539, %v1751
  %v1797 = vsub.f32 %v1542, %v1751
  %v1798 = vsub.f32 %v1547, %v1751
  %v1799 = vsub.f32 %v1550, %v1751
  %v1800 = vsub.f32 %v1555, %v1751
  %v1801 = vsub.f32 %v1558, %v1751
  %v1802 = vsub.f32 %v1563, %v1751
  %v1803 = vsub.f32 %v1566, %v1751
  %v1804 = vsub.f32 %v1571, %v1751
  %v1805 = vsub.f32 %v1574, %v1751
  %v1806 = vsub.f32 %v1579, %v1751
  %v1807 = vsub.f32 %v1582, %v1751
  %v1808 = vsub.f32 %v1587, %v1751
  %v1809 = vsub.f32 %v1590, %v1751
  %v1810 = vsub.f32 %v1595, %v1751
  %v1811 = vsub.f32 %v1598, %v1751
  %v1812 = vsub.f32 %v1603, %v1751
  %v1813 = vsub.f32 %v1606, %v1751
  %v1814 = vsub.f32 %v1611, %v1751
  %v1815 = vsub.f32 %v1614, %v1751
  %v1816 = vmul.f32 %v1752, %v1752
  %v1817 = vmul.f32 %v1753, %v1753
  %v1818 = vmul.f32 %v1754, %v1754
  %v1819 = vmul.f32 %v1755, %v1755
  %v1820 = vmul.f32 %v1756, %v1756
  %v1821 = vmul.f32 %v1757, %v1757
  %v1822 = vmul.f32 %v1758, %v1758
  %v1823 = vmul.f32 %v1759, %v1759
  %v1824 = vmul.f32 %v1760, %v1760
  %v1825 = vmul.f32 %v1761, %v1761
  %v1826 = vmul.f32 %v1762, %v1762
  %v1827 = vmul.f32 %v1763, %v1763
  %v1828 = vmul.f32 %v1764, %v1764
  %v1829 = vmul.f32 %v1765, %v1765
  %v1830 = vmul.f32 %v1766, %v1766
  %v1831 = vmul.f32 %v1767, %v1767
  %v1832 = vmul.f32 %v1768, %v1768
  %v1833 = vmul.f32 %v1769, %v1769
  %v1834 = vmul.f32 %v1770, %v1770
  %v1835 = vmul.f32 %v1771, %v1771
  %v1836 = vmul.f32 %v1772, %v1772
  %v1837 = vmul.f32 %v1773, %v1773
  %v1838 = vmul.f32 %v1774, %v1774
  %v1839 = vmul.f32 %v1775, %v1775
  %v1840 = vmul.f32 %v1776, %v1776
  %v1841 = vmul.f32 %v1777, %v1777
  %v1842 = vmul.f32 %v1778, %v1778
  %v1843 = vmul.f32 %v1779, %v1779
  %v1844 = vmul.f32 %v1780, %v1780
  %v1845 = vmul.f32 %v1781, %v1781
  %v1846 = vmul.f32 %v1782, %v1782
  %v1847 = vmul.f32 %v1783, %v1783
  %v1848 = vmul.f32 %v1784, %v1784
  %v1849 = vmul.f32 %v1785, %v1785
  %v1850 = vmul.f32 %v1786, %v1786
  %v1851 = vmul.f32 %v1787, %v1787
  %v1852 = vmul.f32 %v1788, %v1788
  %v1853 = vmul.f32 %v1789, %v1789
  %v1854 = vmul.f32 %v1790, %v1790
  %v1855 = vmul.f32 %v1791, %v1791
  %v1856 = vmul.f32 %v1792, %v1792
  %v1857 = vmul.f32 %v1793, %v1793
  %v1858 = vmul.f32 %v1794, %v1794
  %v1859 = vmul.f32 %v1795, %v1795
  %v1860 = vmul.f32 %v1796, %v1796
  %v1861 = vmul.f32 %v1797, %v1797
  %v1862 = vmul.f32 %v1798, %v1798
  %v1863 = vmul.f32 %v1799, %v1799
  %v1864 = vmul.f32 %v1800, %v1800
  %v1865 = vmul.f32 %v1801, %v1801
  %v1866 = vmul.f32 %v1802, %v1802
  %v1867 = vmul.f32 %v1803, %v1803
  %v1868 = vmul.f32 %v1804, %v1804
  %v1869 = vmul.f32 %v1805, %v1805
  %v1870 = vmul.f32 %v1806, %v1806
  %v1871 = vmul.f32 %v1807, %v1807
  %v1872 = vmul.f32 %v1808, %v1808
  %v1873 = vmul.f32 %v1809, %v1809
  %v1874 = vmul.f32 %v1810, %v1810
  %v1875 = vmul.f32 %v1811, %v1811
  %v1876 = vmul.f32 %v1812, %v1812
  %v1877 = vmul.f32 %v1813, %v1813
  %v1878 = vmul.f32 %v1814, %v1814
  %v1879 = vmul.f32 %v1815, %v1815
  %v1880 = vsel %vm1617, %v1816, 0.0
  %v1881 = vsel %vm1617, %v1817, 0.0
  %v1882 = vadd.f32 %v1880, %v1881
  %v1883 = vsel %vm1617, %v1818, 0.0
  %v1884 = vadd.f32 %v1882, %v1883
  %v1885 = vsel %vm1617, %v1819, 0.0
  %v1886 = vadd.f32 %v1884, %v1885
  %v1887 = vsel %vm1617, %v1820, 0.0
  %v1888 = vadd.f32 %v1886, %v1887
  %v1889 = vsel %vm1617, %v1821, 0.0
  %v1890 = vadd.f32 %v1888, %v1889
  %v1891 = vsel %vm1617, %v1822, 0.0
  %v1892 = vadd.f32 %v1890, %v1891
  %v1893 = vsel %vm1617, %v1823, 0.0
  %v1894 = vadd.f32 %v1892, %v1893
  %v1895 = vsel %vm1617, %v1824, 0.0
  %v1896 = vadd.f32 %v1894, %v1895
  %v1897 = vsel %vm1617, %v1825, 0.0
  %v1898 = vadd.f32 %v1896, %v1897
  %v1899 = vsel %vm1617, %v1826, 0.0
  %v1900 = vadd.f32 %v1898, %v1899
  %v1901 = vsel %vm1617, %v1827, 0.0
  %v1902 = vadd.f32 %v1900, %v1901
  %v1903 = vsel %vm1617, %v1828, 0.0
  %v1904 = vadd.f32 %v1902, %v1903
  %v1905 = vsel %vm1617, %v1829, 0.0
  %v1906 = vadd.f32 %v1904, %v1905
  %v1907 = vsel %vm1617, %v1830, 0.0
  %v1908 = vadd.f32 %v1906, %v1907
  %v1909 = vsel %vm1617, %v1831, 0.0
  %v1910 = vadd.f32 %v1908, %v1909
  %v1911 = vsel %vm1617, %v1832, 0.0
  %v1912 = vadd.f32 %v1910, %v1911
  %v1913 = vsel %vm1617, %v1833, 0.0
  %v1914 = vadd.f32 %v1912, %v1913
  %v1915 = vsel %vm1617, %v1834, 0.0
  %v1916 = vadd.f32 %v1914, %v1915
  %v1917 = vsel %vm1617, %v1835, 0.0
  %v1918 = vadd.f32 %v1916, %v1917
  %v1919 = vsel %vm1617, %v1836, 0.0
  %v1920 = vadd.f32 %v1918, %v1919
  %v1921 = vsel %vm1617, %v1837, 0.0
  %v1922 = vadd.f32 %v1920, %v1921
  %v1923 = vsel %vm1617, %v1838, 0.0
  %v1924 = vadd.f32 %v1922, %v1923
  %v1925 = vsel %vm1617, %v1839, 0.0
  %v1926 = vadd.f32 %v1924, %v1925
  %v1927 = vsel %vm1617, %v1840, 0.0
  %v1928 = vadd.f32 %v1926, %v1927
  %v1929 = vsel %vm1617, %v1841, 0.0
  %v1930 = vadd.f32 %v1928, %v1929
  %v1931 = vsel %vm1617, %v1842, 0.0
  %v1932 = vadd.f32 %v1930, %v1931
  %v1933 = vsel %vm1617, %v1843, 0.0
  %v1934 = vadd.f32 %v1932, %v1933
  %v1935 = vsel %vm1617, %v1844, 0.0
  %v1936 = vadd.f32 %v1934, %v1935
  %v1937 = vsel %vm1617, %v1845, 0.0
  %v1938 = vadd.f32 %v1936, %v1937
  %v1939 = vsel %vm1617, %v1846, 0.0
  %v1940 = vadd.f32 %v1938, %v1939
  %v1941 = vsel %vm1617, %v1847, 0.0
  %v1942 = vadd.f32 %v1940, %v1941
  %v1943 = vsel %vm1617, %v1848, 0.0
  %v1944 = vadd.f32 %v1942, %v1943
  %v1945 = vsel %vm1617, %v1849, 0.0
  %v1946 = vadd.f32 %v1944, %v1945
  %v1947 = vsel %vm1617, %v1850, 0.0
  %v1948 = vadd.f32 %v1946, %v1947
  %v1949 = vsel %vm1617, %v1851, 0.0
  %v1950 = vadd.f32 %v1948, %v1949
  %v1951 = vsel %vm1617, %v1852, 0.0
  %v1952 = vadd.f32 %v1950, %v1951
  %v1953 = vsel %vm1617, %v1853, 0.0
  %v1954 = vadd.f32 %v1952, %v1953
  %v1955 = vsel %vm1617, %v1854, 0.0
  %v1956 = vadd.f32 %v1954, %v1955
  %v1957 = vsel %vm1617, %v1855, 0.0
  %v1958 = vadd.f32 %v1956, %v1957
  %v1959 = vsel %vm1617, %v1856, 0.0
  %v1960 = vadd.f32 %v1958, %v1959
  %v1961 = vsel %vm1617, %v1857, 0.0
  %v1962 = vadd.f32 %v1960, %v1961
  %v1963 = vsel %vm1617, %v1858, 0.0
  %v1964 = vadd.f32 %v1962, %v1963
  %v1965 = vsel %vm1617, %v1859, 0.0
  %v1966 = vadd.f32 %v1964, %v1965
  %v1967 = vsel %vm1617, %v1860, 0.0
  %v1968 = vadd.f32 %v1966, %v1967
  %v1969 = vsel %vm1617, %v1861, 0.0
  %v1970 = vadd.f32 %v1968, %v1969
  %v1971 = vsel %vm1617, %v1862, 0.0
  %v1972 = vadd.f32 %v1970, %v1971
  %v1973 = vsel %vm1617, %v1863, 0.0
  %v1974 = vadd.f32 %v1972, %v1973
  %v1975 = vsel %vm1617, %v1864, 0.0
  %v1976 = vadd.f32 %v1974, %v1975
  %v1977 = vsel %vm1617, %v1865, 0.0
  %v1978 = vadd.f32 %v1976, %v1977
  %v1979 = vsel %vm1617, %v1866, 0.0
  %v1980 = vadd.f32 %v1978, %v1979
  %v1981 = vsel %vm1617, %v1867, 0.0
  %v1982 = vadd.f32 %v1980, %v1981
  %v1983 = vsel %vm1617, %v1868, 0.0
  %v1984 = vadd.f32 %v1982, %v1983
  %v1985 = vsel %vm1617, %v1869, 0.0
  %v1986 = vadd.f32 %v1984, %v1985
  %v1987 = vsel %vm1617, %v1870, 0.0
  %v1988 = vadd.f32 %v1986, %v1987
  %v1989 = vsel %vm1617, %v1871, 0.0
  %v1990 = vadd.f32 %v1988, %v1989
  %v1991 = vsel %vm1617, %v1872, 0.0
  %v1992 = vadd.f32 %v1990, %v1991
  %v1993 = vsel %vm1617, %v1873, 0.0
  %v1994 = vadd.f32 %v1992, %v1993
  %v1995 = vsel %vm1617, %v1874, 0.0
  %v1996 = vadd.f32 %v1994, %v1995
  %v1997 = vsel %vm1617, %v1875, 0.0
  %v1998 = vadd.f32 %v1996, %v1997
  %v1999 = vsel %vm1617, %v1876, 0.0
  %v2000 = vadd.f32 %v1998, %v1999
  %v2001 = vsel %vm1617, %v1877, 0.0
  %v2002 = vadd.f32 %v2000, %v2001
  %v2003 = vsel %vm1617, %v1878, 0.0
  %v2004 = vadd.f32 %v2002, %v2003
  %v2005 = vsel %vm1617, %v1879, 0.0
  %v2006 = vadd.f32 %v2004, %v2005
  %v2007 = vrot.slane %v2006, 4
  %v2008 = vadd.f32 %v2006, %v2007
  %v2009 = vrot.slane %v2008, 2
  %v2010 = vadd.f32 %v2008, %v2009
  %v2011 = vrot.slane %v2010, 1
  %v2012 = vadd.f32 %v2010, %v2011
  %v2013 = vmul.f32 %v2012, 0.001953125
  %v2014 = vld [vmem:[%s2] sm:$0x3]
  %v2015 = vadd.f32 %v2013, 1e-05
  %v2016 = vrsqrt.pop %v2015
  %v2017 = vmul.f32 %v2014, %v2016
  %v2018 = vlaneseq
  %v2019 = vshrl.u32 %v2018, 7
  %v2020 = vsub.s32 0, %v2019
  %v2021 = vrot.slane %v2017, %v2020
  %v2022 = vmul.f32 %v1752, %v2021
  %v2023 = vmul.f32 %v1753, %v2021
  %v2024 = vmul.f32 %v1754, %v2021
  %v2025 = vmul.f32 %v1755, %v2021
  %v2026 = vmul.f32 %v1756, %v2021
  %v2027 = vmul.f32 %v1757, %v2021
  %v2028 = vmul.f32 %v1758, %v2021
  %v2029 = vmul.f32 %v1759, %v2021
  %v2030 = vmul.f32 %v1760, %v2021
  %v2031 = vmul.f32 %v1761, %v2021
  %v2032 = vmul.f32 %v1762, %v2021
  %v2033 = vmul.f32 %v1763, %v2021
  %v2034 = vmul.f32 %v1764, %v2021
  %v2035 = vmul.f32 %v1765, %v2021
  %v2036 = vmul.f32 %v1766, %v2021
  %v2037 = vmul.f32 %v1767, %v2021
  %v2038 = vmul.f32 %v1768, %v2021
  %v2039 = vmul.f32 %v1769, %v2021
  %v2040 = vmul.f32 %v1770, %v2021
  %v2041 = vmul.f32 %v1771, %v2021
  %v2042 = vmul.f32 %v1772, %v2021
  %v2043 = vmul.f32 %v1773, %v2021
  %v2044 = vmul.f32 %v1774, %v2021
  %v2045 = vmul.f32 %v1775, %v2021
  %v2046 = vmul.f32 %v1776, %v2021
  %v2047 = vmul.f32 %v1777, %v2021
  %v2048 = vmul.f32 %v1778, %v2021
  %v2049 = vmul.f32 %v1779, %v2021
  %v2050 = vmul.f32 %v1780, %v2021
  %v2051 = vmul.f32 %v1781, %v2021
  %v2052 = vmul.f32 %v1782, %v2021
  %v2053 = vmul.f32 %v1783, %v2021
  %v2054 = vmul.f32 %v1784, %v2021
  %v2055 = vmul.f32 %v1785, %v2021
  %v2056 = vmul.f32 %v1786, %v2021
  %v2057 = vmul.f32 %v1787, %v2021
  %v2058 = vmul.f32 %v1788, %v2021
  %v2059 = vmul.f32 %v1789, %v2021
  %v2060 = vmul.f32 %v1790, %v2021
  %v2061 = vmul.f32 %v1791, %v2021
  %v2062 = vmul.f32 %v1792, %v2021
  %v2063 = vmul.f32 %v1793, %v2021
  %v2064 = vmul.f32 %v1794, %v2021
  %v2065 = vmul.f32 %v1795, %v2021
  %v2066 = vmul.f32 %v1796, %v2021
  %v2067 = vmul.f32 %v1797, %v2021
  %v2068 = vmul.f32 %v1798, %v2021
  %v2069 = vmul.f32 %v1799, %v2021
  %v2070 = vmul.f32 %v1800, %v2021
  %v2071 = vmul.f32 %v1801, %v2021
  %v2072 = vmul.f32 %v1802, %v2021
  %v2073 = vmul.f32 %v1803, %v2021
  %v2074 = vmul.f32 %v1804, %v2021
  %v2075 = vmul.f32 %v1805, %v2021
  %v2076 = vmul.f32 %v1806, %v2021
  %v2077 = vmul.f32 %v1807, %v2021
  %v2078 = vmul.f32 %v1808, %v2021
  %v2079 = vmul.f32 %v1809, %v2021
  %v2080 = vmul.f32 %v1810, %v2021
  %v2081 = vmul.f32 %v1811, %v2021
  %v2082 = vmul.f32 %v1812, %v2021
  %v2083 = vmul.f32 %v1813, %v2021
  %v2084 = vmul.f32 %v1814, %v2021
  %v2085 = vmul.f32 %v1815, %v2021
  %v2086 = vlaneseq
  %v2087 = vshrl.u32 %v2086, 7
  %v2088 = vsub.s32 1, %v2087
  %v2089 = vrot.slane %v2014, %v2088
  %v2090 = vadd.f32 %v2022, %v2089
  %v2091 = vadd.f32 %v2023, %v2089
  %v2092 = vadd.f32 %v2024, %v2089
  %v2093 = vadd.f32 %v2025, %v2089
  %v2094 = vadd.f32 %v2026, %v2089
  %v2095 = vadd.f32 %v2027, %v2089
  %v2096 = vadd.f32 %v2028, %v2089
  %v2097 = vadd.f32 %v2029, %v2089
  %v2098 = vadd.f32 %v2030, %v2089
  %v2099 = vadd.f32 %v2031, %v2089
  %v2100 = vadd.f32 %v2032, %v2089
  %v2101 = vadd.f32 %v2033, %v2089
  %v2102 = vadd.f32 %v2034, %v2089
  %v2103 = vadd.f32 %v2035, %v2089
  %v2104 = vadd.f32 %v2036, %v2089
  %v2105 = vadd.f32 %v2037, %v2089
  %v2106 = vadd.f32 %v2038, %v2089
  %v2107 = vadd.f32 %v2039, %v2089
  %v2108 = vadd.f32 %v2040, %v2089
  %v2109 = vadd.f32 %v2041, %v2089
  %v2110 = vadd.f32 %v2042, %v2089
  %v2111 = vadd.f32 %v2043, %v2089
  %v2112 = vadd.f32 %v2044, %v2089
  %v2113 = vadd.f32 %v2045, %v2089
  %v2114 = vadd.f32 %v2046, %v2089
  %v2115 = vadd.f32 %v2047, %v2089
  %v2116 = vadd.f32 %v2048, %v2089
  %v2117 = vadd.f32 %v2049, %v2089
  %v2118 = vadd.f32 %v2050, %v2089
  %v2119 = vadd.f32 %v2051, %v2089
  %v2120 = vadd.f32 %v2052, %v2089
  %v2121 = vadd.f32 %v2053, %v2089
  %v2122 = vadd.f32 %v2054, %v2089
  %v2123 = vadd.f32 %v2055, %v2089
  %v2124 = vadd.f32 %v2056, %v2089
  %v2125 = vadd.f32 %v2057, %v2089
  %v2126 = vadd.f32 %v2058, %v2089
  %v2127 = vadd.f32 %v2059, %v2089
  %v2128 = vadd.f32 %v2060, %v2089
  %v2129 = vadd.f32 %v2061, %v2089
  %v2130 = vadd.f32 %v2062, %v2089
  %v2131 = vadd.f32 %v2063, %v2089
  %v2132 = vadd.f32 %v2064, %v2089
  %v2133 = vadd.f32 %v2065, %v2089
  %v2134 = vadd.f32 %v2066, %v2089
  %v2135 = vadd.f32 %v2067, %v2089
  %v2136 = vadd.f32 %v2068, %v2089
  %v2137 = vadd.f32 %v2069, %v2089
  %v2138 = vadd.f32 %v2070, %v2089
  %v2139 = vadd.f32 %v2071, %v2089
  %v2140 = vadd.f32 %v2072, %v2089
  %v2141 = vadd.f32 %v2073, %v2089
  %v2142 = vadd.f32 %v2074, %v2089
  %v2143 = vadd.f32 %v2075, %v2089
  %v2144 = vadd.f32 %v2076, %v2089
  %v2145 = vadd.f32 %v2077, %v2089
  %v2146 = vadd.f32 %v2078, %v2089
  %v2147 = vadd.f32 %v2079, %v2089
  %v2148 = vadd.f32 %v2080, %v2089
  %v2149 = vadd.f32 %v2081, %v2089
  %v2150 = vadd.f32 %v2082, %v2089
  %v2151 = vadd.f32 %v2083, %v2089
  %v2152 = vadd.f32 %v2084, %v2089
  %v2153 = vadd.f32 %v2085, %v2089
  %v2154 = vmax.f32 %v2090, 0.0
  %v2155 = vmax.f32 %v2091, 0.0
  %v2156 = vmax.f32 %v2092, 0.0
  %v2157 = vmax.f32 %v2093, 0.0
  %v2158 = vmax.f32 %v2094, 0.0
  %v2159 = vmax.f32 %v2095, 0.0
  %v2160 = vmax.f32 %v2096, 0.0
  %v2161 = vmax.f32 %v2097, 0.0
  %v2162 = vmax.f32 %v2098, 0.0
  %v2163 = vmax.f32 %v2099, 0.0
  %v2164 = vmax.f32 %v2100, 0.0
  %v2165 = vmax.f32 %v2101, 0.0
  %v2166 = vmax.f32 %v2102, 0.0
  %v2167 = vmax.f32 %v2103, 0.0
  %v2168 = vmax.f32 %v2104, 0.0
  %v2169 = vmax.f32 %v2105, 0.0
  %v2170 = vmax.f32 %v2106, 0.0
  %v2171 = vmax.f32 %v2107, 0.0
  %v2172 = vmax.f32 %v2108, 0.0
  %v2173 = vmax.f32 %v2109, 0.0
  %v2174 = vmax.f32 %v2110, 0.0
  %v2175 = vmax.f32 %v2111, 0.0
  %v2176 = vmax.f32 %v2112, 0.0
  %v2177 = vmax.f32 %v2113, 0.0
  %v2178 = vmax.f32 %v2114, 0.0
  %v2179 = vmax.f32 %v2115, 0.0
  %v2180 = vmax.f32 %v2116, 0.0
  %v2181 = vmax.f32 %v2117, 0.0
  %v2182 = vmax.f32 %v2118, 0.0
  %v2183 = vmax.f32 %v2119, 0.0
  %v2184 = vmax.f32 %v2120, 0.0
  %v2185 = vmax.f32 %v2121, 0.0
  %v2186 = vmax.f32 %v2122, 0.0
  %v2187 = vmax.f32 %v2123, 0.0
  %v2188 = vmax.f32 %v2124, 0.0
  %v2189 = vmax.f32 %v2125, 0.0
  %v2190 = vmax.f32 %v2126, 0.0
  %v2191 = vmax.f32 %v2127, 0.0
  %v2192 = vmax.f32 %v2128, 0.0
  %v2193 = vmax.f32 %v2129, 0.0
  %v2194 = vmax.f32 %v2130, 0.0
  %v2195 = vmax.f32 %v2131, 0.0
  %v2196 = vmax.f32 %v2132, 0.0
  %v2197 = vmax.f32 %v2133, 0.0
  %v2198 = vmax.f32 %v2134, 0.0
  %v2199 = vmax.f32 %v2135, 0.0
  %v2200 = vmax.f32 %v2136, 0.0
  %v2201 = vmax.f32 %v2137, 0.0
  %v2202 = vmax.f32 %v2138, 0.0
  %v2203 = vmax.f32 %v2139, 0.0
  %v2204 = vmax.f32 %v2140, 0.0
  %v2205 = vmax.f32 %v2141, 0.0
  %v2206 = vmax.f32 %v2142, 0.0
  %v2207 = vmax.f32 %v2143, 0.0
  %v2208 = vmax.f32 %v2144, 0.0
  %v2209 = vmax.f32 %v2145, 0.0
  %v2210 = vmax.f32 %v2146, 0.0
  %v2211 = vmax.f32 %v2147, 0.0
  %v2212 = vmax.f32 %v2148, 0.0
  %v2213 = vmax.f32 %v2149, 0.0
  %v2214 = vmax.f32 %v2150, 0.0
  %v2215 = vmax.f32 %v2151, 0.0
  %v2216 = vmax.f32 %v2152, 0.0
  %v2217 = vmax.f32 %v2153, 0.0
  %v2218 = vpack.c.bf16 %v2155, %v2154
  %v2219 = vpack.c.bf16 %v2157, %v2156
  %v2220 = vpack.c.bf16 %v2159, %v2158
  %v2221 = vpack.c.bf16 %v2161, %v2160
  %v2222 = vpack.c.bf16 %v2163, %v2162
  %v2223 = vpack.c.bf16 %v2165, %v2164
  %v2224 = vpack.c.bf16 %v2167, %v2166
  %v2225 = vpack.c.bf16 %v2169, %v2168
  %v2226 = vpack.c.bf16 %v2171, %v2170
  %v2227 = vpack.c.bf16 %v2173, %v2172
  %v2228 = vpack.c.bf16 %v2175, %v2174
  %v2229 = vpack.c.bf16 %v2177, %v2176
  %v2230 = vpack.c.bf16 %v2179, %v2178
  %v2231 = vpack.c.bf16 %v2181, %v2180
  %v2232 = vpack.c.bf16 %v2183, %v2182
  %v2233 = vpack.c.bf16 %v2185, %v2184
  %v2234 = vpack.c.bf16 %v2187, %v2186
  %v2235 = vpack.c.bf16 %v2189, %v2188
  %v2236 = vpack.c.bf16 %v2191, %v2190
  %v2237 = vpack.c.bf16 %v2193, %v2192
  %v2238 = vpack.c.bf16 %v2195, %v2194
  %v2239 = vpack.c.bf16 %v2197, %v2196
  %v2240 = vpack.c.bf16 %v2199, %v2198
  %v2241 = vpack.c.bf16 %v2201, %v2200
  %v2242 = vpack.c.bf16 %v2203, %v2202
  %v2243 = vpack.c.bf16 %v2205, %v2204
  %v2244 = vpack.c.bf16 %v2207, %v2206
  %v2245 = vpack.c.bf16 %v2209, %v2208
  %v2246 = vpack.c.bf16 %v2211, %v2210
  %v2247 = vpack.c.bf16 %v2213, %v2212
  %v2248 = vpack.c.bf16 %v2215, %v2214
  %v2249 = vpack.c.bf16 %v2217, %v2216
  %v2282 = vunpack.c.l.b16 %v2218
  %v2283 = vunpack.c.h.b16 %v2218
  %v2284 = vunpack.c.l.b16 %v2219
  %v2285 = vunpack.c.h.b16 %v2219
  %v2286 = vunpack.c.l.b16 %v2220
  %v2287 = vunpack.c.h.b16 %v2220
  %v2288 = vunpack.c.l.b16 %v2221
  %v2289 = vunpack.c.h.b16 %v2221
  %v2290 = vunpack.c.l.b16 %v2222
  %v2291 = vunpack.c.h.b16 %v2222
  %v2292 = vunpack.c.l.b16 %v2223
  %v2293 = vunpack.c.h.b16 %v2223
  %v2294 = vunpack.c.l.b16 %v2224
  %v2295 = vunpack.c.h.b16 %v2224
  %v2296 = vunpack.c.l.b16 %v2225
  %v2297 = vunpack.c.h.b16 %v2225
  %v2298 = vunpack.c.l.b16 %v2226
  %v2299 = vunpack.c.h.b16 %v2226
  %v2300 = vunpack.c.l.b16 %v2227
  %v2301 = vunpack.c.h.b16 %v2227
  %v2302 = vunpack.c.l.b16 %v2228
  %v2303 = vunpack.c.h.b16 %v2228
  %v2304 = vunpack.c.l.b16 %v2229
  %v2305 = vunpack.c.h.b16 %v2229
  %v2306 = vunpack.c.l.b16 %v2230
  %v2307 = vunpack.c.h.b16 %v2230
  %v2308 = vunpack.c.l.b16 %v2231
  %v2309 = vunpack.c.h.b16 %v2231
  %v2310 = vunpack.c.l.b16 %v2232
  %v2311 = vunpack.c.h.b16 %v2232
  %v2312 = vunpack.c.l.b16 %v2233
  %v2313 = vunpack.c.h.b16 %v2233
  %v2314 = vunpack.c.l.b16 %v2234
  %v2315 = vunpack.c.h.b16 %v2234
  %v2316 = vunpack.c.l.b16 %v2235
  %v2317 = vunpack.c.h.b16 %v2235
  %v2318 = vunpack.c.l.b16 %v2236
  %v2319 = vunpack.c.h.b16 %v2236
  %v2320 = vunpack.c.l.b16 %v2237
  %v2321 = vunpack.c.h.b16 %v2237
  %v2322 = vunpack.c.l.b16 %v2238
  %v2323 = vunpack.c.h.b16 %v2238
  %v2324 = vunpack.c.l.b16 %v2239
  %v2325 = vunpack.c.h.b16 %v2239
  %v2326 = vunpack.c.l.b16 %v2240
  %v2327 = vunpack.c.h.b16 %v2240
  %v2328 = vunpack.c.l.b16 %v2241
  %v2329 = vunpack.c.h.b16 %v2241
  %v2330 = vunpack.c.l.b16 %v2242
  %v2331 = vunpack.c.h.b16 %v2242
  %v2332 = vunpack.c.l.b16 %v2243
  %v2333 = vunpack.c.h.b16 %v2243
  %v2334 = vunpack.c.l.b16 %v2244
  %v2335 = vunpack.c.h.b16 %v2244
  %v2336 = vunpack.c.l.b16 %v2245
  %v2337 = vunpack.c.h.b16 %v2245
  %v2338 = vunpack.c.l.b16 %v2246
  %v2339 = vunpack.c.h.b16 %v2246
  %v2340 = vunpack.c.l.b16 %v2247
  %v2341 = vunpack.c.h.b16 %v2247
  %v2342 = vunpack.c.l.b16 %v2248
  %v2343 = vunpack.c.h.b16 %v2248
  %v2344 = vunpack.c.l.b16 %v2249
  %v2345 = vunpack.c.h.b16 %v2249
  %v2346 = vpack.c.b16 %v2282, %v2282
  %v2347 = vpack.c.b16 %v2283, %v2283
  %v2348 = vpack.c.b16 %v2284, %v2284
  %v2349 = vpack.c.b16 %v2285, %v2285
  %v2350 = vpack.c.b16 %v2286, %v2286
  %v2351 = vpack.c.b16 %v2287, %v2287
  %v2352 = vpack.c.b16 %v2288, %v2288
  %v2353 = vpack.c.b16 %v2289, %v2289
  %v2354 = vpack.c.b16 %v2290, %v2290
  %v2355 = vpack.c.b16 %v2291, %v2291
  %v2356 = vpack.c.b16 %v2292, %v2292
  %v2357 = vpack.c.b16 %v2293, %v2293
  %v2358 = vpack.c.b16 %v2294, %v2294
  %v2359 = vpack.c.b16 %v2295, %v2295
  %v2360 = vpack.c.b16 %v2296, %v2296
  %v2361 = vpack.c.b16 %v2297, %v2297
  %v2362 = vpack.c.b16 %v2298, %v2298
  %v2363 = vpack.c.b16 %v2299, %v2299
  %v2364 = vpack.c.b16 %v2300, %v2300
  %v2365 = vpack.c.b16 %v2301, %v2301
  %v2366 = vpack.c.b16 %v2302, %v2302
  %v2367 = vpack.c.b16 %v2303, %v2303
  %v2368 = vpack.c.b16 %v2304, %v2304
  %v2369 = vpack.c.b16 %v2305, %v2305
  %v2370 = vpack.c.b16 %v2306, %v2306
  %v2371 = vpack.c.b16 %v2307, %v2307
  %v2372 = vpack.c.b16 %v2308, %v2308
  %v2373 = vpack.c.b16 %v2309, %v2309
  %v2374 = vpack.c.b16 %v2310, %v2310
  %v2375 = vpack.c.b16 %v2311, %v2311
  %v2376 = vpack.c.b16 %v2312, %v2312
  %v2377 = vpack.c.b16 %v2313, %v2313
  %v2378 = vpack.c.b16 %v2314, %v2314
  %v2379 = vpack.c.b16 %v2315, %v2315
  %v2380 = vpack.c.b16 %v2316, %v2316
  %v2381 = vpack.c.b16 %v2317, %v2317
  %v2382 = vpack.c.b16 %v2318, %v2318
  %v2383 = vpack.c.b16 %v2319, %v2319
  %v2384 = vpack.c.b16 %v2320, %v2320
  %v2385 = vpack.c.b16 %v2321, %v2321
  %v2386 = vpack.c.b16 %v2322, %v2322
  %v2387 = vpack.c.b16 %v2323, %v2323
  %v2388 = vpack.c.b16 %v2324, %v2324
  %v2389 = vpack.c.b16 %v2325, %v2325
  %v2390 = vpack.c.b16 %v2326, %v2326
  %v2391 = vpack.c.b16 %v2327, %v2327
  %v2392 = vpack.c.b16 %v2328, %v2328
  %v2393 = vpack.c.b16 %v2329, %v2329
  %v2394 = vpack.c.b16 %v2330, %v2330
  %v2395 = vpack.c.b16 %v2331, %v2331
  %v2396 = vpack.c.b16 %v2332, %v2332
  %v2397 = vpack.c.b16 %v2333, %v2333
  %v2398 = vpack.c.b16 %v2334, %v2334
  %v2399 = vpack.c.b16 %v2335, %v2335
  %v2400 = vpack.c.b16 %v2336, %v2336
  %v2401 = vpack.c.b16 %v2337, %v2337
  %v2402 = vpack.c.b16 %v2338, %v2338
  %v2403 = vpack.c.b16 %v2339, %v2339
  %v2404 = vpack.c.b16 %v2340, %v2340
  %v2405 = vpack.c.b16 %v2341, %v2341
  %v2406 = vpack.c.b16 %v2342, %v2342
  %v2407 = vpack.c.b16 %v2343, %v2343
  %v2408 = vpack.c.b16 %v2344, %v2344
  %v2409 = vpack.c.b16 %v2345, %v2345
  %vm2474 = vcmask 125952
  %2475 = vst.msk [vmem:[%s3] sm:$0xf] %vm2474, %v2346
  %2476 = vst.msk [vmem:[%s3 + $0x4] sm:$0xf] %vm2474, %v2347
  %2477 = vst.msk [vmem:[%s3 + $0x8] sm:$0xf] %vm2474, %v2348
  %2478 = vst.msk [vmem:[%s3 + $0xc] sm:$0xf] %vm2474, %v2349
  %2479 = vst.msk [vmem:[%s3 + $0x10] sm:$0xf] %vm2474, %v2350
  %2480 = vst.msk [vmem:[%s3 + $0x14] sm:$0xf] %vm2474, %v2351
  %2481 = vst.msk [vmem:[%s3 + $0x18] sm:$0xf] %vm2474, %v2352
  %2482 = vst.msk [vmem:[%s3 + $0x1c] sm:$0xf] %vm2474, %v2353
  %2483 = vst.msk [vmem:[%s3 + $0x20] sm:$0xf] %vm2474, %v2354
  %2484 = vst.msk [vmem:[%s3 + $0x24] sm:$0xf] %vm2474, %v2355
  %2485 = vst.msk [vmem:[%s3 + $0x28] sm:$0xf] %vm2474, %v2356
  %2486 = vst.msk [vmem:[%s3 + $0x2c] sm:$0xf] %vm2474, %v2357
  %2487 = vst.msk [vmem:[%s3 + $0x30] sm:$0xf] %vm2474, %v2358
  %2488 = vst.msk [vmem:[%s3 + $0x34] sm:$0xf] %vm2474, %v2359
  %2489 = vst.msk [vmem:[%s3 + $0x38] sm:$0xf] %vm2474, %v2360
  %2490 = vst.msk [vmem:[%s3 + $0x3c] sm:$0xf] %vm2474, %v2361
  %2491 = vst.msk [vmem:[%s3 + $0x40] sm:$0xf] %vm2474, %v2362
  %2492 = vst.msk [vmem:[%s3 + $0x44] sm:$0xf] %vm2474, %v2363
  %2493 = vst.msk [vmem:[%s3 + $0x48] sm:$0xf] %vm2474, %v2364
  %2494 = vst.msk [vmem:[%s3 + $0x4c] sm:$0xf] %vm2474, %v2365
  %2495 = vst.msk [vmem:[%s3 + $0x50] sm:$0xf] %vm2474, %v2366
  %2496 = vst.msk [vmem:[%s3 + $0x54] sm:$0xf] %vm2474, %v2367
  %2497 = vst.msk [vmem:[%s3 + $0x58] sm:$0xf] %vm2474, %v2368
  %2498 = vst.msk [vmem:[%s3 + $0x5c] sm:$0xf] %vm2474, %v2369
  %2499 = vst.msk [vmem:[%s3 + $0x60] sm:$0xf] %vm2474, %v2370
  %2500 = vst.msk [vmem:[%s3 + $0x64] sm:$0xf] %vm2474, %v2371
  %2501 = vst.msk [vmem:[%s3 + $0x68] sm:$0xf] %vm2474, %v2372
  %2502 = vst.msk [vmem:[%s3 + $0x6c] sm:$0xf] %vm2474, %v2373
  %2503 = vst.msk [vmem:[%s3 + $0x70] sm:$0xf] %vm2474, %v2374
  %2504 = vst.msk [vmem:[%s3 + $0x74] sm:$0xf] %vm2474, %v2375
  %2505 = vst.msk [vmem:[%s3 + $0x78] sm:$0xf] %vm2474, %v2376
  %2506 = vst.msk [vmem:[%s3 + $0x7c] sm:$0xf] %vm2474, %v2377
  %2507 = vst.msk [vmem:[%s3 + $0x80] sm:$0xf] %vm2474, %v2378
  %2508 = vst.msk [vmem:[%s3 + $0x84] sm:$0xf] %vm2474, %v2379
  %2509 = vst.msk [vmem:[%s3 + $0x88] sm:$0xf] %vm2474, %v2380
  %2510 = vst.msk [vmem:[%s3 + $0x8c] sm:$0xf] %vm2474, %v2381
  %2511 = vst.msk [vmem:[%s3 + $0x90] sm:$0xf] %vm2474, %v2382
  %2512 = vst.msk [vmem:[%s3 + $0x94] sm:$0xf] %vm2474, %v2383
  %2513 = vst.msk [vmem:[%s3 + $0x98] sm:$0xf] %vm2474, %v2384
  %2514 = vst.msk [vmem:[%s3 + $0x9c] sm:$0xf] %vm2474, %v2385
  %2515 = vst.msk [vmem:[%s3 + $0xa0] sm:$0xf] %vm2474, %v2386
  %2516 = vst.msk [vmem:[%s3 + $0xa4] sm:$0xf] %vm2474, %v2387
  %2517 = vst.msk [vmem:[%s3 + $0xa8] sm:$0xf] %vm2474, %v2388
  %2518 = vst.msk [vmem:[%s3 + $0xac] sm:$0xf] %vm2474, %v2389
  %2519 = vst.msk [vmem:[%s3 + $0xb0] sm:$0xf] %vm2474, %v2390
  %2520 = vst.msk [vmem:[%s3 + $0xb4] sm:$0xf] %vm2474, %v2391
  %2521 = vst.msk [vmem:[%s3 + $0xb8] sm:$0xf] %vm2474, %v2392
  %2522 = vst.msk [vmem:[%s3 + $0xbc] sm:$0xf] %vm2474, %v2393
  %2523 = vst.msk [vmem:[%s3 + $0xc0] sm:$0xf] %vm2474, %v2394
  %2524 = vst.msk [vmem:[%s3 + $0xc4] sm:$0xf] %vm2474, %v2395
  %2525 = vst.msk [vmem:[%s3 + $0xc8] sm:$0xf] %vm2474, %v2396
  %2526 = vst.msk [vmem:[%s3 + $0xcc] sm:$0xf] %vm2474, %v2397
  %2527 = vst.msk [vmem:[%s3 + $0xd0] sm:$0xf] %vm2474, %v2398
  %2528 = vst.msk [vmem:[%s3 + $0xd4] sm:$0xf] %vm2474, %v2399
  %2529 = vst.msk [vmem:[%s3 + $0xd8] sm:$0xf] %vm2474, %v2400
  %2530 = vst.msk [vmem:[%s3 + $0xdc] sm:$0xf] %vm2474, %v2401
  %2531 = vst.msk [vmem:[%s3 + $0xe0] sm:$0xf] %vm2474, %v2402
  %2532 = vst.msk [vmem:[%s3 + $0xe4] sm:$0xf] %vm2474, %v2403
  %2533 = vst.msk [vmem:[%s3 + $0xe8] sm:$0xf] %vm2474, %v2404
  %2534 = vst.msk [vmem:[%s3 + $0xec] sm:$0xf] %vm2474, %v2405
  %2535 = vst.msk [vmem:[%s3 + $0xf0] sm:$0xf] %vm2474, %v2406
  %2536 = vst.msk [vmem:[%s3 + $0xf4] sm:$0xf] %vm2474, %v2407
  %2537 = vst.msk [vmem:[%s3 + $0xf8] sm:$0xf] %vm2474, %v2408
  %2538 = vst.msk [vmem:[%s3 + $0xfc] sm:$0xf] %vm2474, %v2409
  // Predicated region
  $region14: #{_lambda_.7} parent=0 // pred_check
    _
  $region15: #{_lambda_.7} parent=0 // pred_check_branch
    %2540 = sbr.rel (0) target = $region17
  $region16: #{_lambda_.7} parent=0 // pred_region
    _
  $region17: #{_lambda_.7} parent=0 // pred_fallthru
    _
  // Predicated region
  $region18: #{_lambda_.7} parent=0 // pred_check
    _
  $region19: #{_lambda_.7} parent=0 // pred_check_branch
    %2542 = sbr.rel (0) target = $region21
  $region20: #{_lambda_.7} parent=0 // pred_region
    _
  $region21: #{_lambda_.7} parent=0 // pred_fallthru
    _

// kernel: _lambda_.8
$region0: #{_lambda_.8}
  #allocation0 [shape = 'u32[]', space=smem, size = 0x4, offset = 0x4, fixed_abs, tag = 'smem constant byte address 0x4 - core index']
  #allocation1 [shape = 'u32[144,128]{1,0:T(1,128)}', space=vmem, size = 0x12000, scoped, tag = 'internal scratch']
  %s0 = inlined_call_operand.vmem [shape: bf16[882,576], index: 0, kind: input, shape index: {}]
  %s1 = inlined_call_operand.vmem [shape: bf16[576,8], index: 1, kind: input, shape index: {}]
  %s2 = inlined_call_operand.vmem [shape: f32[2,8], index: 2, kind: input, shape index: {}]
  %s3 = inlined_call_operand.vmem [shape: bf16[882,8], index: 3, kind: output, shape index: {}]
  %s4 = sld [smem:[#allocation0]]
  $region22: #{_lambda_.8} parent=0
    _
  %s6 = ssub.s32 1, %s4
  %s7 = scalar_select 0, %s6, %s4
  // Predicated region
  $region2: #{_lambda_.8} parent=0 // pred_check
    _
  $region3: #{_lambda_.8} parent=0 // pred_check_branch
    %9 = sbr.rel (0) target = $region5
  $region4: #{_lambda_.8} parent=0 // pred_region
    _
  $region5: #{_lambda_.8} parent=0 // pred_fallthru
    _
  // Predicated region
  $region6: #{_lambda_.8} parent=0 // pred_check
    _
  $region7: #{_lambda_.8} parent=0 // pred_check_branch
    %11 = sbr.rel (0) target = $region9
  $region8: #{_lambda_.8} parent=0 // pred_region
    _
  $region9: #{_lambda_.8} parent=0 // pred_fallthru
    _
  // Predicated region
  $region10: #{_lambda_.8} parent=0 // pred_check
    _
  $region11: #{_lambda_.8} parent=0 // pred_check_branch
    %13 = sbr.rel (0) target = $region13
  $region12: #{_lambda_.8} parent=0 // pred_region
    _
  $region13: #{_lambda_.8} parent=0 // pred_fallthru
    _
  %v15 = vld [vmem:[%s0] sm:$0xff]
  %v16 = vld [vmem:[%s0 + $0x8] sm:$0xff]
  %v17 = vld [vmem:[%s0 + $0x10] sm:$0xf]
  %v18 = vld [vmem:[%s0 + $0x14] sm:$0xff]
  %v19 = vld [vmem:[%s0 + $0x1c] sm:$0xff]
  %v20 = vld [vmem:[%s0 + $0x24] sm:$0xf]
  %v21 = vld [vmem:[%s0 + $0x28] sm:$0xff]
  %v22 = vld [vmem:[%s0 + $0x30] sm:$0xff]
  %v23 = vld [vmem:[%s0 + $0x38] sm:$0xf]
  %v24 = vld [vmem:[%s0 + $0x3c] sm:$0xff]
  %v25 = vld [vmem:[%s0 + $0x44] sm:$0xff]
  %v26 = vld [vmem:[%s0 + $0x4c] sm:$0xf]
  %v27 = vld [vmem:[%s0 + $0x50] sm:$0xff]
  %v28 = vld [vmem:[%s0 + $0x58] sm:$0xff]
  %v29 = vld [vmem:[%s0 + $0x60] sm:$0xf]
  %v30 = vld [vmem:[%s0 + $0x64] sm:$0xff]
  %v31 = vld [vmem:[%s0 + $0x6c] sm:$0xff]
  %v32 = vld [vmem:[%s0 + $0x74] sm:$0xf]
  %v33 = vld [vmem:[%s0 + $0x78] sm:$0xff]
  %v34 = vld [vmem:[%s0 + $0x80] sm:$0xff]
  %v35 = vld [vmem:[%s0 + $0x88] sm:$0xf]
  %v36 = vld [vmem:[%s0 + $0x8c] sm:$0xff]
  %v37 = vld [vmem:[%s0 + $0x94] sm:$0xff]
  %v38 = vld [vmem:[%s0 + $0x9c] sm:$0xf]
  %v39 = vld [vmem:[%s0 + $0xa0] sm:$0xff]
  %v40 = vld [vmem:[%s0 + $0xa8] sm:$0xff]
  %v41 = vld [vmem:[%s0 + $0xb0] sm:$0xf]
  %v42 = vld [vmem:[%s0 + $0xb4] sm:$0xff]
  %v43 = vld [vmem:[%s0 + $0xbc] sm:$0xff]
  %v44 = vld [vmem:[%s0 + $0xc4] sm:$0xf]
  %v45 = vld [vmem:[%s0 + $0xc8] sm:$0xff]
  %v46 = vld [vmem:[%s0 + $0xd0] sm:$0xff]
  %v47 = vld [vmem:[%s0 + $0xd8] sm:$0xf]
  %v48 = vld [vmem:[%s0 + $0xdc] sm:$0xff]
  %v49 = vld [vmem:[%s0 + $0xe4] sm:$0xff]
  %v50 = vld [vmem:[%s0 + $0xec] sm:$0xf]
  %v51 = vld [vmem:[%s0 + $0xf0] sm:$0xff]
  %v52 = vld [vmem:[%s0 + $0xf8] sm:$0xff]
  %v53 = vld [vmem:[%s0 + $0x100] sm:$0xf]
  %v54 = vld [vmem:[%s0 + $0x104] sm:$0xff]
  %v55 = vld [vmem:[%s0 + $0x10c] sm:$0xff]
  %v56 = vld [vmem:[%s0 + $0x114] sm:$0xf]
  %v57 = vld [vmem:[%s0 + $0x118] sm:$0xff]
  %v58 = vld [vmem:[%s0 + $0x120] sm:$0xff]
  %v59 = vld [vmem:[%s0 + $0x128] sm:$0xf]
  %v60 = vld [vmem:[%s0 + $0x12c] sm:$0xff]
  %v61 = vld [vmem:[%s0 + $0x134] sm:$0xff]
  %v62 = vld [vmem:[%s0 + $0x13c] sm:$0xf]
  %v63 = vld [vmem:[%s0 + $0x140] sm:$0xff]
  %v64 = vld [vmem:[%s0 + $0x148] sm:$0xff]
  %v65 = vld [vmem:[%s0 + $0x150] sm:$0xf]
  %v66 = vld [vmem:[%s0 + $0x154] sm:$0xff]
  %v67 = vld [vmem:[%s0 + $0x15c] sm:$0xff]
  %v68 = vld [vmem:[%s0 + $0x164] sm:$0xf]
  %v69 = vld [vmem:[%s0 + $0x168] sm:$0xff]
  %v70 = vld [vmem:[%s0 + $0x170] sm:$0xff]
  %v71 = vld [vmem:[%s0 + $0x178] sm:$0xf]
  %v72 = vld [vmem:[%s0 + $0x17c] sm:$0xff]
  %v73 = vld [vmem:[%s0 + $0x184] sm:$0xff]
  %v74 = vld [vmem:[%s0 + $0x18c] sm:$0xf]
  %v75 = vld [vmem:[%s0 + $0x190] sm:$0xff]
  %v76 = vld [vmem:[%s0 + $0x198] sm:$0xff]
  %v77 = vld [vmem:[%s0 + $0x1a0] sm:$0xf]
  %v78 = vld [vmem:[%s0 + $0x1a4] sm:$0xff]
  %v79 = vld [vmem:[%s0 + $0x1ac] sm:$0xff]
  %v80 = vld [vmem:[%s0 + $0x1b4] sm:$0xf]
  %v81 = vld [vmem:[%s0 + $0x1b8] sm:$0xff]
  %v82 = vld [vmem:[%s0 + $0x1c0] sm:$0xff]
  %v83 = vld [vmem:[%s0 + $0x1c8] sm:$0xf]
  %v84 = vld [vmem:[%s0 + $0x1cc] sm:$0xff]
  %v85 = vld [vmem:[%s0 + $0x1d4] sm:$0xff]
  %v86 = vld [vmem:[%s0 + $0x1dc] sm:$0xf]
  %v87 = vld [vmem:[%s0 + $0x1e0] sm:$0xff]
  %v88 = vld [vmem:[%s0 + $0x1e8] sm:$0xff]
  %v89 = vld [vmem:[%s0 + $0x1f0] sm:$0xf]
  %v90 = vld [vmem:[%s0 + $0x1f4] sm:$0xff]
  %v91 = vld [vmem:[%s0 + $0x1fc] sm:$0xff]
  %v92 = vld [vmem:[%s0 + $0x204] sm:$0xf]
  %v93 = vld [vmem:[%s0 + $0x208] sm:$0xff]
  %v94 = vld [vmem:[%s0 + $0x210] sm:$0xff]
  %v95 = vld [vmem:[%s0 + $0x218] sm:$0xf]
  %v96 = vld [vmem:[%s0 + $0x21c] sm:$0xff]
  %v97 = vld [vmem:[%s0 + $0x224] sm:$0xff]
  %v98 = vld [vmem:[%s0 + $0x22c] sm:$0xf]
  %v99 = vld [vmem:[%s0 + $0x230] sm:$0xff]
  %v100 = vld [vmem:[%s0 + $0x238] sm:$0xff]
  %v101 = vld [vmem:[%s0 + $0x240] sm:$0xf]
  %v102 = vld [vmem:[%s0 + $0x244] sm:$0xff]
  %v103 = vld [vmem:[%s0 + $0x24c] sm:$0xff]
  %v104 = vld [vmem:[%s0 + $0x254] sm:$0xf]
  %v105 = vld [vmem:[%s0 + $0x258] sm:$0xff]
  %v106 = vld [vmem:[%s0 + $0x260] sm:$0xff]
  %v107 = vld [vmem:[%s0 + $0x268] sm:$0xf]
  %v108 = vld [vmem:[%s0 + $0x26c] sm:$0xff]
  %v109 = vld [vmem:[%s0 + $0x274] sm:$0xff]
  %v110 = vld [vmem:[%s0 + $0x27c] sm:$0xf]
  %v111 = vld [vmem:[%s0 + $0x280] sm:$0xff]
  %v112 = vld [vmem:[%s0 + $0x288] sm:$0xff]
  %v113 = vld [vmem:[%s0 + $0x290] sm:$0xf]
  %v114 = vld [vmem:[%s0 + $0x294] sm:$0xff]
  %v115 = vld [vmem:[%s0 + $0x29c] sm:$0xff]
  %v116 = vld [vmem:[%s0 + $0x2a4] sm:$0xf]
  %v117 = vld [vmem:[%s0 + $0x2a8] sm:$0xff]
  %v118 = vld [vmem:[%s0 + $0x2b0] sm:$0xff]
  %v119 = vld [vmem:[%s0 + $0x2b8] sm:$0xf]
  %v120 = vld [vmem:[%s0 + $0x2bc] sm:$0xff]
  %v121 = vld [vmem:[%s0 + $0x2c4] sm:$0xff]
  %v122 = vld [vmem:[%s0 + $0x2cc] sm:$0xf]
  %v123 = vld [vmem:[%s0 + $0x2d0] sm:$0xff]
  %v124 = vld [vmem:[%s0 + $0x2d8] sm:$0xff]
  %v125 = vld [vmem:[%s0 + $0x2e0] sm:$0xf]
  %v126 = vld [vmem:[%s0 + $0x2e4] sm:$0xff]
  %v127 = vld [vmem:[%s0 + $0x2ec] sm:$0xff]
  %v128 = vld [vmem:[%s0 + $0x2f4] sm:$0xf]
  %v129 = vld [vmem:[%s0 + $0x2f8] sm:$0xff]
  %v130 = vld [vmem:[%s0 + $0x300] sm:$0xff]
  %v131 = vld [vmem:[%s0 + $0x308] sm:$0xf]
  %v132 = vld [vmem:[%s0 + $0x30c] sm:$0xff]
  %v133 = vld [vmem:[%s0 + $0x314] sm:$0xff]
  %v134 = vld [vmem:[%s0 + $0x31c] sm:$0xf]
  %v135 = vld [vmem:[%s0 + $0x320] sm:$0xff]
  %v136 = vld [vmem:[%s0 + $0x328] sm:$0xff]
  %v137 = vld [vmem:[%s0 + $0x330] sm:$0xf]
  %v138 = vld [vmem:[%s0 + $0x334] sm:$0xff]
  %v139 = vld [vmem:[%s0 + $0x33c] sm:$0xff]
  %v140 = vld [vmem:[%s0 + $0x344] sm:$0xf]
  %v141 = vld [vmem:[%s0 + $0x348] sm:$0xff]
  %v142 = vld [vmem:[%s0 + $0x350] sm:$0xff]
  %v143 = vld [vmem:[%s0 + $0x358] sm:$0xf]
  %v144 = vld [vmem:[%s0 + $0x35c] sm:$0xff]
  %v145 = vld [vmem:[%s0 + $0x364] sm:$0xff]
  %v146 = vld [vmem:[%s0 + $0x36c] sm:$0xf]
  %v147 = vld [vmem:[%s0 + $0x370] sm:$0xff]
  %v148 = vld [vmem:[%s0 + $0x378] sm:$0xff]
  %v149 = vld [vmem:[%s0 + $0x380] sm:$0xf]
  %v150 = vld [vmem:[%s0 + $0x384] sm:$0xff]
  %v151 = vld [vmem:[%s0 + $0x38c] sm:$0xff]
  %v152 = vld [vmem:[%s0 + $0x394] sm:$0xf]
  %v153 = vld [vmem:[%s0 + $0x398] sm:$0xff]
  %v154 = vld [vmem:[%s0 + $0x3a0] sm:$0xff]
  %v155 = vld [vmem:[%s0 + $0x3a8] sm:$0xf]
  %v156 = vld [vmem:[%s0 + $0x3ac] sm:$0xff]
  %v157 = vld [vmem:[%s0 + $0x3b4] sm:$0xff]
  %v158 = vld [vmem:[%s0 + $0x3bc] sm:$0xf]
  %v159 = vld [vmem:[%s0 + $0x3c0] sm:$0xff]
  %v160 = vld [vmem:[%s0 + $0x3c8] sm:$0xff]
  %v161 = vld [vmem:[%s0 + $0x3d0] sm:$0xf]
  %v162 = vld [vmem:[%s0 + $0x3d4] sm:$0xff]
  %v163 = vld [vmem:[%s0 + $0x3dc] sm:$0xff]
  %v164 = vld [vmem:[%s0 + $0x3e4] sm:$0xf]
  %v165 = vld [vmem:[%s0 + $0x3e8] sm:$0xff]
  %v166 = vld [vmem:[%s0 + $0x3f0] sm:$0xff]
  %v167 = vld [vmem:[%s0 + $0x3f8] sm:$0xf]
  %v168 = vld [vmem:[%s0 + $0x3fc] sm:$0xff]
  %v169 = vld [vmem:[%s0 + $0x404] sm:$0xff]
  %v170 = vld [vmem:[%s0 + $0x40c] sm:$0xf]
  %v171 = vld [vmem:[%s0 + $0x410] sm:$0xff]
  %v172 = vld [vmem:[%s0 + $0x418] sm:$0xff]
  %v173 = vld [vmem:[%s0 + $0x420] sm:$0xf]
  %v174 = vld [vmem:[%s0 + $0x424] sm:$0xff]
  %v175 = vld [vmem:[%s0 + $0x42c] sm:$0xff]
  %v176 = vld [vmem:[%s0 + $0x434] sm:$0xf]
  %v177 = vld [vmem:[%s0 + $0x438] sm:$0xff]
  %v178 = vld [vmem:[%s0 + $0x440] sm:$0xff]
  %v179 = vld [vmem:[%s0 + $0x448] sm:$0xf]
  %v180 = vld [vmem:[%s0 + $0x44c] sm:$0xff]
  %v181 = vld [vmem:[%s0 + $0x454] sm:$0xff]
  %v182 = vld [vmem:[%s0 + $0x45c] sm:$0xf]
  %v183 = vld [vmem:[%s0 + $0x460] sm:$0xff]
  %v184 = vld [vmem:[%s0 + $0x468] sm:$0xff]
  %v185 = vld [vmem:[%s0 + $0x470] sm:$0xf]
  %v186 = vld [vmem:[%s0 + $0x474] sm:$0xff]
  %v187 = vld [vmem:[%s0 + $0x47c] sm:$0xff]
  %v188 = vld [vmem:[%s0 + $0x484] sm:$0xf]
  %v189 = vld [vmem:[%s0 + $0x488] sm:$0xff]
  %v190 = vld [vmem:[%s0 + $0x490] sm:$0xff]
  %v191 = vld [vmem:[%s0 + $0x498] sm:$0xf]
  %v192 = vld [vmem:[%s0 + $0x49c] sm:$0xff]
  %v193 = vld [vmem:[%s0 + $0x4a4] sm:$0xff]
  %v194 = vld [vmem:[%s0 + $0x4ac] sm:$0xf]
  %v195 = vld [vmem:[%s0 + $0x4b0] sm:$0xff]
  %v196 = vld [vmem:[%s0 + $0x4b8] sm:$0xff]
  %v197 = vld [vmem:[%s0 + $0x4c0] sm:$0xf]
  %v198 = vld [vmem:[%s0 + $0x4c4] sm:$0xff]
  %v199 = vld [vmem:[%s0 + $0x4cc] sm:$0xff]
  %v200 = vld [vmem:[%s0 + $0x4d4] sm:$0xf]
  %v201 = vld [vmem:[%s0 + $0x4d8] sm:$0xff]
  %v202 = vld [vmem:[%s0 + $0x4e0] sm:$0xff]
  %v203 = vld [vmem:[%s0 + $0x4e8] sm:$0xf]
  %v204 = vld [vmem:[%s0 + $0x4ec] sm:$0xff]
  %v205 = vld [vmem:[%s0 + $0x4f4] sm:$0xff]
  %v206 = vld [vmem:[%s0 + $0x4fc] sm:$0xf]
  %v207 = vld [vmem:[%s0 + $0x500] sm:$0xff]
  %v208 = vld [vmem:[%s0 + $0x508] sm:$0xff]
  %v209 = vld [vmem:[%s0 + $0x510] sm:$0xf]
  %v210 = vld [vmem:[%s0 + $0x514] sm:$0xff]
  %v211 = vld [vmem:[%s0 + $0x51c] sm:$0xff]
  %v212 = vld [vmem:[%s0 + $0x524] sm:$0xf]
  %v213 = vld [vmem:[%s0 + $0x528] sm:$0xff]
  %v214 = vld [vmem:[%s0 + $0x530] sm:$0xff]
  %v215 = vld [vmem:[%s0 + $0x538] sm:$0xf]
  %v216 = vld [vmem:[%s0 + $0x53c] sm:$0xff]
  %v217 = vld [vmem:[%s0 + $0x544] sm:$0xff]
  %v218 = vld [vmem:[%s0 + $0x54c] sm:$0xf]
  %v219 = vld [vmem:[%s0 + $0x550] sm:$0xff]
  %v220 = vld [vmem:[%s0 + $0x558] sm:$0xff]
  %v221 = vld [vmem:[%s0 + $0x560] sm:$0xf]
  %v222 = vld [vmem:[%s0 + $0x564] sm:$0xff]
  %v223 = vld [vmem:[%s0 + $0x56c] sm:$0xff]
  %v224 = vld [vmem:[%s0 + $0x574] sm:$0xf]
  %v225 = vld [vmem:[%s0 + $0x578] sm:$0xff]
  %v226 = vld [vmem:[%s0 + $0x580] sm:$0xff]
  %v227 = vld [vmem:[%s0 + $0x588] sm:$0xf]
  %v228 = vld [vmem:[%s0 + $0x58c] sm:$0xff]
  %v229 = vld [vmem:[%s0 + $0x594] sm:$0xff]
  %v230 = vld [vmem:[%s0 + $0x59c] sm:$0xf]
  %v231 = vld [vmem:[%s0 + $0x5a0] sm:$0xff]
  %v232 = vld [vmem:[%s0 + $0x5a8] sm:$0xff]
  %v233 = vld [vmem:[%s0 + $0x5b0] sm:$0xf]
  %v234 = vld [vmem:[%s0 + $0x5b4] sm:$0xff]
  %v235 = vld [vmem:[%s0 + $0x5bc] sm:$0xff]
  %v236 = vld [vmem:[%s0 + $0x5c4] sm:$0xf]
  %v237 = vld [vmem:[%s0 + $0x5c8] sm:$0xff]
  %v238 = vld [vmem:[%s0 + $0x5d0] sm:$0xff]
  %v239 = vld [vmem:[%s0 + $0x5d8] sm:$0xf]
  %v240 = vld [vmem:[%s0 + $0x5dc] sm:$0xff]
  %v241 = vld [vmem:[%s0 + $0x5e4] sm:$0xff]
  %v242 = vld [vmem:[%s0 + $0x5ec] sm:$0xf]
  %v243 = vld [vmem:[%s0 + $0x5f0] sm:$0xff]
  %v244 = vld [vmem:[%s0 + $0x5f8] sm:$0xff]
  %v245 = vld [vmem:[%s0 + $0x600] sm:$0xf]
  %v246 = vld [vmem:[%s0 + $0x604] sm:$0xff]
  %v247 = vld [vmem:[%s0 + $0x60c] sm:$0xff]
  %v248 = vld [vmem:[%s0 + $0x614] sm:$0xf]
  %v249 = vld [vmem:[%s0 + $0x618] sm:$0xff]
  %v250 = vld [vmem:[%s0 + $0x620] sm:$0xff]
  %v251 = vld [vmem:[%s0 + $0x628] sm:$0xf]
  %v252 = vld [vmem:[%s0 + $0x62c] sm:$0xff]
  %v253 = vld [vmem:[%s0 + $0x634] sm:$0xff]
  %v254 = vld [vmem:[%s0 + $0x63c] sm:$0xf]
  %v255 = vld [vmem:[%s0 + $0x640] sm:$0xff]
  %v256 = vld [vmem:[%s0 + $0x648] sm:$0xff]
  %v257 = vld [vmem:[%s0 + $0x650] sm:$0xf]
  %v258 = vld [vmem:[%s0 + $0x654] sm:$0xff]
  %v259 = vld [vmem:[%s0 + $0x65c] sm:$0xff]
  %v260 = vld [vmem:[%s0 + $0x664] sm:$0xf]
  %v261 = vld [vmem:[%s0 + $0x668] sm:$0xff]
  %v262 = vld [vmem:[%s0 + $0x670] sm:$0xff]
  %v263 = vld [vmem:[%s0 + $0x678] sm:$0xf]
  %v264 = vld [vmem:[%s0 + $0x67c] sm:$0xff]
  %v265 = vld [vmem:[%s0 + $0x684] sm:$0xff]
  %v266 = vld [vmem:[%s0 + $0x68c] sm:$0xf]
  %v267 = vld [vmem:[%s0 + $0x690] sm:$0xff]
  %v268 = vld [vmem:[%s0 + $0x698] sm:$0xff]
  %v269 = vld [vmem:[%s0 + $0x6a0] sm:$0xf]
  %v270 = vld [vmem:[%s0 + $0x6a4] sm:$0xff]
  %v271 = vld [vmem:[%s0 + $0x6ac] sm:$0xff]
  %v272 = vld [vmem:[%s0 + $0x6b4] sm:$0xf]
  %v273 = vld [vmem:[%s0 + $0x6b8] sm:$0xff]
  %v274 = vld [vmem:[%s0 + $0x6c0] sm:$0xff]
  %v275 = vld [vmem:[%s0 + $0x6c8] sm:$0xf]
  %v276 = vld [vmem:[%s0 + $0x6cc] sm:$0xff]
  %v277 = vld [vmem:[%s0 + $0x6d4] sm:$0xff]
  %v278 = vld [vmem:[%s0 + $0x6dc] sm:$0xf]
  %v279 = vld [vmem:[%s0 + $0x6e0] sm:$0xff]
  %v280 = vld [vmem:[%s0 + $0x6e8] sm:$0xff]
  %v281 = vld [vmem:[%s0 + $0x6f0] sm:$0xf]
  %v282 = vld [vmem:[%s0 + $0x6f4] sm:$0xff]
  %v283 = vld [vmem:[%s0 + $0x6fc] sm:$0xff]
  %v284 = vld [vmem:[%s0 + $0x704] sm:$0xf]
  %v285 = vld [vmem:[%s0 + $0x708] sm:$0xff]
  %v286 = vld [vmem:[%s0 + $0x710] sm:$0xff]
  %v287 = vld [vmem:[%s0 + $0x718] sm:$0xf]
  %v288 = vld [vmem:[%s0 + $0x71c] sm:$0xff]
  %v289 = vld [vmem:[%s0 + $0x724] sm:$0xff]
  %v290 = vld [vmem:[%s0 + $0x72c] sm:$0xf]
  %v291 = vld [vmem:[%s0 + $0x730] sm:$0xff]
  %v292 = vld [vmem:[%s0 + $0x738] sm:$0xff]
  %v293 = vld [vmem:[%s0 + $0x740] sm:$0xf]
  %v294 = vld [vmem:[%s0 + $0x744] sm:$0xff]
  %v295 = vld [vmem:[%s0 + $0x74c] sm:$0xff]
  %v296 = vld [vmem:[%s0 + $0x754] sm:$0xf]
  %v297 = vld [vmem:[%s0 + $0x758] sm:$0xff]
  %v298 = vld [vmem:[%s0 + $0x760] sm:$0xff]
  %v299 = vld [vmem:[%s0 + $0x768] sm:$0xf]
  %v300 = vld [vmem:[%s0 + $0x76c] sm:$0xff]
  %v301 = vld [vmem:[%s0 + $0x774] sm:$0xff]
  %v302 = vld [vmem:[%s0 + $0x77c] sm:$0xf]
  %v303 = vld [vmem:[%s0 + $0x780] sm:$0xff]
  %v304 = vld [vmem:[%s0 + $0x788] sm:$0xff]
  %v305 = vld [vmem:[%s0 + $0x790] sm:$0xf]
  %v306 = vld [vmem:[%s0 + $0x794] sm:$0xff]
  %v307 = vld [vmem:[%s0 + $0x79c] sm:$0xff]
  %v308 = vld [vmem:[%s0 + $0x7a4] sm:$0xf]
  %v309 = vld [vmem:[%s0 + $0x7a8] sm:$0xff]
  %v310 = vld [vmem:[%s0 + $0x7b0] sm:$0xff]
  %v311 = vld [vmem:[%s0 + $0x7b8] sm:$0xf]
  %v312 = vld [vmem:[%s0 + $0x7bc] sm:$0xff]
  %v313 = vld [vmem:[%s0 + $0x7c4] sm:$0xff]
  %v314 = vld [vmem:[%s0 + $0x7cc] sm:$0xf]
  %v315 = vld [vmem:[%s0 + $0x7d0] sm:$0xff]
  %v316 = vld [vmem:[%s0 + $0x7d8] sm:$0xff]
  %v317 = vld [vmem:[%s0 + $0x7e0] sm:$0xf]
  %v318 = vld [vmem:[%s0 + $0x7e4] sm:$0xff]
  %v319 = vld [vmem:[%s0 + $0x7ec] sm:$0xff]
  %v320 = vld [vmem:[%s0 + $0x7f4] sm:$0xf]
  %v321 = vld [vmem:[%s0 + $0x7f8] sm:$0xff]
  %v322 = vld [vmem:[%s0 + $0x800] sm:$0xff]
  %v323 = vld [vmem:[%s0 + $0x808] sm:$0xf]
  %v324 = vld [vmem:[%s0 + $0x80c] sm:$0xff]
  %v325 = vld [vmem:[%s0 + $0x814] sm:$0xff]
  %v326 = vld [vmem:[%s0 + $0x81c] sm:$0xf]
  %v327 = vld [vmem:[%s0 + $0x820] sm:$0xff]
  %v328 = vld [vmem:[%s0 + $0x828] sm:$0xff]
  %v329 = vld [vmem:[%s0 + $0x830] sm:$0xf]
  %v330 = vld [vmem:[%s0 + $0x834] sm:$0xff]
  %v331 = vld [vmem:[%s0 + $0x83c] sm:$0xff]
  %v332 = vld [vmem:[%s0 + $0x844] sm:$0xf]
  %v333 = vld [vmem:[%s0 + $0x848] sm:$0xff]
  %v334 = vld [vmem:[%s0 + $0x850] sm:$0xff]
  %v335 = vld [vmem:[%s0 + $0x858] sm:$0xf]
  %v336 = vld [vmem:[%s0 + $0x85c] sm:$0xff]
  %v337 = vld [vmem:[%s0 + $0x864] sm:$0xff]
  %v338 = vld [vmem:[%s0 + $0x86c] sm:$0xf]
  %v339 = vld [vmem:[%s0 + $0x870] sm:$0xff]
  %v340 = vld [vmem:[%s0 + $0x878] sm:$0xff]
  %v341 = vld [vmem:[%s0 + $0x880] sm:$0xf]
  %v342 = vld [vmem:[%s0 + $0x884] sm:$0xff]
  %v343 = vld [vmem:[%s0 + $0x88c] sm:$0xff]
  %v344 = vld [vmem:[%s0 + $0x894] sm:$0xf]
  %v345 = vld [vmem:[%s0 + $0x898] sm:$0x11]
  %v346 = vld [vmem:[%s0 + $0x8a0] sm:$0x11]
  %v347 = vld [vmem:[%s0 + $0x8a8] sm:$0x1]
  %v348 = vld [vmem:[%s1] sm:$0xf]
  %v349 = vld [vmem:[%s1 + $0x4] sm:$0xf]
  %v350 = vld [vmem:[%s1 + $0x8] sm:$0xf]
  %v351 = vld [vmem:[%s1 + $0xc] sm:$0xf]
  %v352 = vld [vmem:[%s1 + $0x10] sm:$0xf]
  %v353 = vld [vmem:[%s1 + $0x14] sm:$0xf]
  %v354 = vld [vmem:[%s1 + $0x18] sm:$0xf]
  %v355 = vld [vmem:[%s1 + $0x1c] sm:$0xf]
  %v356 = vld [vmem:[%s1 + $0x20] sm:$0xf]
  %v357 = vld [vmem:[%s1 + $0x24] sm:$0xf]
  %v358 = vld [vmem:[%s1 + $0x28] sm:$0xf]
  %v359 = vld [vmem:[%s1 + $0x2c] sm:$0xf]
  %v360 = vld [vmem:[%s1 + $0x30] sm:$0xf]
  %v361 = vld [vmem:[%s1 + $0x34] sm:$0xf]
  %v362 = vld [vmem:[%s1 + $0x38] sm:$0xf]
  %v363 = vld [vmem:[%s1 + $0x3c] sm:$0xf]
  %v364 = vld [vmem:[%s1 + $0x40] sm:$0xf]
  %v365 = vld [vmem:[%s1 + $0x44] sm:$0xf]
  %v366 = vld [vmem:[%s1 + $0x48] sm:$0xf]
  %v367 = vld [vmem:[%s1 + $0x4c] sm:$0xf]
  %v368 = vld [vmem:[%s1 + $0x50] sm:$0xf]
  %v369 = vld [vmem:[%s1 + $0x54] sm:$0xf]
  %v370 = vld [vmem:[%s1 + $0x58] sm:$0xf]
  %v371 = vld [vmem:[%s1 + $0x5c] sm:$0xf]
  %v372 = vld [vmem:[%s1 + $0x60] sm:$0xf]
  %v373 = vld [vmem:[%s1 + $0x64] sm:$0xf]
  %v374 = vld [vmem:[%s1 + $0x68] sm:$0xf]
  %v375 = vld [vmem:[%s1 + $0x6c] sm:$0xf]
  %v376 = vld [vmem:[%s1 + $0x70] sm:$0xf]
  %v377 = vld [vmem:[%s1 + $0x74] sm:$0xf]
  %v378 = vld [vmem:[%s1 + $0x78] sm:$0xf]
  %v379 = vld [vmem:[%s1 + $0x7c] sm:$0xf]
  %v380 = vld [vmem:[%s1 + $0x80] sm:$0xf]
  %v381 = vld [vmem:[%s1 + $0x84] sm:$0xf]
  %v382 = vld [vmem:[%s1 + $0x88] sm:$0xf]
  %v383 = vld [vmem:[%s1 + $0x8c] sm:$0xf]
  %v384 = vld [vmem:[%s1 + $0x90] sm:$0xf]
  %v385 = vld [vmem:[%s1 + $0x94] sm:$0xf]
  %v386 = vld [vmem:[%s1 + $0x98] sm:$0xf]
  %v387 = vld [vmem:[%s1 + $0x9c] sm:$0xf]
  %v388 = vld [vmem:[%s1 + $0xa0] sm:$0xf]
  %v389 = vld [vmem:[%s1 + $0xa4] sm:$0xf]
  %v390 = vld [vmem:[%s1 + $0xa8] sm:$0xf]
  %v391 = vld [vmem:[%s1 + $0xac] sm:$0xf]
  %v392 = vld [vmem:[%s1 + $0xb0] sm:$0xf]
  %v393 = vld [vmem:[%s1 + $0xb4] sm:$0xf]
  %v394 = vld [vmem:[%s1 + $0xb8] sm:$0xf]
  %v395 = vld [vmem:[%s1 + $0xbc] sm:$0xf]
  %v396 = vld [vmem:[%s1 + $0xc0] sm:$0xf]
  %v397 = vld [vmem:[%s1 + $0xc4] sm:$0xf]
  %v398 = vld [vmem:[%s1 + $0xc8] sm:$0xf]
  %v399 = vld [vmem:[%s1 + $0xcc] sm:$0xf]
  %v400 = vld [vmem:[%s1 + $0xd0] sm:$0xf]
  %v401 = vld [vmem:[%s1 + $0xd4] sm:$0xf]
  %v402 = vld [vmem:[%s1 + $0xd8] sm:$0xf]
  %v403 = vld [vmem:[%s1 + $0xdc] sm:$0xf]
  %v404 = vld [vmem:[%s1 + $0xe0] sm:$0xf]
  %v405 = vld [vmem:[%s1 + $0xe4] sm:$0xf]
  %v406 = vld [vmem:[%s1 + $0xe8] sm:$0xf]
  %v407 = vld [vmem:[%s1 + $0xec] sm:$0xf]
  %v408 = vld [vmem:[%s1 + $0xf0] sm:$0xf]
  %v409 = vld [vmem:[%s1 + $0xf4] sm:$0xf]
  %v410 = vld [vmem:[%s1 + $0xf8] sm:$0xf]
  %v411 = vld [vmem:[%s1 + $0xfc] sm:$0xf]
  %v412 = vld [vmem:[%s1 + $0x100] sm:$0xf]
  %v413 = vld [vmem:[%s1 + $0x104] sm:$0xf]
  %v414 = vld [vmem:[%s1 + $0x108] sm:$0xf]
  %v415 = vld [vmem:[%s1 + $0x10c] sm:$0xf]
  %v416 = vld [vmem:[%s1 + $0x110] sm:$0xf]
  %v417 = vld [vmem:[%s1 + $0x114] sm:$0xf]
  %v418 = vld [vmem:[%s1 + $0x118] sm:$0xf]
  %v419 = vld [vmem:[%s1 + $0x11c] sm:$0xf]
  %v753 = vunpack.c.l.b16 %v15
  %v754 = vunpack.c.h.b16 %v15
  %v755 = vunpack.c.l.b16 %v16
  %v756 = vunpack.c.h.b16 %v16
  %v757 = vunpack.c.l.b16 %v17
  %v758 = vunpack.c.l.b16 %v18
  %v759 = vunpack.c.h.b16 %v18
  %v760 = vunpack.c.l.b16 %v19
  %v761 = vunpack.c.h.b16 %v19
  %v762 = vunpack.c.l.b16 %v20
  %v763 = vunpack.c.l.b16 %v21
  %v764 = vunpack.c.h.b16 %v21
  %v765 = vunpack.c.l.b16 %v22
  %v766 = vunpack.c.h.b16 %v22
  %v767 = vunpack.c.l.b16 %v23
  %v768 = vunpack.c.l.b16 %v24
  %v769 = vunpack.c.h.b16 %v24
  %v770 = vunpack.c.l.b16 %v25
  %v771 = vunpack.c.h.b16 %v25
  %v772 = vunpack.c.l.b16 %v26
  %v773 = vunpack.c.l.b16 %v27
  %v774 = vunpack.c.h.b16 %v27
  %v775 = vunpack.c.l.b16 %v28
  %v776 = vunpack.c.h.b16 %v28
  %v777 = vunpack.c.l.b16 %v29
  %v778 = vunpack.c.l.b16 %v30
  %v779 = vunpack.c.h.b16 %v30
  %v780 = vunpack.c.l.b16 %v31
  %v781 = vunpack.c.h.b16 %v31
  %v782 = vunpack.c.l.b16 %v32
  %v783 = vunpack.c.l.b16 %v33
  %v784 = vunpack.c.h.b16 %v33
  %v785 = vunpack.c.l.b16 %v34
  %v786 = vunpack.c.h.b16 %v34
  %v787 = vunpack.c.l.b16 %v35
  %v788 = vunpack.c.l.b16 %v36
  %v789 = vunpack.c.h.b16 %v36
  %v790 = vunpack.c.l.b16 %v37
  %v791 = vunpack.c.h.b16 %v37
  %v792 = vunpack.c.l.b16 %v38
  %v793 = vunpack.c.l.b16 %v39
  %v794 = vunpack.c.h.b16 %v39
  %v795 = vunpack.c.l.b16 %v40
  %v796 = vunpack.c.h.b16 %v40
  %v797 = vunpack.c.l.b16 %v41
  %v798 = vunpack.c.l.b16 %v42
  %v799 = vunpack.c.h.b16 %v42
  %v800 = vunpack.c.l.b16 %v43
  %v801 = vunpack.c.h.b16 %v43
  %v802 = vunpack.c.l.b16 %v44
  %v803 = vunpack.c.l.b16 %v45
  %v804 = vunpack.c.h.b16 %v45
  %v805 = vunpack.c.l.b16 %v46
  %v806 = vunpack.c.h.b16 %v46
  %v807 = vunpack.c.l.b16 %v47
  %v808 = vunpack.c.l.b16 %v48
  %v809 = vunpack.c.h.b16 %v48
  %v810 = vunpack.c.l.b16 %v49
  %v811 = vunpack.c.h.b16 %v49
  %v812 = vunpack.c.l.b16 %v50
  %v813 = vunpack.c.l.b16 %v51
  %v814 = vunpack.c.h.b16 %v51
  %v815 = vunpack.c.l.b16 %v52
  %v816 = vunpack.c.h.b16 %v52
  %v817 = vunpack.c.l.b16 %v53
  %v818 = vunpack.c.l.b16 %v54
  %v819 = vunpack.c.h.b16 %v54
  %v820 = vunpack.c.l.b16 %v55
  %v821 = vunpack.c.h.b16 %v55
  %v822 = vunpack.c.l.b16 %v56
  %v823 = vunpack.c.l.b16 %v57
  %v824 = vunpack.c.h.b16 %v57
  %v825 = vunpack.c.l.b16 %v58
  %v826 = vunpack.c.h.b16 %v58
  %v827 = vunpack.c.l.b16 %v59
  %v828 = vunpack.c.l.b16 %v60
  %v829 = vunpack.c.h.b16 %v60
  %v830 = vunpack.c.l.b16 %v61
  %v831 = vunpack.c.h.b16 %v61
  %v832 = vunpack.c.l.b16 %v62
  %v833 = vunpack.c.l.b16 %v63
  %v834 = vunpack.c.h.b16 %v63
  %v835 = vunpack.c.l.b16 %v64
  %v836 = vunpack.c.h.b16 %v64
  %v837 = vunpack.c.l.b16 %v65
  %v838 = vunpack.c.l.b16 %v66
  %v839 = vunpack.c.h.b16 %v66
  %v840 = vunpack.c.l.b16 %v67
  %v841 = vunpack.c.h.b16 %v67
  %v842 = vunpack.c.l.b16 %v68
  %v843 = vunpack.c.l.b16 %v69
  %v844 = vunpack.c.h.b16 %v69
  %v845 = vunpack.c.l.b16 %v70
  %v846 = vunpack.c.h.b16 %v70
  %v847 = vunpack.c.l.b16 %v71
  %v848 = vunpack.c.l.b16 %v72
  %v849 = vunpack.c.h.b16 %v72
  %v850 = vunpack.c.l.b16 %v73
  %v851 = vunpack.c.h.b16 %v73
  %v852 = vunpack.c.l.b16 %v74
  %v853 = vunpack.c.l.b16 %v75
  %v854 = vunpack.c.h.b16 %v75
  %v855 = vunpack.c.l.b16 %v76
  %v856 = vunpack.c.h.b16 %v76
  %v857 = vunpack.c.l.b16 %v77
  %v858 = vunpack.c.l.b16 %v78
  %v859 = vunpack.c.h.b16 %v78
  %v860 = vunpack.c.l.b16 %v79
  %v861 = vunpack.c.h.b16 %v79
  %v862 = vunpack.c.l.b16 %v80
  %v863 = vunpack.c.l.b16 %v81
  %v864 = vunpack.c.h.b16 %v81
  %v865 = vunpack.c.l.b16 %v82
  %v866 = vunpack.c.h.b16 %v82
  %v867 = vunpack.c.l.b16 %v83
  %v868 = vunpack.c.l.b16 %v84
  %v869 = vunpack.c.h.b16 %v84
  %v870 = vunpack.c.l.b16 %v85
  %v871 = vunpack.c.h.b16 %v85
  %v872 = vunpack.c.l.b16 %v86
  %v873 = vunpack.c.l.b16 %v87
  %v874 = vunpack.c.h.b16 %v87
  %v875 = vunpack.c.l.b16 %v88
  %v876 = vunpack.c.h.b16 %v88
  %v877 = vunpack.c.l.b16 %v89
  %v878 = vunpack.c.l.b16 %v90
  %v879 = vunpack.c.h.b16 %v90
  %v880 = vunpack.c.l.b16 %v91
  %v881 = vunpack.c.h.b16 %v91
  %v882 = vunpack.c.l.b16 %v92
  %v883 = vunpack.c.l.b16 %v93
  %v884 = vunpack.c.h.b16 %v93
  %v885 = vunpack.c.l.b16 %v94
  %v886 = vunpack.c.h.b16 %v94
  %v887 = vunpack.c.l.b16 %v95
  %v888 = vunpack.c.l.b16 %v96
  %v889 = vunpack.c.h.b16 %v96
  %v890 = vunpack.c.l.b16 %v97
  %v891 = vunpack.c.h.b16 %v97
  %v892 = vunpack.c.l.b16 %v98
  %v893 = vunpack.c.l.b16 %v99
  %v894 = vunpack.c.h.b16 %v99
  %v895 = vunpack.c.l.b16 %v100
  %v896 = vunpack.c.h.b16 %v100
  %v897 = vunpack.c.l.b16 %v101
  %v898 = vunpack.c.l.b16 %v102
  %v899 = vunpack.c.h.b16 %v102
  %v900 = vunpack.c.l.b16 %v103
  %v901 = vunpack.c.h.b16 %v103
  %v902 = vunpack.c.l.b16 %v104
  %v903 = vunpack.c.l.b16 %v105
  %v904 = vunpack.c.h.b16 %v105
  %v905 = vunpack.c.l.b16 %v106
  %v906 = vunpack.c.h.b16 %v106
  %v907 = vunpack.c.l.b16 %v107
  %v908 = vunpack.c.l.b16 %v108
  %v909 = vunpack.c.h.b16 %v108
  %v910 = vunpack.c.l.b16 %v109
  %v911 = vunpack.c.h.b16 %v109
  %v912 = vunpack.c.l.b16 %v110
  %v913 = vunpack.c.l.b16 %v111
  %v914 = vunpack.c.h.b16 %v111
  %v915 = vunpack.c.l.b16 %v112
  %v916 = vunpack.c.h.b16 %v112
  %v917 = vunpack.c.l.b16 %v113
  %v918 = vunpack.c.l.b16 %v114
  %v919 = vunpack.c.h.b16 %v114
  %v920 = vunpack.c.l.b16 %v115
  %v921 = vunpack.c.h.b16 %v115
  %v922 = vunpack.c.l.b16 %v116
  %v923 = vunpack.c.l.b16 %v117
  %v924 = vunpack.c.h.b16 %v117
  %v925 = vunpack.c.l.b16 %v118
  %v926 = vunpack.c.h.b16 %v118
  %v927 = vunpack.c.l.b16 %v119
  %v928 = vunpack.c.l.b16 %v120
  %v929 = vunpack.c.h.b16 %v120
  %v930 = vunpack.c.l.b16 %v121
  %v931 = vunpack.c.h.b16 %v121
  %v932 = vunpack.c.l.b16 %v122
  %v933 = vunpack.c.l.b16 %v123
  %v934 = vunpack.c.h.b16 %v123
  %v935 = vunpack.c.l.b16 %v124
  %v936 = vunpack.c.h.b16 %v124
  %v937 = vunpack.c.l.b16 %v125
  %v938 = vunpack.c.l.b16 %v126
  %v939 = vunpack.c.h.b16 %v126
  %v940 = vunpack.c.l.b16 %v127
  %v941 = vunpack.c.h.b16 %v127
  %v942 = vunpack.c.l.b16 %v128
  %v943 = vunpack.c.l.b16 %v129
  %v944 = vunpack.c.h.b16 %v129
  %v945 = vunpack.c.l.b16 %v130
  %v946 = vunpack.c.h.b16 %v130
  %v947 = vunpack.c.l.b16 %v131
  %v948 = vunpack.c.l.b16 %v132
  %v949 = vunpack.c.h.b16 %v132
  %v950 = vunpack.c.l.b16 %v133
  %v951 = vunpack.c.h.b16 %v133
  %v952 = vunpack.c.l.b16 %v134
  %v953 = vunpack.c.l.b16 %v135
  %v954 = vunpack.c.h.b16 %v135
  %v955 = vunpack.c.l.b16 %v136
  %v956 = vunpack.c.h.b16 %v136
  %v957 = vunpack.c.l.b16 %v137
  %v958 = vunpack.c.l.b16 %v138
  %v959 = vunpack.c.h.b16 %v138
  %v960 = vunpack.c.l.b16 %v139
  %v961 = vunpack.c.h.b16 %v139
  %v962 = vunpack.c.l.b16 %v140
  %v963 = vunpack.c.l.b16 %v141
  %v964 = vunpack.c.h.b16 %v141
  %v965 = vunpack.c.l.b16 %v142
  %v966 = vunpack.c.h.b16 %v142
  %v967 = vunpack.c.l.b16 %v143
  %v968 = vunpack.c.l.b16 %v144
  %v969 = vunpack.c.h.b16 %v144
  %v970 = vunpack.c.l.b16 %v145
  %v971 = vunpack.c.h.b16 %v145
  %v972 = vunpack.c.l.b16 %v146
  %v973 = vunpack.c.l.b16 %v147
  %v974 = vunpack.c.h.b16 %v147
  %v975 = vunpack.c.l.b16 %v148
  %v976 = vunpack.c.h.b16 %v148
  %v977 = vunpack.c.l.b16 %v149
  %v978 = vunpack.c.l.b16 %v150
  %v979 = vunpack.c.h.b16 %v150
  %v980 = vunpack.c.l.b16 %v151
  %v981 = vunpack.c.h.b16 %v151
  %v982 = vunpack.c.l.b16 %v152
  %v983 = vunpack.c.l.b16 %v153
  %v984 = vunpack.c.h.b16 %v153
  %v985 = vunpack.c.l.b16 %v154
  %v986 = vunpack.c.h.b16 %v154
  %v987 = vunpack.c.l.b16 %v155
  %v988 = vunpack.c.l.b16 %v156
  %v989 = vunpack.c.h.b16 %v156
  %v990 = vunpack.c.l.b16 %v157
  %v991 = vunpack.c.h.b16 %v157
  %v992 = vunpack.c.l.b16 %v158
  %v993 = vunpack.c.l.b16 %v159
  %v994 = vunpack.c.h.b16 %v159
  %v995 = vunpack.c.l.b16 %v160
  %v996 = vunpack.c.h.b16 %v160
  %v997 = vunpack.c.l.b16 %v161
  %v998 = vunpack.c.l.b16 %v162
  %v999 = vunpack.c.h.b16 %v162
  %v1000 = vunpack.c.l.b16 %v163
  %v1001 = vunpack.c.h.b16 %v163
  %v1002 = vunpack.c.l.b16 %v164
  %v1003 = vunpack.c.l.b16 %v165
  %v1004 = vunpack.c.h.b16 %v165
  %v1005 = vunpack.c.l.b16 %v166
  %v1006 = vunpack.c.h.b16 %v166
  %v1007 = vunpack.c.l.b16 %v167
  %v1008 = vunpack.c.l.b16 %v168
  %v1009 = vunpack.c.h.b16 %v168
  %v1010 = vunpack.c.l.b16 %v169
  %v1011 = vunpack.c.h.b16 %v169
  %v1012 = vunpack.c.l.b16 %v170
  %v1013 = vunpack.c.l.b16 %v171
  %v1014 = vunpack.c.h.b16 %v171
  %v1015 = vunpack.c.l.b16 %v172
  %v1016 = vunpack.c.h.b16 %v172
  %v1017 = vunpack.c.l.b16 %v173
  %v1018 = vunpack.c.l.b16 %v174
  %v1019 = vunpack.c.h.b16 %v174
  %v1020 = vunpack.c.l.b16 %v175
  %v1021 = vunpack.c.h.b16 %v175
  %v1022 = vunpack.c.l.b16 %v176
  %v1023 = vunpack.c.l.b16 %v177
  %v1024 = vunpack.c.h.b16 %v177
  %v1025 = vunpack.c.l.b16 %v178
  %v1026 = vunpack.c.h.b16 %v178
  %v1027 = vunpack.c.l.b16 %v179
  %v1028 = vunpack.c.l.b16 %v180
  %v1029 = vunpack.c.h.b16 %v180
  %v1030 = vunpack.c.l.b16 %v181
  %v1031 = vunpack.c.h.b16 %v181
  %v1032 = vunpack.c.l.b16 %v182
  %v1033 = vunpack.c.l.b16 %v183
  %v1034 = vunpack.c.h.b16 %v183
  %v1035 = vunpack.c.l.b16 %v184
  %v1036 = vunpack.c.h.b16 %v184
  %v1037 = vunpack.c.l.b16 %v185
  %v1038 = vunpack.c.l.b16 %v186
  %v1039 = vunpack.c.h.b16 %v186
  %v1040 = vunpack.c.l.b16 %v187
  %v1041 = vunpack.c.h.b16 %v187
  %v1042 = vunpack.c.l.b16 %v188
  %v1043 = vunpack.c.l.b16 %v189
  %v1044 = vunpack.c.h.b16 %v189
  %v1045 = vunpack.c.l.b16 %v190
  %v1046 = vunpack.c.h.b16 %v190
  %v1047 = vunpack.c.l.b16 %v191
  %v1048 = vunpack.c.l.b16 %v192
  %v1049 = vunpack.c.h.b16 %v192
  %v1050 = vunpack.c.l.b16 %v193
  %v1051 = vunpack.c.h.b16 %v193
  %v1052 = vunpack.c.l.b16 %v194
  %v1053 = vunpack.c.l.b16 %v195
  %v1054 = vunpack.c.h.b16 %v195
  %v1055 = vunpack.c.l.b16 %v196
  %v1056 = vunpack.c.h.b16 %v196
  %v1057 = vunpack.c.l.b16 %v197
  %v1058 = vunpack.c.l.b16 %v198
  %v1059 = vunpack.c.h.b16 %v198
  %v1060 = vunpack.c.l.b16 %v199
  %v1061 = vunpack.c.h.b16 %v199
  %v1062 = vunpack.c.l.b16 %v200
  %v1063 = vunpack.c.l.b16 %v201
  %v1064 = vunpack.c.h.b16 %v201
  %v1065 = vunpack.c.l.b16 %v202
  %v1066 = vunpack.c.h.b16 %v202
  %v1067 = vunpack.c.l.b16 %v203
  %v1068 = vunpack.c.l.b16 %v204
  %v1069 = vunpack.c.h.b16 %v204
  %v1070 = vunpack.c.l.b16 %v205
  %v1071 = vunpack.c.h.b16 %v205
  %v1072 = vunpack.c.l.b16 %v206
  %v1073 = vunpack.c.l.b16 %v207
  %v1074 = vunpack.c.h.b16 %v207
  %v1075 = vunpack.c.l.b16 %v208
  %v1076 = vunpack.c.h.b16 %v208
  %v1077 = vunpack.c.l.b16 %v209
  %v1078 = vunpack.c.l.b16 %v210
  %v1079 = vunpack.c.h.b16 %v210
  %v1080 = vunpack.c.l.b16 %v211
  %v1081 = vunpack.c.h.b16 %v211
  %v1082 = vunpack.c.l.b16 %v212
  %v1083 = vunpack.c.l.b16 %v213
  %v1084 = vunpack.c.h.b16 %v213
  %v1085 = vunpack.c.l.b16 %v214
  %v1086 = vunpack.c.h.b16 %v214
  %v1087 = vunpack.c.l.b16 %v215
  %v1088 = vunpack.c.l.b16 %v216
  %v1089 = vunpack.c.h.b16 %v216
  %v1090 = vunpack.c.l.b16 %v217
  %v1091 = vunpack.c.h.b16 %v217
  %v1092 = vunpack.c.l.b16 %v218
  %v1093 = vunpack.c.l.b16 %v219
  %v1094 = vunpack.c.h.b16 %v219
  %v1095 = vunpack.c.l.b16 %v220
  %v1096 = vunpack.c.h.b16 %v220
  %v1097 = vunpack.c.l.b16 %v221
  %v1098 = vunpack.c.l.b16 %v222
  %v1099 = vunpack.c.h.b16 %v222
  %v1100 = vunpack.c.l.b16 %v223
  %v1101 = vunpack.c.h.b16 %v223
  %v1102 = vunpack.c.l.b16 %v224
  %v1103 = vunpack.c.l.b16 %v225
  %v1104 = vunpack.c.h.b16 %v225
  %v1105 = vunpack.c.l.b16 %v226
  %v1106 = vunpack.c.h.b16 %v226
  %v1107 = vunpack.c.l.b16 %v227
  %v1108 = vunpack.c.l.b16 %v228
  %v1109 = vunpack.c.h.b16 %v228
  %v1110 = vunpack.c.l.b16 %v229
  %v1111 = vunpack.c.h.b16 %v229
  %v1112 = vunpack.c.l.b16 %v230
  %v1113 = vunpack.c.l.b16 %v231
  %v1114 = vunpack.c.h.b16 %v231
  %v1115 = vunpack.c.l.b16 %v232
  %v1116 = vunpack.c.h.b16 %v232
  %v1117 = vunpack.c.l.b16 %v233
  %v1118 = vunpack.c.l.b16 %v234
  %v1119 = vunpack.c.h.b16 %v234
  %v1120 = vunpack.c.l.b16 %v235
  %v1121 = vunpack.c.h.b16 %v235
  %v1122 = vunpack.c.l.b16 %v236
  %v1123 = vunpack.c.l.b16 %v237
  %v1124 = vunpack.c.h.b16 %v237
  %v1125 = vunpack.c.l.b16 %v238
  %v1126 = vunpack.c.h.b16 %v238
  %v1127 = vunpack.c.l.b16 %v239
  %v1128 = vunpack.c.l.b16 %v240
  %v1129 = vunpack.c.h.b16 %v240
  %v1130 = vunpack.c.l.b16 %v241
  %v1131 = vunpack.c.h.b16 %v241
  %v1132 = vunpack.c.l.b16 %v242
  %v1133 = vunpack.c.l.b16 %v243
  %v1134 = vunpack.c.h.b16 %v243
  %v1135 = vunpack.c.l.b16 %v244
  %v1136 = vunpack.c.h.b16 %v244
  %v1137 = vunpack.c.l.b16 %v245
  %v1138 = vunpack.c.l.b16 %v246
  %v1139 = vunpack.c.h.b16 %v246
  %v1140 = vunpack.c.l.b16 %v247
  %v1141 = vunpack.c.h.b16 %v247
  %v1142 = vunpack.c.l.b16 %v248
  %v1143 = vunpack.c.l.b16 %v249
  %v1144 = vunpack.c.h.b16 %v249
  %v1145 = vunpack.c.l.b16 %v250
  %v1146 = vunpack.c.h.b16 %v250
  %v1147 = vunpack.c.l.b16 %v251
  %v1148 = vunpack.c.l.b16 %v252
  %v1149 = vunpack.c.h.b16 %v252
  %v1150 = vunpack.c.l.b16 %v253
  %v1151 = vunpack.c.h.b16 %v253
  %v1152 = vunpack.c.l.b16 %v254
  %v1153 = vunpack.c.l.b16 %v255
  %v1154 = vunpack.c.h.b16 %v255
  %v1155 = vunpack.c.l.b16 %v256
  %v1156 = vunpack.c.h.b16 %v256
  %v1157 = vunpack.c.l.b16 %v257
  %v1158 = vunpack.c.l.b16 %v258
  %v1159 = vunpack.c.h.b16 %v258
  %v1160 = vunpack.c.l.b16 %v259
  %v1161 = vunpack.c.h.b16 %v259
  %v1162 = vunpack.c.l.b16 %v260
  %v1163 = vunpack.c.l.b16 %v261
  %v1164 = vunpack.c.h.b16 %v261
  %v1165 = vunpack.c.l.b16 %v262
  %v1166 = vunpack.c.h.b16 %v262
  %v1167 = vunpack.c.l.b16 %v263
  %v1168 = vunpack.c.l.b16 %v264
  %v1169 = vunpack.c.h.b16 %v264
  %v1170 = vunpack.c.l.b16 %v265
  %v1171 = vunpack.c.h.b16 %v265
  %v1172 = vunpack.c.l.b16 %v266
  %v1173 = vunpack.c.l.b16 %v267
  %v1174 = vunpack.c.h.b16 %v267
  %v1175 = vunpack.c.l.b16 %v268
  %v1176 = vunpack.c.h.b16 %v268
  %v1177 = vunpack.c.l.b16 %v269
  %v1178 = vunpack.c.l.b16 %v270
  %v1179 = vunpack.c.h.b16 %v270
  %v1180 = vunpack.c.l.b16 %v271
  %v1181 = vunpack.c.h.b16 %v271
  %v1182 = vunpack.c.l.b16 %v272
  %v1183 = vunpack.c.l.b16 %v273
  %v1184 = vunpack.c.h.b16 %v273
  %v1185 = vunpack.c.l.b16 %v274
  %v1186 = vunpack.c.h.b16 %v274
  %v1187 = vunpack.c.l.b16 %v275
  %v1188 = vunpack.c.l.b16 %v276
  %v1189 = vunpack.c.h.b16 %v276
  %v1190 = vunpack.c.l.b16 %v277
  %v1191 = vunpack.c.h.b16 %v277
  %v1192 = vunpack.c.l.b16 %v278
  %v1193 = vunpack.c.l.b16 %v279
  %v1194 = vunpack.c.h.b16 %v279
  %v1195 = vunpack.c.l.b16 %v280
  %v1196 = vunpack.c.h.b16 %v280
  %v1197 = vunpack.c.l.b16 %v281
  %v1198 = vunpack.c.l.b16 %v282
  %v1199 = vunpack.c.h.b16 %v282
  %v1200 = vunpack.c.l.b16 %v283
  %v1201 = vunpack.c.h.b16 %v283
  %v1202 = vunpack.c.l.b16 %v284
  %v1203 = vunpack.c.l.b16 %v285
  %v1204 = vunpack.c.h.b16 %v285
  %v1205 = vunpack.c.l.b16 %v286
  %v1206 = vunpack.c.h.b16 %v286
  %v1207 = vunpack.c.l.b16 %v287
  %v1208 = vunpack.c.l.b16 %v288
  %v1209 = vunpack.c.h.b16 %v288
  %v1210 = vunpack.c.l.b16 %v289
  %v1211 = vunpack.c.h.b16 %v289
  %v1212 = vunpack.c.l.b16 %v290
  %v1213 = vunpack.c.l.b16 %v291
  %v1214 = vunpack.c.h.b16 %v291
  %v1215 = vunpack.c.l.b16 %v292
  %v1216 = vunpack.c.h.b16 %v292
  %v1217 = vunpack.c.l.b16 %v293
  %v1218 = vunpack.c.l.b16 %v294
  %v1219 = vunpack.c.h.b16 %v294
  %v1220 = vunpack.c.l.b16 %v295
  %v1221 = vunpack.c.h.b16 %v295
  %v1222 = vunpack.c.l.b16 %v296
  %v1223 = vunpack.c.l.b16 %v297
  %v1224 = vunpack.c.h.b16 %v297
  %v1225 = vunpack.c.l.b16 %v298
  %v1226 = vunpack.c.h.b16 %v298
  %v1227 = vunpack.c.l.b16 %v299
  %v1228 = vunpack.c.l.b16 %v300
  %v1229 = vunpack.c.h.b16 %v300
  %v1230 = vunpack.c.l.b16 %v301
  %v1231 = vunpack.c.h.b16 %v301
  %v1232 = vunpack.c.l.b16 %v302
  %v1233 = vunpack.c.l.b16 %v303
  %v1234 = vunpack.c.h.b16 %v303
  %v1235 = vunpack.c.l.b16 %v304
  %v1236 = vunpack.c.h.b16 %v304
  %v1237 = vunpack.c.l.b16 %v305
  %v1238 = vunpack.c.l.b16 %v306
  %v1239 = vunpack.c.h.b16 %v306
  %v1240 = vunpack.c.l.b16 %v307
  %v1241 = vunpack.c.h.b16 %v307
  %v1242 = vunpack.c.l.b16 %v308
  %v1243 = vunpack.c.l.b16 %v309
  %v1244 = vunpack.c.h.b16 %v309
  %v1245 = vunpack.c.l.b16 %v310
  %v1246 = vunpack.c.h.b16 %v310
  %v1247 = vunpack.c.l.b16 %v311
  %v1248 = vunpack.c.l.b16 %v312
  %v1249 = vunpack.c.h.b16 %v312
  %v1250 = vunpack.c.l.b16 %v313
  %v1251 = vunpack.c.h.b16 %v313
  %v1252 = vunpack.c.l.b16 %v314
  %v1253 = vunpack.c.l.b16 %v315
  %v1254 = vunpack.c.h.b16 %v315
  %v1255 = vunpack.c.l.b16 %v316
  %v1256 = vunpack.c.h.b16 %v316
  %v1257 = vunpack.c.l.b16 %v317
  %v1258 = vunpack.c.l.b16 %v318
  %v1259 = vunpack.c.h.b16 %v318
  %v1260 = vunpack.c.l.b16 %v319
  %v1261 = vunpack.c.h.b16 %v319
  %v1262 = vunpack.c.l.b16 %v320
  %v1263 = vunpack.c.l.b16 %v321
  %v1264 = vunpack.c.h.b16 %v321
  %v1265 = vunpack.c.l.b16 %v322
  %v1266 = vunpack.c.h.b16 %v322
  %v1267 = vunpack.c.l.b16 %v323
  %v1268 = vunpack.c.l.b16 %v324
  %v1269 = vunpack.c.h.b16 %v324
  %v1270 = vunpack.c.l.b16 %v325
  %v1271 = vunpack.c.h.b16 %v325
  %v1272 = vunpack.c.l.b16 %v326
  %v1273 = vunpack.c.l.b16 %v327
  %v1274 = vunpack.c.h.b16 %v327
  %v1275 = vunpack.c.l.b16 %v328
  %v1276 = vunpack.c.h.b16 %v328
  %v1277 = vunpack.c.l.b16 %v329
  %v1278 = vunpack.c.l.b16 %v330
  %v1279 = vunpack.c.h.b16 %v330
  %v1280 = vunpack.c.l.b16 %v331
  %v1281 = vunpack.c.h.b16 %v331
  %v1282 = vunpack.c.l.b16 %v332
  %v1283 = vunpack.c.l.b16 %v333
  %v1284 = vunpack.c.h.b16 %v333
  %v1285 = vunpack.c.l.b16 %v334
  %v1286 = vunpack.c.h.b16 %v334
  %v1287 = vunpack.c.l.b16 %v335
  %v1288 = vunpack.c.l.b16 %v336
  %v1289 = vunpack.c.h.b16 %v336
  %v1290 = vunpack.c.l.b16 %v337
  %v1291 = vunpack.c.h.b16 %v337
  %v1292 = vunpack.c.l.b16 %v338
  %v1293 = vunpack.c.l.b16 %v339
  %v1294 = vunpack.c.h.b16 %v339
  %v1295 = vunpack.c.l.b16 %v340
  %v1296 = vunpack.c.h.b16 %v340
  %v1297 = vunpack.c.l.b16 %v341
  %v1298 = vunpack.c.l.b16 %v342
  %v1299 = vunpack.c.h.b16 %v342
  %v1300 = vunpack.c.l.b16 %v343
  %v1301 = vunpack.c.h.b16 %v343
  %v1302 = vunpack.c.l.b16 %v344
  %v1303 = vunpack.c.l.b16 %v345
  %v1304 = vunpack.c.h.b16 %v345
  %v1305 = vunpack.c.l.b16 %v346
  %v1306 = vunpack.c.h.b16 %v346
  %v1307 = vunpack.c.l.b16 %v347
  %v1308 = vpack.c.b16 %v758, %v753
  %v1309 = vpack.c.b16 %v759, %v754
  %v1310 = vpack.c.b16 %v760, %v755
  %v1311 = vpack.c.b16 %v761, %v756
  %v1312 = vpack.c.b16 %v762, %v757
  %v1313 = vpack.c.b16 %v768, %v763
  %v1314 = vpack.c.b16 %v769, %v764
  %v1315 = vpack.c.b16 %v770, %v765
  %v1316 = vpack.c.b16 %v771, %v766
  %v1317 = vpack.c.b16 %v772, %v767
  %v1318 = vpack.c.b16 %v778, %v773
  %v1319 = vpack.c.b16 %v779, %v774
  %v1320 = vpack.c.b16 %v780, %v775
  %v1321 = vpack.c.b16 %v781, %v776
  %v1322 = vpack.c.b16 %v782, %v777
  %v1323 = vpack.c.b16 %v788, %v783
  %v1324 = vpack.c.b16 %v789, %v784
  %v1325 = vpack.c.b16 %v790, %v785
  %v1326 = vpack.c.b16 %v791, %v786
  %v1327 = vpack.c.b16 %v792, %v787
  %v1328 = vpack.c.b16 %v798, %v793
  %v1329 = vpack.c.b16 %v799, %v794
  %v1330 = vpack.c.b16 %v800, %v795
  %v1331 = vpack.c.b16 %v801, %v796
  %v1332 = vpack.c.b16 %v802, %v797
  %v1333 = vpack.c.b16 %v808, %v803
  %v1334 = vpack.c.b16 %v809, %v804
  %v1335 = vpack.c.b16 %v810, %v805
  %v1336 = vpack.c.b16 %v811, %v806
  %v1337 = vpack.c.b16 %v812, %v807
  %v1338 = vpack.c.b16 %v818, %v813
  %v1339 = vpack.c.b16 %v819, %v814
  %v1340 = vpack.c.b16 %v820, %v815
  %v1341 = vpack.c.b16 %v821, %v816
  %v1342 = vpack.c.b16 %v822, %v817
  %v1343 = vpack.c.b16 %v828, %v823
  %v1344 = vpack.c.b16 %v829, %v824
  %v1345 = vpack.c.b16 %v830, %v825
  %v1346 = vpack.c.b16 %v831, %v826
  %v1347 = vpack.c.b16 %v832, %v827
  %v1348 = vpack.c.b16 %v838, %v833
  %v1349 = vpack.c.b16 %v839, %v834
  %v1350 = vpack.c.b16 %v840, %v835
  %v1351 = vpack.c.b16 %v841, %v836
  %v1352 = vpack.c.b16 %v842, %v837
  %v1353 = vpack.c.b16 %v848, %v843
  %v1354 = vpack.c.b16 %v849, %v844
  %v1355 = vpack.c.b16 %v850, %v845
  %v1356 = vpack.c.b16 %v851, %v846
  %v1357 = vpack.c.b16 %v852, %v847
  %v1358 = vpack.c.b16 %v858, %v853
  %v1359 = vpack.c.b16 %v859, %v854
  %v1360 = vpack.c.b16 %v860, %v855
  %v1361 = vpack.c.b16 %v861, %v856
  %v1362 = vpack.c.b16 %v862, %v857
  %v1363 = vpack.c.b16 %v868, %v863
  %v1364 = vpack.c.b16 %v869, %v864
  %v1365 = vpack.c.b16 %v870, %v865
  %v1366 = vpack.c.b16 %v871, %v866
  %v1367 = vpack.c.b16 %v872, %v867
  %v1368 = vpack.c.b16 %v878, %v873
  %v1369 = vpack.c.b16 %v879, %v874
  %v1370 = vpack.c.b16 %v880, %v875
  %v1371 = vpack.c.b16 %v881, %v876
  %v1372 = vpack.c.b16 %v882, %v877
  %v1373 = vpack.c.b16 %v888, %v883
  %v1374 = vpack.c.b16 %v889, %v884
  %v1375 = vpack.c.b16 %v890, %v885
  %v1376 = vpack.c.b16 %v891, %v886
  %v1377 = vpack.c.b16 %v892, %v887
  %v1378 = vpack.c.b16 %v898, %v893
  %v1379 = vpack.c.b16 %v899, %v894
  %v1380 = vpack.c.b16 %v900, %v895
  %v1381 = vpack.c.b16 %v901, %v896
  %v1382 = vpack.c.b16 %v902, %v897
  %v1383 = vpack.c.b16 %v908, %v903
  %v1384 = vpack.c.b16 %v909, %v904
  %v1385 = vpack.c.b16 %v910, %v905
  %v1386 = vpack.c.b16 %v911, %v906
  %v1387 = vpack.c.b16 %v912, %v907
  %v1388 = vpack.c.b16 %v918, %v913
  %v1389 = vpack.c.b16 %v919, %v914
  %v1390 = vpack.c.b16 %v920, %v915
  %v1391 = vpack.c.b16 %v921, %v916
  %v1392 = vpack.c.b16 %v922, %v917
  %v1393 = vpack.c.b16 %v928, %v923
  %v1394 = vpack.c.b16 %v929, %v924
  %v1395 = vpack.c.b16 %v930, %v925
  %v1396 = vpack.c.b16 %v931, %v926
  %v1397 = vpack.c.b16 %v932, %v927
  %v1398 = vpack.c.b16 %v938, %v933
  %v1399 = vpack.c.b16 %v939, %v934
  %v1400 = vpack.c.b16 %v940, %v935
  %v1401 = vpack.c.b16 %v941, %v936
  %v1402 = vpack.c.b16 %v942, %v937
  %v1403 = vpack.c.b16 %v948, %v943
  %v1404 = vpack.c.b16 %v949, %v944
  %v1405 = vpack.c.b16 %v950, %v945
  %v1406 = vpack.c.b16 %v951, %v946
  %v1407 = vpack.c.b16 %v952, %v947
  %v1408 = vpack.c.b16 %v958, %v953
  %v1409 = vpack.c.b16 %v959, %v954
  %v1410 = vpack.c.b16 %v960, %v955
  %v1411 = vpack.c.b16 %v961, %v956
  %v1412 = vpack.c.b16 %v962, %v957
  %v1413 = vpack.c.b16 %v968, %v963
  %v1414 = vpack.c.b16 %v969, %v964
  %v1415 = vpack.c.b16 %v970, %v965
  %v1416 = vpack.c.b16 %v971, %v966
  %v1417 = vpack.c.b16 %v972, %v967
  %v1418 = vpack.c.b16 %v978, %v973
  %v1419 = vpack.c.b16 %v979, %v974
  %v1420 = vpack.c.b16 %v980, %v975
  %v1421 = vpack.c.b16 %v981, %v976
  %v1422 = vpack.c.b16 %v982, %v977
  %v1423 = vpack.c.b16 %v988, %v983
  %v1424 = vpack.c.b16 %v989, %v984
  %v1425 = vpack.c.b16 %v990, %v985
  %v1426 = vpack.c.b16 %v991, %v986
  %v1427 = vpack.c.b16 %v992, %v987
  %v1428 = vpack.c.b16 %v998, %v993
  %v1429 = vpack.c.b16 %v999, %v994
  %v1430 = vpack.c.b16 %v1000, %v995
  %v1431 = vpack.c.b16 %v1001, %v996
  %v1432 = vpack.c.b16 %v1002, %v997
  %v1433 = vpack.c.b16 %v1008, %v1003
  %v1434 = vpack.c.b16 %v1009, %v1004
  %v1435 = vpack.c.b16 %v1010, %v1005
  %v1436 = vpack.c.b16 %v1011, %v1006
  %v1437 = vpack.c.b16 %v1012, %v1007
  %v1438 = vpack.c.b16 %v1018, %v1013
  %v1439 = vpack.c.b16 %v1019, %v1014
  %v1440 = vpack.c.b16 %v1020, %v1015
  %v1441 = vpack.c.b16 %v1021, %v1016
  %v1442 = vpack.c.b16 %v1022, %v1017
  %v1443 = vpack.c.b16 %v1028, %v1023
  %v1444 = vpack.c.b16 %v1029, %v1024
  %v1445 = vpack.c.b16 %v1030, %v1025
  %v1446 = vpack.c.b16 %v1031, %v1026
  %v1447 = vpack.c.b16 %v1032, %v1027
  %v1448 = vpack.c.b16 %v1038, %v1033
  %v1449 = vpack.c.b16 %v1039, %v1034
  %v1450 = vpack.c.b16 %v1040, %v1035
  %v1451 = vpack.c.b16 %v1041, %v1036
  %v1452 = vpack.c.b16 %v1042, %v1037
  %v1453 = vpack.c.b16 %v1048, %v1043
  %v1454 = vpack.c.b16 %v1049, %v1044
  %v1455 = vpack.c.b16 %v1050, %v1045
  %v1456 = vpack.c.b16 %v1051, %v1046
  %v1457 = vpack.c.b16 %v1052, %v1047
  %v1458 = vpack.c.b16 %v1058, %v1053
  %v1459 = vpack.c.b16 %v1059, %v1054
  %v1460 = vpack.c.b16 %v1060, %v1055
  %v1461 = vpack.c.b16 %v1061, %v1056
  %v1462 = vpack.c.b16 %v1062, %v1057
  %v1463 = vpack.c.b16 %v1068, %v1063
  %v1464 = vpack.c.b16 %v1069, %v1064
  %v1465 = vpack.c.b16 %v1070, %v1065
  %v1466 = vpack.c.b16 %v1071, %v1066
  %v1467 = vpack.c.b16 %v1072, %v1067
  %v1468 = vpack.c.b16 %v1078, %v1073
  %v1469 = vpack.c.b16 %v1079, %v1074
  %v1470 = vpack.c.b16 %v1080, %v1075
  %v1471 = vpack.c.b16 %v1081, %v1076
  %v1472 = vpack.c.b16 %v1082, %v1077
  %v1473 = vpack.c.b16 %v1088, %v1083
  %v1474 = vpack.c.b16 %v1089, %v1084
  %v1475 = vpack.c.b16 %v1090, %v1085
  %v1476 = vpack.c.b16 %v1091, %v1086
  %v1477 = vpack.c.b16 %v1092, %v1087
  %v1478 = vpack.c.b16 %v1098, %v1093
  %v1479 = vpack.c.b16 %v1099, %v1094
  %v1480 = vpack.c.b16 %v1100, %v1095
  %v1481 = vpack.c.b16 %v1101, %v1096
  %v1482 = vpack.c.b16 %v1102, %v1097
  %v1483 = vpack.c.b16 %v1108, %v1103
  %v1484 = vpack.c.b16 %v1109, %v1104
  %v1485 = vpack.c.b16 %v1110, %v1105
  %v1486 = vpack.c.b16 %v1111, %v1106
  %v1487 = vpack.c.b16 %v1112, %v1107
  %v1488 = vpack.c.b16 %v1118, %v1113
  %v1489 = vpack.c.b16 %v1119, %v1114
  %v1490 = vpack.c.b16 %v1120, %v1115
  %v1491 = vpack.c.b16 %v1121, %v1116
  %v1492 = vpack.c.b16 %v1122, %v1117
  %v1493 = vpack.c.b16 %v1128, %v1123
  %v1494 = vpack.c.b16 %v1129, %v1124
  %v1495 = vpack.c.b16 %v1130, %v1125
  %v1496 = vpack.c.b16 %v1131, %v1126
  %v1497 = vpack.c.b16 %v1132, %v1127
  %v1498 = vpack.c.b16 %v1138, %v1133
  %v1499 = vpack.c.b16 %v1139, %v1134
  %v1500 = vpack.c.b16 %v1140, %v1135
  %v1501 = vpack.c.b16 %v1141, %v1136
  %v1502 = vpack.c.b16 %v1142, %v1137
  %v1503 = vpack.c.b16 %v1148, %v1143
  %v1504 = vpack.c.b16 %v1149, %v1144
  %v1505 = vpack.c.b16 %v1150, %v1145
  %v1506 = vpack.c.b16 %v1151, %v1146
  %v1507 = vpack.c.b16 %v1152, %v1147
  %v1508 = vpack.c.b16 %v1158, %v1153
  %v1509 = vpack.c.b16 %v1159, %v1154
  %v1510 = vpack.c.b16 %v1160, %v1155
  %v1511 = vpack.c.b16 %v1161, %v1156
  %v1512 = vpack.c.b16 %v1162, %v1157
  %v1513 = vpack.c.b16 %v1168, %v1163
  %v1514 = vpack.c.b16 %v1169, %v1164
  %v1515 = vpack.c.b16 %v1170, %v1165
  %v1516 = vpack.c.b16 %v1171, %v1166
  %v1517 = vpack.c.b16 %v1172, %v1167
  %v1518 = vpack.c.b16 %v1178, %v1173
  %v1519 = vpack.c.b16 %v1179, %v1174
  %v1520 = vpack.c.b16 %v1180, %v1175
  %v1521 = vpack.c.b16 %v1181, %v1176
  %v1522 = vpack.c.b16 %v1182, %v1177
  %v1523 = vpack.c.b16 %v1188, %v1183
  %v1524 = vpack.c.b16 %v1189, %v1184
  %v1525 = vpack.c.b16 %v1190, %v1185
  %v1526 = vpack.c.b16 %v1191, %v1186
  %v1527 = vpack.c.b16 %v1192, %v1187
  %v1528 = vpack.c.b16 %v1198, %v1193
  %v1529 = vpack.c.b16 %v1199, %v1194
  %v1530 = vpack.c.b16 %v1200, %v1195
  %v1531 = vpack.c.b16 %v1201, %v1196
  %v1532 = vpack.c.b16 %v1202, %v1197
  %v1533 = vpack.c.b16 %v1208, %v1203
  %v1534 = vpack.c.b16 %v1209, %v1204
  %v1535 = vpack.c.b16 %v1210, %v1205
  %v1536 = vpack.c.b16 %v1211, %v1206
  %v1537 = vpack.c.b16 %v1212, %v1207
  %v1538 = vpack.c.b16 %v1218, %v1213
  %v1539 = vpack.c.b16 %v1219, %v1214
  %v1540 = vpack.c.b16 %v1220, %v1215
  %v1541 = vpack.c.b16 %v1221, %v1216
  %v1542 = vpack.c.b16 %v1222, %v1217
  %v1543 = vpack.c.b16 %v1228, %v1223
  %v1544 = vpack.c.b16 %v1229, %v1224
  %v1545 = vpack.c.b16 %v1230, %v1225
  %v1546 = vpack.c.b16 %v1231, %v1226
  %v1547 = vpack.c.b16 %v1232, %v1227
  %v1548 = vpack.c.b16 %v1238, %v1233
  %v1549 = vpack.c.b16 %v1239, %v1234
  %v1550 = vpack.c.b16 %v1240, %v1235
  %v1551 = vpack.c.b16 %v1241, %v1236
  %v1552 = vpack.c.b16 %v1242, %v1237
  %v1553 = vpack.c.b16 %v1248, %v1243
  %v1554 = vpack.c.b16 %v1249, %v1244
  %v1555 = vpack.c.b16 %v1250, %v1245
  %v1556 = vpack.c.b16 %v1251, %v1246
  %v1557 = vpack.c.b16 %v1252, %v1247
  %v1558 = vpack.c.b16 %v1258, %v1253
  %v1559 = vpack.c.b16 %v1259, %v1254
  %v1560 = vpack.c.b16 %v1260, %v1255
  %v1561 = vpack.c.b16 %v1261, %v1256
  %v1562 = vpack.c.b16 %v1262, %v1257
  %v1563 = vpack.c.b16 %v1268, %v1263
  %v1564 = vpack.c.b16 %v1269, %v1264
  %v1565 = vpack.c.b16 %v1270, %v1265
  %v1566 = vpack.c.b16 %v1271, %v1266
  %v1567 = vpack.c.b16 %v1272, %v1267
  %v1568 = vpack.c.b16 %v1278, %v1273
  %v1569 = vpack.c.b16 %v1279, %v1274
  %v1570 = vpack.c.b16 %v1280, %v1275
  %v1571 = vpack.c.b16 %v1281, %v1276
  %v1572 = vpack.c.b16 %v1282, %v1277
  %v1573 = vpack.c.b16 %v1288, %v1283
  %v1574 = vpack.c.b16 %v1289, %v1284
  %v1575 = vpack.c.b16 %v1290, %v1285
  %v1576 = vpack.c.b16 %v1291, %v1286
  %v1577 = vpack.c.b16 %v1292, %v1287
  %v1578 = vpack.c.b16 %v1298, %v1293
  %v1579 = vpack.c.b16 %v1299, %v1294
  %v1580 = vpack.c.b16 %v1300, %v1295
  %v1581 = vpack.c.b16 %v1301, %v1296
  %v1582 = vpack.c.b16 %v1302, %v1297
  %v1583 = vpack.c.b16 %v1303, %v1303
  %v1584 = vpack.c.b16 %v1304, %v1304
  %v1585 = vpack.c.b16 %v1305, %v1305
  %v1586 = vpack.c.b16 %v1306, %v1306
  %v1587 = vpack.c.b16 %v1307, %v1307
  %v1884 = vunpack.c.l.b16 %v348
  %v1885 = vunpack.c.l.b16 %v349
  %v1886 = vunpack.c.l.b16 %v350
  %v1887 = vunpack.c.l.b16 %v351
  %v1888 = vunpack.c.l.b16 %v352
  %v1889 = vunpack.c.l.b16 %v353
  %v1890 = vunpack.c.l.b16 %v354
  %v1891 = vunpack.c.l.b16 %v355
  %v1892 = vunpack.c.l.b16 %v356
  %v1893 = vunpack.c.l.b16 %v357
  %v1894 = vunpack.c.l.b16 %v358
  %v1895 = vunpack.c.l.b16 %v359
  %v1896 = vunpack.c.l.b16 %v360
  %v1897 = vunpack.c.l.b16 %v361
  %v1898 = vunpack.c.l.b16 %v362
  %v1899 = vunpack.c.l.b16 %v363
  %v1900 = vunpack.c.l.b16 %v364
  %v1901 = vunpack.c.l.b16 %v365
  %v1902 = vunpack.c.l.b16 %v366
  %v1903 = vunpack.c.l.b16 %v367
  %v1904 = vunpack.c.l.b16 %v368
  %v1905 = vunpack.c.l.b16 %v369
  %v1906 = vunpack.c.l.b16 %v370
  %v1907 = vunpack.c.l.b16 %v371
  %v1908 = vunpack.c.l.b16 %v372
  %v1909 = vunpack.c.l.b16 %v373
  %v1910 = vunpack.c.l.b16 %v374
  %v1911 = vunpack.c.l.b16 %v375
  %v1912 = vunpack.c.l.b16 %v376
  %v1913 = vunpack.c.l.b16 %v377
  %v1914 = vunpack.c.l.b16 %v378
  %v1915 = vunpack.c.l.b16 %v379
  %v1916 = vunpack.c.l.b16 %v380
  %v1917 = vunpack.c.l.b16 %v381
  %v1918 = vunpack.c.l.b16 %v382
  %v1919 = vunpack.c.l.b16 %v383
  %v1920 = vunpack.c.l.b16 %v384
  %v1921 = vunpack.c.l.b16 %v385
  %v1922 = vunpack.c.l.b16 %v386
  %v1923 = vunpack.c.l.b16 %v387
  %v1924 = vunpack.c.l.b16 %v388
  %v1925 = vunpack.c.l.b16 %v389
  %v1926 = vunpack.c.l.b16 %v390
  %v1927 = vunpack.c.l.b16 %v391
  %v1928 = vunpack.c.l.b16 %v392
  %v1929 = vunpack.c.l.b16 %v393
  %v1930 = vunpack.c.l.b16 %v394
  %v1931 = vunpack.c.l.b16 %v395
  %v1932 = vunpack.c.l.b16 %v396
  %v1933 = vunpack.c.l.b16 %v397
  %v1934 = vunpack.c.l.b16 %v398
  %v1935 = vunpack.c.l.b16 %v399
  %v1936 = vunpack.c.l.b16 %v400
  %v1937 = vunpack.c.l.b16 %v401
  %v1938 = vunpack.c.l.b16 %v402
  %v1939 = vunpack.c.l.b16 %v403
  %v1940 = vunpack.c.l.b16 %v404
  %v1941 = vunpack.c.l.b16 %v405
  %v1942 = vunpack.c.l.b16 %v406
  %v1943 = vunpack.c.l.b16 %v407
  %v1944 = vunpack.c.l.b16 %v408
  %v1945 = vunpack.c.l.b16 %v409
  %v1946 = vunpack.c.l.b16 %v410
  %v1947 = vunpack.c.l.b16 %v411
  %v1948 = vunpack.c.l.b16 %v412
  %v1949 = vunpack.c.l.b16 %v413
  %v1950 = vunpack.c.l.b16 %v414
  %v1951 = vunpack.c.l.b16 %v415
  %v1952 = vunpack.c.l.b16 %v416
  %v1953 = vunpack.c.l.b16 %v417
  %v1954 = vunpack.c.l.b16 %v418
  %v1955 = vunpack.c.l.b16 %v419
  %v1956 = vpack.c.b16 %v1885, %v1884
  %v1957 = vpack.c.b16 %v1887, %v1886
  %v1958 = vpack.c.b16 %v1889, %v1888
  %v1959 = vpack.c.b16 %v1891, %v1890
  %v1960 = vpack.c.b16 %v1893, %v1892
  %v1961 = vpack.c.b16 %v1895, %v1894
  %v1962 = vpack.c.b16 %v1897, %v1896
  %v1963 = vpack.c.b16 %v1899, %v1898
  %v1964 = vpack.c.b16 %v1901, %v1900
  %v1965 = vpack.c.b16 %v1903, %v1902
  %v1966 = vpack.c.b16 %v1905, %v1904
  %v1967 = vpack.c.b16 %v1907, %v1906
  %v1968 = vpack.c.b16 %v1909, %v1908
  %v1969 = vpack.c.b16 %v1911, %v1910
  %v1970 = vpack.c.b16 %v1913, %v1912
  %v1971 = vpack.c.b16 %v1915, %v1914
  %v1972 = vpack.c.b16 %v1917, %v1916
  %v1973 = vpack.c.b16 %v1919, %v1918
  %v1974 = vpack.c.b16 %v1921, %v1920
  %v1975 = vpack.c.b16 %v1923, %v1922
  %v1976 = vpack.c.b16 %v1925, %v1924
  %v1977 = vpack.c.b16 %v1927, %v1926
  %v1978 = vpack.c.b16 %v1929, %v1928
  %v1979 = vpack.c.b16 %v1931, %v1930
  %v1980 = vpack.c.b16 %v1933, %v1932
  %v1981 = vpack.c.b16 %v1935, %v1934
  %v1982 = vpack.c.b16 %v1937, %v1936
  %v1983 = vpack.c.b16 %v1939, %v1938
  %v1984 = vpack.c.b16 %v1941, %v1940
  %v1985 = vpack.c.b16 %v1943, %v1942
  %v1986 = vpack.c.b16 %v1945, %v1944
  %v1987 = vpack.c.b16 %v1947, %v1946
  %v1988 = vpack.c.b16 %v1949, %v1948
  %v1989 = vpack.c.b16 %v1951, %v1950
  %v1990 = vpack.c.b16 %v1953, %v1952
  %v1991 = vpack.c.b16 %v1955, %v1954
  %vm2028 = vcmask 523264
  %v2030 = vsel %vm2028, %v1312, 0
  %v2033 = vsel %vm2028, %v1317, 0
  %v2036 = vsel %vm2028, %v1322, 0
  %v2039 = vsel %vm2028, %v1327, 0
  %v2042 = vsel %vm2028, %v1332, 0
  %v2045 = vsel %vm2028, %v1337, 0
  %v2048 = vsel %vm2028, %v1342, 0
  %v2051 = vsel %vm2028, %v1347, 0
  %v2054 = vsel %vm2028, %v1352, 0
  %v2057 = vsel %vm2028, %v1357, 0
  %v2060 = vsel %vm2028, %v1362, 0
  %v2063 = vsel %vm2028, %v1367, 0
  %v2066 = vsel %vm2028, %v1372, 0
  %v2069 = vsel %vm2028, %v1377, 0
  %v2072 = vsel %vm2028, %v1382, 0
  %v2075 = vsel %vm2028, %v1387, 0
  %v2078 = vsel %vm2028, %v1392, 0
  %v2081 = vsel %vm2028, %v1397, 0
  %v2084 = vsel %vm2028, %v1402, 0
  %v2087 = vsel %vm2028, %v1407, 0
  %v2090 = vsel %vm2028, %v1412, 0
  %v2093 = vsel %vm2028, %v1417, 0
  %v2096 = vsel %vm2028, %v1422, 0
  %v2099 = vsel %vm2028, %v1427, 0
  %v2102 = vsel %vm2028, %v1432, 0
  %v2105 = vsel %vm2028, %v1437, 0
  %v2108 = vsel %vm2028, %v1442, 0
  %v2111 = vsel %vm2028, %v1447, 0
  %v2114 = vsel %vm2028, %v1452, 0
  %v2117 = vsel %vm2028, %v1457, 0
  %v2120 = vsel %vm2028, %v1462, 0
  %v2123 = vsel %vm2028, %v1467, 0
  %v2126 = vsel %vm2028, %v1472, 0
  %v2129 = vsel %vm2028, %v1477, 0
  %v2132 = vsel %vm2028, %v1482, 0
  %v2135 = vsel %vm2028, %v1487, 0
  %v2138 = vsel %vm2028, %v1492, 0
  %v2141 = vsel %vm2028, %v1497, 0
  %v2144 = vsel %vm2028, %v1502, 0
  %v2147 = vsel %vm2028, %v1507, 0
  %v2150 = vsel %vm2028, %v1512, 0
  %v2153 = vsel %vm2028, %v1517, 0
  %v2156 = vsel %vm2028, %v1522, 0
  %v2159 = vsel %vm2028, %v1527, 0
  %v2162 = vsel %vm2028, %v1532, 0
  %v2165 = vsel %vm2028, %v1537, 0
  %v2168 = vsel %vm2028, %v1542, 0
  %v2171 = vsel %vm2028, %v1547, 0
  %v2174 = vsel %vm2028, %v1552, 0
  %v2177 = vsel %vm2028, %v1557, 0
  %v2180 = vsel %vm2028, %v1562, 0
  %v2183 = vsel %vm2028, %v1567, 0
  %v2186 = vsel %vm2028, %v1572, 0
  %v2189 = vsel %vm2028, %v1577, 0
  %v2192 = vsel %vm2028, %v1582, 0
  %v2195 = vsel %vm2028, %v1587, 0
  %2197 = vmatprep.subr.bf16.mxu0 0
  %2198 = vmatpush1.bf16.msra.mxu0 %v1956
  %2199 = vmatprep.subr.bf16.mxu0 0
  %2200 = vmatpush1.bf16.msra.mxu0 %v1957
  %2201 = vmatprep.subr.bf16.mxu0 0
  %2202 = vmatpush1.bf16.msra.mxu0 %v1958
  %2203 = vmatprep.subr.bf16.mxu0 0
  %2204 = vmatpush1.bf16.msra.mxu0 %v1959
  %2205 = vmatprep.subr.bf16.mxu0 0
  %2206 = vmatpush1.bf16.msra.mxu0 %v1960
  %2207 = vmatprep.subr.bf16.mxu0 0
  %2208 = vmatpush1.bf16.msra.mxu0 %v1961
  %2209 = vmatprep.subr.bf16.mxu0 0
  %2210 = vmatpush1.bf16.msra.mxu0 %v1962
  %2211 = vmatprep.subr.bf16.mxu0 0
  %2212 = vmatpush1.bf16.msra.mxu0 %v1963
  %2213 = vmatprep.subr.bf16.mxu0 0
  %2214 = vmatpush1.bf16.msra.mxu0 %v1964
  %2215 = vmatprep.subr.bf16.mxu0 0
  %2216 = vmatpush1.bf16.msra.mxu0 %v1965
  %2217 = vmatprep.subr.bf16.mxu0 0
  %2218 = vmatpush1.bf16.msra.mxu0 %v1966
  %2219 = vmatprep.subr.bf16.mxu0 0
  %2220 = vmatpush1.bf16.msra.mxu0 %v1967
  %2221 = vmatprep.subr.bf16.mxu0 0
  %2222 = vmatpush1.bf16.msra.mxu0 %v1968
  %2223 = vmatprep.subr.bf16.mxu0 0
  %2224 = vmatpush1.bf16.msra.mxu0 %v1969
  %2225 = vmatprep.subr.bf16.mxu0 0
  %2226 = vmatpush1.bf16.msra.mxu0 %v1970
  %2227 = vmatprep.subr.bf16.mxu0 0
  %2228 = vmatpush1.bf16.msra.mxu0 %v1971
  %2229 = vmatprep.mubr.bf16.mxu0 %v1309
  %2230 = vmatmul.mubr.bf16.gmra.mrb[0].mxu0 %v1308
  %v2231 = vpop.f32.mrb[0].mxu0
  %v2232 = vadd.f32 0.0, %v2231
  %v2233 = vpop.f32.mrb[0].mxu0
  %v2234 = vpop.f32.mrb[0].mxu0
  %v2235 = vadd.f32 0.0, %v2234
  %v2236 = vpop.f32.mrb[0].mxu0
  %2237 = vmatprep.mubr.bf16.mxu0 %v1314
  %2238 = vmatmul.mubr.bf16.gmra.mrb[0].mxu0 %v1313
  %v2239 = vpop.f32.mrb[0].mxu0
  %v2240 = vadd.f32 0.0, %v2239
  %v2241 = vpop.f32.mrb[0].mxu0
  %v2242 = vpop.f32.mrb[0].mxu0
  %v2243 = vadd.f32 0.0, %v2242
  %v2244 = vpop.f32.mrb[0].mxu0
  %2245 = vmatprep.mubr.bf16.mxu0 %v1319
  %2246 = vmatmul.mubr.bf16.gmra.mrb[0].mxu0 %v1318
  %v2247 = vpop.f32.mrb[0].mxu0
  %v2248 = vadd.f32 0.0, %v2247
  %v2249 = vpop.f32.mrb[0].mxu0
  %v2250 = vpop.f32.mrb[0].mxu0
  %v2251 = vadd.f32 0.0, %v2250
  %v2252 = vpop.f32.mrb[0].mxu0
  %2253 = vmatprep.mubr.bf16.mxu0 %v1324
  %2254 = vmatmul.mubr.bf16.gmra.mrb[0].mxu0 %v1323
  %v2255 = vpop.f32.mrb[0].mxu0
  %v2256 = vadd.f32 0.0, %v2255
  %v2257 = vpop.f32.mrb[0].mxu0
  %v2258 = vpop.f32.mrb[0].mxu0
  %v2259 = vadd.f32 0.0, %v2258
  %v2260 = vpop.f32.mrb[0].mxu0
  %2261 = vmatprep.mubr.bf16.mxu0 %v1329
  %2262 = vmatmul.mubr.bf16.gmra.mrb[0].mxu0 %v1328
  %v2263 = vpop.f32.mrb[0].mxu0
  %v2264 = vadd.f32 0.0, %v2263
  %v2265 = vpop.f32.mrb[0].mxu0
  %v2266 = vpop.f32.mrb[0].mxu0
  %v2267 = vadd.f32 0.0, %v2266
  %v2268 = vpop.f32.mrb[0].mxu0
  %2269 = vmatprep.mubr.bf16.mxu0 %v1334
  %2270 = vmatmul.mubr.bf16.gmra.mrb[0].mxu0 %v1333
  %v2271 = vpop.f32.mrb[0].mxu0
  %v2272 = vadd.f32 0.0, %v2271
  %v2273 = vpop.f32.mrb[0].mxu0
  %v2274 = vpop.f32.mrb[0].mxu0
  %v2275 = vadd.f32 0.0, %v2274
  %v2276 = vpop.f32.mrb[0].mxu0
  %2277 = vmatprep.mubr.bf16.mxu0 %v1339
  %2278 = vmatmul.mubr.bf16.gmra.mrb[0].mxu0 %v1338
  %v2279 = vpop.f32.mrb[0].mxu0
  %v2280 = vadd.f32 0.0, %v2279
  %v2281 = vpop.f32.mrb[0].mxu0
  %v2282 = vpop.f32.mrb[0].mxu0
  %v2283 = vadd.f32 0.0, %v2282
  %v2284 = vpop.f32.mrb[0].mxu0
  %2285 = vmatprep.mubr.bf16.mxu0 %v1344
  %2286 = vmatmul.mubr.bf16.gmra.mrb[0].mxu0 %v1343
  %v2287 = vpop.f32.mrb[0].mxu0
  %v2288 = vadd.f32 0.0, %v2287
  %v2289 = vpop.f32.mrb[0].mxu0
  %v2290 = vpop.f32.mrb[0].mxu0
  %v2291 = vadd.f32 0.0, %v2290
  %v2292 = vpop.f32.mrb[0].mxu0
  %2293 = vmatprep.mubr.bf16.mxu0 %v1349
  %2294 = vmatmul.mubr.bf16.gmra.mrb[0].mxu0 %v1348
  %v2295 = vpop.f32.mrb[0].mxu0
  %v2296 = vadd.f32 0.0, %v2295
  %v2297 = vpop.f32.mrb[0].mxu0
  %v2298 = vpop.f32.mrb[0].mxu0
  %v2299 = vadd.f32 0.0, %v2298
  %v2300 = vpop.f32.mrb[0].mxu0
  %2301 = vmatprep.mubr.bf16.mxu0 %v1354
  %2302 = vmatmul.mubr.bf16.gmra.mrb[0].mxu0 %v1353
  %v2303 = vpop.f32.mrb[0].mxu0
  %v2304 = vadd.f32 0.0, %v2303
  %v2305 = vpop.f32.mrb[0].mxu0
  %v2306 = vpop.f32.mrb[0].mxu0
  %v2307 = vadd.f32 0.0, %v2306
  %v2308 = vpop.f32.mrb[0].mxu0
  %2309 = vmatprep.mubr.bf16.mxu0 %v1359
  %2310 = vmatmul.mubr.bf16.gmra.mrb[0].mxu0 %v1358
  %v2311 = vpop.f32.mrb[0].mxu0
  %v2312 = vadd.f32 0.0, %v2311
  %v2313 = vpop.f32.mrb[0].mxu0
  %v2314 = vpop.f32.mrb[0].mxu0
  %v2315 = vadd.f32 0.0, %v2314
  %v2316 = vpop.f32.mrb[0].mxu0
  %2317 = vmatprep.mubr.bf16.mxu0 %v1364
  %2318 = vmatmul.mubr.bf16.gmra.mrb[0].mxu0 %v1363
  %v2319 = vpop.f32.mrb[0].mxu0
  %v2320 = vadd.f32 0.0, %v2319
  %v2321 = vpop.f32.mrb[0].mxu0
  %v2322 = vpop.f32.mrb[0].mxu0
  %v2323 = vadd.f32 0.0, %v2322
  %v2324 = vpop.f32.mrb[0].mxu0
  %2325 = vmatprep.mubr.bf16.mxu0 %v1369
  %2326 = vmatmul.mubr.bf16.gmra.mrb[0].mxu0 %v1368
  %v2327 = vpop.f32.mrb[0].mxu0
  %v2328 = vadd.f32 0.0, %v2327
  %v2329 = vpop.f32.mrb[0].mxu0
  %v2330 = vpop.f32.mrb[0].mxu0
  %v2331 = vadd.f32 0.0, %v2330
  %v2332 = vpop.f32.mrb[0].mxu0
  %2333 = vmatprep.mubr.bf16.mxu0 %v1374
  %2334 = vmatmul.mubr.bf16.gmra.mrb[0].mxu0 %v1373
  %v2335 = vpop.f32.mrb[0].mxu0
  %v2336 = vadd.f32 0.0, %v2335
  %v2337 = vpop.f32.mrb[0].mxu0
  %v2338 = vpop.f32.mrb[0].mxu0
  %v2339 = vadd.f32 0.0, %v2338
  %v2340 = vpop.f32.mrb[0].mxu0
  %2341 = vmatprep.mubr.bf16.mxu0 %v1379
  %2342 = vmatmul.mubr.bf16.gmra.mrb[0].mxu0 %v1378
  %v2343 = vpop.f32.mrb[0].mxu0
  %v2344 = vadd.f32 0.0, %v2343
  %v2345 = vpop.f32.mrb[0].mxu0
  %v2346 = vpop.f32.mrb[0].mxu0
  %v2347 = vadd.f32 0.0, %v2346
  %v2348 = vpop.f32.mrb[0].mxu0
  %2349 = vmatprep.mubr.bf16.mxu0 %v1384
  %2350 = vmatmul.mubr.bf16.gmra.mrb[0].mxu0 %v1383
  %v2351 = vpop.f32.mrb[0].mxu0
  %v2352 = vadd.f32 0.0, %v2351
  %v2353 = vpop.f32.mrb[0].mxu0
  %v2354 = vpop.f32.mrb[0].mxu0
  %v2355 = vadd.f32 0.0, %v2354
  %v2356 = vpop.f32.mrb[0].mxu0
  %2357 = vmatprep.mubr.bf16.mxu0 %v1389
  %2358 = vmatmul.mubr.bf16.gmra.mrb[0].mxu0 %v1388
  %v2359 = vpop.f32.mrb[0].mxu0
  %v2360 = vadd.f32 0.0, %v2359
  %v2361 = vpop.f32.mrb[0].mxu0
  %v2362 = vpop.f32.mrb[0].mxu0
  %v2363 = vadd.f32 0.0, %v2362
  %v2364 = vpop.f32.mrb[0].mxu0
  %2365 = vmatprep.mubr.bf16.mxu0 %v1394
  %2366 = vmatmul.mubr.bf16.gmra.mrb[0].mxu0 %v1393
  %v2367 = vpop.f32.mrb[0].mxu0
  %v2368 = vadd.f32 0.0, %v2367
  %v2369 = vpop.f32.mrb[0].mxu0
  %v2370 = vpop.f32.mrb[0].mxu0
  %v2371 = vadd.f32 0.0, %v2370
  %v2372 = vpop.f32.mrb[0].mxu0
  %2373 = vmatprep.mubr.bf16.mxu0 %v1399
  %2374 = vmatmul.mubr.bf16.gmra.mrb[0].mxu0 %v1398
  %v2375 = vpop.f32.mrb[0].mxu0
  %v2376 = vadd.f32 0.0, %v2375
  %v2377 = vpop.f32.mrb[0].mxu0
  %v2378 = vpop.f32.mrb[0].mxu0
  %v2379 = vadd.f32 0.0, %v2378
  %v2380 = vpop.f32.mrb[0].mxu0
  %2381 = vmatprep.mubr.bf16.mxu0 %v1404
  %2382 = vmatmul.mubr.bf16.gmra.mrb[0].mxu0 %v1403
  %v2383 = vpop.f32.mrb[0].mxu0
  %v2384 = vadd.f32 0.0, %v2383
  %v2385 = vpop.f32.mrb[0].mxu0
  %v2386 = vpop.f32.mrb[0].mxu0
  %v2387 = vadd.f32 0.0, %v2386
  %v2388 = vpop.f32.mrb[0].mxu0
  %2389 = vmatprep.mubr.bf16.mxu0 %v1409
  %2390 = vmatmul.mubr.bf16.gmra.mrb[0].mxu0 %v1408
  %v2391 = vpop.f32.mrb[0].mxu0
  %v2392 = vadd.f32 0.0, %v2391
  %v2393 = vpop.f32.mrb[0].mxu0
  %v2394 = vpop.f32.mrb[0].mxu0
  %v2395 = vadd.f32 0.0, %v2394
  %v2396 = vpop.f32.mrb[0].mxu0
  %2397 = vmatprep.mubr.bf16.mxu0 %v1414
  %2398 = vmatmul.mubr.bf16.gmra.mrb[0].mxu0 %v1413
  %v2399 = vpop.f32.mrb[0].mxu0
  %v2400 = vadd.f32 0.0, %v2399
  %v2401 = vpop.f32.mrb[0].mxu0
  %v2402 = vpop.f32.mrb[0].mxu0
  %v2403 = vadd.f32 0.0, %v2402
  %v2404 = vpop.f32.mrb[0].mxu0
  %2405 = vmatprep.mubr.bf16.mxu0 %v1419
  %2406 = vmatmul.mubr.bf16.gmra.mrb[0].mxu0 %v1418
  %v2407 = vpop.f32.mrb[0].mxu0
  %v2408 = vadd.f32 0.0, %v2407
  %v2409 = vpop.f32.mrb[0].mxu0
  %v2410 = vpop.f32.mrb[0].mxu0
  %v2411 = vadd.f32 0.0, %v2410
  %v2412 = vpop.f32.mrb[0].mxu0
  %2413 = vmatprep.mubr.bf16.mxu0 %v1424
  %2414 = vmatmul.mubr.bf16.gmra.mrb[0].mxu0 %v1423
  %v2415 = vpop.f32.mrb[0].mxu0
  %v2416 = vadd.f32 0.0, %v2415
  %v2417 = vpop.f32.mrb[0].mxu0
  %v2418 = vpop.f32.mrb[0].mxu0
  %v2419 = vadd.f32 0.0, %v2418
  %v2420 = vpop.f32.mrb[0].mxu0
  %2421 = vmatprep.mubr.bf16.mxu0 %v1429
  %2422 = vmatmul.mubr.bf16.gmra.mrb[0].mxu0 %v1428
  %v2423 = vpop.f32.mrb[0].mxu0
  %v2424 = vadd.f32 0.0, %v2423
  %v2425 = vpop.f32.mrb[0].mxu0
  %v2426 = vpop.f32.mrb[0].mxu0
  %v2427 = vadd.f32 0.0, %v2426
  %v2428 = vpop.f32.mrb[0].mxu0
  %2429 = vmatprep.mubr.bf16.mxu0 %v1434
  %2430 = vmatmul.mubr.bf16.gmra.mrb[0].mxu0 %v1433
  %v2431 = vpop.f32.mrb[0].mxu0
  %v2432 = vadd.f32 0.0, %v2431
  %v2433 = vpop.f32.mrb[0].mxu0
  %v2434 = vpop.f32.mrb[0].mxu0
  %v2435 = vadd.f32 0.0, %v2434
  %v2436 = vpop.f32.mrb[0].mxu0
  %2437 = vmatprep.mubr.bf16.mxu0 %v1439
  %2438 = vmatmul.mubr.bf16.gmra.mrb[0].mxu0 %v1438
  %v2439 = vpop.f32.mrb[0].mxu0
  %v2440 = vadd.f32 0.0, %v2439
  %v2441 = vpop.f32.mrb[0].mxu0
  %v2442 = vpop.f32.mrb[0].mxu0
  %v2443 = vadd.f32 0.0, %v2442
  %v2444 = vpop.f32.mrb[0].mxu0
  %2445 = vmatprep.mubr.bf16.mxu0 %v1444
  %2446 = vmatmul.mubr.bf16.gmra.mrb[0].mxu0 %v1443
  %v2447 = vpop.f32.mrb[0].mxu0
  %v2448 = vadd.f32 0.0, %v2447
  %v2449 = vpop.f32.mrb[0].mxu0
  %v2450 = vpop.f32.mrb[0].mxu0
  %v2451 = vadd.f32 0.0, %v2450
  %v2452 = vpop.f32.mrb[0].mxu0
  %2453 = vmatprep.mubr.bf16.mxu0 %v1449
  %2454 = vmatmul.mubr.bf16.gmra.mrb[0].mxu0 %v1448
  %v2455 = vpop.f32.mrb[0].mxu0
  %v2456 = vadd.f32 0.0, %v2455
  %v2457 = vpop.f32.mrb[0].mxu0
  %v2458 = vpop.f32.mrb[0].mxu0
  %v2459 = vadd.f32 0.0, %v2458
  %v2460 = vpop.f32.mrb[0].mxu0
  %2461 = vmatprep.mubr.bf16.mxu0 %v1454
  %2462 = vmatmul.mubr.bf16.gmra.mrb[0].mxu0 %v1453
  %v2463 = vpop.f32.mrb[0].mxu0
  %v2464 = vadd.f32 0.0, %v2463
  %v2465 = vpop.f32.mrb[0].mxu0
  %v2466 = vpop.f32.mrb[0].mxu0
  %v2467 = vadd.f32 0.0, %v2466
  %v2468 = vpop.f32.mrb[0].mxu0
  %2469 = vmatprep.mubr.bf16.mxu0 %v1459
  %2470 = vmatmul.mubr.bf16.gmra.mrb[0].mxu0 %v1458
  %v2471 = vpop.f32.mrb[0].mxu0
  %v2472 = vadd.f32 0.0, %v2471
  %v2473 = vpop.f32.mrb[0].mxu0
  %v2474 = vpop.f32.mrb[0].mxu0
  %v2475 = vadd.f32 0.0, %v2474
  %v2476 = vpop.f32.mrb[0].mxu0
  %2477 = vmatprep.mubr.bf16.mxu0 %v1464
  %2478 = vmatmul.mubr.bf16.gmra.mrb[0].mxu0 %v1463
  %v2479 = vpop.f32.mrb[0].mxu0
  %v2480 = vadd.f32 0.0, %v2479
  %v2481 = vpop.f32.mrb[0].mxu0
  %v2482 = vpop.f32.mrb[0].mxu0
  %v2483 = vadd.f32 0.0, %v2482
  %v2484 = vpop.f32.mrb[0].mxu0
  %2485 = vmatprep.mubr.bf16.mxu0 %v1469
  %2486 = vmatmul.mubr.bf16.gmra.mrb[0].mxu0 %v1468
  %v2487 = vpop.f32.mrb[0].mxu0
  %v2488 = vadd.f32 0.0, %v2487
  %v2489 = vpop.f32.mrb[0].mxu0
  %v2490 = vpop.f32.mrb[0].mxu0
  %v2491 = vadd.f32 0.0, %v2490
  %v2492 = vpop.f32.mrb[0].mxu0
  %2493 = vmatprep.mubr.bf16.mxu0 %v1474
  %2494 = vmatmul.mubr.bf16.gmra.mrb[0].mxu0 %v1473
  %v2495 = vpop.f32.mrb[0].mxu0
  %v2496 = vadd.f32 0.0, %v2495
  %v2497 = vpop.f32.mrb[0].mxu0
  %v2498 = vpop.f32.mrb[0].mxu0
  %v2499 = vadd.f32 0.0, %v2498
  %v2500 = vpop.f32.mrb[0].mxu0
  %2501 = vmatprep.mubr.bf16.mxu0 %v1479
  %2502 = vmatmul.mubr.bf16.gmra.mrb[0].mxu0 %v1478
  %v2503 = vpop.f32.mrb[0].mxu0
  %v2504 = vadd.f32 0.0, %v2503
  %v2505 = vpop.f32.mrb[0].mxu0
  %v2506 = vpop.f32.mrb[0].mxu0
  %v2507 = vadd.f32 0.0, %v2506
  %v2508 = vpop.f32.mrb[0].mxu0
  %2509 = vmatprep.mubr.bf16.mxu0 %v1484
  %2510 = vmatmul.mubr.bf16.gmra.mrb[0].mxu0 %v1483
  %v2511 = vpop.f32.mrb[0].mxu0
  %v2512 = vadd.f32 0.0, %v2511
  %v2513 = vpop.f32.mrb[0].mxu0
  %v2514 = vpop.f32.mrb[0].mxu0
  %v2515 = vadd.f32 0.0, %v2514
  %v2516 = vpop.f32.mrb[0].mxu0
  %2517 = vmatprep.mubr.bf16.mxu0 %v1489
  %2518 = vmatmul.mubr.bf16.gmra.mrb[0].mxu0 %v1488
  %v2519 = vpop.f32.mrb[0].mxu0
  %v2520 = vadd.f32 0.0, %v2519
  %v2521 = vpop.f32.mrb[0].mxu0
  %v2522 = vpop.f32.mrb[0].mxu0
  %v2523 = vadd.f32 0.0, %v2522
  %v2524 = vpop.f32.mrb[0].mxu0
  %2525 = vmatprep.mubr.bf16.mxu0 %v1494
  %2526 = vmatmul.mubr.bf16.gmra.mrb[0].mxu0 %v1493
  %v2527 = vpop.f32.mrb[0].mxu0
  %v2528 = vadd.f32 0.0, %v2527
  %v2529 = vpop.f32.mrb[0].mxu0
  %v2530 = vpop.f32.mrb[0].mxu0
  %v2531 = vadd.f32 0.0, %v2530
  %v2532 = vpop.f32.mrb[0].mxu0
  %2533 = vmatprep.mubr.bf16.mxu0 %v1499
  %2534 = vmatmul.mubr.bf16.gmra.mrb[0].mxu0 %v1498
  %v2535 = vpop.f32.mrb[0].mxu0
  %v2536 = vadd.f32 0.0, %v2535
  %v2537 = vpop.f32.mrb[0].mxu0
  %v2538 = vpop.f32.mrb[0].mxu0
  %v2539 = vadd.f32 0.0, %v2538
  %v2540 = vpop.f32.mrb[0].mxu0
  %2541 = vmatprep.mubr.bf16.mxu0 %v1504
  %2542 = vmatmul.mubr.bf16.gmra.mrb[0].mxu0 %v1503
  %v2543 = vpop.f32.mrb[0].mxu0
  %v2544 = vadd.f32 0.0, %v2543
  %v2545 = vpop.f32.mrb[0].mxu0
  %v2546 = vpop.f32.mrb[0].mxu0
  %v2547 = vadd.f32 0.0, %v2546
  %v2548 = vpop.f32.mrb[0].mxu0
  %2549 = vmatprep.mubr.bf16.mxu0 %v1509
  %2550 = vmatmul.mubr.bf16.gmra.mrb[0].mxu0 %v1508
  %v2551 = vpop.f32.mrb[0].mxu0
  %v2552 = vadd.f32 0.0, %v2551
  %v2553 = vpop.f32.mrb[0].mxu0
  %v2554 = vpop.f32.mrb[0].mxu0
  %v2555 = vadd.f32 0.0, %v2554
  %v2556 = vpop.f32.mrb[0].mxu0
  %2557 = vmatprep.mubr.bf16.mxu0 %v1514
  %2558 = vmatmul.mubr.bf16.gmra.mrb[0].mxu0 %v1513
  %v2559 = vpop.f32.mrb[0].mxu0
  %v2560 = vadd.f32 0.0, %v2559
  %v2561 = vpop.f32.mrb[0].mxu0
  %v2562 = vpop.f32.mrb[0].mxu0
  %v2563 = vadd.f32 0.0, %v2562
  %v2564 = vpop.f32.mrb[0].mxu0
  %2565 = vmatprep.mubr.bf16.mxu0 %v1519
  %2566 = vmatmul.mubr.bf16.gmra.mrb[0].mxu0 %v1518
  %v2567 = vpop.f32.mrb[0].mxu0
  %v2568 = vadd.f32 0.0, %v2567
  %v2569 = vpop.f32.mrb[0].mxu0
  %v2570 = vpop.f32.mrb[0].mxu0
  %v2571 = vadd.f32 0.0, %v2570
  %v2572 = vpop.f32.mrb[0].mxu0
  %2573 = vmatprep.mubr.bf16.mxu0 %v1524
  %2574 = vmatmul.mubr.bf16.gmra.mrb[0].mxu0 %v1523
  %v2575 = vpop.f32.mrb[0].mxu0
  %v2576 = vadd.f32 0.0, %v2575
  %v2577 = vpop.f32.mrb[0].mxu0
  %v2578 = vpop.f32.mrb[0].mxu0
  %v2579 = vadd.f32 0.0, %v2578
  %v2580 = vpop.f32.mrb[0].mxu0
  %2581 = vmatprep.mubr.bf16.mxu0 %v1529
  %2582 = vmatmul.mubr.bf16.gmra.mrb[0].mxu0 %v1528
  %v2583 = vpop.f32.mrb[0].mxu0
  %v2584 = vadd.f32 0.0, %v2583
  %v2585 = vpop.f32.mrb[0].mxu0
  %v2586 = vpop.f32.mrb[0].mxu0
  %v2587 = vadd.f32 0.0, %v2586
  %v2588 = vpop.f32.mrb[0].mxu0
  %2589 = vmatprep.mubr.bf16.mxu0 %v1534
  %2590 = vmatmul.mubr.bf16.gmra.mrb[0].mxu0 %v1533
  %v2591 = vpop.f32.mrb[0].mxu0
  %v2592 = vadd.f32 0.0, %v2591
  %v2593 = vpop.f32.mrb[0].mxu0
  %v2594 = vpop.f32.mrb[0].mxu0
  %v2595 = vadd.f32 0.0, %v2594
  %v2596 = vpop.f32.mrb[0].mxu0
  %2597 = vmatprep.mubr.bf16.mxu0 %v1539
  %2598 = vmatmul.mubr.bf16.gmra.mrb[0].mxu0 %v1538
  %v2599 = vpop.f32.mrb[0].mxu0
  %v2600 = vadd.f32 0.0, %v2599
  %v2601 = vpop.f32.mrb[0].mxu0
  %v2602 = vpop.f32.mrb[0].mxu0
  %v2603 = vadd.f32 0.0, %v2602
  %v2604 = vpop.f32.mrb[0].mxu0
  %2605 = vmatprep.mubr.bf16.mxu0 %v1544
  %2606 = vmatmul.mubr.bf16.gmra.mrb[0].mxu0 %v1543
  %v2607 = vpop.f32.mrb[0].mxu0
  %v2608 = vadd.f32 0.0, %v2607
  %v2609 = vpop.f32.mrb[0].mxu0
  %v2610 = vpop.f32.mrb[0].mxu0
  %v2611 = vadd.f32 0.0, %v2610
  %v2612 = vpop.f32.mrb[0].mxu0
  %2613 = vmatprep.mubr.bf16.mxu0 %v1549
  %2614 = vmatmul.mubr.bf16.gmra.mrb[0].mxu0 %v1548
  %v2615 = vpop.f32.mrb[0].mxu0
  %v2616 = vadd.f32 0.0, %v2615
  %v2617 = vpop.f32.mrb[0].mxu0
  %v2618 = vpop.f32.mrb[0].mxu0
  %v2619 = vadd.f32 0.0, %v2618
  %v2620 = vpop.f32.mrb[0].mxu0
  %2621 = vmatprep.mubr.bf16.mxu0 %v1554
  %2622 = vmatmul.mubr.bf16.gmra.mrb[0].mxu0 %v1553
  %v2623 = vpop.f32.mrb[0].mxu0
  %v2624 = vadd.f32 0.0, %v2623
  %v2625 = vpop.f32.mrb[0].mxu0
  %v2626 = vpop.f32.mrb[0].mxu0
  %v2627 = vadd.f32 0.0, %v2626
  %v2628 = vpop.f32.mrb[0].mxu0
  %2629 = vmatprep.mubr.bf16.mxu0 %v1559
  %2630 = vmatmul.mubr.bf16.gmra.mrb[0].mxu0 %v1558
  %v2631 = vpop.f32.mrb[0].mxu0
  %v2632 = vadd.f32 0.0, %v2631
  %v2633 = vpop.f32.mrb[0].mxu0
  %v2634 = vpop.f32.mrb[0].mxu0
  %v2635 = vadd.f32 0.0, %v2634
  %v2636 = vpop.f32.mrb[0].mxu0
  %2637 = vmatprep.mubr.bf16.mxu0 %v1564
  %2638 = vmatmul.mubr.bf16.gmra.mrb[0].mxu0 %v1563
  %v2639 = vpop.f32.mrb[0].mxu0
  %v2640 = vadd.f32 0.0, %v2639
  %v2641 = vpop.f32.mrb[0].mxu0
  %v2642 = vpop.f32.mrb[0].mxu0
  %v2643 = vadd.f32 0.0, %v2642
  %v2644 = vpop.f32.mrb[0].mxu0
  %2645 = vmatprep.mubr.bf16.mxu0 %v1569
  %2646 = vmatmul.mubr.bf16.gmra.mrb[0].mxu0 %v1568
  %v2647 = vpop.f32.mrb[0].mxu0
  %v2648 = vadd.f32 0.0, %v2647
  %v2649 = vpop.f32.mrb[0].mxu0
  %v2650 = vpop.f32.mrb[0].mxu0
  %v2651 = vadd.f32 0.0, %v2650
  %v2652 = vpop.f32.mrb[0].mxu0
  %2653 = vmatprep.mubr.bf16.mxu0 %v1574
  %2654 = vmatmul.mubr.bf16.gmra.mrb[0].mxu0 %v1573
  %v2655 = vpop.f32.mrb[0].mxu0
  %v2656 = vadd.f32 0.0, %v2655
  %v2657 = vpop.f32.mrb[0].mxu0
  %v2658 = vpop.f32.mrb[0].mxu0
  %v2659 = vadd.f32 0.0, %v2658
  %v2660 = vpop.f32.mrb[0].mxu0
  %2661 = vmatprep.mubr.bf16.mxu0 %v1579
  %2662 = vmatmul.mubr.bf16.gmra.mrb[0].mxu0 %v1578
  %v2663 = vpop.f32.mrb[0].mxu0
  %v2664 = vadd.f32 0.0, %v2663
  %v2665 = vpop.f32.mrb[0].mxu0
  %v2666 = vpop.f32.mrb[0].mxu0
  %v2667 = vadd.f32 0.0, %v2666
  %v2668 = vpop.f32.mrb[0].mxu0
  %2669 = vmatprep.mubr.bf16.mxu0 %v1584
  %2670 = vmatmul.mubr.bf16.gmra.mrb[0].mxu0 %v1583
  %v2671 = vpop.f32.mrb[0].mxu0
  %v2672 = vadd.f32 0.0, %v2671
  %v2673 = vpop.f32.mrb[0].mxu0
  %v2674 = vpop.f32.mrb[0].mxu0
  %v2675 = vpop.f32.mrb[0].mxu0
  %2676 = vdwg.mxu0
  %2677 = vmatprep.subr.bf16.mxu0 0
  %2678 = vmatpush1.bf16.msra.mxu0 %v1972
  %2679 = vmatprep.subr.bf16.mxu0 0
  %2680 = vmatpush1.bf16.msra.mxu0 %v1973
  %2681 = vmatprep.subr.bf16.mxu0 0
  %2682 = vmatpush1.bf16.msra.mxu0 %v1974
  %2683 = vmatprep.subr.bf16.mxu0 0
  %2684 = vmatpush1.bf16.msra.mxu0 %v1975
  %2685 = vmatprep.subr.bf16.mxu0 0
  %2686 = vmatpush1.bf16.msra.mxu0 %v1976
  %2687 = vmatprep.subr.bf16.mxu0 0
  %2688 = vmatpush1.bf16.msra.mxu0 %v1977
  %2689 = vmatprep.subr.bf16.mxu0 0
  %2690 = vmatpush1.bf16.msra.mxu0 %v1978
  %2691 = vmatprep.subr.bf16.mxu0 0
  %2692 = vmatpush1.bf16.msra.mxu0 %v1979
  %2693 = vmatprep.subr.bf16.mxu0 0
  %2694 = vmatpush1.bf16.msra.mxu0 %v1980
  %2695 = vmatprep.subr.bf16.mxu0 0
  %2696 = vmatpush1.bf16.msra.mxu0 %v1981
  %2697 = vmatprep.subr.bf16.mxu0 0
  %2698 = vmatpush1.bf16.msra.mxu0 %v1982
  %2699 = vmatprep.subr.bf16.mxu0 0
  %2700 = vmatpush1.bf16.msra.mxu0 %v1983
  %2701 = vmatprep.subr.bf16.mxu0 0
  %2702 = vmatpush1.bf16.msra.mxu0 %v1984
  %2703 = vmatprep.subr.bf16.mxu0 0
  %2704 = vmatpush1.bf16.msra.mxu0 %v1985
  %2705 = vmatprep.subr.bf16.mxu0 0
  %2706 = vmatpush1.bf16.msra.mxu0 %v1986
  %2707 = vmatprep.subr.bf16.mxu0 0
  %2708 = vmatpush1.bf16.msra.mxu0 %v1987
  %2709 = vmatprep.mubr.bf16.mxu0 %v1311
  %2710 = vmatmul.mubr.bf16.gmra.mrb[0].mxu0 %v1310
  %v2711 = vpop.f32.mrb[0].mxu0
  %v2712 = vadd.f32 %v2232, %v2711
  %v2713 = vpop.f32.mrb[0].mxu0
  %v2714 = vpop.f32.mrb[0].mxu0
  %v2715 = vadd.f32 %v2235, %v2714
  %v2716 = vpop.f32.mrb[0].mxu0
  %2717 = vmatprep.mubr.bf16.mxu0 %v1316
  %2718 = vmatmul.mubr.bf16.gmra.mrb[0].mxu0 %v1315
  %v2719 = vpop.f32.mrb[0].mxu0
  %v2720 = vadd.f32 %v2240, %v2719
  %v2721 = vpop.f32.mrb[0].mxu0
  %v2722 = vpop.f32.mrb[0].mxu0
  %v2723 = vadd.f32 %v2243, %v2722
  %v2724 = vpop.f32.mrb[0].mxu0
  %2725 = vmatprep.mubr.bf16.mxu0 %v1321
  %2726 = vmatmul.mubr.bf16.gmra.mrb[0].mxu0 %v1320
  %v2727 = vpop.f32.mrb[0].mxu0
  %v2728 = vadd.f32 %v2248, %v2727
  %v2729 = vpop.f32.mrb[0].mxu0
  %v2730 = vpop.f32.mrb[0].mxu0
  %v2731 = vadd.f32 %v2251, %v2730
  %v2732 = vpop.f32.mrb[0].mxu0
  %2733 = vmatprep.mubr.bf16.mxu0 %v1326
  %2734 = vmatmul.mubr.bf16.gmra.mrb[0].mxu0 %v1325
  %v2735 = vpop.f32.mrb[0].mxu0
  %v2736 = vadd.f32 %v2256, %v2735
  %v2737 = vpop.f32.mrb[0].mxu0
  %v2738 = vpop.f32.mrb[0].mxu0
  %v2739 = vadd.f32 %v2259, %v2738
  %v2740 = vpop.f32.mrb[0].mxu0
  %2741 = vmatprep.mubr.bf16.mxu0 %v1331
  %2742 = vmatmul.mubr.bf16.gmra.mrb[0].mxu0 %v1330
  %v2743 = vpop.f32.mrb[0].mxu0
  %v2744 = vadd.f32 %v2264, %v2743
  %v2745 = vpop.f32.mrb[0].mxu0
  %v2746 = vpop.f32.mrb[0].mxu0
  %v2747 = vadd.f32 %v2267, %v2746
  %v2748 = vpop.f32.mrb[0].mxu0
  %2749 = vmatprep.mubr.bf16.mxu0 %v1336
  %2750 = vmatmul.mubr.bf16.gmra.mrb[0].mxu0 %v1335
  %v2751 = vpop.f32.mrb[0].mxu0
  %v2752 = vadd.f32 %v2272, %v2751
  %v2753 = vpop.f32.mrb[0].mxu0
  %v2754 = vpop.f32.mrb[0].mxu0
  %v2755 = vadd.f32 %v2275, %v2754
  %v2756 = vpop.f32.mrb[0].mxu0
  %2757 = vmatprep.mubr.bf16.mxu0 %v1341
  %2758 = vmatmul.mubr.bf16.gmra.mrb[0].mxu0 %v1340
  %v2759 = vpop.f32.mrb[0].mxu0
  %v2760 = vadd.f32 %v2280, %v2759
  %v2761 = vpop.f32.mrb[0].mxu0
  %v2762 = vpop.f32.mrb[0].mxu0
  %v2763 = vadd.f32 %v2283, %v2762
  %v2764 = vpop.f32.mrb[0].mxu0
  %2765 = vmatprep.mubr.bf16.mxu0 %v1346
  %2766 = vmatmul.mubr.bf16.gmra.mrb[0].mxu0 %v1345
  %v2767 = vpop.f32.mrb[0].mxu0
  %v2768 = vadd.f32 %v2288, %v2767
  %v2769 = vpop.f32.mrb[0].mxu0
  %v2770 = vpop.f32.mrb[0].mxu0
  %v2771 = vadd.f32 %v2291, %v2770
  %v2772 = vpop.f32.mrb[0].mxu0
  %2773 = vmatprep.mubr.bf16.mxu0 %v1351
  %2774 = vmatmul.mubr.bf16.gmra.mrb[0].mxu0 %v1350
  %v2775 = vpop.f32.mrb[0].mxu0
  %v2776 = vadd.f32 %v2296, %v2775
  %v2777 = vpop.f32.mrb[0].mxu0
  %v2778 = vpop.f32.mrb[0].mxu0
  %v2779 = vadd.f32 %v2299, %v2778
  %v2780 = vpop.f32.mrb[0].mxu0
  %2781 = vmatprep.mubr.bf16.mxu0 %v1356
  %2782 = vmatmul.mubr.bf16.gmra.mrb[0].mxu0 %v1355
  %v2783 = vpop.f32.mrb[0].mxu0
  %v2784 = vadd.f32 %v2304, %v2783
  %v2785 = vpop.f32.mrb[0].mxu0
  %v2786 = vpop.f32.mrb[0].mxu0
  %v2787 = vadd.f32 %v2307, %v2786
  %v2788 = vpop.f32.mrb[0].mxu0
  %2789 = vmatprep.mubr.bf16.mxu0 %v1361
  %2790 = vmatmul.mubr.bf16.gmra.mrb[0].mxu0 %v1360
  %v2791 = vpop.f32.mrb[0].mxu0
  %v2792 = vadd.f32 %v2312, %v2791
  %v2793 = vpop.f32.mrb[0].mxu0
  %v2794 = vpop.f32.mrb[0].mxu0
  %v2795 = vadd.f32 %v2315, %v2794
  %v2796 = vpop.f32.mrb[0].mxu0
  %2797 = vmatprep.mubr.bf16.mxu0 %v1366
  %2798 = vmatmul.mubr.bf16.gmra.mrb[0].mxu0 %v1365
  %v2799 = vpop.f32.mrb[0].mxu0
  %v2800 = vadd.f32 %v2320, %v2799
  %v2801 = vpop.f32.mrb[0].mxu0
  %v2802 = vpop.f32.mrb[0].mxu0
  %v2803 = vadd.f32 %v2323, %v2802
  %v2804 = vpop.f32.mrb[0].mxu0
  %2805 = vmatprep.mubr.bf16.mxu0 %v1371
  %2806 = vmatmul.mubr.bf16.gmra.mrb[0].mxu0 %v1370
  %v2807 = vpop.f32.mrb[0].mxu0
  %v2808 = vadd.f32 %v2328, %v2807
  %v2809 = vpop.f32.mrb[0].mxu0
  %v2810 = vpop.f32.mrb[0].mxu0
  %v2811 = vadd.f32 %v2331, %v2810
  %v2812 = vpop.f32.mrb[0].mxu0
  %2813 = vmatprep.mubr.bf16.mxu0 %v1376
  %2814 = vmatmul.mubr.bf16.gmra.mrb[0].mxu0 %v1375
  %v2815 = vpop.f32.mrb[0].mxu0
  %v2816 = vadd.f32 %v2336, %v2815
  %v2817 = vpop.f32.mrb[0].mxu0
  %v2818 = vpop.f32.mrb[0].mxu0
  %v2819 = vadd.f32 %v2339, %v2818
  %v2820 = vpop.f32.mrb[0].mxu0
  %2821 = vmatprep.mubr.bf16.mxu0 %v1381
  %2822 = vmatmul.mubr.bf16.gmra.mrb[0].mxu0 %v1380
  %v2823 = vpop.f32.mrb[0].mxu0
  %v2824 = vadd.f32 %v2344, %v2823
  %v2825 = vpop.f32.mrb[0].mxu0
  %v2826 = vpop.f32.mrb[0].mxu0
  %v2827 = vadd.f32 %v2347, %v2826
  %v2828 = vpop.f32.mrb[0].mxu0
  %2829 = vmatprep.mubr.bf16.mxu0 %v1386
  %2830 = vmatmul.mubr.bf16.gmra.mrb[0].mxu0 %v1385
  %v2831 = vpop.f32.mrb[0].mxu0
  %v2832 = vadd.f32 %v2352, %v2831
  %v2833 = vpop.f32.mrb[0].mxu0
  %v2834 = vpop.f32.mrb[0].mxu0
  %v2835 = vadd.f32 %v2355, %v2834
  %v2836 = vpop.f32.mrb[0].mxu0
  %2837 = vmatprep.mubr.bf16.mxu0 %v1391
  %2838 = vmatmul.mubr.bf16.gmra.mrb[0].mxu0 %v1390
  %v2839 = vpop.f32.mrb[0].mxu0
  %v2840 = vadd.f32 %v2360, %v2839
  %v2841 = vpop.f32.mrb[0].mxu0
  %v2842 = vpop.f32.mrb[0].mxu0
  %v2843 = vadd.f32 %v2363, %v2842
  %v2844 = vpop.f32.mrb[0].mxu0
  %2845 = vmatprep.mubr.bf16.mxu0 %v1396
  %2846 = vmatmul.mubr.bf16.gmra.mrb[0].mxu0 %v1395
  %v2847 = vpop.f32.mrb[0].mxu0
  %v2848 = vadd.f32 %v2368, %v2847
  %v2849 = vpop.f32.mrb[0].mxu0
  %v2850 = vpop.f32.mrb[0].mxu0
  %v2851 = vadd.f32 %v2371, %v2850
  %v2852 = vpop.f32.mrb[0].mxu0
  %2853 = vmatprep.mubr.bf16.mxu0 %v1401
  %2854 = vmatmul.mubr.bf16.gmra.mrb[0].mxu0 %v1400
  %v2855 = vpop.f32.mrb[0].mxu0
  %v2856 = vadd.f32 %v2376, %v2855
  %v2857 = vpop.f32.mrb[0].mxu0
  %v2858 = vpop.f32.mrb[0].mxu0
  %v2859 = vadd.f32 %v2379, %v2858
  %v2860 = vpop.f32.mrb[0].mxu0
  %2861 = vmatprep.mubr.bf16.mxu0 %v1406
  %2862 = vmatmul.mubr.bf16.gmra.mrb[0].mxu0 %v1405
  %v2863 = vpop.f32.mrb[0].mxu0
  %v2864 = vadd.f32 %v2384, %v2863
  %v2865 = vpop.f32.mrb[0].mxu0
  %v2866 = vpop.f32.mrb[0].mxu0
  %v2867 = vadd.f32 %v2387, %v2866
  %v2868 = vpop.f32.mrb[0].mxu0
  %2869 = vmatprep.mubr.bf16.mxu0 %v1411
  %2870 = vmatmul.mubr.bf16.gmra.mrb[0].mxu0 %v1410
  %v2871 = vpop.f32.mrb[0].mxu0
  %v2872 = vadd.f32 %v2392, %v2871
  %v2873 = vpop.f32.mrb[0].mxu0
  %v2874 = vpop.f32.mrb[0].mxu0
  %v2875 = vadd.f32 %v2395, %v2874
  %v2876 = vpop.f32.mrb[0].mxu0
  %2877 = vmatprep.mubr.bf16.mxu0 %v1416
  %2878 = vmatmul.mubr.bf16.gmra.mrb[0].mxu0 %v1415
  %v2879 = vpop.f32.mrb[0].mxu0
  %v2880 = vadd.f32 %v2400, %v2879
  %v2881 = vpop.f32.mrb[0].mxu0
  %v2882 = vpop.f32.mrb[0].mxu0
  %v2883 = vadd.f32 %v2403, %v2882
  %v2884 = vpop.f32.mrb[0].mxu0
  %2885 = vmatprep.mubr.bf16.mxu0 %v1421
  %2886 = vmatmul.mubr.bf16.gmra.mrb[0].mxu0 %v1420
  %v2887 = vpop.f32.mrb[0].mxu0
  %v2888 = vadd.f32 %v2408, %v2887
  %v2889 = vpop.f32.mrb[0].mxu0
  %v2890 = vpop.f32.mrb[0].mxu0
  %v2891 = vadd.f32 %v2411, %v2890
  %v2892 = vpop.f32.mrb[0].mxu0
  %2893 = vmatprep.mubr.bf16.mxu0 %v1426
  %2894 = vmatmul.mubr.bf16.gmra.mrb[0].mxu0 %v1425
  %v2895 = vpop.f32.mrb[0].mxu0
  %v2896 = vadd.f32 %v2416, %v2895
  %v2897 = vpop.f32.mrb[0].mxu0
  %v2898 = vpop.f32.mrb[0].mxu0
  %v2899 = vadd.f32 %v2419, %v2898
  %v2900 = vpop.f32.mrb[0].mxu0
  %2901 = vmatprep.mubr.bf16.mxu0 %v1431
  %2902 = vmatmul.mubr.bf16.gmra.mrb[0].mxu0 %v1430
  %v2903 = vpop.f32.mrb[0].mxu0
  %v2904 = vadd.f32 %v2424, %v2903
  %v2905 = vpop.f32.mrb[0].mxu0
  %v2906 = vpop.f32.mrb[0].mxu0
  %v2907 = vadd.f32 %v2427, %v2906
  %v2908 = vpop.f32.mrb[0].mxu0
  %2909 = vmatprep.mubr.bf16.mxu0 %v1436
  %2910 = vmatmul.mubr.bf16.gmra.mrb[0].mxu0 %v1435
  %v2911 = vpop.f32.mrb[0].mxu0
  %v2912 = vadd.f32 %v2432, %v2911
  %v2913 = vpop.f32.mrb[0].mxu0
  %v2914 = vpop.f32.mrb[0].mxu0
  %v2915 = vadd.f32 %v2435, %v2914
  %v2916 = vpop.f32.mrb[0].mxu0
  %2917 = vmatprep.mubr.bf16.mxu0 %v1441
  %2918 = vmatmul.mubr.bf16.gmra.mrb[0].mxu0 %v1440
  %v2919 = vpop.f32.mrb[0].mxu0
  %v2920 = vadd.f32 %v2440, %v2919
  %v2921 = vpop.f32.mrb[0].mxu0
  %v2922 = vpop.f32.mrb[0].mxu0
  %v2923 = vadd.f32 %v2443, %v2922
  %v2924 = vpop.f32.mrb[0].mxu0
  %2925 = vmatprep.mubr.bf16.mxu0 %v1446
  %2926 = vmatmul.mubr.bf16.gmra.mrb[0].mxu0 %v1445
  %v2927 = vpop.f32.mrb[0].mxu0
  %v2928 = vadd.f32 %v2448, %v2927
  %v2929 = vpop.f32.mrb[0].mxu0
  %v2930 = vpop.f32.mrb[0].mxu0
  %v2931 = vadd.f32 %v2451, %v2930
  %v2932 = vpop.f32.mrb[0].mxu0
  %2933 = vmatprep.mubr.bf16.mxu0 %v1451
  %2934 = vmatmul.mubr.bf16.gmra.mrb[0].mxu0 %v1450
  %v2935 = vpop.f32.mrb[0].mxu0
  %v2936 = vadd.f32 %v2456, %v2935
  %v2937 = vpop.f32.mrb[0].mxu0
  %v2938 = vpop.f32.mrb[0].mxu0
  %v2939 = vadd.f32 %v2459, %v2938
  %v2940 = vpop.f32.mrb[0].mxu0
  %2941 = vmatprep.mubr.bf16.mxu0 %v1456
  %2942 = vmatmul.mubr.bf16.gmra.mrb[0].mxu0 %v1455
  %v2943 = vpop.f32.mrb[0].mxu0
  %v2944 = vadd.f32 %v2464, %v2943
  %v2945 = vpop.f32.mrb[0].mxu0
  %v2946 = vpop.f32.mrb[0].mxu0
  %v2947 = vadd.f32 %v2467, %v2946
  %v2948 = vpop.f32.mrb[0].mxu0
  %2949 = vmatprep.mubr.bf16.mxu0 %v1461
  %2950 = vmatmul.mubr.bf16.gmra.mrb[0].mxu0 %v1460
  %v2951 = vpop.f32.mrb[0].mxu0
  %v2952 = vadd.f32 %v2472, %v2951
  %v2953 = vpop.f32.mrb[0].mxu0
  %v2954 = vpop.f32.mrb[0].mxu0
  %v2955 = vadd.f32 %v2475, %v2954
  %v2956 = vpop.f32.mrb[0].mxu0
  %2957 = vmatprep.mubr.bf16.mxu0 %v1466
  %2958 = vmatmul.mubr.bf16.gmra.mrb[0].mxu0 %v1465
  %v2959 = vpop.f32.mrb[0].mxu0
  %v2960 = vadd.f32 %v2480, %v2959
  %v2961 = vpop.f32.mrb[0].mxu0
  %v2962 = vpop.f32.mrb[0].mxu0
  %v2963 = vadd.f32 %v2483, %v2962
  %v2964 = vpop.f32.mrb[0].mxu0
  %2965 = vmatprep.mubr.bf16.mxu0 %v1471
  %2966 = vmatmul.mubr.bf16.gmra.mrb[0].mxu0 %v1470
  %v2967 = vpop.f32.mrb[0].mxu0
  %v2968 = vadd.f32 %v2488, %v2967
  %v2969 = vpop.f32.mrb[0].mxu0
  %v2970 = vpop.f32.mrb[0].mxu0
  %v2971 = vadd.f32 %v2491, %v2970
  %v2972 = vpop.f32.mrb[0].mxu0
  %2973 = vmatprep.mubr.bf16.mxu0 %v1476
  %2974 = vmatmul.mubr.bf16.gmra.mrb[0].mxu0 %v1475
  %v2975 = vpop.f32.mrb[0].mxu0
  %v2976 = vadd.f32 %v2496, %v2975
  %v2977 = vpop.f32.mrb[0].mxu0
  %v2978 = vpop.f32.mrb[0].mxu0
  %v2979 = vadd.f32 %v2499, %v2978
  %v2980 = vpop.f32.mrb[0].mxu0
  %2981 = vmatprep.mubr.bf16.mxu0 %v1481
  %2982 = vmatmul.mubr.bf16.gmra.mrb[0].mxu0 %v1480
  %v2983 = vpop.f32.mrb[0].mxu0
  %v2984 = vadd.f32 %v2504, %v2983
  %v2985 = vpop.f32.mrb[0].mxu0
  %v2986 = vpop.f32.mrb[0].mxu0
  %v2987 = vadd.f32 %v2507, %v2986
  %v2988 = vpop.f32.mrb[0].mxu0
  %2989 = vmatprep.mubr.bf16.mxu0 %v1486
  %2990 = vmatmul.mubr.bf16.gmra.mrb[0].mxu0 %v1485
  %v2991 = vpop.f32.mrb[0].mxu0
  %v2992 = vadd.f32 %v2512, %v2991
  %v2993 = vpop.f32.mrb[0].mxu0
  %v2994 = vpop.f32.mrb[0].mxu0
  %v2995 = vadd.f32 %v2515, %v2994
  %v2996 = vpop.f32.mrb[0].mxu0
  %2997 = vmatprep.mubr.bf16.mxu0 %v1491
  %2998 = vmatmul.mubr.bf16.gmra.mrb[0].mxu0 %v1490
  %v2999 = vpop.f32.mrb[0].mxu0
  %v3000 = vadd.f32 %v2520, %v2999
  %v3001 = vpop.f32.mrb[0].mxu0
  %v3002 = vpop.f32.mrb[0].mxu0
  %v3003 = vadd.f32 %v2523, %v3002
  %v3004 = vpop.f32.mrb[0].mxu0
  %3005 = vmatprep.mubr.bf16.mxu0 %v1496
  %3006 = vmatmul.mubr.bf16.gmra.mrb[0].mxu0 %v1495
  %v3007 = vpop.f32.mrb[0].mxu0
  %v3008 = vadd.f32 %v2528, %v3007
  %v3009 = vpop.f32.mrb[0].mxu0
  %v3010 = vpop.f32.mrb[0].mxu0
  %v3011 = vadd.f32 %v2531, %v3010
  %v3012 = vpop.f32.mrb[0].mxu0
  %3013 = vmatprep.mubr.bf16.mxu0 %v1501
  %3014 = vmatmul.mubr.bf16.gmra.mrb[0].mxu0 %v1500
  %v3015 = vpop.f32.mrb[0].mxu0
  %v3016 = vadd.f32 %v2536, %v3015
  %v3017 = vpop.f32.mrb[0].mxu0
  %v3018 = vpop.f32.mrb[0].mxu0
  %v3019 = vadd.f32 %v2539, %v3018
  %v3020 = vpop.f32.mrb[0].mxu0
  %3021 = vmatprep.mubr.bf16.mxu0 %v1506
  %3022 = vmatmul.mubr.bf16.gmra.mrb[0].mxu0 %v1505
  %v3023 = vpop.f32.mrb[0].mxu0
  %v3024 = vadd.f32 %v2544, %v3023
  %v3025 = vpop.f32.mrb[0].mxu0
  %v3026 = vpop.f32.mrb[0].mxu0
  %v3027 = vadd.f32 %v2547, %v3026
  %v3028 = vpop.f32.mrb[0].mxu0
  %3029 = vmatprep.mubr.bf16.mxu0 %v1511
  %3030 = vmatmul.mubr.bf16.gmra.mrb[0].mxu0 %v1510
  %v3031 = vpop.f32.mrb[0].mxu0
  %v3032 = vadd.f32 %v2552, %v3031
  %v3033 = vpop.f32.mrb[0].mxu0
  %v3034 = vpop.f32.mrb[0].mxu0
  %v3035 = vadd.f32 %v2555, %v3034
  %v3036 = vpop.f32.mrb[0].mxu0
  %3037 = vmatprep.mubr.bf16.mxu0 %v1516
  %3038 = vmatmul.mubr.bf16.gmra.mrb[0].mxu0 %v1515
  %v3039 = vpop.f32.mrb[0].mxu0
  %v3040 = vadd.f32 %v2560, %v3039
  %v3041 = vpop.f32.mrb[0].mxu0
  %v3042 = vpop.f32.mrb[0].mxu0
  %v3043 = vadd.f32 %v2563, %v3042
  %v3044 = vpop.f32.mrb[0].mxu0
  %3045 = vmatprep.mubr.bf16.mxu0 %v1521
  %3046 = vmatmul.mubr.bf16.gmra.mrb[0].mxu0 %v1520
  %v3047 = vpop.f32.mrb[0].mxu0
  %v3048 = vadd.f32 %v2568, %v3047
  %v3049 = vpop.f32.mrb[0].mxu0
  %v3050 = vpop.f32.mrb[0].mxu0
  %v3051 = vadd.f32 %v2571, %v3050
  %v3052 = vpop.f32.mrb[0].mxu0
  %3053 = vmatprep.mubr.bf16.mxu0 %v1526
  %3054 = vmatmul.mubr.bf16.gmra.mrb[0].mxu0 %v1525
  %v3055 = vpop.f32.mrb[0].mxu0
  %v3056 = vadd.f32 %v2576, %v3055
  %v3057 = vpop.f32.mrb[0].mxu0
  %v3058 = vpop.f32.mrb[0].mxu0
  %v3059 = vadd.f32 %v2579, %v3058
  %v3060 = vpop.f32.mrb[0].mxu0
  %3061 = vmatprep.mubr.bf16.mxu0 %v1531
  %3062 = vmatmul.mubr.bf16.gmra.mrb[0].mxu0 %v1530
  %v3063 = vpop.f32.mrb[0].mxu0
  %v3064 = vadd.f32 %v2584, %v3063
  %v3065 = vpop.f32.mrb[0].mxu0
  %v3066 = vpop.f32.mrb[0].mxu0
  %v3067 = vadd.f32 %v2587, %v3066
  %v3068 = vpop.f32.mrb[0].mxu0
  %3069 = vmatprep.mubr.bf16.mxu0 %v1536
  %3070 = vmatmul.mubr.bf16.gmra.mrb[0].mxu0 %v1535
  %v3071 = vpop.f32.mrb[0].mxu0
  %v3072 = vadd.f32 %v2592, %v3071
  %v3073 = vpop.f32.mrb[0].mxu0
  %v3074 = vpop.f32.mrb[0].mxu0
  %v3075 = vadd.f32 %v2595, %v3074
  %v3076 = vpop.f32.mrb[0].mxu0
  %3077 = vmatprep.mubr.bf16.mxu0 %v1541
  %3078 = vmatmul.mubr.bf16.gmra.mrb[0].mxu0 %v1540
  %v3079 = vpop.f32.mrb[0].mxu0
  %v3080 = vadd.f32 %v2600, %v3079
  %v3081 = vpop.f32.mrb[0].mxu0
  %v3082 = vpop.f32.mrb[0].mxu0
  %v3083 = vadd.f32 %v2603, %v3082
  %v3084 = vpop.f32.mrb[0].mxu0
  %3085 = vmatprep.mubr.bf16.mxu0 %v1546
  %3086 = vmatmul.mubr.bf16.gmra.mrb[0].mxu0 %v1545
  %v3087 = vpop.f32.mrb[0].mxu0
  %v3088 = vadd.f32 %v2608, %v3087
  %v3089 = vpop.f32.mrb[0].mxu0
  %v3090 = vpop.f32.mrb[0].mxu0
  %v3091 = vadd.f32 %v2611, %v3090
  %v3092 = vpop.f32.mrb[0].mxu0
  %3093 = vmatprep.mubr.bf16.mxu0 %v1551
  %3094 = vmatmul.mubr.bf16.gmra.mrb[0].mxu0 %v1550
  %v3095 = vpop.f32.mrb[0].mxu0
  %v3096 = vadd.f32 %v2616, %v3095
  %v3097 = vpop.f32.mrb[0].mxu0
  %v3098 = vpop.f32.mrb[0].mxu0
  %v3099 = vadd.f32 %v2619, %v3098
  %v3100 = vpop.f32.mrb[0].mxu0
  %3101 = vmatprep.mubr.bf16.mxu0 %v1556
  %3102 = vmatmul.mubr.bf16.gmra.mrb[0].mxu0 %v1555
  %v3103 = vpop.f32.mrb[0].mxu0
  %v3104 = vadd.f32 %v2624, %v3103
  %v3105 = vpop.f32.mrb[0].mxu0
  %v3106 = vpop.f32.mrb[0].mxu0
  %v3107 = vadd.f32 %v2627, %v3106
  %v3108 = vpop.f32.mrb[0].mxu0
  %3109 = vmatprep.mubr.bf16.mxu0 %v1561
  %3110 = vmatmul.mubr.bf16.gmra.mrb[0].mxu0 %v1560
  %v3111 = vpop.f32.mrb[0].mxu0
  %v3112 = vadd.f32 %v2632, %v3111
  %v3113 = vpop.f32.mrb[0].mxu0
  %v3114 = vpop.f32.mrb[0].mxu0
  %v3115 = vadd.f32 %v2635, %v3114
  %v3116 = vpop.f32.mrb[0].mxu0
  %3117 = vmatprep.mubr.bf16.mxu0 %v1566
  %3118 = vmatmul.mubr.bf16.gmra.mrb[0].mxu0 %v1565
  %v3119 = vpop.f32.mrb[0].mxu0
  %v3120 = vadd.f32 %v2640, %v3119
  %v3121 = vpop.f32.mrb[0].mxu0
  %v3122 = vpop.f32.mrb[0].mxu0
  %v3123 = vadd.f32 %v2643, %v3122
  %v3124 = vpop.f32.mrb[0].mxu0
  %3125 = vmatprep.mubr.bf16.mxu0 %v1571
  %3126 = vmatmul.mubr.bf16.gmra.mrb[0].mxu0 %v1570
  %v3127 = vpop.f32.mrb[0].mxu0
  %v3128 = vadd.f32 %v2648, %v3127
  %v3129 = vpop.f32.mrb[0].mxu0
  %v3130 = vpop.f32.mrb[0].mxu0
  %v3131 = vadd.f32 %v2651, %v3130
  %v3132 = vpop.f32.mrb[0].mxu0
  %3133 = vmatprep.mubr.bf16.mxu0 %v1576
  %3134 = vmatmul.mubr.bf16.gmra.mrb[0].mxu0 %v1575
  %v3135 = vpop.f32.mrb[0].mxu0
  %v3136 = vadd.f32 %v2656, %v3135
  %v3137 = vpop.f32.mrb[0].mxu0
  %v3138 = vpop.f32.mrb[0].mxu0
  %v3139 = vadd.f32 %v2659, %v3138
  %v3140 = vpop.f32.mrb[0].mxu0
  %3141 = vmatprep.mubr.bf16.mxu0 %v1581
  %3142 = vmatmul.mubr.bf16.gmra.mrb[0].mxu0 %v1580
  %v3143 = vpop.f32.mrb[0].mxu0
  %v3144 = vadd.f32 %v2664, %v3143
  %v3145 = vpop.f32.mrb[0].mxu0
  %v3146 = vpop.f32.mrb[0].mxu0
  %v3147 = vadd.f32 %v2667, %v3146
  %v3148 = vpop.f32.mrb[0].mxu0
  %3149 = vmatprep.mubr.bf16.mxu0 %v1586
  %3150 = vmatmul.mubr.bf16.gmra.mrb[0].mxu0 %v1585
  %v3151 = vpop.f32.mrb[0].mxu0
  %v3152 = vadd.f32 %v2672, %v3151
  %v3153 = vpop.f32.mrb[0].mxu0
  %v3154 = vpop.f32.mrb[0].mxu0
  %v3155 = vpop.f32.mrb[0].mxu0
  %3156 = vdwg.mxu0
  %3157 = vmatprep.subr.bf16.mxu0 0
  %3158 = vmatpush1.bf16.msra.mxu0 %v1988
  %3159 = vmatprep.subr.bf16.mxu0 0
  %3160 = vmatpush1.bf16.msra.mxu0 %v1989
  %3161 = vmatprep.subr.bf16.mxu0 0
  %3162 = vmatpush1.bf16.msra.mxu0 %v1990
  %3163 = vmatprep.subr.bf16.mxu0 0
  %3164 = vmatpush1.bf16.msra.mxu0 %v1991
  %3165 = vmatprep.subr.bf16.mxu0 0
  %3166 = vmatpush1.bf16.msra.mxu0 0
  %3167 = vmatprep.subr.bf16.mxu0 0
  %3168 = vmatpush1.bf16.msra.mxu0 0
  %3169 = vmatprep.subr.bf16.mxu0 0
  %3170 = vmatpush1.bf16.msra.mxu0 0
  %3171 = vmatprep.subr.bf16.mxu0 0
  %3172 = vmatpush1.bf16.msra.mxu0 0
  %3173 = vmatprep.subr.bf16.mxu0 0
  %3174 = vmatpush1.bf16.msra.mxu0 0
  %3175 = vmatprep.subr.bf16.mxu0 0
  %3176 = vmatpush1.bf16.msra.mxu0 0
  %3177 = vmatprep.subr.bf16.mxu0 0
  %3178 = vmatpush1.bf16.msra.mxu0 0
  %3179 = vmatprep.subr.bf16.mxu0 0
  %3180 = vmatpush1.bf16.msra.mxu0 0
  %3181 = vmatprep.subr.bf16.mxu0 0
  %3182 = vmatpush1.bf16.msra.mxu0 0
  %3183 = vmatprep.subr.bf16.mxu0 0
  %3184 = vmatpush1.bf16.msra.mxu0 0
  %3185 = vmatprep.subr.bf16.mxu0 0
  %3186 = vmatpush1.bf16.msra.mxu0 0
  %3187 = vmatprep.subr.bf16.mxu0 0
  %3188 = vmatpush1.bf16.msra.mxu0 0
  %3189 = vmatprep.mubr.bf16.mxu0 0
  %3190 = vmatmul.mubr.bf16.gmra.mrb[0].mxu0 %v2030
  %v3191 = vpop.f32.mrb[0].mxu0
  %v3192 = vadd.f32 %v2712, %v3191
  %v3193 = vpop.f32.mrb[0].mxu0
  %v3194 = vpop.f32.mrb[0].mxu0
  %v3195 = vadd.f32 %v2715, %v3194
  %v3196 = vpop.f32.mrb[0].mxu0
  %3197 = vmatprep.mubr.bf16.mxu0 0
  %3198 = vmatmul.mubr.bf16.gmra.mrb[0].mxu0 %v2033
  %v3199 = vpop.f32.mrb[0].mxu0
  %v3200 = vadd.f32 %v2720, %v3199
  %v3201 = vpop.f32.mrb[0].mxu0
  %v3202 = vpop.f32.mrb[0].mxu0
  %v3203 = vadd.f32 %v2723, %v3202
  %v3204 = vpop.f32.mrb[0].mxu0
  %3205 = vmatprep.mubr.bf16.mxu0 0
  %3206 = vmatmul.mubr.bf16.gmra.mrb[0].mxu0 %v2036
  %v3207 = vpop.f32.mrb[0].mxu0
  %v3208 = vadd.f32 %v2728, %v3207
  %v3209 = vpop.f32.mrb[0].mxu0
  %v3210 = vpop.f32.mrb[0].mxu0
  %v3211 = vadd.f32 %v2731, %v3210
  %v3212 = vpop.f32.mrb[0].mxu0
  %3213 = vmatprep.mubr.bf16.mxu0 0
  %3214 = vmatmul.mubr.bf16.gmra.mrb[0].mxu0 %v2039
  %v3215 = vpop.f32.mrb[0].mxu0
  %v3216 = vadd.f32 %v2736, %v3215
  %v3217 = vpop.f32.mrb[0].mxu0
  %v3218 = vpop.f32.mrb[0].mxu0
  %v3219 = vadd.f32 %v2739, %v3218
  %v3220 = vpop.f32.mrb[0].mxu0
  %3221 = vmatprep.mubr.bf16.mxu0 0
  %3222 = vmatmul.mubr.bf16.gmra.mrb[0].mxu0 %v2042
  %v3223 = vpop.f32.mrb[0].mxu0
  %v3224 = vadd.f32 %v2744, %v3223
  %v3225 = vpop.f32.mrb[0].mxu0
  %v3226 = vpop.f32.mrb[0].mxu0
  %v3227 = vadd.f32 %v2747, %v3226
  %v3228 = vpop.f32.mrb[0].mxu0
  %3229 = vmatprep.mubr.bf16.mxu0 0
  %3230 = vmatmul.mubr.bf16.gmra.mrb[0].mxu0 %v2045
  %v3231 = vpop.f32.mrb[0].mxu0
  %v3232 = vadd.f32 %v2752, %v3231
  %v3233 = vpop.f32.mrb[0].mxu0
  %v3234 = vpop.f32.mrb[0].mxu0
  %v3235 = vadd.f32 %v2755, %v3234
  %v3236 = vpop.f32.mrb[0].mxu0
  %3237 = vmatprep.mubr.bf16.mxu0 0
  %3238 = vmatmul.mubr.bf16.gmra.mrb[0].mxu0 %v2048
  %v3239 = vpop.f32.mrb[0].mxu0
  %v3240 = vadd.f32 %v2760, %v3239
  %v3241 = vpop.f32.mrb[0].mxu0
  %v3242 = vpop.f32.mrb[0].mxu0
  %v3243 = vadd.f32 %v2763, %v3242
  %v3244 = vpop.f32.mrb[0].mxu0
  %3245 = vmatprep.mubr.bf16.mxu0 0
  %3246 = vmatmul.mubr.bf16.gmra.mrb[0].mxu0 %v2051
  %v3247 = vpop.f32.mrb[0].mxu0
  %v3248 = vadd.f32 %v2768, %v3247
  %v3249 = vpop.f32.mrb[0].mxu0
  %v3250 = vpop.f32.mrb[0].mxu0
  %v3251 = vadd.f32 %v2771, %v3250
  %v3252 = vpop.f32.mrb[0].mxu0
  %3253 = vmatprep.mubr.bf16.mxu0 0
  %3254 = vmatmul.mubr.bf16.gmra.mrb[0].mxu0 %v2054
  %v3255 = vpop.f32.mrb[0].mxu0
  %v3256 = vadd.f32 %v2776, %v3255
  %v3257 = vpop.f32.mrb[0].mxu0
  %v3258 = vpop.f32.mrb[0].mxu0
  %v3259 = vadd.f32 %v2779, %v3258
  %v3260 = vpop.f32.mrb[0].mxu0
  %3261 = vmatprep.mubr.bf16.mxu0 0
  %3262 = vmatmul.mubr.bf16.gmra.mrb[0].mxu0 %v2057
  %v3263 = vpop.f32.mrb[0].mxu0
  %v3264 = vadd.f32 %v2784, %v3263
  %v3265 = vpop.f32.mrb[0].mxu0
  %v3266 = vpop.f32.mrb[0].mxu0
  %v3267 = vadd.f32 %v2787, %v3266
  %v3268 = vpop.f32.mrb[0].mxu0
  %3269 = vmatprep.mubr.bf16.mxu0 0
  %3270 = vmatmul.mubr.bf16.gmra.mrb[0].mxu0 %v2060
  %v3271 = vpop.f32.mrb[0].mxu0
  %v3272 = vadd.f32 %v2792, %v3271
  %v3273 = vpop.f32.mrb[0].mxu0
  %v3274 = vpop.f32.mrb[0].mxu0
  %v3275 = vadd.f32 %v2795, %v3274
  %v3276 = vpop.f32.mrb[0].mxu0
  %3277 = vmatprep.mubr.bf16.mxu0 0
  %3278 = vmatmul.mubr.bf16.gmra.mrb[0].mxu0 %v2063
  %v3279 = vpop.f32.mrb[0].mxu0
  %v3280 = vadd.f32 %v2800, %v3279
  %v3281 = vpop.f32.mrb[0].mxu0
  %v3282 = vpop.f32.mrb[0].mxu0
  %v3283 = vadd.f32 %v2803, %v3282
  %v3284 = vpop.f32.mrb[0].mxu0
  %3285 = vmatprep.mubr.bf16.mxu0 0
  %3286 = vmatmul.mubr.bf16.gmra.mrb[0].mxu0 %v2066
  %v3287 = vpop.f32.mrb[0].mxu0
  %v3288 = vadd.f32 %v2808, %v3287
  %v3289 = vpop.f32.mrb[0].mxu0
  %v3290 = vpop.f32.mrb[0].mxu0
  %v3291 = vadd.f32 %v2811, %v3290
  %v3292 = vpop.f32.mrb[0].mxu0
  %3293 = vmatprep.mubr.bf16.mxu0 0
  %3294 = vmatmul.mubr.bf16.gmra.mrb[0].mxu0 %v2069
  %v3295 = vpop.f32.mrb[0].mxu0
  %v3296 = vadd.f32 %v2816, %v3295
  %v3297 = vpop.f32.mrb[0].mxu0
  %v3298 = vpop.f32.mrb[0].mxu0
  %v3299 = vadd.f32 %v2819, %v3298
  %v3300 = vpop.f32.mrb[0].mxu0
  %3301 = vmatprep.mubr.bf16.mxu0 0
  %3302 = vmatmul.mubr.bf16.gmra.mrb[0].mxu0 %v2072
  %v3303 = vpop.f32.mrb[0].mxu0
  %v3304 = vadd.f32 %v2824, %v3303
  %v3305 = vpop.f32.mrb[0].mxu0
  %v3306 = vpop.f32.mrb[0].mxu0
  %v3307 = vadd.f32 %v2827, %v3306
  %v3308 = vpop.f32.mrb[0].mxu0
  %3309 = vmatprep.mubr.bf16.mxu0 0
  %3310 = vmatmul.mubr.bf16.gmra.mrb[0].mxu0 %v2075
  %v3311 = vpop.f32.mrb[0].mxu0
  %v3312 = vadd.f32 %v2832, %v3311
  %v3313 = vpop.f32.mrb[0].mxu0
  %v3314 = vpop.f32.mrb[0].mxu0
  %v3315 = vadd.f32 %v2835, %v3314
  %v3316 = vpop.f32.mrb[0].mxu0
  %3317 = vmatprep.mubr.bf16.mxu0 0
  %3318 = vmatmul.mubr.bf16.gmra.mrb[0].mxu0 %v2078
  %v3319 = vpop.f32.mrb[0].mxu0
  %v3320 = vadd.f32 %v2840, %v3319
  %v3321 = vpop.f32.mrb[0].mxu0
  %v3322 = vpop.f32.mrb[0].mxu0
  %v3323 = vadd.f32 %v2843, %v3322
  %v3324 = vpop.f32.mrb[0].mxu0
  %3325 = vmatprep.mubr.bf16.mxu0 0
  %3326 = vmatmul.mubr.bf16.gmra.mrb[0].mxu0 %v2081
  %v3327 = vpop.f32.mrb[0].mxu0
  %v3328 = vadd.f32 %v2848, %v3327
  %v3329 = vpop.f32.mrb[0].mxu0
  %v3330 = vpop.f32.mrb[0].mxu0
  %v3331 = vadd.f32 %v2851, %v3330
  %v3332 = vpop.f32.mrb[0].mxu0
  %3333 = vmatprep.mubr.bf16.mxu0 0
  %3334 = vmatmul.mubr.bf16.gmra.mrb[0].mxu0 %v2084
  %v3335 = vpop.f32.mrb[0].mxu0
  %v3336 = vadd.f32 %v2856, %v3335
  %v3337 = vpop.f32.mrb[0].mxu0
  %v3338 = vpop.f32.mrb[0].mxu0
  %v3339 = vadd.f32 %v2859, %v3338
  %v3340 = vpop.f32.mrb[0].mxu0
  %3341 = vmatprep.mubr.bf16.mxu0 0
  %3342 = vmatmul.mubr.bf16.gmra.mrb[0].mxu0 %v2087
  %v3343 = vpop.f32.mrb[0].mxu0
  %v3344 = vadd.f32 %v2864, %v3343
  %v3345 = vpop.f32.mrb[0].mxu0
  %v3346 = vpop.f32.mrb[0].mxu0
  %v3347 = vadd.f32 %v2867, %v3346
  %v3348 = vpop.f32.mrb[0].mxu0
  %3349 = vmatprep.mubr.bf16.mxu0 0
  %3350 = vmatmul.mubr.bf16.gmra.mrb[0].mxu0 %v2090
  %v3351 = vpop.f32.mrb[0].mxu0
  %v3352 = vadd.f32 %v2872, %v3351
  %v3353 = vpop.f32.mrb[0].mxu0
  %v3354 = vpop.f32.mrb[0].mxu0
  %v3355 = vadd.f32 %v2875, %v3354
  %v3356 = vpop.f32.mrb[0].mxu0
  %3357 = vmatprep.mubr.bf16.mxu0 0
  %3358 = vmatmul.mubr.bf16.gmra.mrb[0].mxu0 %v2093
  %v3359 = vpop.f32.mrb[0].mxu0
  %v3360 = vadd.f32 %v2880, %v3359
  %v3361 = vpop.f32.mrb[0].mxu0
  %v3362 = vpop.f32.mrb[0].mxu0
  %v3363 = vadd.f32 %v2883, %v3362
  %v3364 = vpop.f32.mrb[0].mxu0
  %3365 = vmatprep.mubr.bf16.mxu0 0
  %3366 = vmatmul.mubr.bf16.gmra.mrb[0].mxu0 %v2096
  %v3367 = vpop.f32.mrb[0].mxu0
  %v3368 = vadd.f32 %v2888, %v3367
  %v3369 = vpop.f32.mrb[0].mxu0
  %v3370 = vpop.f32.mrb[0].mxu0
  %v3371 = vadd.f32 %v2891, %v3370
  %v3372 = vpop.f32.mrb[0].mxu0
  %3373 = vmatprep.mubr.bf16.mxu0 0
  %3374 = vmatmul.mubr.bf16.gmra.mrb[0].mxu0 %v2099
  %v3375 = vpop.f32.mrb[0].mxu0
  %v3376 = vadd.f32 %v2896, %v3375
  %v3377 = vpop.f32.mrb[0].mxu0
  %v3378 = vpop.f32.mrb[0].mxu0
  %v3379 = vadd.f32 %v2899, %v3378
  %v3380 = vpop.f32.mrb[0].mxu0
  %3381 = vmatprep.mubr.bf16.mxu0 0
  %3382 = vmatmul.mubr.bf16.gmra.mrb[0].mxu0 %v2102
  %v3383 = vpop.f32.mrb[0].mxu0
  %v3384 = vadd.f32 %v2904, %v3383
  %v3385 = vpop.f32.mrb[0].mxu0
  %v3386 = vpop.f32.mrb[0].mxu0
  %v3387 = vadd.f32 %v2907, %v3386
  %v3388 = vpop.f32.mrb[0].mxu0
  %3389 = vmatprep.mubr.bf16.mxu0 0
  %3390 = vmatmul.mubr.bf16.gmra.mrb[0].mxu0 %v2105
  %v3391 = vpop.f32.mrb[0].mxu0
  %v3392 = vadd.f32 %v2912, %v3391
  %v3393 = vpop.f32.mrb[0].mxu0
  %v3394 = vpop.f32.mrb[0].mxu0
  %v3395 = vadd.f32 %v2915, %v3394
  %v3396 = vpop.f32.mrb[0].mxu0
  %3397 = vmatprep.mubr.bf16.mxu0 0
  %3398 = vmatmul.mubr.bf16.gmra.mrb[0].mxu0 %v2108
  %v3399 = vpop.f32.mrb[0].mxu0
  %v3400 = vadd.f32 %v2920, %v3399
  %v3401 = vpop.f32.mrb[0].mxu0
  %v3402 = vpop.f32.mrb[0].mxu0
  %v3403 = vadd.f32 %v2923, %v3402
  %v3404 = vpop.f32.mrb[0].mxu0
  %3405 = vmatprep.mubr.bf16.mxu0 0
  %3406 = vmatmul.mubr.bf16.gmra.mrb[0].mxu0 %v2111
  %v3407 = vpop.f32.mrb[0].mxu0
  %v3408 = vadd.f32 %v2928, %v3407
  %v3409 = vpop.f32.mrb[0].mxu0
  %v3410 = vpop.f32.mrb[0].mxu0
  %v3411 = vadd.f32 %v2931, %v3410
  %v3412 = vpop.f32.mrb[0].mxu0
  %3413 = vmatprep.mubr.bf16.mxu0 0
  %3414 = vmatmul.mubr.bf16.gmra.mrb[0].mxu0 %v2114
  %v3415 = vpop.f32.mrb[0].mxu0
  %v3416 = vadd.f32 %v2936, %v3415
  %v3417 = vpop.f32.mrb[0].mxu0
  %v3418 = vpop.f32.mrb[0].mxu0
  %v3419 = vadd.f32 %v2939, %v3418
  %v3420 = vpop.f32.mrb[0].mxu0
  %3421 = vmatprep.mubr.bf16.mxu0 0
  %3422 = vmatmul.mubr.bf16.gmra.mrb[0].mxu0 %v2117
  %v3423 = vpop.f32.mrb[0].mxu0
  %v3424 = vadd.f32 %v2944, %v3423
  %v3425 = vpop.f32.mrb[0].mxu0
  %v3426 = vpop.f32.mrb[0].mxu0
  %v3427 = vadd.f32 %v2947, %v3426
  %v3428 = vpop.f32.mrb[0].mxu0
  %3429 = vmatprep.mubr.bf16.mxu0 0
  %3430 = vmatmul.mubr.bf16.gmra.mrb[0].mxu0 %v2120
  %v3431 = vpop.f32.mrb[0].mxu0
  %v3432 = vadd.f32 %v2952, %v3431
  %v3433 = vpop.f32.mrb[0].mxu0
  %v3434 = vpop.f32.mrb[0].mxu0
  %v3435 = vadd.f32 %v2955, %v3434
  %v3436 = vpop.f32.mrb[0].mxu0
  %3437 = vmatprep.mubr.bf16.mxu0 0
  %3438 = vmatmul.mubr.bf16.gmra.mrb[0].mxu0 %v2123
  %v3439 = vpop.f32.mrb[0].mxu0
  %v3440 = vadd.f32 %v2960, %v3439
  %v3441 = vpop.f32.mrb[0].mxu0
  %v3442 = vpop.f32.mrb[0].mxu0
  %v3443 = vadd.f32 %v2963, %v3442
  %v3444 = vpop.f32.mrb[0].mxu0
  %3445 = vmatprep.mubr.bf16.mxu0 0
  %3446 = vmatmul.mubr.bf16.gmra.mrb[0].mxu0 %v2126
  %v3447 = vpop.f32.mrb[0].mxu0
  %v3448 = vadd.f32 %v2968, %v3447
  %v3449 = vpop.f32.mrb[0].mxu0
  %v3450 = vpop.f32.mrb[0].mxu0
  %v3451 = vadd.f32 %v2971, %v3450
  %v3452 = vpop.f32.mrb[0].mxu0
  %3453 = vmatprep.mubr.bf16.mxu0 0
  %3454 = vmatmul.mubr.bf16.gmra.mrb[0].mxu0 %v2129
  %v3455 = vpop.f32.mrb[0].mxu0
  %v3456 = vadd.f32 %v2976, %v3455
  %v3457 = vpop.f32.mrb[0].mxu0
  %v3458 = vpop.f32.mrb[0].mxu0
  %v3459 = vadd.f32 %v2979, %v3458
  %v3460 = vpop.f32.mrb[0].mxu0
  %3461 = vmatprep.mubr.bf16.mxu0 0
  %3462 = vmatmul.mubr.bf16.gmra.mrb[0].mxu0 %v2132
  %v3463 = vpop.f32.mrb[0].mxu0
  %v3464 = vadd.f32 %v2984, %v3463
  %v3465 = vpop.f32.mrb[0].mxu0
  %v3466 = vpop.f32.mrb[0].mxu0
  %v3467 = vadd.f32 %v2987, %v3466
  %v3468 = vpop.f32.mrb[0].mxu0
  %3469 = vmatprep.mubr.bf16.mxu0 0
  %3470 = vmatmul.mubr.bf16.gmra.mrb[0].mxu0 %v2135
  %v3471 = vpop.f32.mrb[0].mxu0
  %v3472 = vadd.f32 %v2992, %v3471
  %v3473 = vpop.f32.mrb[0].mxu0
  %v3474 = vpop.f32.mrb[0].mxu0
  %v3475 = vadd.f32 %v2995, %v3474
  %v3476 = vpop.f32.mrb[0].mxu0
  %3477 = vmatprep.mubr.bf16.mxu0 0
  %3478 = vmatmul.mubr.bf16.gmra.mrb[0].mxu0 %v2138
  %v3479 = vpop.f32.mrb[0].mxu0
  %v3480 = vadd.f32 %v3000, %v3479
  %v3481 = vpop.f32.mrb[0].mxu0
  %v3482 = vpop.f32.mrb[0].mxu0
  %v3483 = vadd.f32 %v3003, %v3482
  %v3484 = vpop.f32.mrb[0].mxu0
  %3485 = vmatprep.mubr.bf16.mxu0 0
  %3486 = vmatmul.mubr.bf16.gmra.mrb[0].mxu0 %v2141
  %v3487 = vpop.f32.mrb[0].mxu0
  %v3488 = vadd.f32 %v3008, %v3487
  %v3489 = vpop.f32.mrb[0].mxu0
  %v3490 = vpop.f32.mrb[0].mxu0
  %v3491 = vadd.f32 %v3011, %v3490
  %v3492 = vpop.f32.mrb[0].mxu0
  %3493 = vmatprep.mubr.bf16.mxu0 0
  %3494 = vmatmul.mubr.bf16.gmra.mrb[0].mxu0 %v2144
  %v3495 = vpop.f32.mrb[0].mxu0
  %v3496 = vadd.f32 %v3016, %v3495
  %v3497 = vpop.f32.mrb[0].mxu0
  %v3498 = vpop.f32.mrb[0].mxu0
  %v3499 = vadd.f32 %v3019, %v3498
  %v3500 = vpop.f32.mrb[0].mxu0
  %3501 = vmatprep.mubr.bf16.mxu0 0
  %3502 = vmatmul.mubr.bf16.gmra.mrb[0].mxu0 %v2147
  %v3503 = vpop.f32.mrb[0].mxu0
  %v3504 = vadd.f32 %v3024, %v3503
  %v3505 = vpop.f32.mrb[0].mxu0
  %v3506 = vpop.f32.mrb[0].mxu0
  %v3507 = vadd.f32 %v3027, %v3506
  %v3508 = vpop.f32.mrb[0].mxu0
  %3509 = vmatprep.mubr.bf16.mxu0 0
  %3510 = vmatmul.mubr.bf16.gmra.mrb[0].mxu0 %v2150
  %v3511 = vpop.f32.mrb[0].mxu0
  %v3512 = vadd.f32 %v3032, %v3511
  %v3513 = vpop.f32.mrb[0].mxu0
  %v3514 = vpop.f32.mrb[0].mxu0
  %v3515 = vadd.f32 %v3035, %v3514
  %v3516 = vpop.f32.mrb[0].mxu0
  %3517 = vmatprep.mubr.bf16.mxu0 0
  %3518 = vmatmul.mubr.bf16.gmra.mrb[0].mxu0 %v2153
  %v3519 = vpop.f32.mrb[0].mxu0
  %v3520 = vadd.f32 %v3040, %v3519
  %v3521 = vpop.f32.mrb[0].mxu0
  %v3522 = vpop.f32.mrb[0].mxu0
  %v3523 = vadd.f32 %v3043, %v3522
  %v3524 = vpop.f32.mrb[0].mxu0
  %3525 = vmatprep.mubr.bf16.mxu0 0
  %3526 = vmatmul.mubr.bf16.gmra.mrb[0].mxu0 %v2156
  %v3527 = vpop.f32.mrb[0].mxu0
  %v3528 = vadd.f32 %v3048, %v3527
  %v3529 = vpop.f32.mrb[0].mxu0
  %v3530 = vpop.f32.mrb[0].mxu0
  %v3531 = vadd.f32 %v3051, %v3530
  %v3532 = vpop.f32.mrb[0].mxu0
  %3533 = vmatprep.mubr.bf16.mxu0 0
  %3534 = vmatmul.mubr.bf16.gmra.mrb[0].mxu0 %v2159
  %v3535 = vpop.f32.mrb[0].mxu0
  %v3536 = vadd.f32 %v3056, %v3535
  %v3537 = vpop.f32.mrb[0].mxu0
  %v3538 = vpop.f32.mrb[0].mxu0
  %v3539 = vadd.f32 %v3059, %v3538
  %v3540 = vpop.f32.mrb[0].mxu0
  %3541 = vmatprep.mubr.bf16.mxu0 0
  %3542 = vmatmul.mubr.bf16.gmra.mrb[0].mxu0 %v2162
  %v3543 = vpop.f32.mrb[0].mxu0
  %v3544 = vadd.f32 %v3064, %v3543
  %v3545 = vpop.f32.mrb[0].mxu0
  %v3546 = vpop.f32.mrb[0].mxu0
  %v3547 = vadd.f32 %v3067, %v3546
  %v3548 = vpop.f32.mrb[0].mxu0
  %3549 = vmatprep.mubr.bf16.mxu0 0
  %3550 = vmatmul.mubr.bf16.gmra.mrb[0].mxu0 %v2165
  %v3551 = vpop.f32.mrb[0].mxu0
  %v3552 = vadd.f32 %v3072, %v3551
  %v3553 = vpop.f32.mrb[0].mxu0
  %v3554 = vpop.f32.mrb[0].mxu0
  %v3555 = vadd.f32 %v3075, %v3554
  %v3556 = vpop.f32.mrb[0].mxu0
  %3557 = vmatprep.mubr.bf16.mxu0 0
  %3558 = vmatmul.mubr.bf16.gmra.mrb[0].mxu0 %v2168
  %v3559 = vpop.f32.mrb[0].mxu0
  %v3560 = vadd.f32 %v3080, %v3559
  %v3561 = vpop.f32.mrb[0].mxu0
  %v3562 = vpop.f32.mrb[0].mxu0
  %v3563 = vadd.f32 %v3083, %v3562
  %v3564 = vpop.f32.mrb[0].mxu0
  %3565 = vmatprep.mubr.bf16.mxu0 0
  %3566 = vmatmul.mubr.bf16.gmra.mrb[0].mxu0 %v2171
  %v3567 = vpop.f32.mrb[0].mxu0
  %v3568 = vadd.f32 %v3088, %v3567
  %v3569 = vpop.f32.mrb[0].mxu0
  %v3570 = vpop.f32.mrb[0].mxu0
  %v3571 = vadd.f32 %v3091, %v3570
  %v3572 = vpop.f32.mrb[0].mxu0
  %3573 = vmatprep.mubr.bf16.mxu0 0
  %3574 = vmatmul.mubr.bf16.gmra.mrb[0].mxu0 %v2174
  %v3575 = vpop.f32.mrb[0].mxu0
  %v3576 = vadd.f32 %v3096, %v3575
  %v3577 = vpop.f32.mrb[0].mxu0
  %v3578 = vpop.f32.mrb[0].mxu0
  %v3579 = vadd.f32 %v3099, %v3578
  %v3580 = vpop.f32.mrb[0].mxu0
  %3581 = vmatprep.mubr.bf16.mxu0 0
  %3582 = vmatmul.mubr.bf16.gmra.mrb[0].mxu0 %v2177
  %v3583 = vpop.f32.mrb[0].mxu0
  %v3584 = vadd.f32 %v3104, %v3583
  %v3585 = vpop.f32.mrb[0].mxu0
  %v3586 = vpop.f32.mrb[0].mxu0
  %v3587 = vadd.f32 %v3107, %v3586
  %v3588 = vpop.f32.mrb[0].mxu0
  %3589 = vmatprep.mubr.bf16.mxu0 0
  %3590 = vmatmul.mubr.bf16.gmra.mrb[0].mxu0 %v2180
  %v3591 = vpop.f32.mrb[0].mxu0
  %v3592 = vadd.f32 %v3112, %v3591
  %v3593 = vpop.f32.mrb[0].mxu0
  %v3594 = vpop.f32.mrb[0].mxu0
  %v3595 = vadd.f32 %v3115, %v3594
  %v3596 = vpop.f32.mrb[0].mxu0
  %3597 = vmatprep.mubr.bf16.mxu0 0
  %3598 = vmatmul.mubr.bf16.gmra.mrb[0].mxu0 %v2183
  %v3599 = vpop.f32.mrb[0].mxu0
  %v3600 = vadd.f32 %v3120, %v3599
  %v3601 = vpop.f32.mrb[0].mxu0
  %v3602 = vpop.f32.mrb[0].mxu0
  %v3603 = vadd.f32 %v3123, %v3602
  %v3604 = vpop.f32.mrb[0].mxu0
  %3605 = vmatprep.mubr.bf16.mxu0 0
  %3606 = vmatmul.mubr.bf16.gmra.mrb[0].mxu0 %v2186
  %v3607 = vpop.f32.mrb[0].mxu0
  %v3608 = vadd.f32 %v3128, %v3607
  %v3609 = vpop.f32.mrb[0].mxu0
  %v3610 = vpop.f32.mrb[0].mxu0
  %v3611 = vadd.f32 %v3131, %v3610
  %v3612 = vpop.f32.mrb[0].mxu0
  %3613 = vmatprep.mubr.bf16.mxu0 0
  %3614 = vmatmul.mubr.bf16.gmra.mrb[0].mxu0 %v2189
  %v3615 = vpop.f32.mrb[0].mxu0
  %v3616 = vadd.f32 %v3136, %v3615
  %v3617 = vpop.f32.mrb[0].mxu0
  %v3618 = vpop.f32.mrb[0].mxu0
  %v3619 = vadd.f32 %v3139, %v3618
  %v3620 = vpop.f32.mrb[0].mxu0
  %3621 = vmatprep.mubr.bf16.mxu0 0
  %3622 = vmatmul.mubr.bf16.gmra.mrb[0].mxu0 %v2192
  %v3623 = vpop.f32.mrb[0].mxu0
  %v3624 = vadd.f32 %v3144, %v3623
  %v3625 = vpop.f32.mrb[0].mxu0
  %v3626 = vpop.f32.mrb[0].mxu0
  %v3627 = vadd.f32 %v3147, %v3626
  %v3628 = vpop.f32.mrb[0].mxu0
  %3629 = vmatprep.mubr.bf16.mxu0 0
  %3630 = vmatmul.mubr.bf16.gmra.mrb[0].mxu0 %v2195
  %v3631 = vpop.f32.mrb[0].mxu0
  %v3632 = vadd.f32 %v3152, %v3631
  %v3633 = vpop.f32.mrb[0].mxu0
  %v3634 = vpop.f32.mrb[0].mxu0
  %v3635 = vpop.f32.mrb[0].mxu0
  %3636 = vdwg.mxu0
  %vm3637 = vcmask 64512
  %v3638 = vsel %vm3637, %v3192, 0.0
  %v3639 = vsel %vm3637, %v3195, 0.0
  %v3640 = vadd.f32 %v3638, %v3639
  %v3641 = vsel %vm3637, %v3200, 0.0
  %v3642 = vadd.f32 %v3640, %v3641
  %v3643 = vsel %vm3637, %v3203, 0.0
  %v3644 = vadd.f32 %v3642, %v3643
  %v3645 = vsel %vm3637, %v3208, 0.0
  %v3646 = vadd.f32 %v3644, %v3645
  %v3647 = vsel %vm3637, %v3211, 0.0
  %v3648 = vadd.f32 %v3646, %v3647
  %v3649 = vsel %vm3637, %v3216, 0.0
  %v3650 = vadd.f32 %v3648, %v3649
  %v3651 = vsel %vm3637, %v3219, 0.0
  %v3652 = vadd.f32 %v3650, %v3651
  %v3653 = vsel %vm3637, %v3224, 0.0
  %v3654 = vadd.f32 %v3652, %v3653
  %v3655 = vsel %vm3637, %v3227, 0.0
  %v3656 = vadd.f32 %v3654, %v3655
  %v3657 = vsel %vm3637, %v3232, 0.0
  %v3658 = vadd.f32 %v3656, %v3657
  %v3659 = vsel %vm3637, %v3235, 0.0
  %v3660 = vadd.f32 %v3658, %v3659
  %v3661 = vsel %vm3637, %v3240, 0.0
  %v3662 = vadd.f32 %v3660, %v3661
  %v3663 = vsel %vm3637, %v3243, 0.0
  %v3664 = vadd.f32 %v3662, %v3663
  %v3665 = vsel %vm3637, %v3248, 0.0
  %v3666 = vadd.f32 %v3664, %v3665
  %v3667 = vsel %vm3637, %v3251, 0.0
  %v3668 = vadd.f32 %v3666, %v3667
  %v3669 = vsel %vm3637, %v3256, 0.0
  %v3670 = vadd.f32 %v3668, %v3669
  %v3671 = vsel %vm3637, %v3259, 0.0
  %v3672 = vadd.f32 %v3670, %v3671
  %v3673 = vsel %vm3637, %v3264, 0.0
  %v3674 = vadd.f32 %v3672, %v3673
  %v3675 = vsel %vm3637, %v3267, 0.0
  %v3676 = vadd.f32 %v3674, %v3675
  %v3677 = vsel %vm3637, %v3272, 0.0
  %v3678 = vadd.f32 %v3676, %v3677
  %v3679 = vsel %vm3637, %v3275, 0.0
  %v3680 = vadd.f32 %v3678, %v3679
  %v3681 = vsel %vm3637, %v3280, 0.0
  %v3682 = vadd.f32 %v3680, %v3681
  %v3683 = vsel %vm3637, %v3283, 0.0
  %v3684 = vadd.f32 %v3682, %v3683
  %v3685 = vsel %vm3637, %v3288, 0.0
  %v3686 = vadd.f32 %v3684, %v3685
  %v3687 = vsel %vm3637, %v3291, 0.0
  %v3688 = vadd.f32 %v3686, %v3687
  %v3689 = vsel %vm3637, %v3296, 0.0
  %v3690 = vadd.f32 %v3688, %v3689
  %v3691 = vsel %vm3637, %v3299, 0.0
  %v3692 = vadd.f32 %v3690, %v3691
  %v3693 = vsel %vm3637, %v3304, 0.0
  %v3694 = vadd.f32 %v3692, %v3693
  %v3695 = vsel %vm3637, %v3307, 0.0
  %v3696 = vadd.f32 %v3694, %v3695
  %v3697 = vsel %vm3637, %v3312, 0.0
  %v3698 = vadd.f32 %v3696, %v3697
  %v3699 = vsel %vm3637, %v3315, 0.0
  %v3700 = vadd.f32 %v3698, %v3699
  %v3701 = vsel %vm3637, %v3320, 0.0
  %v3702 = vadd.f32 %v3700, %v3701
  %v3703 = vsel %vm3637, %v3323, 0.0
  %v3704 = vadd.f32 %v3702, %v3703
  %v3705 = vsel %vm3637, %v3328, 0.0
  %v3706 = vadd.f32 %v3704, %v3705
  %v3707 = vsel %vm3637, %v3331, 0.0
  %v3708 = vadd.f32 %v3706, %v3707
  %v3709 = vsel %vm3637, %v3336, 0.0
  %v3710 = vadd.f32 %v3708, %v3709
  %v3711 = vsel %vm3637, %v3339, 0.0
  %v3712 = vadd.f32 %v3710, %v3711
  %v3713 = vsel %vm3637, %v3344, 0.0
  %v3714 = vadd.f32 %v3712, %v3713
  %v3715 = vsel %vm3637, %v3347, 0.0
  %v3716 = vadd.f32 %v3714, %v3715
  %v3717 = vsel %vm3637, %v3352, 0.0
  %v3718 = vadd.f32 %v3716, %v3717
  %v3719 = vsel %vm3637, %v3355, 0.0
  %v3720 = vadd.f32 %v3718, %v3719
  %v3721 = vsel %vm3637, %v3360, 0.0
  %v3722 = vadd.f32 %v3720, %v3721
  %v3723 = vsel %vm3637, %v3363, 0.0
  %v3724 = vadd.f32 %v3722, %v3723
  %v3725 = vsel %vm3637, %v3368, 0.0
  %v3726 = vadd.f32 %v3724, %v3725
  %v3727 = vsel %vm3637, %v3371, 0.0
  %v3728 = vadd.f32 %v3726, %v3727
  %v3729 = vsel %vm3637, %v3376, 0.0
  %v3730 = vadd.f32 %v3728, %v3729
  %v3731 = vsel %vm3637, %v3379, 0.0
  %v3732 = vadd.f32 %v3730, %v3731
  %v3733 = vsel %vm3637, %v3384, 0.0
  %v3734 = vadd.f32 %v3732, %v3733
  %v3735 = vsel %vm3637, %v3387, 0.0
  %v3736 = vadd.f32 %v3734, %v3735
  %v3737 = vsel %vm3637, %v3392, 0.0
  %v3738 = vadd.f32 %v3736, %v3737
  %v3739 = vsel %vm3637, %v3395, 0.0
  %v3740 = vadd.f32 %v3738, %v3739
  %v3741 = vsel %vm3637, %v3400, 0.0
  %v3742 = vadd.f32 %v3740, %v3741
  %v3743 = vsel %vm3637, %v3403, 0.0
  %v3744 = vadd.f32 %v3742, %v3743
  %v3745 = vsel %vm3637, %v3408, 0.0
  %v3746 = vadd.f32 %v3744, %v3745
  %v3747 = vsel %vm3637, %v3411, 0.0
  %v3748 = vadd.f32 %v3746, %v3747
  %v3749 = vsel %vm3637, %v3416, 0.0
  %v3750 = vadd.f32 %v3748, %v3749
  %v3751 = vsel %vm3637, %v3419, 0.0
  %v3752 = vadd.f32 %v3750, %v3751
  %v3753 = vsel %vm3637, %v3424, 0.0
  %v3754 = vadd.f32 %v3752, %v3753
  %v3755 = vsel %vm3637, %v3427, 0.0
  %v3756 = vadd.f32 %v3754, %v3755
  %v3757 = vsel %vm3637, %v3432, 0.0
  %v3758 = vadd.f32 %v3756, %v3757
  %v3759 = vsel %vm3637, %v3435, 0.0
  %v3760 = vadd.f32 %v3758, %v3759
  %v3761 = vsel %vm3637, %v3440, 0.0
  %v3762 = vadd.f32 %v3760, %v3761
  %v3763 = vsel %vm3637, %v3443, 0.0
  %v3764 = vadd.f32 %v3762, %v3763
  %v3765 = vsel %vm3637, %v3448, 0.0
  %v3766 = vadd.f32 %v3764, %v3765
  %v3767 = vsel %vm3637, %v3451, 0.0
  %v3768 = vadd.f32 %v3766, %v3767
  %v3769 = vsel %vm3637, %v3456, 0.0
  %v3770 = vadd.f32 %v3768, %v3769
  %v3771 = vsel %vm3637, %v3459, 0.0
  %v3772 = vadd.f32 %v3770, %v3771
  %v3773 = vsel %vm3637, %v3464, 0.0
  %v3774 = vadd.f32 %v3772, %v3773
  %v3775 = vsel %vm3637, %v3467, 0.0
  %v3776 = vadd.f32 %v3774, %v3775
  %v3777 = vsel %vm3637, %v3472, 0.0
  %v3778 = vadd.f32 %v3776, %v3777
  %v3779 = vsel %vm3637, %v3475, 0.0
  %v3780 = vadd.f32 %v3778, %v3779
  %v3781 = vsel %vm3637, %v3480, 0.0
  %v3782 = vadd.f32 %v3780, %v3781
  %v3783 = vsel %vm3637, %v3483, 0.0
  %v3784 = vadd.f32 %v3782, %v3783
  %v3785 = vsel %vm3637, %v3488, 0.0
  %v3786 = vadd.f32 %v3784, %v3785
  %v3787 = vsel %vm3637, %v3491, 0.0
  %v3788 = vadd.f32 %v3786, %v3787
  %v3789 = vsel %vm3637, %v3496, 0.0
  %v3790 = vadd.f32 %v3788, %v3789
  %v3791 = vsel %vm3637, %v3499, 0.0
  %v3792 = vadd.f32 %v3790, %v3791
  %v3793 = vsel %vm3637, %v3504, 0.0
  %v3794 = vadd.f32 %v3792, %v3793
  %v3795 = vsel %vm3637, %v3507, 0.0
  %v3796 = vadd.f32 %v3794, %v3795
  %v3797 = vsel %vm3637, %v3512, 0.0
  %v3798 = vadd.f32 %v3796, %v3797
  %v3799 = vsel %vm3637, %v3515, 0.0
  %v3800 = vadd.f32 %v3798, %v3799
  %v3801 = vsel %vm3637, %v3520, 0.0
  %v3802 = vadd.f32 %v3800, %v3801
  %v3803 = vsel %vm3637, %v3523, 0.0
  %v3804 = vadd.f32 %v3802, %v3803
  %v3805 = vsel %vm3637, %v3528, 0.0
  %v3806 = vadd.f32 %v3804, %v3805
  %v3807 = vsel %vm3637, %v3531, 0.0
  %v3808 = vadd.f32 %v3806, %v3807
  %v3809 = vsel %vm3637, %v3536, 0.0
  %v3810 = vadd.f32 %v3808, %v3809
  %v3811 = vsel %vm3637, %v3539, 0.0
  %v3812 = vadd.f32 %v3810, %v3811
  %v3813 = vsel %vm3637, %v3544, 0.0
  %v3814 = vadd.f32 %v3812, %v3813
  %v3815 = vsel %vm3637, %v3547, 0.0
  %v3816 = vadd.f32 %v3814, %v3815
  %v3817 = vsel %vm3637, %v3552, 0.0
  %v3818 = vadd.f32 %v3816, %v3817
  %v3819 = vsel %vm3637, %v3555, 0.0
  %v3820 = vadd.f32 %v3818, %v3819
  %v3821 = vsel %vm3637, %v3560, 0.0
  %v3822 = vadd.f32 %v3820, %v3821
  %v3823 = vsel %vm3637, %v3563, 0.0
  %v3824 = vadd.f32 %v3822, %v3823
  %v3825 = vsel %vm3637, %v3568, 0.0
  %v3826 = vadd.f32 %v3824, %v3825
  %v3827 = vsel %vm3637, %v3571, 0.0
  %v3828 = vadd.f32 %v3826, %v3827
  %v3829 = vsel %vm3637, %v3576, 0.0
  %v3830 = vadd.f32 %v3828, %v3829
  %v3831 = vsel %vm3637, %v3579, 0.0
  %v3832 = vadd.f32 %v3830, %v3831
  %v3833 = vsel %vm3637, %v3584, 0.0
  %v3834 = vadd.f32 %v3832, %v3833
  %v3835 = vsel %vm3637, %v3587, 0.0
  %v3836 = vadd.f32 %v3834, %v3835
  %v3837 = vsel %vm3637, %v3592, 0.0
  %v3838 = vadd.f32 %v3836, %v3837
  %v3839 = vsel %vm3637, %v3595, 0.0
  %v3840 = vadd.f32 %v3838, %v3839
  %v3841 = vsel %vm3637, %v3600, 0.0
  %v3842 = vadd.f32 %v3840, %v3841
  %v3843 = vsel %vm3637, %v3603, 0.0
  %v3844 = vadd.f32 %v3842, %v3843
  %v3845 = vsel %vm3637, %v3608, 0.0
  %v3846 = vadd.f32 %v3844, %v3845
  %v3847 = vsel %vm3637, %v3611, 0.0
  %v3848 = vadd.f32 %v3846, %v3847
  %v3849 = vsel %vm3637, %v3616, 0.0
  %v3850 = vadd.f32 %v3848, %v3849
  %v3851 = vsel %vm3637, %v3619, 0.0
  %v3852 = vadd.f32 %v3850, %v3851
  %v3853 = vsel %vm3637, %v3624, 0.0
  %v3854 = vadd.f32 %v3852, %v3853
  %v3855 = vsel %vm3637, %v3627, 0.0
  %v3856 = vadd.f32 %v3854, %v3855
  %vm3857 = vcmask 58368
  %v3858 = vsel %vm3857, %v3632, 0.0
  %v3859 = vadd.f32 %v3856, %v3858
  %v3860 = vrot.slane %v3859, 4
  %v3861 = vadd.f32 %v3859, %v3860
  %v3862 = vrot.slane %v3861, 2
  %v3863 = vadd.f32 %v3861, %v3862
  %v3864 = vrot.slane %v3863, 1
  %v3865 = vadd.f32 %v3863, %v3864
  %v3866 = vmul.f32 %v3865, 0.0011337869
  %v3867 = vsub.f32 %v3192, %v3866
  %v3868 = vsub.f32 %v3195, %v3866
  %v3869 = vsub.f32 %v3200, %v3866
  %v3870 = vsub.f32 %v3203, %v3866
  %v3871 = vsub.f32 %v3208, %v3866
  %v3872 = vsub.f32 %v3211, %v3866
  %v3873 = vsub.f32 %v3216, %v3866
  %v3874 = vsub.f32 %v3219, %v3866
  %v3875 = vsub.f32 %v3224, %v3866
  %v3876 = vsub.f32 %v3227, %v3866
  %v3877 = vsub.f32 %v3232, %v3866
  %v3878 = vsub.f32 %v3235, %v3866
  %v3879 = vsub.f32 %v3240, %v3866
  %v3880 = vsub.f32 %v3243, %v3866
  %v3881 = vsub.f32 %v3248, %v3866
  %v3882 = vsub.f32 %v3251, %v3866
  %v3883 = vsub.f32 %v3256, %v3866
  %v3884 = vsub.f32 %v3259, %v3866
  %v3885 = vsub.f32 %v3264, %v3866
  %v3886 = vsub.f32 %v3267, %v3866
  %v3887 = vsub.f32 %v3272, %v3866
  %v3888 = vsub.f32 %v3275, %v3866
  %v3889 = vsub.f32 %v3280, %v3866
  %v3890 = vsub.f32 %v3283, %v3866
  %v3891 = vsub.f32 %v3288, %v3866
  %v3892 = vsub.f32 %v3291, %v3866
  %v3893 = vsub.f32 %v3296, %v3866
  %v3894 = vsub.f32 %v3299, %v3866
  %v3895 = vsub.f32 %v3304, %v3866
  %v3896 = vsub.f32 %v3307, %v3866
  %v3897 = vsub.f32 %v3312, %v3866
  %v3898 = vsub.f32 %v3315, %v3866
  %v3899 = vsub.f32 %v3320, %v3866
  %v3900 = vsub.f32 %v3323, %v3866
  %v3901 = vsub.f32 %v3328, %v3866
  %v3902 = vsub.f32 %v3331, %v3866
  %v3903 = vsub.f32 %v3336, %v3866
  %v3904 = vsub.f32 %v3339, %v3866
  %v3905 = vsub.f32 %v3344, %v3866
  %v3906 = vsub.f32 %v3347, %v3866
  %v3907 = vsub.f32 %v3352, %v3866
  %v3908 = vsub.f32 %v3355, %v3866
  %v3909 = vsub.f32 %v3360, %v3866
  %v3910 = vsub.f32 %v3363, %v3866
  %v3911 = vsub.f32 %v3368, %v3866
  %v3912 = vsub.f32 %v3371, %v3866
  %v3913 = vsub.f32 %v3376, %v3866
  %v3914 = vsub.f32 %v3379, %v3866
  %v3915 = vsub.f32 %v3384, %v3866
  %v3916 = vsub.f32 %v3387, %v3866
  %v3917 = vsub.f32 %v3392, %v3866
  %v3918 = vsub.f32 %v3395, %v3866
  %v3919 = vsub.f32 %v3400, %v3866
  %v3920 = vsub.f32 %v3403, %v3866
  %v3921 = vsub.f32 %v3408, %v3866
  %v3922 = vsub.f32 %v3411, %v3866
  %v3923 = vsub.f32 %v3416, %v3866
  %v3924 = vsub.f32 %v3419, %v3866
  %v3925 = vsub.f32 %v3424, %v3866
  %v3926 = vsub.f32 %v3427, %v3866
  %v3927 = vsub.f32 %v3432, %v3866
  %v3928 = vsub.f32 %v3435, %v3866
  %v3929 = vsub.f32 %v3440, %v3866
  %v3930 = vsub.f32 %v3443, %v3866
  %v3931 = vsub.f32 %v3448, %v3866
  %v3932 = vsub.f32 %v3451, %v3866
  %v3933 = vsub.f32 %v3456, %v3866
  %v3934 = vsub.f32 %v3459, %v3866
  %v3935 = vsub.f32 %v3464, %v3866
  %v3936 = vsub.f32 %v3467, %v3866
  %v3937 = vsub.f32 %v3472, %v3866
  %v3938 = vsub.f32 %v3475, %v3866
  %v3939 = vsub.f32 %v3480, %v3866
  %v3940 = vsub.f32 %v3483, %v3866
  %v3941 = vsub.f32 %v3488, %v3866
  %v3942 = vsub.f32 %v3491, %v3866
  %v3943 = vsub.f32 %v3496, %v3866
  %v3944 = vsub.f32 %v3499, %v3866
  %v3945 = vsub.f32 %v3504, %v3866
  %v3946 = vsub.f32 %v3507, %v3866
  %v3947 = vsub.f32 %v3512, %v3866
  %v3948 = vsub.f32 %v3515, %v3866
  %v3949 = vsub.f32 %v3520, %v3866
  %v3950 = vsub.f32 %v3523, %v3866
  %v3951 = vsub.f32 %v3528, %v3866
  %v3952 = vsub.f32 %v3531, %v3866
  %v3953 = vsub.f32 %v3536, %v3866
  %v3954 = vsub.f32 %v3539, %v3866
  %v3955 = vsub.f32 %v3544, %v3866
  %v3956 = vsub.f32 %v3547, %v3866
  %v3957 = vsub.f32 %v3552, %v3866
  %v3958 = vsub.f32 %v3555, %v3866
  %v3959 = vsub.f32 %v3560, %v3866
  %v3960 = vsub.f32 %v3563, %v3866
  %v3961 = vsub.f32 %v3568, %v3866
  %v3962 = vsub.f32 %v3571, %v3866
  %v3963 = vsub.f32 %v3576, %v3866
  %v3964 = vsub.f32 %v3579, %v3866
  %v3965 = vsub.f32 %v3584, %v3866
  %v3966 = vsub.f32 %v3587, %v3866
  %v3967 = vsub.f32 %v3592, %v3866
  %v3968 = vsub.f32 %v3595, %v3866
  %v3969 = vsub.f32 %v3600, %v3866
  %v3970 = vsub.f32 %v3603, %v3866
  %v3971 = vsub.f32 %v3608, %v3866
  %v3972 = vsub.f32 %v3611, %v3866
  %v3973 = vsub.f32 %v3616, %v3866
  %v3974 = vsub.f32 %v3619, %v3866
  %v3975 = vsub.f32 %v3624, %v3866
  %v3976 = vsub.f32 %v3627, %v3866
  %v3977 = vsub.f32 %v3632, %v3866
  %v3978 = vmul.f32 %v3867, %v3867
  %v3979 = vmul.f32 %v3868, %v3868
  %v3980 = vmul.f32 %v3869, %v3869
  %v3981 = vmul.f32 %v3870, %v3870
  %v3982 = vmul.f32 %v3871, %v3871
  %v3983 = vmul.f32 %v3872, %v3872
  %v3984 = vmul.f32 %v3873, %v3873
  %v3985 = vmul.f32 %v3874, %v3874
  %v3986 = vmul.f32 %v3875, %v3875
  %v3987 = vmul.f32 %v3876, %v3876
  %v3988 = vmul.f32 %v3877, %v3877
  %v3989 = vmul.f32 %v3878, %v3878
  %v3990 = vmul.f32 %v3879, %v3879
  %v3991 = vmul.f32 %v3880, %v3880
  %v3992 = vmul.f32 %v3881, %v3881
  %v3993 = vmul.f32 %v3882, %v3882
  %v3994 = vmul.f32 %v3883, %v3883
  %v3995 = vmul.f32 %v3884, %v3884
  %v3996 = vmul.f32 %v3885, %v3885
  %v3997 = vmul.f32 %v3886, %v3886
  %v3998 = vmul.f32 %v3887, %v3887
  %v3999 = vmul.f32 %v3888, %v3888
  %v4000 = vmul.f32 %v3889, %v3889
  %v4001 = vmul.f32 %v3890, %v3890
  %v4002 = vmul.f32 %v3891, %v3891
  %v4003 = vmul.f32 %v3892, %v3892
  %v4004 = vmul.f32 %v3893, %v3893
  %v4005 = vmul.f32 %v3894, %v3894
  %v4006 = vmul.f32 %v3895, %v3895
  %v4007 = vmul.f32 %v3896, %v3896
  %v4008 = vmul.f32 %v3897, %v3897
  %v4009 = vmul.f32 %v3898, %v3898
  %v4010 = vmul.f32 %v3899, %v3899
  %v4011 = vmul.f32 %v3900, %v3900
  %v4012 = vmul.f32 %v3901, %v3901
  %v4013 = vmul.f32 %v3902, %v3902
  %v4014 = vmul.f32 %v3903, %v3903
  %v4015 = vmul.f32 %v3904, %v3904
  %v4016 = vmul.f32 %v3905, %v3905
  %v4017 = vmul.f32 %v3906, %v3906
  %v4018 = vmul.f32 %v3907, %v3907
  %v4019 = vmul.f32 %v3908, %v3908
  %v4020 = vmul.f32 %v3909, %v3909
  %v4021 = vmul.f32 %v3910, %v3910
  %v4022 = vmul.f32 %v3911, %v3911
  %v4023 = vmul.f32 %v3912, %v3912
  %v4024 = vmul.f32 %v3913, %v3913
  %v4025 = vmul.f32 %v3914, %v3914
  %v4026 = vmul.f32 %v3915, %v3915
  %v4027 = vmul.f32 %v3916, %v3916
  %v4028 = vmul.f32 %v3917, %v3917
  %v4029 = vmul.f32 %v3918, %v3918
  %v4030 = vmul.f32 %v3919, %v3919
  %v4031 = vmul.f32 %v3920, %v3920
  %v4032 = vmul.f32 %v3921, %v3921
  %v4033 = vmul.f32 %v3922, %v3922
  %v4034 = vmul.f32 %v3923, %v3923
  %v4035 = vmul.f32 %v3924, %v3924
  %v4036 = vmul.f32 %v3925, %v3925
  %v4037 = vmul.f32 %v3926, %v3926
  %v4038 = vmul.f32 %v3927, %v3927
  %v4039 = vmul.f32 %v3928, %v3928
  %v4040 = vmul.f32 %v3929, %v3929
  %v4041 = vmul.f32 %v3930, %v3930
  %v4042 = vmul.f32 %v3931, %v3931
  %v4043 = vmul.f32 %v3932, %v3932
  %v4044 = vmul.f32 %v3933, %v3933
  %v4045 = vmul.f32 %v3934, %v3934
  %v4046 = vmul.f32 %v3935, %v3935
  %v4047 = vmul.f32 %v3936, %v3936
  %v4048 = vmul.f32 %v3937, %v3937
  %v4049 = vmul.f32 %v3938, %v3938
  %v4050 = vmul.f32 %v3939, %v3939
  %v4051 = vmul.f32 %v3940, %v3940
  %v4052 = vmul.f32 %v3941, %v3941
  %v4053 = vmul.f32 %v3942, %v3942
  %v4054 = vmul.f32 %v3943, %v3943
  %v4055 = vmul.f32 %v3944, %v3944
  %v4056 = vmul.f32 %v3945, %v3945
  %v4057 = vmul.f32 %v3946, %v3946
  %v4058 = vmul.f32 %v3947, %v3947
  %v4059 = vmul.f32 %v3948, %v3948
  %v4060 = vmul.f32 %v3949, %v3949
  %v4061 = vmul.f32 %v3950, %v3950
  %v4062 = vmul.f32 %v3951, %v3951
  %v4063 = vmul.f32 %v3952, %v3952
  %v4064 = vmul.f32 %v3953, %v3953
  %v4065 = vmul.f32 %v3954, %v3954
  %v4066 = vmul.f32 %v3955, %v3955
  %v4067 = vmul.f32 %v3956, %v3956
  %v4068 = vmul.f32 %v3957, %v3957
  %v4069 = vmul.f32 %v3958, %v3958
  %v4070 = vmul.f32 %v3959, %v3959
  %v4071 = vmul.f32 %v3960, %v3960
  %v4072 = vmul.f32 %v3961, %v3961
  %v4073 = vmul.f32 %v3962, %v3962
  %v4074 = vmul.f32 %v3963, %v3963
  %v4075 = vmul.f32 %v3964, %v3964
  %v4076 = vmul.f32 %v3965, %v3965
  %v4077 = vmul.f32 %v3966, %v3966
  %v4078 = vmul.f32 %v3967, %v3967
  %v4079 = vmul.f32 %v3968, %v3968
  %v4080 = vmul.f32 %v3969, %v3969
  %v4081 = vmul.f32 %v3970, %v3970
  %v4082 = vmul.f32 %v3971, %v3971
  %v4083 = vmul.f32 %v3972, %v3972
  %v4084 = vmul.f32 %v3973, %v3973
  %v4085 = vmul.f32 %v3974, %v3974
  %v4086 = vmul.f32 %v3975, %v3975
  %v4087 = vmul.f32 %v3976, %v3976
  %v4088 = vmul.f32 %v3977, %v3977
  %v4089 = vsel %vm3637, %v3978, 0.0
  %v4090 = vsel %vm3637, %v3979, 0.0
  %v4091 = vadd.f32 %v4089, %v4090
  %v4092 = vsel %vm3637, %v3980, 0.0
  %v4093 = vadd.f32 %v4091, %v4092
  %v4094 = vsel %vm3637, %v3981, 0.0
  %v4095 = vadd.f32 %v4093, %v4094
  %v4096 = vsel %vm3637, %v3982, 0.0
  %v4097 = vadd.f32 %v4095, %v4096
  %v4098 = vsel %vm3637, %v3983, 0.0
  %v4099 = vadd.f32 %v4097, %v4098
  %v4100 = vsel %vm3637, %v3984, 0.0
  %v4101 = vadd.f32 %v4099, %v4100
  %v4102 = vsel %vm3637, %v3985, 0.0
  %v4103 = vadd.f32 %v4101, %v4102
  %v4104 = vsel %vm3637, %v3986, 0.0
  %v4105 = vadd.f32 %v4103, %v4104
  %v4106 = vsel %vm3637, %v3987, 0.0
  %v4107 = vadd.f32 %v4105, %v4106
  %v4108 = vsel %vm3637, %v3988, 0.0
  %v4109 = vadd.f32 %v4107, %v4108
  %v4110 = vsel %vm3637, %v3989, 0.0
  %v4111 = vadd.f32 %v4109, %v4110
  %v4112 = vsel %vm3637, %v3990, 0.0
  %v4113 = vadd.f32 %v4111, %v4112
  %v4114 = vsel %vm3637, %v3991, 0.0
  %v4115 = vadd.f32 %v4113, %v4114
  %v4116 = vsel %vm3637, %v3992, 0.0
  %v4117 = vadd.f32 %v4115, %v4116
  %v4118 = vsel %vm3637, %v3993, 0.0
  %v4119 = vadd.f32 %v4117, %v4118
  %v4120 = vsel %vm3637, %v3994, 0.0
  %v4121 = vadd.f32 %v4119, %v4120
  %v4122 = vsel %vm3637, %v3995, 0.0
  %v4123 = vadd.f32 %v4121, %v4122
  %v4124 = vsel %vm3637, %v3996, 0.0
  %v4125 = vadd.f32 %v4123, %v4124
  %v4126 = vsel %vm3637, %v3997, 0.0
  %v4127 = vadd.f32 %v4125, %v4126
  %v4128 = vsel %vm3637, %v3998, 0.0
  %v4129 = vadd.f32 %v4127, %v4128
  %v4130 = vsel %vm3637, %v3999, 0.0
  %v4131 = vadd.f32 %v4129, %v4130
  %v4132 = vsel %vm3637, %v4000, 0.0
  %v4133 = vadd.f32 %v4131, %v4132
  %v4134 = vsel %vm3637, %v4001, 0.0
  %v4135 = vadd.f32 %v4133, %v4134
  %v4136 = vsel %vm3637, %v4002, 0.0
  %v4137 = vadd.f32 %v4135, %v4136
  %v4138 = vsel %vm3637, %v4003, 0.0
  %v4139 = vadd.f32 %v4137, %v4138
  %v4140 = vsel %vm3637, %v4004, 0.0
  %v4141 = vadd.f32 %v4139, %v4140
  %v4142 = vsel %vm3637, %v4005, 0.0
  %v4143 = vadd.f32 %v4141, %v4142
  %v4144 = vsel %vm3637, %v4006, 0.0
  %v4145 = vadd.f32 %v4143, %v4144
  %v4146 = vsel %vm3637, %v4007, 0.0
  %v4147 = vadd.f32 %v4145, %v4146
  %v4148 = vsel %vm3637, %v4008, 0.0
  %v4149 = vadd.f32 %v4147, %v4148
  %v4150 = vsel %vm3637, %v4009, 0.0
  %v4151 = vadd.f32 %v4149, %v4150
  %v4152 = vsel %vm3637, %v4010, 0.0
  %v4153 = vadd.f32 %v4151, %v4152
  %v4154 = vsel %vm3637, %v4011, 0.0
  %v4155 = vadd.f32 %v4153, %v4154
  %v4156 = vsel %vm3637, %v4012, 0.0
  %v4157 = vadd.f32 %v4155, %v4156
  %v4158 = vsel %vm3637, %v4013, 0.0
  %v4159 = vadd.f32 %v4157, %v4158
  %v4160 = vsel %vm3637, %v4014, 0.0
  %v4161 = vadd.f32 %v4159, %v4160
  %v4162 = vsel %vm3637, %v4015, 0.0
  %v4163 = vadd.f32 %v4161, %v4162
  %v4164 = vsel %vm3637, %v4016, 0.0
  %v4165 = vadd.f32 %v4163, %v4164
  %v4166 = vsel %vm3637, %v4017, 0.0
  %v4167 = vadd.f32 %v4165, %v4166
  %v4168 = vsel %vm3637, %v4018, 0.0
  %v4169 = vadd.f32 %v4167, %v4168
  %v4170 = vsel %vm3637, %v4019, 0.0
  %v4171 = vadd.f32 %v4169, %v4170
  %v4172 = vsel %vm3637, %v4020, 0.0
  %v4173 = vadd.f32 %v4171, %v4172
  %v4174 = vsel %vm3637, %v4021, 0.0
  %v4175 = vadd.f32 %v4173, %v4174
  %v4176 = vsel %vm3637, %v4022, 0.0
  %v4177 = vadd.f32 %v4175, %v4176
  %v4178 = vsel %vm3637, %v4023, 0.0
  %v4179 = vadd.f32 %v4177, %v4178
  %v4180 = vsel %vm3637, %v4024, 0.0
  %v4181 = vadd.f32 %v4179, %v4180
  %v4182 = vsel %vm3637, %v4025, 0.0
  %v4183 = vadd.f32 %v4181, %v4182
  %v4184 = vsel %vm3637, %v4026, 0.0
  %v4185 = vadd.f32 %v4183, %v4184
  %v4186 = vsel %vm3637, %v4027, 0.0
  %v4187 = vadd.f32 %v4185, %v4186
  %v4188 = vsel %vm3637, %v4028, 0.0
  %v4189 = vadd.f32 %v4187, %v4188
  %v4190 = vsel %vm3637, %v4029, 0.0
  %v4191 = vadd.f32 %v4189, %v4190
  %v4192 = vsel %vm3637, %v4030, 0.0
  %v4193 = vadd.f32 %v4191, %v4192
  %v4194 = vsel %vm3637, %v4031, 0.0
  %v4195 = vadd.f32 %v4193, %v4194
  %v4196 = vsel %vm3637, %v4032, 0.0
  %v4197 = vadd.f32 %v4195, %v4196
  %v4198 = vsel %vm3637, %v4033, 0.0
  %v4199 = vadd.f32 %v4197, %v4198
  %v4200 = vsel %vm3637, %v4034, 0.0
  %v4201 = vadd.f32 %v4199, %v4200
  %v4202 = vsel %vm3637, %v4035, 0.0
  %v4203 = vadd.f32 %v4201, %v4202
  %v4204 = vsel %vm3637, %v4036, 0.0
  %v4205 = vadd.f32 %v4203, %v4204
  %v4206 = vsel %vm3637, %v4037, 0.0
  %v4207 = vadd.f32 %v4205, %v4206
  %v4208 = vsel %vm3637, %v4038, 0.0
  %v4209 = vadd.f32 %v4207, %v4208
  %v4210 = vsel %vm3637, %v4039, 0.0
  %v4211 = vadd.f32 %v4209, %v4210
  %v4212 = vsel %vm3637, %v4040, 0.0
  %v4213 = vadd.f32 %v4211, %v4212
  %v4214 = vsel %vm3637, %v4041, 0.0
  %v4215 = vadd.f32 %v4213, %v4214
  %v4216 = vsel %vm3637, %v4042, 0.0
  %v4217 = vadd.f32 %v4215, %v4216
  %v4218 = vsel %vm3637, %v4043, 0.0
  %v4219 = vadd.f32 %v4217, %v4218
  %v4220 = vsel %vm3637, %v4044, 0.0
  %v4221 = vadd.f32 %v4219, %v4220
  %v4222 = vsel %vm3637, %v4045, 0.0
  %v4223 = vadd.f32 %v4221, %v4222
  %v4224 = vsel %vm3637, %v4046, 0.0
  %v4225 = vadd.f32 %v4223, %v4224
  %v4226 = vsel %vm3637, %v4047, 0.0
  %v4227 = vadd.f32 %v4225, %v4226
  %v4228 = vsel %vm3637, %v4048, 0.0
  %v4229 = vadd.f32 %v4227, %v4228
  %v4230 = vsel %vm3637, %v4049, 0.0
  %v4231 = vadd.f32 %v4229, %v4230
  %v4232 = vsel %vm3637, %v4050, 0.0
  %v4233 = vadd.f32 %v4231, %v4232
  %v4234 = vsel %vm3637, %v4051, 0.0
  %v4235 = vadd.f32 %v4233, %v4234
  %v4236 = vsel %vm3637, %v4052, 0.0
  %v4237 = vadd.f32 %v4235, %v4236
  %v4238 = vsel %vm3637, %v4053, 0.0
  %v4239 = vadd.f32 %v4237, %v4238
  %v4240 = vsel %vm3637, %v4054, 0.0
  %v4241 = vadd.f32 %v4239, %v4240
  %v4242 = vsel %vm3637, %v4055, 0.0
  %v4243 = vadd.f32 %v4241, %v4242
  %v4244 = vsel %vm3637, %v4056, 0.0
  %v4245 = vadd.f32 %v4243, %v4244
  %v4246 = vsel %vm3637, %v4057, 0.0
  %v4247 = vadd.f32 %v4245, %v4246
  %v4248 = vsel %vm3637, %v4058, 0.0
  %v4249 = vadd.f32 %v4247, %v4248
  %v4250 = vsel %vm3637, %v4059, 0.0
  %v4251 = vadd.f32 %v4249, %v4250
  %v4252 = vsel %vm3637, %v4060, 0.0
  %v4253 = vadd.f32 %v4251, %v4252
  %v4254 = vsel %vm3637, %v4061, 0.0
  %v4255 = vadd.f32 %v4253, %v4254
  %v4256 = vsel %vm3637, %v4062, 0.0
  %v4257 = vadd.f32 %v4255, %v4256
  %v4258 = vsel %vm3637, %v4063, 0.0
  %v4259 = vadd.f32 %v4257, %v4258
  %v4260 = vsel %vm3637, %v4064, 0.0
  %v4261 = vadd.f32 %v4259, %v4260
  %v4262 = vsel %vm3637, %v4065, 0.0
  %v4263 = vadd.f32 %v4261, %v4262
  %v4264 = vsel %vm3637, %v4066, 0.0
  %v4265 = vadd.f32 %v4263, %v4264
  %v4266 = vsel %vm3637, %v4067, 0.0
  %v4267 = vadd.f32 %v4265, %v4266
  %v4268 = vsel %vm3637, %v4068, 0.0
  %v4269 = vadd.f32 %v4267, %v4268
  %v4270 = vsel %vm3637, %v4069, 0.0
  %v4271 = vadd.f32 %v4269, %v4270
  %v4272 = vsel %vm3637, %v4070, 0.0
  %v4273 = vadd.f32 %v4271, %v4272
  %v4274 = vsel %vm3637, %v4071, 0.0
  %v4275 = vadd.f32 %v4273, %v4274
  %v4276 = vsel %vm3637, %v4072, 0.0
  %v4277 = vadd.f32 %v4275, %v4276
  %v4278 = vsel %vm3637, %v4073, 0.0
  %v4279 = vadd.f32 %v4277, %v4278
  %v4280 = vsel %vm3637, %v4074, 0.0
  %v4281 = vadd.f32 %v4279, %v4280
  %v4282 = vsel %vm3637, %v4075, 0.0
  %v4283 = vadd.f32 %v4281, %v4282
  %v4284 = vsel %vm3637, %v4076, 0.0
  %v4285 = vadd.f32 %v4283, %v4284
  %v4286 = vsel %vm3637, %v4077, 0.0
  %v4287 = vadd.f32 %v4285, %v4286
  %v4288 = vsel %vm3637, %v4078, 0.0
  %v4289 = vadd.f32 %v4287, %v4288
  %v4290 = vsel %vm3637, %v4079, 0.0
  %v4291 = vadd.f32 %v4289, %v4290
  %v4292 = vsel %vm3637, %v4080, 0.0
  %v4293 = vadd.f32 %v4291, %v4292
  %v4294 = vsel %vm3637, %v4081, 0.0
  %v4295 = vadd.f32 %v4293, %v4294
  %v4296 = vsel %vm3637, %v4082, 0.0
  %v4297 = vadd.f32 %v4295, %v4296
  %v4298 = vsel %vm3637, %v4083, 0.0
  %v4299 = vadd.f32 %v4297, %v4298
  %v4300 = vsel %vm3637, %v4084, 0.0
  %v4301 = vadd.f32 %v4299, %v4300
  %v4302 = vsel %vm3637, %v4085, 0.0
  %v4303 = vadd.f32 %v4301, %v4302
  %v4304 = vsel %vm3637, %v4086, 0.0
  %v4305 = vadd.f32 %v4303, %v4304
  %v4306 = vsel %vm3637, %v4087, 0.0
  %v4307 = vadd.f32 %v4305, %v4306
  %v4308 = vsel %vm3857, %v4088, 0.0
  %v4309 = vadd.f32 %v4307, %v4308
  %v4310 = vrot.slane %v4309, 4
  %v4311 = vadd.f32 %v4309, %v4310
  %v4312 = vrot.slane %v4311, 2
  %v4313 = vadd.f32 %v4311, %v4312
  %v4314 = vrot.slane %v4313, 1
  %v4315 = vadd.f32 %v4313, %v4314
  %v4316 = vmul.f32 %v4315, 0.0011337869
  %v4317 = vld [vmem:[%s2] sm:$0x3]
  %v4318 = vadd.f32 %v4316, 1e-05
  %v4319 = vrsqrt.pop %v4318
  %v4320 = vmul.f32 %v4317, %v4319
  %v4321 = vlaneseq
  %v4322 = vshrl.u32 %v4321, 7
  %v4323 = vsub.s32 0, %v4322
  %v4324 = vrot.slane %v4320, %v4323
  %v4325 = vmul.f32 %v3867, %v4324
  %v4326 = vmul.f32 %v3868, %v4324
  %v4327 = vmul.f32 %v3869, %v4324
  %v4328 = vmul.f32 %v3870, %v4324
  %v4329 = vmul.f32 %v3871, %v4324
  %v4330 = vmul.f32 %v3872, %v4324
  %v4331 = vmul.f32 %v3873, %v4324
  %v4332 = vmul.f32 %v3874, %v4324
  %v4333 = vmul.f32 %v3875, %v4324
  %v4334 = vmul.f32 %v3876, %v4324
  %v4335 = vmul.f32 %v3877, %v4324
  %v4336 = vmul.f32 %v3878, %v4324
  %v4337 = vmul.f32 %v3879, %v4324
  %v4338 = vmul.f32 %v3880, %v4324
  %v4339 = vmul.f32 %v3881, %v4324
  %v4340 = vmul.f32 %v3882, %v4324
  %v4341 = vmul.f32 %v3883, %v4324
  %v4342 = vmul.f32 %v3884, %v4324
  %v4343 = vmul.f32 %v3885, %v4324
  %v4344 = vmul.f32 %v3886, %v4324
  %v4345 = vmul.f32 %v3887, %v4324
  %v4346 = vmul.f32 %v3888, %v4324
  %v4347 = vmul.f32 %v3889, %v4324
  %v4348 = vmul.f32 %v3890, %v4324
  %v4349 = vmul.f32 %v3891, %v4324
  %v4350 = vmul.f32 %v3892, %v4324
  %v4351 = vmul.f32 %v3893, %v4324
  %v4352 = vmul.f32 %v3894, %v4324
  %v4353 = vmul.f32 %v3895, %v4324
  %v4354 = vmul.f32 %v3896, %v4324
  %v4355 = vmul.f32 %v3897, %v4324
  %v4356 = vmul.f32 %v3898, %v4324
  %v4357 = vmul.f32 %v3899, %v4324
  %v4358 = vmul.f32 %v3900, %v4324
  %v4359 = vmul.f32 %v3901, %v4324
  %v4360 = vmul.f32 %v3902, %v4324
  %v4361 = vmul.f32 %v3903, %v4324
  %v4362 = vmul.f32 %v3904, %v4324
  %v4363 = vmul.f32 %v3905, %v4324
  %v4364 = vmul.f32 %v3906, %v4324
  %v4365 = vmul.f32 %v3907, %v4324
  %v4366 = vmul.f32 %v3908, %v4324
  %v4367 = vmul.f32 %v3909, %v4324
  %v4368 = vmul.f32 %v3910, %v4324
  %v4369 = vmul.f32 %v3911, %v4324
  %v4370 = vmul.f32 %v3912, %v4324
  %v4371 = vmul.f32 %v3913, %v4324
  %v4372 = vmul.f32 %v3914, %v4324
  %v4373 = vmul.f32 %v3915, %v4324
  %v4374 = vmul.f32 %v3916, %v4324
  %v4375 = vmul.f32 %v3917, %v4324
  %v4376 = vmul.f32 %v3918, %v4324
  %v4377 = vmul.f32 %v3919, %v4324
  %v4378 = vmul.f32 %v3920, %v4324
  %v4379 = vmul.f32 %v3921, %v4324
  %v4380 = vmul.f32 %v3922, %v4324
  %v4381 = vmul.f32 %v3923, %v4324
  %v4382 = vmul.f32 %v3924, %v4324
  %v4383 = vmul.f32 %v3925, %v4324
  %v4384 = vmul.f32 %v3926, %v4324
  %v4385 = vmul.f32 %v3927, %v4324
  %v4386 = vmul.f32 %v3928, %v4324
  %v4387 = vmul.f32 %v3929, %v4324
  %v4388 = vmul.f32 %v3930, %v4324
  %v4389 = vmul.f32 %v3931, %v4324
  %v4390 = vmul.f32 %v3932, %v4324
  %v4391 = vmul.f32 %v3933, %v4324
  %v4392 = vmul.f32 %v3934, %v4324
  %v4393 = vmul.f32 %v3935, %v4324
  %v4394 = vmul.f32 %v3936, %v4324
  %v4395 = vmul.f32 %v3937, %v4324
  %v4396 = vmul.f32 %v3938, %v4324
  %v4397 = vmul.f32 %v3939, %v4324
  %v4398 = vmul.f32 %v3940, %v4324
  %v4399 = vmul.f32 %v3941, %v4324
  %v4400 = vmul.f32 %v3942, %v4324
  %v4401 = vmul.f32 %v3943, %v4324
  %v4402 = vmul.f32 %v3944, %v4324
  %v4403 = vmul.f32 %v3945, %v4324
  %v4404 = vmul.f32 %v3946, %v4324
  %v4405 = vmul.f32 %v3947, %v4324
  %v4406 = vmul.f32 %v3948, %v4324
  %v4407 = vmul.f32 %v3949, %v4324
  %v4408 = vmul.f32 %v3950, %v4324
  %v4409 = vmul.f32 %v3951, %v4324
  %v4410 = vmul.f32 %v3952, %v4324
  %v4411 = vmul.f32 %v3953, %v4324
  %v4412 = vmul.f32 %v3954, %v4324
  %v4413 = vmul.f32 %v3955, %v4324
  %v4414 = vmul.f32 %v3956, %v4324
  %v4415 = vmul.f32 %v3957, %v4324
  %v4416 = vmul.f32 %v3958, %v4324
  %v4417 = vmul.f32 %v3959, %v4324
  %v4418 = vmul.f32 %v3960, %v4324
  %v4419 = vmul.f32 %v3961, %v4324
  %v4420 = vmul.f32 %v3962, %v4324
  %v4421 = vmul.f32 %v3963, %v4324
  %v4422 = vmul.f32 %v3964, %v4324
  %v4423 = vmul.f32 %v3965, %v4324
  %v4424 = vmul.f32 %v3966, %v4324
  %v4425 = vmul.f32 %v3967, %v4324
  %v4426 = vmul.f32 %v3968, %v4324
  %v4427 = vmul.f32 %v3969, %v4324
  %v4428 = vmul.f32 %v3970, %v4324
  %v4429 = vmul.f32 %v3971, %v4324
  %v4430 = vmul.f32 %v3972, %v4324
  %v4431 = vmul.f32 %v3973, %v4324
  %v4432 = vmul.f32 %v3974, %v4324
  %v4433 = vmul.f32 %v3975, %v4324
  %v4434 = vmul.f32 %v3976, %v4324
  %v4435 = vmul.f32 %v3977, %v4324
  %v4436 = vlaneseq
  %v4437 = vshrl.u32 %v4436, 7
  %v4438 = vsub.s32 1, %v4437
  %v4439 = vrot.slane %v4317, %v4438
  %v4440 = vadd.f32 %v4325, %v4439
  %v4441 = vadd.f32 %v4326, %v4439
  %v4442 = vadd.f32 %v4327, %v4439
  %v4443 = vadd.f32 %v4328, %v4439
  %v4444 = vadd.f32 %v4329, %v4439
  %v4445 = vadd.f32 %v4330, %v4439
  %v4446 = vadd.f32 %v4331, %v4439
  %v4447 = vadd.f32 %v4332, %v4439
  %v4448 = vadd.f32 %v4333, %v4439
  %v4449 = vadd.f32 %v4334, %v4439
  %v4450 = vadd.f32 %v4335, %v4439
  %v4451 = vadd.f32 %v4336, %v4439
  %v4452 = vadd.f32 %v4337, %v4439
  %v4453 = vadd.f32 %v4338, %v4439
  %v4454 = vadd.f32 %v4339, %v4439
  %v4455 = vadd.f32 %v4340, %v4439
  %v4456 = vadd.f32 %v4341, %v4439
  %v4457 = vadd.f32 %v4342, %v4439
  %v4458 = vadd.f32 %v4343, %v4439
  %v4459 = vadd.f32 %v4344, %v4439
  %v4460 = vadd.f32 %v4345, %v4439
  %v4461 = vadd.f32 %v4346, %v4439
  %v4462 = vadd.f32 %v4347, %v4439
  %v4463 = vadd.f32 %v4348, %v4439
  %v4464 = vadd.f32 %v4349, %v4439
  %v4465 = vadd.f32 %v4350, %v4439
  %v4466 = vadd.f32 %v4351, %v4439
  %v4467 = vadd.f32 %v4352, %v4439
  %v4468 = vadd.f32 %v4353, %v4439
  %v4469 = vadd.f32 %v4354, %v4439
  %v4470 = vadd.f32 %v4355, %v4439
  %v4471 = vadd.f32 %v4356, %v4439
  %v4472 = vadd.f32 %v4357, %v4439
  %v4473 = vadd.f32 %v4358, %v4439
  %v4474 = vadd.f32 %v4359, %v4439
  %v4475 = vadd.f32 %v4360, %v4439
  %v4476 = vadd.f32 %v4361, %v4439
  %v4477 = vadd.f32 %v4362, %v4439
  %v4478 = vadd.f32 %v4363, %v4439
  %v4479 = vadd.f32 %v4364, %v4439
  %v4480 = vadd.f32 %v4365, %v4439
  %v4481 = vadd.f32 %v4366, %v4439
  %v4482 = vadd.f32 %v4367, %v4439
  %v4483 = vadd.f32 %v4368, %v4439
  %v4484 = vadd.f32 %v4369, %v4439
  %v4485 = vadd.f32 %v4370, %v4439
  %v4486 = vadd.f32 %v4371, %v4439
  %v4487 = vadd.f32 %v4372, %v4439
  %v4488 = vadd.f32 %v4373, %v4439
  %v4489 = vadd.f32 %v4374, %v4439
  %v4490 = vadd.f32 %v4375, %v4439
  %v4491 = vadd.f32 %v4376, %v4439
  %v4492 = vadd.f32 %v4377, %v4439
  %v4493 = vadd.f32 %v4378, %v4439
  %v4494 = vadd.f32 %v4379, %v4439
  %v4495 = vadd.f32 %v4380, %v4439
  %v4496 = vadd.f32 %v4381, %v4439
  %v4497 = vadd.f32 %v4382, %v4439
  %v4498 = vadd.f32 %v4383, %v4439
  %v4499 = vadd.f32 %v4384, %v4439
  %v4500 = vadd.f32 %v4385, %v4439
  %v4501 = vadd.f32 %v4386, %v4439
  %v4502 = vadd.f32 %v4387, %v4439
  %v4503 = vadd.f32 %v4388, %v4439
  %v4504 = vadd.f32 %v4389, %v4439
  %v4505 = vadd.f32 %v4390, %v4439
  %v4506 = vadd.f32 %v4391, %v4439
  %v4507 = vadd.f32 %v4392, %v4439
  %v4508 = vadd.f32 %v4393, %v4439
  %v4509 = vadd.f32 %v4394, %v4439
  %v4510 = vadd.f32 %v4395, %v4439
  %v4511 = vadd.f32 %v4396, %v4439
  %v4512 = vadd.f32 %v4397, %v4439
  %v4513 = vadd.f32 %v4398, %v4439
  %v4514 = vadd.f32 %v4399, %v4439
  %v4515 = vadd.f32 %v4400, %v4439
  %v4516 = vadd.f32 %v4401, %v4439
  %v4517 = vadd.f32 %v4402, %v4439
  %v4518 = vadd.f32 %v4403, %v4439
  %v4519 = vadd.f32 %v4404, %v4439
  %v4520 = vadd.f32 %v4405, %v4439
  %v4521 = vadd.f32 %v4406, %v4439
  %v4522 = vadd.f32 %v4407, %v4439
  %v4523 = vadd.f32 %v4408, %v4439
  %v4524 = vadd.f32 %v4409, %v4439
  %v4525 = vadd.f32 %v4410, %v4439
  %v4526 = vadd.f32 %v4411, %v4439
  %v4527 = vadd.f32 %v4412, %v4439
  %v4528 = vadd.f32 %v4413, %v4439
  %v4529 = vadd.f32 %v4414, %v4439
  %v4530 = vadd.f32 %v4415, %v4439
  %v4531 = vadd.f32 %v4416, %v4439
  %v4532 = vadd.f32 %v4417, %v4439
  %v4533 = vadd.f32 %v4418, %v4439
  %v4534 = vadd.f32 %v4419, %v4439
  %v4535 = vadd.f32 %v4420, %v4439
  %v4536 = vadd.f32 %v4421, %v4439
  %v4537 = vadd.f32 %v4422, %v4439
  %v4538 = vadd.f32 %v4423, %v4439
  %v4539 = vadd.f32 %v4424, %v4439
  %v4540 = vadd.f32 %v4425, %v4439
  %v4541 = vadd.f32 %v4426, %v4439
  %v4542 = vadd.f32 %v4427, %v4439
  %v4543 = vadd.f32 %v4428, %v4439
  %v4544 = vadd.f32 %v4429, %v4439
  %v4545 = vadd.f32 %v4430, %v4439
  %v4546 = vadd.f32 %v4431, %v4439
  %v4547 = vadd.f32 %v4432, %v4439
  %v4548 = vadd.f32 %v4433, %v4439
  %v4549 = vadd.f32 %v4434, %v4439
  %v4550 = vadd.f32 %v4435, %v4439
  %v4551 = vmax.f32 %v4440, 0.0
  %v4552 = vmax.f32 %v4441, 0.0
  %v4553 = vmax.f32 %v4442, 0.0
  %v4554 = vmax.f32 %v4443, 0.0
  %v4555 = vmax.f32 %v4444, 0.0
  %v4556 = vmax.f32 %v4445, 0.0
  %v4557 = vmax.f32 %v4446, 0.0
  %v4558 = vmax.f32 %v4447, 0.0
  %v4559 = vmax.f32 %v4448, 0.0
  %v4560 = vmax.f32 %v4449, 0.0
  %v4561 = vmax.f32 %v4450, 0.0
  %v4562 = vmax.f32 %v4451, 0.0
  %v4563 = vmax.f32 %v4452, 0.0
  %v4564 = vmax.f32 %v4453, 0.0
  %v4565 = vmax.f32 %v4454, 0.0
  %v4566 = vmax.f32 %v4455, 0.0
  %v4567 = vmax.f32 %v4456, 0.0
  %v4568 = vmax.f32 %v4457, 0.0
  %v4569 = vmax.f32 %v4458, 0.0
  %v4570 = vmax.f32 %v4459, 0.0
  %v4571 = vmax.f32 %v4460, 0.0
  %v4572 = vmax.f32 %v4461, 0.0
  %v4573 = vmax.f32 %v4462, 0.0
  %v4574 = vmax.f32 %v4463, 0.0
  %v4575 = vmax.f32 %v4464, 0.0
  %v4576 = vmax.f32 %v4465, 0.0
  %v4577 = vmax.f32 %v4466, 0.0
  %v4578 = vmax.f32 %v4467, 0.0
  %v4579 = vmax.f32 %v4468, 0.0
  %v4580 = vmax.f32 %v4469, 0.0
  %v4581 = vmax.f32 %v4470, 0.0
  %v4582 = vmax.f32 %v4471, 0.0
  %v4583 = vmax.f32 %v4472, 0.0
  %v4584 = vmax.f32 %v4473, 0.0
  %v4585 = vmax.f32 %v4474, 0.0
  %v4586 = vmax.f32 %v4475, 0.0
  %v4587 = vmax.f32 %v4476, 0.0
  %v4588 = vmax.f32 %v4477, 0.0
  %v4589 = vmax.f32 %v4478, 0.0
  %v4590 = vmax.f32 %v4479, 0.0
  %v4591 = vmax.f32 %v4480, 0.0
  %v4592 = vmax.f32 %v4481, 0.0
  %v4593 = vmax.f32 %v4482, 0.0
  %v4594 = vmax.f32 %v4483, 0.0
  %v4595 = vmax.f32 %v4484, 0.0
  %v4596 = vmax.f32 %v4485, 0.0
  %v4597 = vmax.f32 %v4486, 0.0
  %v4598 = vmax.f32 %v4487, 0.0
  %v4599 = vmax.f32 %v4488, 0.0
  %v4600 = vmax.f32 %v4489, 0.0
  %v4601 = vmax.f32 %v4490, 0.0
  %v4602 = vmax.f32 %v4491, 0.0
  %v4603 = vmax.f32 %v4492, 0.0
  %v4604 = vmax.f32 %v4493, 0.0
  %v4605 = vmax.f32 %v4494, 0.0
  %v4606 = vmax.f32 %v4495, 0.0
  %v4607 = vmax.f32 %v4496, 0.0
  %v4608 = vmax.f32 %v4497, 0.0
  %v4609 = vmax.f32 %v4498, 0.0
  %v4610 = vmax.f32 %v4499, 0.0
  %v4611 = vmax.f32 %v4500, 0.0
  %v4612 = vmax.f32 %v4501, 0.0
  %v4613 = vmax.f32 %v4502, 0.0
  %v4614 = vmax.f32 %v4503, 0.0
  %v4615 = vmax.f32 %v4504, 0.0
  %v4616 = vmax.f32 %v4505, 0.0
  %v4617 = vmax.f32 %v4506, 0.0
  %v4618 = vmax.f32 %v4507, 0.0
  %v4619 = vmax.f32 %v4508, 0.0
  %v4620 = vmax.f32 %v4509, 0.0
  %v4621 = vmax.f32 %v4510, 0.0
  %v4622 = vmax.f32 %v4511, 0.0
  %v4623 = vmax.f32 %v4512, 0.0
  %v4624 = vmax.f32 %v4513, 0.0
  %v4625 = vmax.f32 %v4514, 0.0
  %v4626 = vmax.f32 %v4515, 0.0
  %v4627 = vmax.f32 %v4516, 0.0
  %v4628 = vmax.f32 %v4517, 0.0
  %v4629 = vmax.f32 %v4518, 0.0
  %v4630 = vmax.f32 %v4519, 0.0
  %v4631 = vmax.f32 %v4520, 0.0
  %v4632 = vmax.f32 %v4521, 0.0
  %v4633 = vmax.f32 %v4522, 0.0
  %v4634 = vmax.f32 %v4523, 0.0
  %v4635 = vmax.f32 %v4524, 0.0
  %v4636 = vmax.f32 %v4525, 0.0
  %v4637 = vmax.f32 %v4526, 0.0
  %v4638 = vmax.f32 %v4527, 0.0
  %v4639 = vmax.f32 %v4528, 0.0
  %v4640 = vmax.f32 %v4529, 0.0
  %v4641 = vmax.f32 %v4530, 0.0
  %v4642 = vmax.f32 %v4531, 0.0
  %v4643 = vmax.f32 %v4532, 0.0
  %v4644 = vmax.f32 %v4533, 0.0
  %v4645 = vmax.f32 %v4534, 0.0
  %v4646 = vmax.f32 %v4535, 0.0
  %v4647 = vmax.f32 %v4536, 0.0
  %v4648 = vmax.f32 %v4537, 0.0
  %v4649 = vmax.f32 %v4538, 0.0
  %v4650 = vmax.f32 %v4539, 0.0
  %v4651 = vmax.f32 %v4540, 0.0
  %v4652 = vmax.f32 %v4541, 0.0
  %v4653 = vmax.f32 %v4542, 0.0
  %v4654 = vmax.f32 %v4543, 0.0
  %v4655 = vmax.f32 %v4544, 0.0
  %v4656 = vmax.f32 %v4545, 0.0
  %v4657 = vmax.f32 %v4546, 0.0
  %v4658 = vmax.f32 %v4547, 0.0
  %v4659 = vmax.f32 %v4548, 0.0
  %v4660 = vmax.f32 %v4549, 0.0
  %v4661 = vmax.f32 %v4550, 0.0
  %v4662 = vpack.c.bf16 %v4552, %v4551
  %v4663 = vpack.c.bf16 %v4554, %v4553
  %v4664 = vpack.c.bf16 %v4556, %v4555
  %v4665 = vpack.c.bf16 %v4558, %v4557
  %v4666 = vpack.c.bf16 %v4560, %v4559
  %v4667 = vpack.c.bf16 %v4562, %v4561
  %v4668 = vpack.c.bf16 %v4564, %v4563
  %v4669 = vpack.c.bf16 %v4566, %v4565
  %v4670 = vpack.c.bf16 %v4568, %v4567
  %v4671 = vpack.c.bf16 %v4570, %v4569
  %v4672 = vpack.c.bf16 %v4572, %v4571
  %v4673 = vpack.c.bf16 %v4574, %v4573
  %v4674 = vpack.c.bf16 %v4576, %v4575
  %v4675 = vpack.c.bf16 %v4578, %v4577
  %v4676 = vpack.c.bf16 %v4580, %v4579
  %v4677 = vpack.c.bf16 %v4582, %v4581
  %v4678 = vpack.c.bf16 %v4584, %v4583
  %v4679 = vpack.c.bf16 %v4586, %v4585
  %v4680 = vpack.c.bf16 %v4588, %v4587
  %v4681 = vpack.c.bf16 %v4590, %v4589
  %v4682 = vpack.c.bf16 %v4592, %v4591
  %v4683 = vpack.c.bf16 %v4594, %v4593
  %v4684 = vpack.c.bf16 %v4596, %v4595
  %v4685 = vpack.c.bf16 %v4598, %v4597
  %v4686 = vpack.c.bf16 %v4600, %v4599
  %v4687 = vpack.c.bf16 %v4602, %v4601
  %v4688 = vpack.c.bf16 %v4604, %v4603
  %v4689 = vpack.c.bf16 %v4606, %v4605
  %v4690 = vpack.c.bf16 %v4608, %v4607
  %v4691 = vpack.c.bf16 %v4610, %v4609
  %v4692 = vpack.c.bf16 %v4612, %v4611
  %v4693 = vpack.c.bf16 %v4614, %v4613
  %v4694 = vpack.c.bf16 %v4616, %v4615
  %v4695 = vpack.c.bf16 %v4618, %v4617
  %v4696 = vpack.c.bf16 %v4620, %v4619
  %v4697 = vpack.c.bf16 %v4622, %v4621
  %v4698 = vpack.c.bf16 %v4624, %v4623
  %v4699 = vpack.c.bf16 %v4626, %v4625
  %v4700 = vpack.c.bf16 %v4628, %v4627
  %v4701 = vpack.c.bf16 %v4630, %v4629
  %v4702 = vpack.c.bf16 %v4632, %v4631
  %v4703 = vpack.c.bf16 %v4634, %v4633
  %v4704 = vpack.c.bf16 %v4636, %v4635
  %v4705 = vpack.c.bf16 %v4638, %v4637
  %v4706 = vpack.c.bf16 %v4640, %v4639
  %v4707 = vpack.c.bf16 %v4642, %v4641
  %v4708 = vpack.c.bf16 %v4644, %v4643
  %v4709 = vpack.c.bf16 %v4646, %v4645
  %v4710 = vpack.c.bf16 %v4648, %v4647
  %v4711 = vpack.c.bf16 %v4650, %v4649
  %v4712 = vpack.c.bf16 %v4652, %v4651
  %v4713 = vpack.c.bf16 %v4654, %v4653
  %v4714 = vpack.c.bf16 %v4656, %v4655
  %v4715 = vpack.c.bf16 %v4658, %v4657
  %v4716 = vpack.c.bf16 %v4660, %v4659
  %v4717 = vpack.c.bf16 %v4661, %v4661
  %v4774 = vunpack.c.l.b16 %v4662
  %v4775 = vunpack.c.h.b16 %v4662
  %v4776 = vunpack.c.l.b16 %v4663
  %v4777 = vunpack.c.h.b16 %v4663
  %v4778 = vunpack.c.l.b16 %v4664
  %v4779 = vunpack.c.h.b16 %v4664
  %v4780 = vunpack.c.l.b16 %v4665
  %v4781 = vunpack.c.h.b16 %v4665
  %v4782 = vunpack.c.l.b16 %v4666
  %v4783 = vunpack.c.h.b16 %v4666
  %v4784 = vunpack.c.l.b16 %v4667
  %v4785 = vunpack.c.h.b16 %v4667
  %v4786 = vunpack.c.l.b16 %v4668
  %v4787 = vunpack.c.h.b16 %v4668
  %v4788 = vunpack.c.l.b16 %v4669
  %v4789 = vunpack.c.h.b16 %v4669
  %v4790 = vunpack.c.l.b16 %v4670
  %v4791 = vunpack.c.h.b16 %v4670
  %v4792 = vunpack.c.l.b16 %v4671
  %v4793 = vunpack.c.h.b16 %v4671
  %v4794 = vunpack.c.l.b16 %v4672
  %v4795 = vunpack.c.h.b16 %v4672
  %v4796 = vunpack.c.l.b16 %v4673
  %v4797 = vunpack.c.h.b16 %v4673
  %v4798 = vunpack.c.l.b16 %v4674
  %v4799 = vunpack.c.h.b16 %v4674
  %v4800 = vunpack.c.l.b16 %v4675
  %v4801 = vunpack.c.h.b16 %v4675
  %v4802 = vunpack.c.l.b16 %v4676
  %v4803 = vunpack.c.h.b16 %v4676
  %v4804 = vunpack.c.l.b16 %v4677
  %v4805 = vunpack.c.h.b16 %v4677
  %v4806 = vunpack.c.l.b16 %v4678
  %v4807 = vunpack.c.h.b16 %v4678
  %v4808 = vunpack.c.l.b16 %v4679
  %v4809 = vunpack.c.h.b16 %v4679
  %v4810 = vunpack.c.l.b16 %v4680
  %v4811 = vunpack.c.h.b16 %v4680
  %v4812 = vunpack.c.l.b16 %v4681
  %v4813 = vunpack.c.h.b16 %v4681
  %v4814 = vunpack.c.l.b16 %v4682
  %v4815 = vunpack.c.h.b16 %v4682
  %v4816 = vunpack.c.l.b16 %v4683
  %v4817 = vunpack.c.h.b16 %v4683
  %v4818 = vunpack.c.l.b16 %v4684
  %v4819 = vunpack.c.h.b16 %v4684
  %v4820 = vunpack.c.l.b16 %v4685
  %v4821 = vunpack.c.h.b16 %v4685
  %v4822 = vunpack.c.l.b16 %v4686
  %v4823 = vunpack.c.h.b16 %v4686
  %v4824 = vunpack.c.l.b16 %v4687
  %v4825 = vunpack.c.h.b16 %v4687
  %v4826 = vunpack.c.l.b16 %v4688
  %v4827 = vunpack.c.h.b16 %v4688
  %v4828 = vunpack.c.l.b16 %v4689
  %v4829 = vunpack.c.h.b16 %v4689
  %v4830 = vunpack.c.l.b16 %v4690
  %v4831 = vunpack.c.h.b16 %v4690
  %v4832 = vunpack.c.l.b16 %v4691
  %v4833 = vunpack.c.h.b16 %v4691
  %v4834 = vunpack.c.l.b16 %v4692
  %v4835 = vunpack.c.h.b16 %v4692
  %v4836 = vunpack.c.l.b16 %v4693
  %v4837 = vunpack.c.h.b16 %v4693
  %v4838 = vunpack.c.l.b16 %v4694
  %v4839 = vunpack.c.h.b16 %v4694
  %v4840 = vunpack.c.l.b16 %v4695
  %v4841 = vunpack.c.h.b16 %v4695
  %v4842 = vunpack.c.l.b16 %v4696
  %v4843 = vunpack.c.h.b16 %v4696
  %v4844 = vunpack.c.l.b16 %v4697
  %v4845 = vunpack.c.h.b16 %v4697
  %v4846 = vunpack.c.l.b16 %v4698
  %v4847 = vunpack.c.h.b16 %v4698
  %v4848 = vunpack.c.l.b16 %v4699
  %v4849 = vunpack.c.h.b16 %v4699
  %v4850 = vunpack.c.l.b16 %v4700
  %v4851 = vunpack.c.h.b16 %v4700
  %v4852 = vunpack.c.l.b16 %v4701
  %v4853 = vunpack.c.h.b16 %v4701
  %v4854 = vunpack.c.l.b16 %v4702
  %v4855 = vunpack.c.h.b16 %v4702
  %v4856 = vunpack.c.l.b16 %v4703
  %v4857 = vunpack.c.h.b16 %v4703
  %v4858 = vunpack.c.l.b16 %v4704
  %v4859 = vunpack.c.h.b16 %v4704
  %v4860 = vunpack.c.l.b16 %v4705
  %v4861 = vunpack.c.h.b16 %v4705
  %v4862 = vunpack.c.l.b16 %v4706
  %v4863 = vunpack.c.h.b16 %v4706
  %v4864 = vunpack.c.l.b16 %v4707
  %v4865 = vunpack.c.h.b16 %v4707
  %v4866 = vunpack.c.l.b16 %v4708
  %v4867 = vunpack.c.h.b16 %v4708
  %v4868 = vunpack.c.l.b16 %v4709
  %v4869 = vunpack.c.h.b16 %v4709
  %v4870 = vunpack.c.l.b16 %v4710
  %v4871 = vunpack.c.h.b16 %v4710
  %v4872 = vunpack.c.l.b16 %v4711
  %v4873 = vunpack.c.h.b16 %v4711
  %v4874 = vunpack.c.l.b16 %v4712
  %v4875 = vunpack.c.h.b16 %v4712
  %v4876 = vunpack.c.l.b16 %v4713
  %v4877 = vunpack.c.h.b16 %v4713
  %v4878 = vunpack.c.l.b16 %v4714
  %v4879 = vunpack.c.h.b16 %v4714
  %v4880 = vunpack.c.l.b16 %v4715
  %v4881 = vunpack.c.h.b16 %v4715
  %v4882 = vunpack.c.l.b16 %v4716
  %v4883 = vunpack.c.h.b16 %v4716
  %v4884 = vunpack.c.l.b16 %v4717
  %v4885 = vpack.c.b16 %v4774, %v4774
  %v4886 = vpack.c.b16 %v4775, %v4775
  %v4887 = vpack.c.b16 %v4776, %v4776
  %v4888 = vpack.c.b16 %v4777, %v4777
  %v4889 = vpack.c.b16 %v4778, %v4778
  %v4890 = vpack.c.b16 %v4779, %v4779
  %v4891 = vpack.c.b16 %v4780, %v4780
  %v4892 = vpack.c.b16 %v4781, %v4781
  %v4893 = vpack.c.b16 %v4782, %v4782
  %v4894 = vpack.c.b16 %v4783, %v4783
  %v4895 = vpack.c.b16 %v4784, %v4784
  %v4896 = vpack.c.b16 %v4785, %v4785
  %v4897 = vpack.c.b16 %v4786, %v4786
  %v4898 = vpack.c.b16 %v4787, %v4787
  %v4899 = vpack.c.b16 %v4788, %v4788
  %v4900 = vpack.c.b16 %v4789, %v4789
  %v4901 = vpack.c.b16 %v4790, %v4790
  %v4902 = vpack.c.b16 %v4791, %v4791
  %v4903 = vpack.c.b16 %v4792, %v4792
  %v4904 = vpack.c.b16 %v4793, %v4793
  %v4905 = vpack.c.b16 %v4794, %v4794
  %v4906 = vpack.c.b16 %v4795, %v4795
  %v4907 = vpack.c.b16 %v4796, %v4796
  %v4908 = vpack.c.b16 %v4797, %v4797
  %v4909 = vpack.c.b16 %v4798, %v4798
  %v4910 = vpack.c.b16 %v4799, %v4799
  %v4911 = vpack.c.b16 %v4800, %v4800
  %v4912 = vpack.c.b16 %v4801, %v4801
  %v4913 = vpack.c.b16 %v4802, %v4802
  %v4914 = vpack.c.b16 %v4803, %v4803
  %v4915 = vpack.c.b16 %v4804, %v4804
  %v4916 = vpack.c.b16 %v4805, %v4805
  %v4917 = vpack.c.b16 %v4806, %v4806
  %v4918 = vpack.c.b16 %v4807, %v4807
  %v4919 = vpack.c.b16 %v4808, %v4808
  %v4920 = vpack.c.b16 %v4809, %v4809
  %v4921 = vpack.c.b16 %v4810, %v4810
  %v4922 = vpack.c.b16 %v4811, %v4811
  %v4923 = vpack.c.b16 %v4812, %v4812
  %v4924 = vpack.c.b16 %v4813, %v4813
  %v4925 = vpack.c.b16 %v4814, %v4814
  %v4926 = vpack.c.b16 %v4815, %v4815
  %v4927 = vpack.c.b16 %v4816, %v4816
  %v4928 = vpack.c.b16 %v4817, %v4817
  %v4929 = vpack.c.b16 %v4818, %v4818
  %v4930 = vpack.c.b16 %v4819, %v4819
  %v4931 = vpack.c.b16 %v4820, %v4820
  %v4932 = vpack.c.b16 %v4821, %v4821
  %v4933 = vpack.c.b16 %v4822, %v4822
  %v4934 = vpack.c.b16 %v4823, %v4823
  %v4935 = vpack.c.b16 %v4824, %v4824
  %v4936 = vpack.c.b16 %v4825, %v4825
  %v4937 = vpack.c.b16 %v4826, %v4826
  %v4938 = vpack.c.b16 %v4827, %v4827
  %v4939 = vpack.c.b16 %v4828, %v4828
  %v4940 = vpack.c.b16 %v4829, %v4829
  %v4941 = vpack.c.b16 %v4830, %v4830
  %v4942 = vpack.c.b16 %v4831, %v4831
  %v4943 = vpack.c.b16 %v4832, %v4832
  %v4944 = vpack.c.b16 %v4833, %v4833
  %v4945 = vpack.c.b16 %v4834, %v4834
  %v4946 = vpack.c.b16 %v4835, %v4835
  %v4947 = vpack.c.b16 %v4836, %v4836
  %v4948 = vpack.c.b16 %v4837, %v4837
  %v4949 = vpack.c.b16 %v4838, %v4838
  %v4950 = vpack.c.b16 %v4839, %v4839
  %v4951 = vpack.c.b16 %v4840, %v4840
  %v4952 = vpack.c.b16 %v4841, %v4841
  %v4953 = vpack.c.b16 %v4842, %v4842
  %v4954 = vpack.c.b16 %v4843, %v4843
  %v4955 = vpack.c.b16 %v4844, %v4844
  %v4956 = vpack.c.b16 %v4845, %v4845
  %v4957 = vpack.c.b16 %v4846, %v4846
  %v4958 = vpack.c.b16 %v4847, %v4847
  %v4959 = vpack.c.b16 %v4848, %v4848
  %v4960 = vpack.c.b16 %v4849, %v4849
  %v4961 = vpack.c.b16 %v4850, %v4850
  %v4962 = vpack.c.b16 %v4851, %v4851
  %v4963 = vpack.c.b16 %v4852, %v4852
  %v4964 = vpack.c.b16 %v4853, %v4853
  %v4965 = vpack.c.b16 %v4854, %v4854
  %v4966 = vpack.c.b16 %v4855, %v4855
  %v4967 = vpack.c.b16 %v4856, %v4856
  %v4968 = vpack.c.b16 %v4857, %v4857
  %v4969 = vpack.c.b16 %v4858, %v4858
  %v4970 = vpack.c.b16 %v4859, %v4859
  %v4971 = vpack.c.b16 %v4860, %v4860
  %v4972 = vpack.c.b16 %v4861, %v4861
  %v4973 = vpack.c.b16 %v4862, %v4862
  %v4974 = vpack.c.b16 %v4863, %v4863
  %v4975 = vpack.c.b16 %v4864, %v4864
  %v4976 = vpack.c.b16 %v4865, %v4865
  %v4977 = vpack.c.b16 %v4866, %v4866
  %v4978 = vpack.c.b16 %v4867, %v4867
  %v4979 = vpack.c.b16 %v4868, %v4868
  %v4980 = vpack.c.b16 %v4869, %v4869
  %v4981 = vpack.c.b16 %v4870, %v4870
  %v4982 = vpack.c.b16 %v4871, %v4871
  %v4983 = vpack.c.b16 %v4872, %v4872
  %v4984 = vpack.c.b16 %v4873, %v4873
  %v4985 = vpack.c.b16 %v4874, %v4874
  %v4986 = vpack.c.b16 %v4875, %v4875
  %v4987 = vpack.c.b16 %v4876, %v4876
  %v4988 = vpack.c.b16 %v4877, %v4877
  %v4989 = vpack.c.b16 %v4878, %v4878
  %v4990 = vpack.c.b16 %v4879, %v4879
  %v4991 = vpack.c.b16 %v4880, %v4880
  %v4992 = vpack.c.b16 %v4881, %v4881
  %v4993 = vpack.c.b16 %v4882, %v4882
  %v4994 = vpack.c.b16 %v4883, %v4883
  %v4995 = vpack.c.b16 %v4884, %v4884
  %vm5107 = vcmask 60416
  %5108 = vst.msk [vmem:[%s3] sm:$0xf] %vm5107, %v4885
  %5109 = vst.msk [vmem:[%s3 + $0x4] sm:$0xf] %vm5107, %v4886
  %5110 = vst.msk [vmem:[%s3 + $0x8] sm:$0xf] %vm5107, %v4887
  %5111 = vst.msk [vmem:[%s3 + $0xc] sm:$0xf] %vm5107, %v4888
  %5112 = vst.msk [vmem:[%s3 + $0x10] sm:$0xf] %vm5107, %v4889
  %5113 = vst.msk [vmem:[%s3 + $0x14] sm:$0xf] %vm5107, %v4890
  %5114 = vst.msk [vmem:[%s3 + $0x18] sm:$0xf] %vm5107, %v4891
  %5115 = vst.msk [vmem:[%s3 + $0x1c] sm:$0xf] %vm5107, %v4892
  %5116 = vst.msk [vmem:[%s3 + $0x20] sm:$0xf] %vm5107, %v4893
  %5117 = vst.msk [vmem:[%s3 + $0x24] sm:$0xf] %vm5107, %v4894
  %5118 = vst.msk [vmem:[%s3 + $0x28] sm:$0xf] %vm5107, %v4895
  %5119 = vst.msk [vmem:[%s3 + $0x2c] sm:$0xf] %vm5107, %v4896
  %5120 = vst.msk [vmem:[%s3 + $0x30] sm:$0xf] %vm5107, %v4897
  %5121 = vst.msk [vmem:[%s3 + $0x34] sm:$0xf] %vm5107, %v4898
  %5122 = vst.msk [vmem:[%s3 + $0x38] sm:$0xf] %vm5107, %v4899
  %5123 = vst.msk [vmem:[%s3 + $0x3c] sm:$0xf] %vm5107, %v4900
  %5124 = vst.msk [vmem:[%s3 + $0x40] sm:$0xf] %vm5107, %v4901
  %5125 = vst.msk [vmem:[%s3 + $0x44] sm:$0xf] %vm5107, %v4902
  %5126 = vst.msk [vmem:[%s3 + $0x48] sm:$0xf] %vm5107, %v4903
  %5127 = vst.msk [vmem:[%s3 + $0x4c] sm:$0xf] %vm5107, %v4904
  %5128 = vst.msk [vmem:[%s3 + $0x50] sm:$0xf] %vm5107, %v4905
  %5129 = vst.msk [vmem:[%s3 + $0x54] sm:$0xf] %vm5107, %v4906
  %5130 = vst.msk [vmem:[%s3 + $0x58] sm:$0xf] %vm5107, %v4907
  %5131 = vst.msk [vmem:[%s3 + $0x5c] sm:$0xf] %vm5107, %v4908
  %5132 = vst.msk [vmem:[%s3 + $0x60] sm:$0xf] %vm5107, %v4909
  %5133 = vst.msk [vmem:[%s3 + $0x64] sm:$0xf] %vm5107, %v4910
  %5134 = vst.msk [vmem:[%s3 + $0x68] sm:$0xf] %vm5107, %v4911
  %5135 = vst.msk [vmem:[%s3 + $0x6c] sm:$0xf] %vm5107, %v4912
  %5136 = vst.msk [vmem:[%s3 + $0x70] sm:$0xf] %vm5107, %v4913
  %5137 = vst.msk [vmem:[%s3 + $0x74] sm:$0xf] %vm5107, %v4914
  %5138 = vst.msk [vmem:[%s3 + $0x78] sm:$0xf] %vm5107, %v4915
  %5139 = vst.msk [vmem:[%s3 + $0x7c] sm:$0xf] %vm5107, %v4916
  %5140 = vst.msk [vmem:[%s3 + $0x80] sm:$0xf] %vm5107, %v4917
  %5141 = vst.msk [vmem:[%s3 + $0x84] sm:$0xf] %vm5107, %v4918
  %5142 = vst.msk [vmem:[%s3 + $0x88] sm:$0xf] %vm5107, %v4919
  %5143 = vst.msk [vmem:[%s3 + $0x8c] sm:$0xf] %vm5107, %v4920
  %5144 = vst.msk [vmem:[%s3 + $0x90] sm:$0xf] %vm5107, %v4921
  %5145 = vst.msk [vmem:[%s3 + $0x94] sm:$0xf] %vm5107, %v4922
  %5146 = vst.msk [vmem:[%s3 + $0x98] sm:$0xf] %vm5107, %v4923
  %5147 = vst.msk [vmem:[%s3 + $0x9c] sm:$0xf] %vm5107, %v4924
  %5148 = vst.msk [vmem:[%s3 + $0xa0] sm:$0xf] %vm5107, %v4925
  %5149 = vst.msk [vmem:[%s3 + $0xa4] sm:$0xf] %vm5107, %v4926
  %5150 = vst.msk [vmem:[%s3 + $0xa8] sm:$0xf] %vm5107, %v4927
  %5151 = vst.msk [vmem:[%s3 + $0xac] sm:$0xf] %vm5107, %v4928
  %5152 = vst.msk [vmem:[%s3 + $0xb0] sm:$0xf] %vm5107, %v4929
  %5153 = vst.msk [vmem:[%s3 + $0xb4] sm:$0xf] %vm5107, %v4930
  %5154 = vst.msk [vmem:[%s3 + $0xb8] sm:$0xf] %vm5107, %v4931
  %5155 = vst.msk [vmem:[%s3 + $0xbc] sm:$0xf] %vm5107, %v4932
  %5156 = vst.msk [vmem:[%s3 + $0xc0] sm:$0xf] %vm5107, %v4933
  %5157 = vst.msk [vmem:[%s3 + $0xc4] sm:$0xf] %vm5107, %v4934
  %5158 = vst.msk [vmem:[%s3 + $0xc8] sm:$0xf] %vm5107, %v4935
  %5159 = vst.msk [vmem:[%s3 + $0xcc] sm:$0xf] %vm5107, %v4936
  %5160 = vst.msk [vmem:[%s3 + $0xd0] sm:$0xf] %vm5107, %v4937
  %5161 = vst.msk [vmem:[%s3 + $0xd4] sm:$0xf] %vm5107, %v4938
  %5162 = vst.msk [vmem:[%s3 + $0xd8] sm:$0xf] %vm5107, %v4939
  %5163 = vst.msk [vmem:[%s3 + $0xdc] sm:$0xf] %vm5107, %v4940
  %5164 = vst.msk [vmem:[%s3 + $0xe0] sm:$0xf] %vm5107, %v4941
  %5165 = vst.msk [vmem:[%s3 + $0xe4] sm:$0xf] %vm5107, %v4942
  %5166 = vst.msk [vmem:[%s3 + $0xe8] sm:$0xf] %vm5107, %v4943
  %5167 = vst.msk [vmem:[%s3 + $0xec] sm:$0xf] %vm5107, %v4944
  %5168 = vst.msk [vmem:[%s3 + $0xf0] sm:$0xf] %vm5107, %v4945
  %5169 = vst.msk [vmem:[%s3 + $0xf4] sm:$0xf] %vm5107, %v4946
  %5170 = vst.msk [vmem:[%s3 + $0xf8] sm:$0xf] %vm5107, %v4947
  %5171 = vst.msk [vmem:[%s3 + $0xfc] sm:$0xf] %vm5107, %v4948
  %5172 = vst.msk [vmem:[%s3 + $0x100] sm:$0xf] %vm5107, %v4949
  %5173 = vst.msk [vmem:[%s3 + $0x104] sm:$0xf] %vm5107, %v4950
  %5174 = vst.msk [vmem:[%s3 + $0x108] sm:$0xf] %vm5107, %v4951
  %5175 = vst.msk [vmem:[%s3 + $0x10c] sm:$0xf] %vm5107, %v4952
  %5176 = vst.msk [vmem:[%s3 + $0x110] sm:$0xf] %vm5107, %v4953
  %5177 = vst.msk [vmem:[%s3 + $0x114] sm:$0xf] %vm5107, %v4954
  %5178 = vst.msk [vmem:[%s3 + $0x118] sm:$0xf] %vm5107, %v4955
  %5179 = vst.msk [vmem:[%s3 + $0x11c] sm:$0xf] %vm5107, %v4956
  %5180 = vst.msk [vmem:[%s3 + $0x120] sm:$0xf] %vm5107, %v4957
  %5181 = vst.msk [vmem:[%s3 + $0x124] sm:$0xf] %vm5107, %v4958
  %5182 = vst.msk [vmem:[%s3 + $0x128] sm:$0xf] %vm5107, %v4959
  %5183 = vst.msk [vmem:[%s3 + $0x12c] sm:$0xf] %vm5107, %v4960
  %5184 = vst.msk [vmem:[%s3 + $0x130] sm:$0xf] %vm5107, %v4961
  %5185 = vst.msk [vmem:[%s3 + $0x134] sm:$0xf] %vm5107, %v4962
  %5186 = vst.msk [vmem:[%s3 + $0x138] sm:$0xf] %vm5107, %v4963
  %5187 = vst.msk [vmem:[%s3 + $0x13c] sm:$0xf] %vm5107, %v4964
  %5188 = vst.msk [vmem:[%s3 + $0x140] sm:$0xf] %vm5107, %v4965
  %5189 = vst.msk [vmem:[%s3 + $0x144] sm:$0xf] %vm5107, %v4966
  %5190 = vst.msk [vmem:[%s3 + $0x148] sm:$0xf] %vm5107, %v4967
  %5191 = vst.msk [vmem:[%s3 + $0x14c] sm:$0xf] %vm5107, %v4968
  %5192 = vst.msk [vmem:[%s3 + $0x150] sm:$0xf] %vm5107, %v4969
  %5193 = vst.msk [vmem:[%s3 + $0x154] sm:$0xf] %vm5107, %v4970
  %5194 = vst.msk [vmem:[%s3 + $0x158] sm:$0xf] %vm5107, %v4971
  %5195 = vst.msk [vmem:[%s3 + $0x15c] sm:$0xf] %vm5107, %v4972
  %5196 = vst.msk [vmem:[%s3 + $0x160] sm:$0xf] %vm5107, %v4973
  %5197 = vst.msk [vmem:[%s3 + $0x164] sm:$0xf] %vm5107, %v4974
  %5198 = vst.msk [vmem:[%s3 + $0x168] sm:$0xf] %vm5107, %v4975
  %5199 = vst.msk [vmem:[%s3 + $0x16c] sm:$0xf] %vm5107, %v4976
  %5200 = vst.msk [vmem:[%s3 + $0x170] sm:$0xf] %vm5107, %v4977
  %5201 = vst.msk [vmem:[%s3 + $0x174] sm:$0xf] %vm5107, %v4978
  %5202 = vst.msk [vmem:[%s3 + $0x178] sm:$0xf] %vm5107, %v4979
  %5203 = vst.msk [vmem:[%s3 + $0x17c] sm:$0xf] %vm5107, %v4980
  %5204 = vst.msk [vmem:[%s3 + $0x180] sm:$0xf] %vm5107, %v4981
  %5205 = vst.msk [vmem:[%s3 + $0x184] sm:$0xf] %vm5107, %v4982
  %5206 = vst.msk [vmem:[%s3 + $0x188] sm:$0xf] %vm5107, %v4983
  %5207 = vst.msk [vmem:[%s3 + $0x18c] sm:$0xf] %vm5107, %v4984
  %5208 = vst.msk [vmem:[%s3 + $0x190] sm:$0xf] %vm5107, %v4985
  %5209 = vst.msk [vmem:[%s3 + $0x194] sm:$0xf] %vm5107, %v4986
  %5210 = vst.msk [vmem:[%s3 + $0x198] sm:$0xf] %vm5107, %v4987
  %5211 = vst.msk [vmem:[%s3 + $0x19c] sm:$0xf] %vm5107, %v4988
  %5212 = vst.msk [vmem:[%s3 + $0x1a0] sm:$0xf] %vm5107, %v4989
  %5213 = vst.msk [vmem:[%s3 + $0x1a4] sm:$0xf] %vm5107, %v4990
  %5214 = vst.msk [vmem:[%s3 + $0x1a8] sm:$0xf] %vm5107, %v4991
  %5215 = vst.msk [vmem:[%s3 + $0x1ac] sm:$0xf] %vm5107, %v4992
  %5216 = vst.msk [vmem:[%s3 + $0x1b0] sm:$0xf] %vm5107, %v4993
  %5217 = vst.msk [vmem:[%s3 + $0x1b4] sm:$0xf] %vm5107, %v4994
  %vm5218 = vcmask 57344
  %5219 = vst.msk [vmem:[%s3 + $0x1b8] sm:$0x1] %vm5218, %v4995
  // Predicated region
  $region14: #{_lambda_.8} parent=0 // pred_check
    _
  $region15: #{_lambda_.8} parent=0 // pred_check_branch
    %5221 = sbr.rel (0) target = $region17
  $region16: #{_lambda_.8} parent=0 // pred_region
    _
  $region17: #{_lambda_.8} parent=0 // pred_fallthru
    _
  // Predicated region
  $region18: #{_lambda_.8} parent=0 // pred_check
    _
  $region19: #{_lambda_.8} parent=0 // pred_check_branch
    %5223 = sbr.rel (0) target = $region21
  $region20: #{_lambda_.8} parent=0 // pred_region
    _
  $region21: #{_lambda_.8} parent=0 // pred_fallthru
    _

// kernel: _lambda_.9
$region0: #{_lambda_.9}
  #allocation0 [shape = 'u32[]', space=smem, size = 0x4, offset = 0x4, fixed_abs, tag = 'smem constant byte address 0x4 - core index']
  #allocation1 [shape = 'u32[144,128]{1,0:T(1,128)}', space=vmem, size = 0x12000, scoped, tag = 'internal scratch']
  %s0 = inlined_call_operand.vmem [shape: bf16[1260,80], index: 0, kind: input, shape index: {}]
  %s1 = inlined_call_operand.vmem [shape: bf16[80,4], index: 1, kind: input, shape index: {}]
  %s2 = inlined_call_operand.vmem [shape: f32[2,4], index: 2, kind: input, shape index: {}]
  %s3 = inlined_call_operand.vmem [shape: f32[1260,4], index: 3, kind: output, shape index: {}]
  %s4 = sld [smem:[#allocation0]]
  $region22: #{_lambda_.9} parent=0
    _
  %s6 = ssub.s32 1, %s4
  %s7 = scalar_select 0, %s6, %s4
  // Predicated region
  $region2: #{_lambda_.9} parent=0 // pred_check
    _
  $region3: #{_lambda_.9} parent=0 // pred_check_branch
    %9 = sbr.rel (0) target = $region5
  $region4: #{_lambda_.9} parent=0 // pred_region
    _
  $region5: #{_lambda_.9} parent=0 // pred_fallthru
    _
  // Predicated region
  $region6: #{_lambda_.9} parent=0 // pred_check
    _
  $region7: #{_lambda_.9} parent=0 // pred_check_branch
    %11 = sbr.rel (0) target = $region9
  $region8: #{_lambda_.9} parent=0 // pred_region
    _
  $region9: #{_lambda_.9} parent=0 // pred_fallthru
    _
  // Predicated region
  $region10: #{_lambda_.9} parent=0 // pred_check
    _
  $region11: #{_lambda_.9} parent=0 // pred_check_branch
    %13 = sbr.rel (0) target = $region13
  $region12: #{_lambda_.9} parent=0 // pred_region
    _
  $region13: #{_lambda_.9} parent=0 // pred_fallthru
    _
  %v15 = vld [vmem:[%s0] sm:$0xf]
  %v16 = vld [vmem:[%s0 + $0x4] sm:$0xf]
  %v17 = vld [vmem:[%s0 + $0x8] sm:$0xf]
  %v18 = vld [vmem:[%s0 + $0xc] sm:$0xf]
  %v19 = vld [vmem:[%s0 + $0x10] sm:$0xf]
  %v20 = vld [vmem:[%s0 + $0x14] sm:$0xf]
  %v21 = vld [vmem:[%s0 + $0x18] sm:$0xf]
  %v22 = vld [vmem:[%s0 + $0x1c] sm:$0xf]
  %v23 = vld [vmem:[%s0 + $0x20] sm:$0xf]
  %v24 = vld [vmem:[%s0 + $0x24] sm:$0xf]
  %v25 = vld [vmem:[%s0 + $0x28] sm:$0xf]
  %v26 = vld [vmem:[%s0 + $0x2c] sm:$0xf]
  %v27 = vld [vmem:[%s0 + $0x30] sm:$0xf]
  %v28 = vld [vmem:[%s0 + $0x34] sm:$0xf]
  %v29 = vld [vmem:[%s0 + $0x38] sm:$0xf]
  %v30 = vld [vmem:[%s0 + $0x3c] sm:$0xf]
  %v31 = vld [vmem:[%s0 + $0x40] sm:$0xf]
  %v32 = vld [vmem:[%s0 + $0x44] sm:$0xf]
  %v33 = vld [vmem:[%s0 + $0x48] sm:$0xf]
  %v34 = vld [vmem:[%s0 + $0x4c] sm:$0xf]
  %v35 = vld [vmem:[%s0 + $0x50] sm:$0xf]
  %v36 = vld [vmem:[%s0 + $0x54] sm:$0xf]
  %v37 = vld [vmem:[%s0 + $0x58] sm:$0xf]
  %v38 = vld [vmem:[%s0 + $0x5c] sm:$0xf]
  %v39 = vld [vmem:[%s0 + $0x60] sm:$0xf]
  %v40 = vld [vmem:[%s0 + $0x64] sm:$0xf]
  %v41 = vld [vmem:[%s0 + $0x68] sm:$0xf]
  %v42 = vld [vmem:[%s0 + $0x6c] sm:$0xf]
  %v43 = vld [vmem:[%s0 + $0x70] sm:$0xf]
  %v44 = vld [vmem:[%s0 + $0x74] sm:$0xf]
  %v45 = vld [vmem:[%s0 + $0x78] sm:$0xf]
  %v46 = vld [vmem:[%s0 + $0x7c] sm:$0xf]
  %v47 = vld [vmem:[%s0 + $0x80] sm:$0xf]
  %v48 = vld [vmem:[%s0 + $0x84] sm:$0xf]
  %v49 = vld [vmem:[%s0 + $0x88] sm:$0xf]
  %v50 = vld [vmem:[%s0 + $0x8c] sm:$0xf]
  %v51 = vld [vmem:[%s0 + $0x90] sm:$0xf]
  %v52 = vld [vmem:[%s0 + $0x94] sm:$0xf]
  %v53 = vld [vmem:[%s0 + $0x98] sm:$0xf]
  %v54 = vld [vmem:[%s0 + $0x9c] sm:$0xf]
  %v55 = vld [vmem:[%s0 + $0xa0] sm:$0xf]
  %v56 = vld [vmem:[%s0 + $0xa4] sm:$0xf]
  %v57 = vld [vmem:[%s0 + $0xa8] sm:$0xf]
  %v58 = vld [vmem:[%s0 + $0xac] sm:$0xf]
  %v59 = vld [vmem:[%s0 + $0xb0] sm:$0xf]
  %v60 = vld [vmem:[%s0 + $0xb4] sm:$0xf]
  %v61 = vld [vmem:[%s0 + $0xb8] sm:$0xf]
  %v62 = vld [vmem:[%s0 + $0xbc] sm:$0xf]
  %v63 = vld [vmem:[%s0 + $0xc0] sm:$0xf]
  %v64 = vld [vmem:[%s0 + $0xc4] sm:$0xf]
  %v65 = vld [vmem:[%s0 + $0xc8] sm:$0xf]
  %v66 = vld [vmem:[%s0 + $0xcc] sm:$0xf]
  %v67 = vld [vmem:[%s0 + $0xd0] sm:$0xf]
  %v68 = vld [vmem:[%s0 + $0xd4] sm:$0xf]
  %v69 = vld [vmem:[%s0 + $0xd8] sm:$0xf]
  %v70 = vld [vmem:[%s0 + $0xdc] sm:$0xf]
  %v71 = vld [vmem:[%s0 + $0xe0] sm:$0xf]
  %v72 = vld [vmem:[%s0 + $0xe4] sm:$0xf]
  %v73 = vld [vmem:[%s0 + $0xe8] sm:$0xf]
  %v74 = vld [vmem:[%s0 + $0xec] sm:$0xf]
  %v75 = vld [vmem:[%s0 + $0xf0] sm:$0xf]
  %v76 = vld [vmem:[%s0 + $0xf4] sm:$0xf]
  %v77 = vld [vmem:[%s0 + $0xf8] sm:$0xf]
  %v78 = vld [vmem:[%s0 + $0xfc] sm:$0xf]
  %v79 = vld [vmem:[%s0 + $0x100] sm:$0xf]
  %v80 = vld [vmem:[%s0 + $0x104] sm:$0xf]
  %v81 = vld [vmem:[%s0 + $0x108] sm:$0xf]
  %v82 = vld [vmem:[%s0 + $0x10c] sm:$0xf]
  %v83 = vld [vmem:[%s0 + $0x110] sm:$0xf]
  %v84 = vld [vmem:[%s0 + $0x114] sm:$0xf]
  %v85 = vld [vmem:[%s0 + $0x118] sm:$0xf]
  %v86 = vld [vmem:[%s0 + $0x11c] sm:$0xf]
  %v87 = vld [vmem:[%s0 + $0x120] sm:$0xf]
  %v88 = vld [vmem:[%s0 + $0x124] sm:$0xf]
  %v89 = vld [vmem:[%s0 + $0x128] sm:$0xf]
  %v90 = vld [vmem:[%s0 + $0x12c] sm:$0xf]
  %v91 = vld [vmem:[%s0 + $0x130] sm:$0xf]
  %v92 = vld [vmem:[%s0 + $0x134] sm:$0xf]
  %v93 = vld [vmem:[%s0 + $0x138] sm:$0xf]
  %v94 = vld [vmem:[%s0 + $0x13c] sm:$0xf]
  %v95 = vld [vmem:[%s0 + $0x140] sm:$0xf]
  %v96 = vld [vmem:[%s0 + $0x144] sm:$0xf]
  %v97 = vld [vmem:[%s0 + $0x148] sm:$0xf]
  %v98 = vld [vmem:[%s0 + $0x14c] sm:$0xf]
  %v99 = vld [vmem:[%s0 + $0x150] sm:$0xf]
  %v100 = vld [vmem:[%s0 + $0x154] sm:$0xf]
  %v101 = vld [vmem:[%s0 + $0x158] sm:$0xf]
  %v102 = vld [vmem:[%s0 + $0x15c] sm:$0xf]
  %v103 = vld [vmem:[%s0 + $0x160] sm:$0xf]
  %v104 = vld [vmem:[%s0 + $0x164] sm:$0xf]
  %v105 = vld [vmem:[%s0 + $0x168] sm:$0xf]
  %v106 = vld [vmem:[%s0 + $0x16c] sm:$0xf]
  %v107 = vld [vmem:[%s0 + $0x170] sm:$0xf]
  %v108 = vld [vmem:[%s0 + $0x174] sm:$0xf]
  %v109 = vld [vmem:[%s0 + $0x178] sm:$0xf]
  %v110 = vld [vmem:[%s0 + $0x17c] sm:$0xf]
  %v111 = vld [vmem:[%s0 + $0x180] sm:$0xf]
  %v112 = vld [vmem:[%s0 + $0x184] sm:$0xf]
  %v113 = vld [vmem:[%s0 + $0x188] sm:$0xf]
  %v114 = vld [vmem:[%s0 + $0x18c] sm:$0xf]
  %v115 = vld [vmem:[%s0 + $0x190] sm:$0xf]
  %v116 = vld [vmem:[%s0 + $0x194] sm:$0xf]
  %v117 = vld [vmem:[%s0 + $0x198] sm:$0xf]
  %v118 = vld [vmem:[%s0 + $0x19c] sm:$0xf]
  %v119 = vld [vmem:[%s0 + $0x1a0] sm:$0xf]
  %v120 = vld [vmem:[%s0 + $0x1a4] sm:$0xf]
  %v121 = vld [vmem:[%s0 + $0x1a8] sm:$0xf]
  %v122 = vld [vmem:[%s0 + $0x1ac] sm:$0xf]
  %v123 = vld [vmem:[%s0 + $0x1b0] sm:$0xf]
  %v124 = vld [vmem:[%s0 + $0x1b4] sm:$0xf]
  %v125 = vld [vmem:[%s0 + $0x1b8] sm:$0xf]
  %v126 = vld [vmem:[%s0 + $0x1bc] sm:$0xf]
  %v127 = vld [vmem:[%s0 + $0x1c0] sm:$0xf]
  %v128 = vld [vmem:[%s0 + $0x1c4] sm:$0xf]
  %v129 = vld [vmem:[%s0 + $0x1c8] sm:$0xf]
  %v130 = vld [vmem:[%s0 + $0x1cc] sm:$0xf]
  %v131 = vld [vmem:[%s0 + $0x1d0] sm:$0xf]
  %v132 = vld [vmem:[%s0 + $0x1d4] sm:$0xf]
  %v133 = vld [vmem:[%s0 + $0x1d8] sm:$0xf]
  %v134 = vld [vmem:[%s0 + $0x1dc] sm:$0xf]
  %v135 = vld [vmem:[%s0 + $0x1e0] sm:$0xf]
  %v136 = vld [vmem:[%s0 + $0x1e4] sm:$0xf]
  %v137 = vld [vmem:[%s0 + $0x1e8] sm:$0xf]
  %v138 = vld [vmem:[%s0 + $0x1ec] sm:$0xf]
  %v139 = vld [vmem:[%s0 + $0x1f0] sm:$0xf]
  %v140 = vld [vmem:[%s0 + $0x1f4] sm:$0xf]
  %v141 = vld [vmem:[%s0 + $0x1f8] sm:$0xf]
  %v142 = vld [vmem:[%s0 + $0x1fc] sm:$0xf]
  %v143 = vld [vmem:[%s0 + $0x200] sm:$0xf]
  %v144 = vld [vmem:[%s0 + $0x204] sm:$0xf]
  %v145 = vld [vmem:[%s0 + $0x208] sm:$0xf]
  %v146 = vld [vmem:[%s0 + $0x20c] sm:$0xf]
  %v147 = vld [vmem:[%s0 + $0x210] sm:$0xf]
  %v148 = vld [vmem:[%s0 + $0x214] sm:$0xf]
  %v149 = vld [vmem:[%s0 + $0x218] sm:$0xf]
  %v150 = vld [vmem:[%s0 + $0x21c] sm:$0xf]
  %v151 = vld [vmem:[%s0 + $0x220] sm:$0xf]
  %v152 = vld [vmem:[%s0 + $0x224] sm:$0xf]
  %v153 = vld [vmem:[%s0 + $0x228] sm:$0xf]
  %v154 = vld [vmem:[%s0 + $0x22c] sm:$0xf]
  %v155 = vld [vmem:[%s0 + $0x230] sm:$0xf]
  %v156 = vld [vmem:[%s0 + $0x234] sm:$0xf]
  %v157 = vld [vmem:[%s0 + $0x238] sm:$0xf]
  %v158 = vld [vmem:[%s0 + $0x23c] sm:$0xf]
  %v159 = vld [vmem:[%s0 + $0x240] sm:$0xf]
  %v160 = vld [vmem:[%s0 + $0x244] sm:$0xf]
  %v161 = vld [vmem:[%s0 + $0x248] sm:$0xf]
  %v162 = vld [vmem:[%s0 + $0x24c] sm:$0xf]
  %v163 = vld [vmem:[%s0 + $0x250] sm:$0xf]
  %v164 = vld [vmem:[%s0 + $0x254] sm:$0xf]
  %v165 = vld [vmem:[%s0 + $0x258] sm:$0xf]
  %v166 = vld [vmem:[%s0 + $0x25c] sm:$0xf]
  %v167 = vld [vmem:[%s0 + $0x260] sm:$0xf]
  %v168 = vld [vmem:[%s0 + $0x264] sm:$0xf]
  %v169 = vld [vmem:[%s0 + $0x268] sm:$0xf]
  %v170 = vld [vmem:[%s0 + $0x26c] sm:$0xf]
  %v171 = vld [vmem:[%s0 + $0x270] sm:$0xf]
  %v172 = vld [vmem:[%s0 + $0x274] sm:$0x3]
  %v173 = vld [vmem:[%s1] sm:$0xf]
  %v174 = vld [vmem:[%s1 + $0x4] sm:$0xf]
  %v175 = vld [vmem:[%s1 + $0x8] sm:$0xf]
  %v176 = vld [vmem:[%s1 + $0xc] sm:$0xf]
  %v177 = vld [vmem:[%s1 + $0x10] sm:$0xf]
  %v178 = vld [vmem:[%s1 + $0x14] sm:$0xf]
  %v179 = vld [vmem:[%s1 + $0x18] sm:$0xf]
  %v180 = vld [vmem:[%s1 + $0x1c] sm:$0xf]
  %v181 = vld [vmem:[%s1 + $0x20] sm:$0xf]
  %v182 = vld [vmem:[%s1 + $0x24] sm:$0xf]
  %v341 = vunpack.c.l.b16 %v15
  %v342 = vunpack.c.l.b16 %v16
  %v343 = vunpack.c.l.b16 %v17
  %v344 = vunpack.c.l.b16 %v18
  %v345 = vunpack.c.l.b16 %v19
  %v346 = vunpack.c.l.b16 %v20
  %v347 = vunpack.c.l.b16 %v21
  %v348 = vunpack.c.l.b16 %v22
  %v349 = vunpack.c.l.b16 %v23
  %v350 = vunpack.c.l.b16 %v24
  %v351 = vunpack.c.l.b16 %v25
  %v352 = vunpack.c.l.b16 %v26
  %v353 = vunpack.c.l.b16 %v27
  %v354 = vunpack.c.l.b16 %v28
  %v355 = vunpack.c.l.b16 %v29
  %v356 = vunpack.c.l.b16 %v30
  %v357 = vunpack.c.l.b16 %v31
  %v358 = vunpack.c.l.b16 %v32
  %v359 = vunpack.c.l.b16 %v33
  %v360 = vunpack.c.l.b16 %v34
  %v361 = vunpack.c.l.b16 %v35
  %v362 = vunpack.c.l.b16 %v36
  %v363 = vunpack.c.l.b16 %v37
  %v364 = vunpack.c.l.b16 %v38
  %v365 = vunpack.c.l.b16 %v39
  %v366 = vunpack.c.l.b16 %v40
  %v367 = vunpack.c.l.b16 %v41
  %v368 = vunpack.c.l.b16 %v42
  %v369 = vunpack.c.l.b16 %v43
  %v370 = vunpack.c.l.b16 %v44
  %v371 = vunpack.c.l.b16 %v45
  %v372 = vunpack.c.l.b16 %v46
  %v373 = vunpack.c.l.b16 %v47
  %v374 = vunpack.c.l.b16 %v48
  %v375 = vunpack.c.l.b16 %v49
  %v376 = vunpack.c.l.b16 %v50
  %v377 = vunpack.c.l.b16 %v51
  %v378 = vunpack.c.l.b16 %v52
  %v379 = vunpack.c.l.b16 %v53
  %v380 = vunpack.c.l.b16 %v54
  %v381 = vunpack.c.l.b16 %v55
  %v382 = vunpack.c.l.b16 %v56
  %v383 = vunpack.c.l.b16 %v57
  %v384 = vunpack.c.l.b16 %v58
  %v385 = vunpack.c.l.b16 %v59
  %v386 = vunpack.c.l.b16 %v60
  %v387 = vunpack.c.l.b16 %v61
  %v388 = vunpack.c.l.b16 %v62
  %v389 = vunpack.c.l.b16 %v63
  %v390 = vunpack.c.l.b16 %v64
  %v391 = vunpack.c.l.b16 %v65
  %v392 = vunpack.c.l.b16 %v66
  %v393 = vunpack.c.l.b16 %v67
  %v394 = vunpack.c.l.b16 %v68
  %v395 = vunpack.c.l.b16 %v69
  %v396 = vunpack.c.l.b16 %v70
  %v397 = vunpack.c.l.b16 %v71
  %v398 = vunpack.c.l.b16 %v72
  %v399 = vunpack.c.l.b16 %v73
  %v400 = vunpack.c.l.b16 %v74
  %v401 = vunpack.c.l.b16 %v75
  %v402 = vunpack.c.l.b16 %v76
  %v403 = vunpack.c.l.b16 %v77
  %v404 = vunpack.c.l.b16 %v78
  %v405 = vunpack.c.l.b16 %v79
  %v406 = vunpack.c.l.b16 %v80
  %v407 = vunpack.c.l.b16 %v81
  %v408 = vunpack.c.l.b16 %v82
  %v409 = vunpack.c.l.b16 %v83
  %v410 = vunpack.c.l.b16 %v84
  %v411 = vunpack.c.l.b16 %v85
  %v412 = vunpack.c.l.b16 %v86
  %v413 = vunpack.c.l.b16 %v87
  %v414 = vunpack.c.l.b16 %v88
  %v415 = vunpack.c.l.b16 %v89
  %v416 = vunpack.c.l.b16 %v90
  %v417 = vunpack.c.l.b16 %v91
  %v418 = vunpack.c.l.b16 %v92
  %v419 = vunpack.c.l.b16 %v93
  %v420 = vunpack.c.l.b16 %v94
  %v421 = vunpack.c.l.b16 %v95
  %v422 = vunpack.c.l.b16 %v96
  %v423 = vunpack.c.l.b16 %v97
  %v424 = vunpack.c.l.b16 %v98
  %v425 = vunpack.c.l.b16 %v99
  %v426 = vunpack.c.l.b16 %v100
  %v427 = vunpack.c.l.b16 %v101
  %v428 = vunpack.c.l.b16 %v102
  %v429 = vunpack.c.l.b16 %v103
  %v430 = vunpack.c.l.b16 %v104
  %v431 = vunpack.c.l.b16 %v105
  %v432 = vunpack.c.l.b16 %v106
  %v433 = vunpack.c.l.b16 %v107
  %v434 = vunpack.c.l.b16 %v108
  %v435 = vunpack.c.l.b16 %v109
  %v436 = vunpack.c.l.b16 %v110
  %v437 = vunpack.c.l.b16 %v111
  %v438 = vunpack.c.l.b16 %v112
  %v439 = vunpack.c.l.b16 %v113
  %v440 = vunpack.c.l.b16 %v114
  %v441 = vunpack.c.l.b16 %v115
  %v442 = vunpack.c.l.b16 %v116
  %v443 = vunpack.c.l.b16 %v117
  %v444 = vunpack.c.l.b16 %v118
  %v445 = vunpack.c.l.b16 %v119
  %v446 = vunpack.c.l.b16 %v120
  %v447 = vunpack.c.l.b16 %v121
  %v448 = vunpack.c.l.b16 %v122
  %v449 = vunpack.c.l.b16 %v123
  %v450 = vunpack.c.l.b16 %v124
  %v451 = vunpack.c.l.b16 %v125
  %v452 = vunpack.c.l.b16 %v126
  %v453 = vunpack.c.l.b16 %v127
  %v454 = vunpack.c.l.b16 %v128
  %v455 = vunpack.c.l.b16 %v129
  %v456 = vunpack.c.l.b16 %v130
  %v457 = vunpack.c.l.b16 %v131
  %v458 = vunpack.c.l.b16 %v132
  %v459 = vunpack.c.l.b16 %v133
  %v460 = vunpack.c.l.b16 %v134
  %v461 = vunpack.c.l.b16 %v135
  %v462 = vunpack.c.l.b16 %v136
  %v463 = vunpack.c.l.b16 %v137
  %v464 = vunpack.c.l.b16 %v138
  %v465 = vunpack.c.l.b16 %v139
  %v466 = vunpack.c.l.b16 %v140
  %v467 = vunpack.c.l.b16 %v141
  %v468 = vunpack.c.l.b16 %v142
  %v469 = vunpack.c.l.b16 %v143
  %v470 = vunpack.c.l.b16 %v144
  %v471 = vunpack.c.l.b16 %v145
  %v472 = vunpack.c.l.b16 %v146
  %v473 = vunpack.c.l.b16 %v147
  %v474 = vunpack.c.l.b16 %v148
  %v475 = vunpack.c.l.b16 %v149
  %v476 = vunpack.c.l.b16 %v150
  %v477 = vunpack.c.l.b16 %v151
  %v478 = vunpack.c.l.b16 %v152
  %v479 = vunpack.c.l.b16 %v153
  %v480 = vunpack.c.l.b16 %v154
  %v481 = vunpack.c.l.b16 %v155
  %v482 = vunpack.c.l.b16 %v156
  %v483 = vunpack.c.l.b16 %v157
  %v484 = vunpack.c.l.b16 %v158
  %v485 = vunpack.c.l.b16 %v159
  %v486 = vunpack.c.l.b16 %v160
  %v487 = vunpack.c.l.b16 %v161
  %v488 = vunpack.c.l.b16 %v162
  %v489 = vunpack.c.l.b16 %v163
  %v490 = vunpack.c.l.b16 %v164
  %v491 = vunpack.c.l.b16 %v165
  %v492 = vunpack.c.l.b16 %v166
  %v493 = vunpack.c.l.b16 %v167
  %v494 = vunpack.c.l.b16 %v168
  %v495 = vunpack.c.l.b16 %v169
  %v496 = vunpack.c.l.b16 %v170
  %v497 = vunpack.c.l.b16 %v171
  %v498 = vunpack.c.l.b16 %v172
  %v499 = vpack.c.b16 %v342, %v341
  %v500 = vpack.c.b16 %v344, %v343
  %v501 = vpack.c.b16 %v346, %v345
  %v502 = vpack.c.b16 %v348, %v347
  %v503 = vpack.c.b16 %v350, %v349
  %v504 = vpack.c.b16 %v352, %v351
  %v505 = vpack.c.b16 %v354, %v353
  %v506 = vpack.c.b16 %v356, %v355
  %v507 = vpack.c.b16 %v358, %v357
  %v508 = vpack.c.b16 %v360, %v359
  %v509 = vpack.c.b16 %v362, %v361
  %v510 = vpack.c.b16 %v364, %v363
  %v511 = vpack.c.b16 %v366, %v365
  %v512 = vpack.c.b16 %v368, %v367
  %v513 = vpack.c.b16 %v370, %v369
  %v514 = vpack.c.b16 %v372, %v371
  %v515 = vpack.c.b16 %v374, %v373
  %v516 = vpack.c.b16 %v376, %v375
  %v517 = vpack.c.b16 %v378, %v377
  %v518 = vpack.c.b16 %v380, %v379
  %v519 = vpack.c.b16 %v382, %v381
  %v520 = vpack.c.b16 %v384, %v383
  %v521 = vpack.c.b16 %v386, %v385
  %v522 = vpack.c.b16 %v388, %v387
  %v523 = vpack.c.b16 %v390, %v389
  %v524 = vpack.c.b16 %v392, %v391
  %v525 = vpack.c.b16 %v394, %v393
  %v526 = vpack.c.b16 %v396, %v395
  %v527 = vpack.c.b16 %v398, %v397
  %v528 = vpack.c.b16 %v400, %v399
  %v529 = vpack.c.b16 %v402, %v401
  %v530 = vpack.c.b16 %v404, %v403
  %v531 = vpack.c.b16 %v406, %v405
  %v532 = vpack.c.b16 %v408, %v407
  %v533 = vpack.c.b16 %v410, %v409
  %v534 = vpack.c.b16 %v412, %v411
  %v535 = vpack.c.b16 %v414, %v413
  %v536 = vpack.c.b16 %v416, %v415
  %v537 = vpack.c.b16 %v418, %v417
  %v538 = vpack.c.b16 %v420, %v419
  %v539 = vpack.c.b16 %v422, %v421
  %v540 = vpack.c.b16 %v424, %v423
  %v541 = vpack.c.b16 %v426, %v425
  %v542 = vpack.c.b16 %v428, %v427
  %v543 = vpack.c.b16 %v430, %v429
  %v544 = vpack.c.b16 %v432, %v431
  %v545 = vpack.c.b16 %v434, %v433
  %v546 = vpack.c.b16 %v436, %v435
  %v547 = vpack.c.b16 %v438, %v437
  %v548 = vpack.c.b16 %v440, %v439
  %v549 = vpack.c.b16 %v442, %v441
  %v550 = vpack.c.b16 %v444, %v443
  %v551 = vpack.c.b16 %v446, %v445
  %v552 = vpack.c.b16 %v448, %v447
  %v553 = vpack.c.b16 %v450, %v449
  %v554 = vpack.c.b16 %v452, %v451
  %v555 = vpack.c.b16 %v454, %v453
  %v556 = vpack.c.b16 %v456, %v455
  %v557 = vpack.c.b16 %v458, %v457
  %v558 = vpack.c.b16 %v460, %v459
  %v559 = vpack.c.b16 %v462, %v461
  %v560 = vpack.c.b16 %v464, %v463
  %v561 = vpack.c.b16 %v466, %v465
  %v562 = vpack.c.b16 %v468, %v467
  %v563 = vpack.c.b16 %v470, %v469
  %v564 = vpack.c.b16 %v472, %v471
  %v565 = vpack.c.b16 %v474, %v473
  %v566 = vpack.c.b16 %v476, %v475
  %v567 = vpack.c.b16 %v478, %v477
  %v568 = vpack.c.b16 %v480, %v479
  %v569 = vpack.c.b16 %v482, %v481
  %v570 = vpack.c.b16 %v484, %v483
  %v571 = vpack.c.b16 %v486, %v485
  %v572 = vpack.c.b16 %v488, %v487
  %v573 = vpack.c.b16 %v490, %v489
  %v574 = vpack.c.b16 %v492, %v491
  %v575 = vpack.c.b16 %v494, %v493
  %v576 = vpack.c.b16 %v496, %v495
  %v577 = vpack.c.b16 %v498, %v497
  %v588 = vunpack.c.l.b16 %v173
  %v589 = vunpack.c.l.b16 %v174
  %v590 = vunpack.c.l.b16 %v175
  %v591 = vunpack.c.l.b16 %v176
  %v592 = vunpack.c.l.b16 %v177
  %v593 = vunpack.c.l.b16 %v178
  %v594 = vunpack.c.l.b16 %v179
  %v595 = vunpack.c.l.b16 %v180
  %v596 = vunpack.c.l.b16 %v181
  %v597 = vunpack.c.l.b16 %v182
  %v598 = vpack.c.b16 %v589, %v588
  %v599 = vpack.c.b16 %v591, %v590
  %v600 = vpack.c.b16 %v593, %v592
  %v601 = vpack.c.b16 %v595, %v594
  %v602 = vpack.c.b16 %v597, %v596
  %vm608 = vcmask 654336
  %v610 = vsel %vm608, %v499, 0
  %v613 = vsel %vm608, %v500, 0
  %v616 = vsel %vm608, %v501, 0
  %v619 = vsel %vm608, %v502, 0
  %v622 = vsel %vm608, %v503, 0
  %v625 = vsel %vm608, %v504, 0
  %v628 = vsel %vm608, %v505, 0
  %v631 = vsel %vm608, %v506, 0
  %v634 = vsel %vm608, %v507, 0
  %v637 = vsel %vm608, %v508, 0
  %v640 = vsel %vm608, %v509, 0
  %v643 = vsel %vm608, %v510, 0
  %v646 = vsel %vm608, %v511, 0
  %v649 = vsel %vm608, %v512, 0
  %v652 = vsel %vm608, %v513, 0
  %v655 = vsel %vm608, %v514, 0
  %v658 = vsel %vm608, %v515, 0
  %v661 = vsel %vm608, %v516, 0
  %v664 = vsel %vm608, %v517, 0
  %v667 = vsel %vm608, %v518, 0
  %v670 = vsel %vm608, %v519, 0
  %v673 = vsel %vm608, %v520, 0
  %v676 = vsel %vm608, %v521, 0
  %v679 = vsel %vm608, %v522, 0
  %v682 = vsel %vm608, %v523, 0
  %v685 = vsel %vm608, %v524, 0
  %v688 = vsel %vm608, %v525, 0
  %v691 = vsel %vm608, %v526, 0
  %v694 = vsel %vm608, %v527, 0
  %v697 = vsel %vm608, %v528, 0
  %v700 = vsel %vm608, %v529, 0
  %v703 = vsel %vm608, %v530, 0
  %v706 = vsel %vm608, %v531, 0
  %v709 = vsel %vm608, %v532, 0
  %v712 = vsel %vm608, %v533, 0
  %v715 = vsel %vm608, %v534, 0
  %v718 = vsel %vm608, %v535, 0
  %v721 = vsel %vm608, %v536, 0
  %v724 = vsel %vm608, %v537, 0
  %v727 = vsel %vm608, %v538, 0
  %v730 = vsel %vm608, %v539, 0
  %v733 = vsel %vm608, %v540, 0
  %v736 = vsel %vm608, %v541, 0
  %v739 = vsel %vm608, %v542, 0
  %v742 = vsel %vm608, %v543, 0
  %v745 = vsel %vm608, %v544, 0
  %v748 = vsel %vm608, %v545, 0
  %v751 = vsel %vm608, %v546, 0
  %v754 = vsel %vm608, %v547, 0
  %v757 = vsel %vm608, %v548, 0
  %v760 = vsel %vm608, %v549, 0
  %v763 = vsel %vm608, %v550, 0
  %v766 = vsel %vm608, %v551, 0
  %v769 = vsel %vm608, %v552, 0
  %v772 = vsel %vm608, %v553, 0
  %v775 = vsel %vm608, %v554, 0
  %v778 = vsel %vm608, %v555, 0
  %v781 = vsel %vm608, %v556, 0
  %v784 = vsel %vm608, %v557, 0
  %v787 = vsel %vm608, %v558, 0
  %v790 = vsel %vm608, %v559, 0
  %v793 = vsel %vm608, %v560, 0
  %v796 = vsel %vm608, %v561, 0
  %v799 = vsel %vm608, %v562, 0
  %v802 = vsel %vm608, %v563, 0
  %v805 = vsel %vm608, %v564, 0
  %v808 = vsel %vm608, %v565, 0
  %v811 = vsel %vm608, %v566, 0
  %v814 = vsel %vm608, %v567, 0
  %v817 = vsel %vm608, %v568, 0
  %v820 = vsel %vm608, %v569, 0
  %v823 = vsel %vm608, %v570, 0
  %v826 = vsel %vm608, %v571, 0
  %v829 = vsel %vm608, %v572, 0
  %v832 = vsel %vm608, %v573, 0
  %v835 = vsel %vm608, %v574, 0
  %v838 = vsel %vm608, %v575, 0
  %v841 = vsel %vm608, %v576, 0
  %v844 = vsel %vm608, %v577, 0
  %846 = vmatprep.subr.bf16.mxu0 0
  %847 = vmatpush1.bf16.msra.mxu0 %v598
  %848 = vmatprep.subr.bf16.mxu0 0
  %849 = vmatpush1.bf16.msra.mxu0 %v599
  %850 = vmatprep.subr.bf16.mxu0 0
  %851 = vmatpush1.bf16.msra.mxu0 %v600
  %852 = vmatprep.subr.bf16.mxu0 0
  %853 = vmatpush1.bf16.msra.mxu0 %v601
  %854 = vmatprep.subr.bf16.mxu0 0
  %855 = vmatpush1.bf16.msra.mxu0 %v602
  %856 = vmatprep.subr.bf16.mxu0 0
  %857 = vmatpush1.bf16.msra.mxu0 0
  %858 = vmatprep.subr.bf16.mxu0 0
  %859 = vmatpush1.bf16.msra.mxu0 0
  %860 = vmatprep.subr.bf16.mxu0 0
  %861 = vmatpush1.bf16.msra.mxu0 0
  %862 = vmatprep.subr.bf16.mxu0 0
  %863 = vmatpush1.bf16.msra.mxu0 0
  %864 = vmatprep.subr.bf16.mxu0 0
  %865 = vmatpush1.bf16.msra.mxu0 0
  %866 = vmatprep.subr.bf16.mxu0 0
  %867 = vmatpush1.bf16.msra.mxu0 0
  %868 = vmatprep.subr.bf16.mxu0 0
  %869 = vmatpush1.bf16.msra.mxu0 0
  %870 = vmatprep.subr.bf16.mxu0 0
  %871 = vmatpush1.bf16.msra.mxu0 0
  %872 = vmatprep.subr.bf16.mxu0 0
  %873 = vmatpush1.bf16.msra.mxu0 0
  %874 = vmatprep.subr.bf16.mxu0 0
  %875 = vmatpush1.bf16.msra.mxu0 0
  %876 = vmatprep.subr.bf16.mxu0 0
  %877 = vmatpush1.bf16.msra.mxu0 0
  %878 = vmatprep.mubr.bf16.mxu0 0
  %879 = vmatmul.mubr.bf16.gmra.mrb[0].mxu0 %v610
  %v880 = vpop.f32.mrb[0].mxu0
  %v881 = vadd.f32 0.0, %v880
  %v882 = vpop.f32.mrb[0].mxu0
  %v883 = vpop.f32.mrb[0].mxu0
  %v884 = vadd.f32 0.0, %v883
  %v885 = vpop.f32.mrb[0].mxu0
  %886 = vmatprep.mubr.bf16.mxu0 0
  %887 = vmatmul.mubr.bf16.gmra.mrb[0].mxu0 %v613
  %v888 = vpop.f32.mrb[0].mxu0
  %v889 = vadd.f32 0.0, %v888
  %v890 = vpop.f32.mrb[0].mxu0
  %v891 = vpop.f32.mrb[0].mxu0
  %v892 = vadd.f32 0.0, %v891
  %v893 = vpop.f32.mrb[0].mxu0
  %894 = vmatprep.mubr.bf16.mxu0 0
  %895 = vmatmul.mubr.bf16.gmra.mrb[0].mxu0 %v616
  %v896 = vpop.f32.mrb[0].mxu0
  %v897 = vadd.f32 0.0, %v896
  %v898 = vpop.f32.mrb[0].mxu0
  %v899 = vpop.f32.mrb[0].mxu0
  %v900 = vadd.f32 0.0, %v899
  %v901 = vpop.f32.mrb[0].mxu0
  %902 = vmatprep.mubr.bf16.mxu0 0
  %903 = vmatmul.mubr.bf16.gmra.mrb[0].mxu0 %v619
  %v904 = vpop.f32.mrb[0].mxu0
  %v905 = vadd.f32 0.0, %v904
  %v906 = vpop.f32.mrb[0].mxu0
  %v907 = vpop.f32.mrb[0].mxu0
  %v908 = vadd.f32 0.0, %v907
  %v909 = vpop.f32.mrb[0].mxu0
  %910 = vmatprep.mubr.bf16.mxu0 0
  %911 = vmatmul.mubr.bf16.gmra.mrb[0].mxu0 %v622
  %v912 = vpop.f32.mrb[0].mxu0
  %v913 = vadd.f32 0.0, %v912
  %v914 = vpop.f32.mrb[0].mxu0
  %v915 = vpop.f32.mrb[0].mxu0
  %v916 = vadd.f32 0.0, %v915
  %v917 = vpop.f32.mrb[0].mxu0
  %918 = vmatprep.mubr.bf16.mxu0 0
  %919 = vmatmul.mubr.bf16.gmra.mrb[0].mxu0 %v625
  %v920 = vpop.f32.mrb[0].mxu0
  %v921 = vadd.f32 0.0, %v920
  %v922 = vpop.f32.mrb[0].mxu0
  %v923 = vpop.f32.mrb[0].mxu0
  %v924 = vadd.f32 0.0, %v923
  %v925 = vpop.f32.mrb[0].mxu0
  %926 = vmatprep.mubr.bf16.mxu0 0
  %927 = vmatmul.mubr.bf16.gmra.mrb[0].mxu0 %v628
  %v928 = vpop.f32.mrb[0].mxu0
  %v929 = vadd.f32 0.0, %v928
  %v930 = vpop.f32.mrb[0].mxu0
  %v931 = vpop.f32.mrb[0].mxu0
  %v932 = vadd.f32 0.0, %v931
  %v933 = vpop.f32.mrb[0].mxu0
  %934 = vmatprep.mubr.bf16.mxu0 0
  %935 = vmatmul.mubr.bf16.gmra.mrb[0].mxu0 %v631
  %v936 = vpop.f32.mrb[0].mxu0
  %v937 = vadd.f32 0.0, %v936
  %v938 = vpop.f32.mrb[0].mxu0
  %v939 = vpop.f32.mrb[0].mxu0
  %v940 = vadd.f32 0.0, %v939
  %v941 = vpop.f32.mrb[0].mxu0
  %942 = vmatprep.mubr.bf16.mxu0 0
  %943 = vmatmul.mubr.bf16.gmra.mrb[0].mxu0 %v634
  %v944 = vpop.f32.mrb[0].mxu0
  %v945 = vadd.f32 0.0, %v944
  %v946 = vpop.f32.mrb[0].mxu0
  %v947 = vpop.f32.mrb[0].mxu0
  %v948 = vadd.f32 0.0, %v947
  %v949 = vpop.f32.mrb[0].mxu0
  %950 = vmatprep.mubr.bf16.mxu0 0
  %951 = vmatmul.mubr.bf16.gmra.mrb[0].mxu0 %v637
  %v952 = vpop.f32.mrb[0].mxu0
  %v953 = vadd.f32 0.0, %v952
  %v954 = vpop.f32.mrb[0].mxu0
  %v955 = vpop.f32.mrb[0].mxu0
  %v956 = vadd.f32 0.0, %v955
  %v957 = vpop.f32.mrb[0].mxu0
  %958 = vmatprep.mubr.bf16.mxu0 0
  %959 = vmatmul.mubr.bf16.gmra.mrb[0].mxu0 %v640
  %v960 = vpop.f32.mrb[0].mxu0
  %v961 = vadd.f32 0.0, %v960
  %v962 = vpop.f32.mrb[0].mxu0
  %v963 = vpop.f32.mrb[0].mxu0
  %v964 = vadd.f32 0.0, %v963
  %v965 = vpop.f32.mrb[0].mxu0
  %966 = vmatprep.mubr.bf16.mxu0 0
  %967 = vmatmul.mubr.bf16.gmra.mrb[0].mxu0 %v643
  %v968 = vpop.f32.mrb[0].mxu0
  %v969 = vadd.f32 0.0, %v968
  %v970 = vpop.f32.mrb[0].mxu0
  %v971 = vpop.f32.mrb[0].mxu0
  %v972 = vadd.f32 0.0, %v971
  %v973 = vpop.f32.mrb[0].mxu0
  %974 = vmatprep.mubr.bf16.mxu0 0
  %975 = vmatmul.mubr.bf16.gmra.mrb[0].mxu0 %v646
  %v976 = vpop.f32.mrb[0].mxu0
  %v977 = vadd.f32 0.0, %v976
  %v978 = vpop.f32.mrb[0].mxu0
  %v979 = vpop.f32.mrb[0].mxu0
  %v980 = vadd.f32 0.0, %v979
  %v981 = vpop.f32.mrb[0].mxu0
  %982 = vmatprep.mubr.bf16.mxu0 0
  %983 = vmatmul.mubr.bf16.gmra.mrb[0].mxu0 %v649
  %v984 = vpop.f32.mrb[0].mxu0
  %v985 = vadd.f32 0.0, %v984
  %v986 = vpop.f32.mrb[0].mxu0
  %v987 = vpop.f32.mrb[0].mxu0
  %v988 = vadd.f32 0.0, %v987
  %v989 = vpop.f32.mrb[0].mxu0
  %990 = vmatprep.mubr.bf16.mxu0 0
  %991 = vmatmul.mubr.bf16.gmra.mrb[0].mxu0 %v652
  %v992 = vpop.f32.mrb[0].mxu0
  %v993 = vadd.f32 0.0, %v992
  %v994 = vpop.f32.mrb[0].mxu0
  %v995 = vpop.f32.mrb[0].mxu0
  %v996 = vadd.f32 0.0, %v995
  %v997 = vpop.f32.mrb[0].mxu0
  %998 = vmatprep.mubr.bf16.mxu0 0
  %999 = vmatmul.mubr.bf16.gmra.mrb[0].mxu0 %v655
  %v1000 = vpop.f32.mrb[0].mxu0
  %v1001 = vadd.f32 0.0, %v1000
  %v1002 = vpop.f32.mrb[0].mxu0
  %v1003 = vpop.f32.mrb[0].mxu0
  %v1004 = vadd.f32 0.0, %v1003
  %v1005 = vpop.f32.mrb[0].mxu0
  %1006 = vmatprep.mubr.bf16.mxu0 0
  %1007 = vmatmul.mubr.bf16.gmra.mrb[0].mxu0 %v658
  %v1008 = vpop.f32.mrb[0].mxu0
  %v1009 = vadd.f32 0.0, %v1008
  %v1010 = vpop.f32.mrb[0].mxu0
  %v1011 = vpop.f32.mrb[0].mxu0
  %v1012 = vadd.f32 0.0, %v1011
  %v1013 = vpop.f32.mrb[0].mxu0
  %1014 = vmatprep.mubr.bf16.mxu0 0
  %1015 = vmatmul.mubr.bf16.gmra.mrb[0].mxu0 %v661
  %v1016 = vpop.f32.mrb[0].mxu0
  %v1017 = vadd.f32 0.0, %v1016
  %v1018 = vpop.f32.mrb[0].mxu0
  %v1019 = vpop.f32.mrb[0].mxu0
  %v1020 = vadd.f32 0.0, %v1019
  %v1021 = vpop.f32.mrb[0].mxu0
  %1022 = vmatprep.mubr.bf16.mxu0 0
  %1023 = vmatmul.mubr.bf16.gmra.mrb[0].mxu0 %v664
  %v1024 = vpop.f32.mrb[0].mxu0
  %v1025 = vadd.f32 0.0, %v1024
  %v1026 = vpop.f32.mrb[0].mxu0
  %v1027 = vpop.f32.mrb[0].mxu0
  %v1028 = vadd.f32 0.0, %v1027
  %v1029 = vpop.f32.mrb[0].mxu0
  %1030 = vmatprep.mubr.bf16.mxu0 0
  %1031 = vmatmul.mubr.bf16.gmra.mrb[0].mxu0 %v667
  %v1032 = vpop.f32.mrb[0].mxu0
  %v1033 = vadd.f32 0.0, %v1032
  %v1034 = vpop.f32.mrb[0].mxu0
  %v1035 = vpop.f32.mrb[0].mxu0
  %v1036 = vadd.f32 0.0, %v1035
  %v1037 = vpop.f32.mrb[0].mxu0
  %1038 = vmatprep.mubr.bf16.mxu0 0
  %1039 = vmatmul.mubr.bf16.gmra.mrb[0].mxu0 %v670
  %v1040 = vpop.f32.mrb[0].mxu0
  %v1041 = vadd.f32 0.0, %v1040
  %v1042 = vpop.f32.mrb[0].mxu0
  %v1043 = vpop.f32.mrb[0].mxu0
  %v1044 = vadd.f32 0.0, %v1043
  %v1045 = vpop.f32.mrb[0].mxu0
  %1046 = vmatprep.mubr.bf16.mxu0 0
  %1047 = vmatmul.mubr.bf16.gmra.mrb[0].mxu0 %v673
  %v1048 = vpop.f32.mrb[0].mxu0
  %v1049 = vadd.f32 0.0, %v1048
  %v1050 = vpop.f32.mrb[0].mxu0
  %v1051 = vpop.f32.mrb[0].mxu0
  %v1052 = vadd.f32 0.0, %v1051
  %v1053 = vpop.f32.mrb[0].mxu0
  %1054 = vmatprep.mubr.bf16.mxu0 0
  %1055 = vmatmul.mubr.bf16.gmra.mrb[0].mxu0 %v676
  %v1056 = vpop.f32.mrb[0].mxu0
  %v1057 = vadd.f32 0.0, %v1056
  %v1058 = vpop.f32.mrb[0].mxu0
  %v1059 = vpop.f32.mrb[0].mxu0
  %v1060 = vadd.f32 0.0, %v1059
  %v1061 = vpop.f32.mrb[0].mxu0
  %1062 = vmatprep.mubr.bf16.mxu0 0
  %1063 = vmatmul.mubr.bf16.gmra.mrb[0].mxu0 %v679
  %v1064 = vpop.f32.mrb[0].mxu0
  %v1065 = vadd.f32 0.0, %v1064
  %v1066 = vpop.f32.mrb[0].mxu0
  %v1067 = vpop.f32.mrb[0].mxu0
  %v1068 = vadd.f32 0.0, %v1067
  %v1069 = vpop.f32.mrb[0].mxu0
  %1070 = vmatprep.mubr.bf16.mxu0 0
  %1071 = vmatmul.mubr.bf16.gmra.mrb[0].mxu0 %v682
  %v1072 = vpop.f32.mrb[0].mxu0
  %v1073 = vadd.f32 0.0, %v1072
  %v1074 = vpop.f32.mrb[0].mxu0
  %v1075 = vpop.f32.mrb[0].mxu0
  %v1076 = vadd.f32 0.0, %v1075
  %v1077 = vpop.f32.mrb[0].mxu0
  %1078 = vmatprep.mubr.bf16.mxu0 0
  %1079 = vmatmul.mubr.bf16.gmra.mrb[0].mxu0 %v685
  %v1080 = vpop.f32.mrb[0].mxu0
  %v1081 = vadd.f32 0.0, %v1080
  %v1082 = vpop.f32.mrb[0].mxu0
  %v1083 = vpop.f32.mrb[0].mxu0
  %v1084 = vadd.f32 0.0, %v1083
  %v1085 = vpop.f32.mrb[0].mxu0
  %1086 = vmatprep.mubr.bf16.mxu0 0
  %1087 = vmatmul.mubr.bf16.gmra.mrb[0].mxu0 %v688
  %v1088 = vpop.f32.mrb[0].mxu0
  %v1089 = vadd.f32 0.0, %v1088
  %v1090 = vpop.f32.mrb[0].mxu0
  %v1091 = vpop.f32.mrb[0].mxu0
  %v1092 = vadd.f32 0.0, %v1091
  %v1093 = vpop.f32.mrb[0].mxu0
  %1094 = vmatprep.mubr.bf16.mxu0 0
  %1095 = vmatmul.mubr.bf16.gmra.mrb[0].mxu0 %v691
  %v1096 = vpop.f32.mrb[0].mxu0
  %v1097 = vadd.f32 0.0, %v1096
  %v1098 = vpop.f32.mrb[0].mxu0
  %v1099 = vpop.f32.mrb[0].mxu0
  %v1100 = vadd.f32 0.0, %v1099
  %v1101 = vpop.f32.mrb[0].mxu0
  %1102 = vmatprep.mubr.bf16.mxu0 0
  %1103 = vmatmul.mubr.bf16.gmra.mrb[0].mxu0 %v694
  %v1104 = vpop.f32.mrb[0].mxu0
  %v1105 = vadd.f32 0.0, %v1104
  %v1106 = vpop.f32.mrb[0].mxu0
  %v1107 = vpop.f32.mrb[0].mxu0
  %v1108 = vadd.f32 0.0, %v1107
  %v1109 = vpop.f32.mrb[0].mxu0
  %1110 = vmatprep.mubr.bf16.mxu0 0
  %1111 = vmatmul.mubr.bf16.gmra.mrb[0].mxu0 %v697
  %v1112 = vpop.f32.mrb[0].mxu0
  %v1113 = vadd.f32 0.0, %v1112
  %v1114 = vpop.f32.mrb[0].mxu0
  %v1115 = vpop.f32.mrb[0].mxu0
  %v1116 = vadd.f32 0.0, %v1115
  %v1117 = vpop.f32.mrb[0].mxu0
  %1118 = vmatprep.mubr.bf16.mxu0 0
  %1119 = vmatmul.mubr.bf16.gmra.mrb[0].mxu0 %v700
  %v1120 = vpop.f32.mrb[0].mxu0
  %v1121 = vadd.f32 0.0, %v1120
  %v1122 = vpop.f32.mrb[0].mxu0
  %v1123 = vpop.f32.mrb[0].mxu0
  %v1124 = vadd.f32 0.0, %v1123
  %v1125 = vpop.f32.mrb[0].mxu0
  %1126 = vmatprep.mubr.bf16.mxu0 0
  %1127 = vmatmul.mubr.bf16.gmra.mrb[0].mxu0 %v703
  %v1128 = vpop.f32.mrb[0].mxu0
  %v1129 = vadd.f32 0.0, %v1128
  %v1130 = vpop.f32.mrb[0].mxu0
  %v1131 = vpop.f32.mrb[0].mxu0
  %v1132 = vadd.f32 0.0, %v1131
  %v1133 = vpop.f32.mrb[0].mxu0
  %1134 = vmatprep.mubr.bf16.mxu0 0
  %1135 = vmatmul.mubr.bf16.gmra.mrb[0].mxu0 %v706
  %v1136 = vpop.f32.mrb[0].mxu0
  %v1137 = vadd.f32 0.0, %v1136
  %v1138 = vpop.f32.mrb[0].mxu0
  %v1139 = vpop.f32.mrb[0].mxu0
  %v1140 = vadd.f32 0.0, %v1139
  %v1141 = vpop.f32.mrb[0].mxu0
  %1142 = vmatprep.mubr.bf16.mxu0 0
  %1143 = vmatmul.mubr.bf16.gmra.mrb[0].mxu0 %v709
  %v1144 = vpop.f32.mrb[0].mxu0
  %v1145 = vadd.f32 0.0, %v1144
  %v1146 = vpop.f32.mrb[0].mxu0
  %v1147 = vpop.f32.mrb[0].mxu0
  %v1148 = vadd.f32 0.0, %v1147
  %v1149 = vpop.f32.mrb[0].mxu0
  %1150 = vmatprep.mubr.bf16.mxu0 0
  %1151 = vmatmul.mubr.bf16.gmra.mrb[0].mxu0 %v712
  %v1152 = vpop.f32.mrb[0].mxu0
  %v1153 = vadd.f32 0.0, %v1152
  %v1154 = vpop.f32.mrb[0].mxu0
  %v1155 = vpop.f32.mrb[0].mxu0
  %v1156 = vadd.f32 0.0, %v1155
  %v1157 = vpop.f32.mrb[0].mxu0
  %1158 = vmatprep.mubr.bf16.mxu0 0
  %1159 = vmatmul.mubr.bf16.gmra.mrb[0].mxu0 %v715
  %v1160 = vpop.f32.mrb[0].mxu0
  %v1161 = vadd.f32 0.0, %v1160
  %v1162 = vpop.f32.mrb[0].mxu0
  %v1163 = vpop.f32.mrb[0].mxu0
  %v1164 = vadd.f32 0.0, %v1163
  %v1165 = vpop.f32.mrb[0].mxu0
  %1166 = vmatprep.mubr.bf16.mxu0 0
  %1167 = vmatmul.mubr.bf16.gmra.mrb[0].mxu0 %v718
  %v1168 = vpop.f32.mrb[0].mxu0
  %v1169 = vadd.f32 0.0, %v1168
  %v1170 = vpop.f32.mrb[0].mxu0
  %v1171 = vpop.f32.mrb[0].mxu0
  %v1172 = vadd.f32 0.0, %v1171
  %v1173 = vpop.f32.mrb[0].mxu0
  %1174 = vmatprep.mubr.bf16.mxu0 0
  %1175 = vmatmul.mubr.bf16.gmra.mrb[0].mxu0 %v721
  %v1176 = vpop.f32.mrb[0].mxu0
  %v1177 = vadd.f32 0.0, %v1176
  %v1178 = vpop.f32.mrb[0].mxu0
  %v1179 = vpop.f32.mrb[0].mxu0
  %v1180 = vadd.f32 0.0, %v1179
  %v1181 = vpop.f32.mrb[0].mxu0
  %1182 = vmatprep.mubr.bf16.mxu0 0
  %1183 = vmatmul.mubr.bf16.gmra.mrb[0].mxu0 %v724
  %v1184 = vpop.f32.mrb[0].mxu0
  %v1185 = vadd.f32 0.0, %v1184
  %v1186 = vpop.f32.mrb[0].mxu0
  %v1187 = vpop.f32.mrb[0].mxu0
  %v1188 = vadd.f32 0.0, %v1187
  %v1189 = vpop.f32.mrb[0].mxu0
  %1190 = vmatprep.mubr.bf16.mxu0 0
  %1191 = vmatmul.mubr.bf16.gmra.mrb[0].mxu0 %v727
  %v1192 = vpop.f32.mrb[0].mxu0
  %v1193 = vadd.f32 0.0, %v1192
  %v1194 = vpop.f32.mrb[0].mxu0
  %v1195 = vpop.f32.mrb[0].mxu0
  %v1196 = vadd.f32 0.0, %v1195
  %v1197 = vpop.f32.mrb[0].mxu0
  %1198 = vmatprep.mubr.bf16.mxu0 0
  %1199 = vmatmul.mubr.bf16.gmra.mrb[0].mxu0 %v730
  %v1200 = vpop.f32.mrb[0].mxu0
  %v1201 = vadd.f32 0.0, %v1200
  %v1202 = vpop.f32.mrb[0].mxu0
  %v1203 = vpop.f32.mrb[0].mxu0
  %v1204 = vadd.f32 0.0, %v1203
  %v1205 = vpop.f32.mrb[0].mxu0
  %1206 = vmatprep.mubr.bf16.mxu0 0
  %1207 = vmatmul.mubr.bf16.gmra.mrb[0].mxu0 %v733
  %v1208 = vpop.f32.mrb[0].mxu0
  %v1209 = vadd.f32 0.0, %v1208
  %v1210 = vpop.f32.mrb[0].mxu0
  %v1211 = vpop.f32.mrb[0].mxu0
  %v1212 = vadd.f32 0.0, %v1211
  %v1213 = vpop.f32.mrb[0].mxu0
  %1214 = vmatprep.mubr.bf16.mxu0 0
  %1215 = vmatmul.mubr.bf16.gmra.mrb[0].mxu0 %v736
  %v1216 = vpop.f32.mrb[0].mxu0
  %v1217 = vadd.f32 0.0, %v1216
  %v1218 = vpop.f32.mrb[0].mxu0
  %v1219 = vpop.f32.mrb[0].mxu0
  %v1220 = vadd.f32 0.0, %v1219
  %v1221 = vpop.f32.mrb[0].mxu0
  %1222 = vmatprep.mubr.bf16.mxu0 0
  %1223 = vmatmul.mubr.bf16.gmra.mrb[0].mxu0 %v739
  %v1224 = vpop.f32.mrb[0].mxu0
  %v1225 = vadd.f32 0.0, %v1224
  %v1226 = vpop.f32.mrb[0].mxu0
  %v1227 = vpop.f32.mrb[0].mxu0
  %v1228 = vadd.f32 0.0, %v1227
  %v1229 = vpop.f32.mrb[0].mxu0
  %1230 = vmatprep.mubr.bf16.mxu0 0
  %1231 = vmatmul.mubr.bf16.gmra.mrb[0].mxu0 %v742
  %v1232 = vpop.f32.mrb[0].mxu0
  %v1233 = vadd.f32 0.0, %v1232
  %v1234 = vpop.f32.mrb[0].mxu0
  %v1235 = vpop.f32.mrb[0].mxu0
  %v1236 = vadd.f32 0.0, %v1235
  %v1237 = vpop.f32.mrb[0].mxu0
  %1238 = vmatprep.mubr.bf16.mxu0 0
  %1239 = vmatmul.mubr.bf16.gmra.mrb[0].mxu0 %v745
  %v1240 = vpop.f32.mrb[0].mxu0
  %v1241 = vadd.f32 0.0, %v1240
  %v1242 = vpop.f32.mrb[0].mxu0
  %v1243 = vpop.f32.mrb[0].mxu0
  %v1244 = vadd.f32 0.0, %v1243
  %v1245 = vpop.f32.mrb[0].mxu0
  %1246 = vmatprep.mubr.bf16.mxu0 0
  %1247 = vmatmul.mubr.bf16.gmra.mrb[0].mxu0 %v748
  %v1248 = vpop.f32.mrb[0].mxu0
  %v1249 = vadd.f32 0.0, %v1248
  %v1250 = vpop.f32.mrb[0].mxu0
  %v1251 = vpop.f32.mrb[0].mxu0
  %v1252 = vadd.f32 0.0, %v1251
  %v1253 = vpop.f32.mrb[0].mxu0
  %1254 = vmatprep.mubr.bf16.mxu0 0
  %1255 = vmatmul.mubr.bf16.gmra.mrb[0].mxu0 %v751
  %v1256 = vpop.f32.mrb[0].mxu0
  %v1257 = vadd.f32 0.0, %v1256
  %v1258 = vpop.f32.mrb[0].mxu0
  %v1259 = vpop.f32.mrb[0].mxu0
  %v1260 = vadd.f32 0.0, %v1259
  %v1261 = vpop.f32.mrb[0].mxu0
  %1262 = vmatprep.mubr.bf16.mxu0 0
  %1263 = vmatmul.mubr.bf16.gmra.mrb[0].mxu0 %v754
  %v1264 = vpop.f32.mrb[0].mxu0
  %v1265 = vadd.f32 0.0, %v1264
  %v1266 = vpop.f32.mrb[0].mxu0
  %v1267 = vpop.f32.mrb[0].mxu0
  %v1268 = vadd.f32 0.0, %v1267
  %v1269 = vpop.f32.mrb[0].mxu0
  %1270 = vmatprep.mubr.bf16.mxu0 0
  %1271 = vmatmul.mubr.bf16.gmra.mrb[0].mxu0 %v757
  %v1272 = vpop.f32.mrb[0].mxu0
  %v1273 = vadd.f32 0.0, %v1272
  %v1274 = vpop.f32.mrb[0].mxu0
  %v1275 = vpop.f32.mrb[0].mxu0
  %v1276 = vadd.f32 0.0, %v1275
  %v1277 = vpop.f32.mrb[0].mxu0
  %1278 = vmatprep.mubr.bf16.mxu0 0
  %1279 = vmatmul.mubr.bf16.gmra.mrb[0].mxu0 %v760
  %v1280 = vpop.f32.mrb[0].mxu0
  %v1281 = vadd.f32 0.0, %v1280
  %v1282 = vpop.f32.mrb[0].mxu0
  %v1283 = vpop.f32.mrb[0].mxu0
  %v1284 = vadd.f32 0.0, %v1283
  %v1285 = vpop.f32.mrb[0].mxu0
  %1286 = vmatprep.mubr.bf16.mxu0 0
  %1287 = vmatmul.mubr.bf16.gmra.mrb[0].mxu0 %v763
  %v1288 = vpop.f32.mrb[0].mxu0
  %v1289 = vadd.f32 0.0, %v1288
  %v1290 = vpop.f32.mrb[0].mxu0
  %v1291 = vpop.f32.mrb[0].mxu0
  %v1292 = vadd.f32 0.0, %v1291
  %v1293 = vpop.f32.mrb[0].mxu0
  %1294 = vmatprep.mubr.bf16.mxu0 0
  %1295 = vmatmul.mubr.bf16.gmra.mrb[0].mxu0 %v766
  %v1296 = vpop.f32.mrb[0].mxu0
  %v1297 = vadd.f32 0.0, %v1296
  %v1298 = vpop.f32.mrb[0].mxu0
  %v1299 = vpop.f32.mrb[0].mxu0
  %v1300 = vadd.f32 0.0, %v1299
  %v1301 = vpop.f32.mrb[0].mxu0
  %1302 = vmatprep.mubr.bf16.mxu0 0
  %1303 = vmatmul.mubr.bf16.gmra.mrb[0].mxu0 %v769
  %v1304 = vpop.f32.mrb[0].mxu0
  %v1305 = vadd.f32 0.0, %v1304
  %v1306 = vpop.f32.mrb[0].mxu0
  %v1307 = vpop.f32.mrb[0].mxu0
  %v1308 = vadd.f32 0.0, %v1307
  %v1309 = vpop.f32.mrb[0].mxu0
  %1310 = vmatprep.mubr.bf16.mxu0 0
  %1311 = vmatmul.mubr.bf16.gmra.mrb[0].mxu0 %v772
  %v1312 = vpop.f32.mrb[0].mxu0
  %v1313 = vadd.f32 0.0, %v1312
  %v1314 = vpop.f32.mrb[0].mxu0
  %v1315 = vpop.f32.mrb[0].mxu0
  %v1316 = vadd.f32 0.0, %v1315
  %v1317 = vpop.f32.mrb[0].mxu0
  %1318 = vmatprep.mubr.bf16.mxu0 0
  %1319 = vmatmul.mubr.bf16.gmra.mrb[0].mxu0 %v775
  %v1320 = vpop.f32.mrb[0].mxu0
  %v1321 = vadd.f32 0.0, %v1320
  %v1322 = vpop.f32.mrb[0].mxu0
  %v1323 = vpop.f32.mrb[0].mxu0
  %v1324 = vadd.f32 0.0, %v1323
  %v1325 = vpop.f32.mrb[0].mxu0
  %1326 = vmatprep.mubr.bf16.mxu0 0
  %1327 = vmatmul.mubr.bf16.gmra.mrb[0].mxu0 %v778
  %v1328 = vpop.f32.mrb[0].mxu0
  %v1329 = vadd.f32 0.0, %v1328
  %v1330 = vpop.f32.mrb[0].mxu0
  %v1331 = vpop.f32.mrb[0].mxu0
  %v1332 = vadd.f32 0.0, %v1331
  %v1333 = vpop.f32.mrb[0].mxu0
  %1334 = vmatprep.mubr.bf16.mxu0 0
  %1335 = vmatmul.mubr.bf16.gmra.mrb[0].mxu0 %v781
  %v1336 = vpop.f32.mrb[0].mxu0
  %v1337 = vadd.f32 0.0, %v1336
  %v1338 = vpop.f32.mrb[0].mxu0
  %v1339 = vpop.f32.mrb[0].mxu0
  %v1340 = vadd.f32 0.0, %v1339
  %v1341 = vpop.f32.mrb[0].mxu0
  %1342 = vmatprep.mubr.bf16.mxu0 0
  %1343 = vmatmul.mubr.bf16.gmra.mrb[0].mxu0 %v784
  %v1344 = vpop.f32.mrb[0].mxu0
  %v1345 = vadd.f32 0.0, %v1344
  %v1346 = vpop.f32.mrb[0].mxu0
  %v1347 = vpop.f32.mrb[0].mxu0
  %v1348 = vadd.f32 0.0, %v1347
  %v1349 = vpop.f32.mrb[0].mxu0
  %1350 = vmatprep.mubr.bf16.mxu0 0
  %1351 = vmatmul.mubr.bf16.gmra.mrb[0].mxu0 %v787
  %v1352 = vpop.f32.mrb[0].mxu0
  %v1353 = vadd.f32 0.0, %v1352
  %v1354 = vpop.f32.mrb[0].mxu0
  %v1355 = vpop.f32.mrb[0].mxu0
  %v1356 = vadd.f32 0.0, %v1355
  %v1357 = vpop.f32.mrb[0].mxu0
  %1358 = vmatprep.mubr.bf16.mxu0 0
  %1359 = vmatmul.mubr.bf16.gmra.mrb[0].mxu0 %v790
  %v1360 = vpop.f32.mrb[0].mxu0
  %v1361 = vadd.f32 0.0, %v1360
  %v1362 = vpop.f32.mrb[0].mxu0
  %v1363 = vpop.f32.mrb[0].mxu0
  %v1364 = vadd.f32 0.0, %v1363
  %v1365 = vpop.f32.mrb[0].mxu0
  %1366 = vmatprep.mubr.bf16.mxu0 0
  %1367 = vmatmul.mubr.bf16.gmra.mrb[0].mxu0 %v793
  %v1368 = vpop.f32.mrb[0].mxu0
  %v1369 = vadd.f32 0.0, %v1368
  %v1370 = vpop.f32.mrb[0].mxu0
  %v1371 = vpop.f32.mrb[0].mxu0
  %v1372 = vadd.f32 0.0, %v1371
  %v1373 = vpop.f32.mrb[0].mxu0
  %1374 = vmatprep.mubr.bf16.mxu0 0
  %1375 = vmatmul.mubr.bf16.gmra.mrb[0].mxu0 %v796
  %v1376 = vpop.f32.mrb[0].mxu0
  %v1377 = vadd.f32 0.0, %v1376
  %v1378 = vpop.f32.mrb[0].mxu0
  %v1379 = vpop.f32.mrb[0].mxu0
  %v1380 = vadd.f32 0.0, %v1379
  %v1381 = vpop.f32.mrb[0].mxu0
  %1382 = vmatprep.mubr.bf16.mxu0 0
  %1383 = vmatmul.mubr.bf16.gmra.mrb[0].mxu0 %v799
  %v1384 = vpop.f32.mrb[0].mxu0
  %v1385 = vadd.f32 0.0, %v1384
  %v1386 = vpop.f32.mrb[0].mxu0
  %v1387 = vpop.f32.mrb[0].mxu0
  %v1388 = vadd.f32 0.0, %v1387
  %v1389 = vpop.f32.mrb[0].mxu0
  %1390 = vmatprep.mubr.bf16.mxu0 0
  %1391 = vmatmul.mubr.bf16.gmra.mrb[0].mxu0 %v802
  %v1392 = vpop.f32.mrb[0].mxu0
  %v1393 = vadd.f32 0.0, %v1392
  %v1394 = vpop.f32.mrb[0].mxu0
  %v1395 = vpop.f32.mrb[0].mxu0
  %v1396 = vadd.f32 0.0, %v1395
  %v1397 = vpop.f32.mrb[0].mxu0
  %1398 = vmatprep.mubr.bf16.mxu0 0
  %1399 = vmatmul.mubr.bf16.gmra.mrb[0].mxu0 %v805
  %v1400 = vpop.f32.mrb[0].mxu0
  %v1401 = vadd.f32 0.0, %v1400
  %v1402 = vpop.f32.mrb[0].mxu0
  %v1403 = vpop.f32.mrb[0].mxu0
  %v1404 = vadd.f32 0.0, %v1403
  %v1405 = vpop.f32.mrb[0].mxu0
  %1406 = vmatprep.mubr.bf16.mxu0 0
  %1407 = vmatmul.mubr.bf16.gmra.mrb[0].mxu0 %v808
  %v1408 = vpop.f32.mrb[0].mxu0
  %v1409 = vadd.f32 0.0, %v1408
  %v1410 = vpop.f32.mrb[0].mxu0
  %v1411 = vpop.f32.mrb[0].mxu0
  %v1412 = vadd.f32 0.0, %v1411
  %v1413 = vpop.f32.mrb[0].mxu0
  %1414 = vmatprep.mubr.bf16.mxu0 0
  %1415 = vmatmul.mubr.bf16.gmra.mrb[0].mxu0 %v811
  %v1416 = vpop.f32.mrb[0].mxu0
  %v1417 = vadd.f32 0.0, %v1416
  %v1418 = vpop.f32.mrb[0].mxu0
  %v1419 = vpop.f32.mrb[0].mxu0
  %v1420 = vadd.f32 0.0, %v1419
  %v1421 = vpop.f32.mrb[0].mxu0
  %1422 = vmatprep.mubr.bf16.mxu0 0
  %1423 = vmatmul.mubr.bf16.gmra.mrb[0].mxu0 %v814
  %v1424 = vpop.f32.mrb[0].mxu0
  %v1425 = vadd.f32 0.0, %v1424
  %v1426 = vpop.f32.mrb[0].mxu0
  %v1427 = vpop.f32.mrb[0].mxu0
  %v1428 = vadd.f32 0.0, %v1427
  %v1429 = vpop.f32.mrb[0].mxu0
  %1430 = vmatprep.mubr.bf16.mxu0 0
  %1431 = vmatmul.mubr.bf16.gmra.mrb[0].mxu0 %v817
  %v1432 = vpop.f32.mrb[0].mxu0
  %v1433 = vadd.f32 0.0, %v1432
  %v1434 = vpop.f32.mrb[0].mxu0
  %v1435 = vpop.f32.mrb[0].mxu0
  %v1436 = vadd.f32 0.0, %v1435
  %v1437 = vpop.f32.mrb[0].mxu0
  %1438 = vmatprep.mubr.bf16.mxu0 0
  %1439 = vmatmul.mubr.bf16.gmra.mrb[0].mxu0 %v820
  %v1440 = vpop.f32.mrb[0].mxu0
  %v1441 = vadd.f32 0.0, %v1440
  %v1442 = vpop.f32.mrb[0].mxu0
  %v1443 = vpop.f32.mrb[0].mxu0
  %v1444 = vadd.f32 0.0, %v1443
  %v1445 = vpop.f32.mrb[0].mxu0
  %1446 = vmatprep.mubr.bf16.mxu0 0
  %1447 = vmatmul.mubr.bf16.gmra.mrb[0].mxu0 %v823
  %v1448 = vpop.f32.mrb[0].mxu0
  %v1449 = vadd.f32 0.0, %v1448
  %v1450 = vpop.f32.mrb[0].mxu0
  %v1451 = vpop.f32.mrb[0].mxu0
  %v1452 = vadd.f32 0.0, %v1451
  %v1453 = vpop.f32.mrb[0].mxu0
  %1454 = vmatprep.mubr.bf16.mxu0 0
  %1455 = vmatmul.mubr.bf16.gmra.mrb[0].mxu0 %v826
  %v1456 = vpop.f32.mrb[0].mxu0
  %v1457 = vadd.f32 0.0, %v1456
  %v1458 = vpop.f32.mrb[0].mxu0
  %v1459 = vpop.f32.mrb[0].mxu0
  %v1460 = vadd.f32 0.0, %v1459
  %v1461 = vpop.f32.mrb[0].mxu0
  %1462 = vmatprep.mubr.bf16.mxu0 0
  %1463 = vmatmul.mubr.bf16.gmra.mrb[0].mxu0 %v829
  %v1464 = vpop.f32.mrb[0].mxu0
  %v1465 = vadd.f32 0.0, %v1464
  %v1466 = vpop.f32.mrb[0].mxu0
  %v1467 = vpop.f32.mrb[0].mxu0
  %v1468 = vadd.f32 0.0, %v1467
  %v1469 = vpop.f32.mrb[0].mxu0
  %1470 = vmatprep.mubr.bf16.mxu0 0
  %1471 = vmatmul.mubr.bf16.gmra.mrb[0].mxu0 %v832
  %v1472 = vpop.f32.mrb[0].mxu0
  %v1473 = vadd.f32 0.0, %v1472
  %v1474 = vpop.f32.mrb[0].mxu0
  %v1475 = vpop.f32.mrb[0].mxu0
  %v1476 = vadd.f32 0.0, %v1475
  %v1477 = vpop.f32.mrb[0].mxu0
  %1478 = vmatprep.mubr.bf16.mxu0 0
  %1479 = vmatmul.mubr.bf16.gmra.mrb[0].mxu0 %v835
  %v1480 = vpop.f32.mrb[0].mxu0
  %v1481 = vadd.f32 0.0, %v1480
  %v1482 = vpop.f32.mrb[0].mxu0
  %v1483 = vpop.f32.mrb[0].mxu0
  %v1484 = vadd.f32 0.0, %v1483
  %v1485 = vpop.f32.mrb[0].mxu0
  %1486 = vmatprep.mubr.bf16.mxu0 0
  %1487 = vmatmul.mubr.bf16.gmra.mrb[0].mxu0 %v838
  %v1488 = vpop.f32.mrb[0].mxu0
  %v1489 = vadd.f32 0.0, %v1488
  %v1490 = vpop.f32.mrb[0].mxu0
  %v1491 = vpop.f32.mrb[0].mxu0
  %v1492 = vadd.f32 0.0, %v1491
  %v1493 = vpop.f32.mrb[0].mxu0
  %1494 = vmatprep.mubr.bf16.mxu0 0
  %1495 = vmatmul.mubr.bf16.gmra.mrb[0].mxu0 %v841
  %v1496 = vpop.f32.mrb[0].mxu0
  %v1497 = vadd.f32 0.0, %v1496
  %v1498 = vpop.f32.mrb[0].mxu0
  %v1499 = vpop.f32.mrb[0].mxu0
  %v1500 = vadd.f32 0.0, %v1499
  %v1501 = vpop.f32.mrb[0].mxu0
  %1502 = vmatprep.mubr.bf16.mxu0 0
  %1503 = vmatmul.mubr.bf16.gmra.mrb[0].mxu0 %v844
  %v1504 = vpop.f32.mrb[0].mxu0
  %v1505 = vadd.f32 0.0, %v1504
  %v1506 = vpop.f32.mrb[0].mxu0
  %v1507 = vpop.f32.mrb[0].mxu0
  %v1508 = vadd.f32 0.0, %v1507
  %v1509 = vpop.f32.mrb[0].mxu0
  %1510 = vdwg.mxu0
  %vm1511 = vcmask 31744
  %v1512 = vsel %vm1511, %v881, 0.0
  %v1513 = vsel %vm1511, %v884, 0.0
  %v1514 = vadd.f32 %v1512, %v1513
  %v1515 = vsel %vm1511, %v889, 0.0
  %v1516 = vadd.f32 %v1514, %v1515
  %v1517 = vsel %vm1511, %v892, 0.0
  %v1518 = vadd.f32 %v1516, %v1517
  %v1519 = vsel %vm1511, %v897, 0.0
  %v1520 = vadd.f32 %v1518, %v1519
  %v1521 = vsel %vm1511, %v900, 0.0
  %v1522 = vadd.f32 %v1520, %v1521
  %v1523 = vsel %vm1511, %v905, 0.0
  %v1524 = vadd.f32 %v1522, %v1523
  %v1525 = vsel %vm1511, %v908, 0.0
  %v1526 = vadd.f32 %v1524, %v1525
  %v1527 = vsel %vm1511, %v913, 0.0
  %v1528 = vadd.f32 %v1526, %v1527
  %v1529 = vsel %vm1511, %v916, 0.0
  %v1530 = vadd.f32 %v1528, %v1529
  %v1531 = vsel %vm1511, %v921, 0.0
  %v1532 = vadd.f32 %v1530, %v1531
  %v1533 = vsel %vm1511, %v924, 0.0
  %v1534 = vadd.f32 %v1532, %v1533
  %v1535 = vsel %vm1511, %v929, 0.0
  %v1536 = vadd.f32 %v1534, %v1535
  %v1537 = vsel %vm1511, %v932, 0.0
  %v1538 = vadd.f32 %v1536, %v1537
  %v1539 = vsel %vm1511, %v937, 0.0
  %v1540 = vadd.f32 %v1538, %v1539
  %v1541 = vsel %vm1511, %v940, 0.0
  %v1542 = vadd.f32 %v1540, %v1541
  %v1543 = vsel %vm1511, %v945, 0.0
  %v1544 = vadd.f32 %v1542, %v1543
  %v1545 = vsel %vm1511, %v948, 0.0
  %v1546 = vadd.f32 %v1544, %v1545
  %v1547 = vsel %vm1511, %v953, 0.0
  %v1548 = vadd.f32 %v1546, %v1547
  %v1549 = vsel %vm1511, %v956, 0.0
  %v1550 = vadd.f32 %v1548, %v1549
  %v1551 = vsel %vm1511, %v961, 0.0
  %v1552 = vadd.f32 %v1550, %v1551
  %v1553 = vsel %vm1511, %v964, 0.0
  %v1554 = vadd.f32 %v1552, %v1553
  %v1555 = vsel %vm1511, %v969, 0.0
  %v1556 = vadd.f32 %v1554, %v1555
  %v1557 = vsel %vm1511, %v972, 0.0
  %v1558 = vadd.f32 %v1556, %v1557
  %v1559 = vsel %vm1511, %v977, 0.0
  %v1560 = vadd.f32 %v1558, %v1559
  %v1561 = vsel %vm1511, %v980, 0.0
  %v1562 = vadd.f32 %v1560, %v1561
  %v1563 = vsel %vm1511, %v985, 0.0
  %v1564 = vadd.f32 %v1562, %v1563
  %v1565 = vsel %vm1511, %v988, 0.0
  %v1566 = vadd.f32 %v1564, %v1565
  %v1567 = vsel %vm1511, %v993, 0.0
  %v1568 = vadd.f32 %v1566, %v1567
  %v1569 = vsel %vm1511, %v996, 0.0
  %v1570 = vadd.f32 %v1568, %v1569
  %v1571 = vsel %vm1511, %v1001, 0.0
  %v1572 = vadd.f32 %v1570, %v1571
  %v1573 = vsel %vm1511, %v1004, 0.0
  %v1574 = vadd.f32 %v1572, %v1573
  %v1575 = vsel %vm1511, %v1009, 0.0
  %v1576 = vadd.f32 %v1574, %v1575
  %v1577 = vsel %vm1511, %v1012, 0.0
  %v1578 = vadd.f32 %v1576, %v1577
  %v1579 = vsel %vm1511, %v1017, 0.0
  %v1580 = vadd.f32 %v1578, %v1579
  %v1581 = vsel %vm1511, %v1020, 0.0
  %v1582 = vadd.f32 %v1580, %v1581
  %v1583 = vsel %vm1511, %v1025, 0.0
  %v1584 = vadd.f32 %v1582, %v1583
  %v1585 = vsel %vm1511, %v1028, 0.0
  %v1586 = vadd.f32 %v1584, %v1585
  %v1587 = vsel %vm1511, %v1033, 0.0
  %v1588 = vadd.f32 %v1586, %v1587
  %v1589 = vsel %vm1511, %v1036, 0.0
  %v1590 = vadd.f32 %v1588, %v1589
  %v1591 = vsel %vm1511, %v1041, 0.0
  %v1592 = vadd.f32 %v1590, %v1591
  %v1593 = vsel %vm1511, %v1044, 0.0
  %v1594 = vadd.f32 %v1592, %v1593
  %v1595 = vsel %vm1511, %v1049, 0.0
  %v1596 = vadd.f32 %v1594, %v1595
  %v1597 = vsel %vm1511, %v1052, 0.0
  %v1598 = vadd.f32 %v1596, %v1597
  %v1599 = vsel %vm1511, %v1057, 0.0
  %v1600 = vadd.f32 %v1598, %v1599
  %v1601 = vsel %vm1511, %v1060, 0.0
  %v1602 = vadd.f32 %v1600, %v1601
  %v1603 = vsel %vm1511, %v1065, 0.0
  %v1604 = vadd.f32 %v1602, %v1603
  %v1605 = vsel %vm1511, %v1068, 0.0
  %v1606 = vadd.f32 %v1604, %v1605
  %v1607 = vsel %vm1511, %v1073, 0.0
  %v1608 = vadd.f32 %v1606, %v1607
  %v1609 = vsel %vm1511, %v1076, 0.0
  %v1610 = vadd.f32 %v1608, %v1609
  %v1611 = vsel %vm1511, %v1081, 0.0
  %v1612 = vadd.f32 %v1610, %v1611
  %v1613 = vsel %vm1511, %v1084, 0.0
  %v1614 = vadd.f32 %v1612, %v1613
  %v1615 = vsel %vm1511, %v1089, 0.0
  %v1616 = vadd.f32 %v1614, %v1615
  %v1617 = vsel %vm1511, %v1092, 0.0
  %v1618 = vadd.f32 %v1616, %v1617
  %v1619 = vsel %vm1511, %v1097, 0.0
  %v1620 = vadd.f32 %v1618, %v1619
  %v1621 = vsel %vm1511, %v1100, 0.0
  %v1622 = vadd.f32 %v1620, %v1621
  %v1623 = vsel %vm1511, %v1105, 0.0
  %v1624 = vadd.f32 %v1622, %v1623
  %v1625 = vsel %vm1511, %v1108, 0.0
  %v1626 = vadd.f32 %v1624, %v1625
  %v1627 = vsel %vm1511, %v1113, 0.0
  %v1628 = vadd.f32 %v1626, %v1627
  %v1629 = vsel %vm1511, %v1116, 0.0
  %v1630 = vadd.f32 %v1628, %v1629
  %v1631 = vsel %vm1511, %v1121, 0.0
  %v1632 = vadd.f32 %v1630, %v1631
  %v1633 = vsel %vm1511, %v1124, 0.0
  %v1634 = vadd.f32 %v1632, %v1633
  %v1635 = vsel %vm1511, %v1129, 0.0
  %v1636 = vadd.f32 %v1634, %v1635
  %v1637 = vsel %vm1511, %v1132, 0.0
  %v1638 = vadd.f32 %v1636, %v1637
  %v1639 = vsel %vm1511, %v1137, 0.0
  %v1640 = vadd.f32 %v1638, %v1639
  %v1641 = vsel %vm1511, %v1140, 0.0
  %v1642 = vadd.f32 %v1640, %v1641
  %v1643 = vsel %vm1511, %v1145, 0.0
  %v1644 = vadd.f32 %v1642, %v1643
  %v1645 = vsel %vm1511, %v1148, 0.0
  %v1646 = vadd.f32 %v1644, %v1645
  %v1647 = vsel %vm1511, %v1153, 0.0
  %v1648 = vadd.f32 %v1646, %v1647
  %v1649 = vsel %vm1511, %v1156, 0.0
  %v1650 = vadd.f32 %v1648, %v1649
  %v1651 = vsel %vm1511, %v1161, 0.0
  %v1652 = vadd.f32 %v1650, %v1651
  %v1653 = vsel %vm1511, %v1164, 0.0
  %v1654 = vadd.f32 %v1652, %v1653
  %v1655 = vsel %vm1511, %v1169, 0.0
  %v1656 = vadd.f32 %v1654, %v1655
  %v1657 = vsel %vm1511, %v1172, 0.0
  %v1658 = vadd.f32 %v1656, %v1657
  %v1659 = vsel %vm1511, %v1177, 0.0
  %v1660 = vadd.f32 %v1658, %v1659
  %v1661 = vsel %vm1511, %v1180, 0.0
  %v1662 = vadd.f32 %v1660, %v1661
  %v1663 = vsel %vm1511, %v1185, 0.0
  %v1664 = vadd.f32 %v1662, %v1663
  %v1665 = vsel %vm1511, %v1188, 0.0
  %v1666 = vadd.f32 %v1664, %v1665
  %v1667 = vsel %vm1511, %v1193, 0.0
  %v1668 = vadd.f32 %v1666, %v1667
  %v1669 = vsel %vm1511, %v1196, 0.0
  %v1670 = vadd.f32 %v1668, %v1669
  %v1671 = vsel %vm1511, %v1201, 0.0
  %v1672 = vadd.f32 %v1670, %v1671
  %v1673 = vsel %vm1511, %v1204, 0.0
  %v1674 = vadd.f32 %v1672, %v1673
  %v1675 = vsel %vm1511, %v1209, 0.0
  %v1676 = vadd.f32 %v1674, %v1675
  %v1677 = vsel %vm1511, %v1212, 0.0
  %v1678 = vadd.f32 %v1676, %v1677
  %v1679 = vsel %vm1511, %v1217, 0.0
  %v1680 = vadd.f32 %v1678, %v1679
  %v1681 = vsel %vm1511, %v1220, 0.0
  %v1682 = vadd.f32 %v1680, %v1681
  %v1683 = vsel %vm1511, %v1225, 0.0
  %v1684 = vadd.f32 %v1682, %v1683
  %v1685 = vsel %vm1511, %v1228, 0.0
  %v1686 = vadd.f32 %v1684, %v1685
  %v1687 = vsel %vm1511, %v1233, 0.0
  %v1688 = vadd.f32 %v1686, %v1687
  %v1689 = vsel %vm1511, %v1236, 0.0
  %v1690 = vadd.f32 %v1688, %v1689
  %v1691 = vsel %vm1511, %v1241, 0.0
  %v1692 = vadd.f32 %v1690, %v1691
  %v1693 = vsel %vm1511, %v1244, 0.0
  %v1694 = vadd.f32 %v1692, %v1693
  %v1695 = vsel %vm1511, %v1249, 0.0
  %v1696 = vadd.f32 %v1694, %v1695
  %v1697 = vsel %vm1511, %v1252, 0.0
  %v1698 = vadd.f32 %v1696, %v1697
  %v1699 = vsel %vm1511, %v1257, 0.0
  %v1700 = vadd.f32 %v1698, %v1699
  %v1701 = vsel %vm1511, %v1260, 0.0
  %v1702 = vadd.f32 %v1700, %v1701
  %v1703 = vsel %vm1511, %v1265, 0.0
  %v1704 = vadd.f32 %v1702, %v1703
  %v1705 = vsel %vm1511, %v1268, 0.0
  %v1706 = vadd.f32 %v1704, %v1705
  %v1707 = vsel %vm1511, %v1273, 0.0
  %v1708 = vadd.f32 %v1706, %v1707
  %v1709 = vsel %vm1511, %v1276, 0.0
  %v1710 = vadd.f32 %v1708, %v1709
  %v1711 = vsel %vm1511, %v1281, 0.0
  %v1712 = vadd.f32 %v1710, %v1711
  %v1713 = vsel %vm1511, %v1284, 0.0
  %v1714 = vadd.f32 %v1712, %v1713
  %v1715 = vsel %vm1511, %v1289, 0.0
  %v1716 = vadd.f32 %v1714, %v1715
  %v1717 = vsel %vm1511, %v1292, 0.0
  %v1718 = vadd.f32 %v1716, %v1717
  %v1719 = vsel %vm1511, %v1297, 0.0
  %v1720 = vadd.f32 %v1718, %v1719
  %v1721 = vsel %vm1511, %v1300, 0.0
  %v1722 = vadd.f32 %v1720, %v1721
  %v1723 = vsel %vm1511, %v1305, 0.0
  %v1724 = vadd.f32 %v1722, %v1723
  %v1725 = vsel %vm1511, %v1308, 0.0
  %v1726 = vadd.f32 %v1724, %v1725
  %v1727 = vsel %vm1511, %v1313, 0.0
  %v1728 = vadd.f32 %v1726, %v1727
  %v1729 = vsel %vm1511, %v1316, 0.0
  %v1730 = vadd.f32 %v1728, %v1729
  %v1731 = vsel %vm1511, %v1321, 0.0
  %v1732 = vadd.f32 %v1730, %v1731
  %v1733 = vsel %vm1511, %v1324, 0.0
  %v1734 = vadd.f32 %v1732, %v1733
  %v1735 = vsel %vm1511, %v1329, 0.0
  %v1736 = vadd.f32 %v1734, %v1735
  %v1737 = vsel %vm1511, %v1332, 0.0
  %v1738 = vadd.f32 %v1736, %v1737
  %v1739 = vsel %vm1511, %v1337, 0.0
  %v1740 = vadd.f32 %v1738, %v1739
  %v1741 = vsel %vm1511, %v1340, 0.0
  %v1742 = vadd.f32 %v1740, %v1741
  %v1743 = vsel %vm1511, %v1345, 0.0
  %v1744 = vadd.f32 %v1742, %v1743
  %v1745 = vsel %vm1511, %v1348, 0.0
  %v1746 = vadd.f32 %v1744, %v1745
  %v1747 = vsel %vm1511, %v1353, 0.0
  %v1748 = vadd.f32 %v1746, %v1747
  %v1749 = vsel %vm1511, %v1356, 0.0
  %v1750 = vadd.f32 %v1748, %v1749
  %v1751 = vsel %vm1511, %v1361, 0.0
  %v1752 = vadd.f32 %v1750, %v1751
  %v1753 = vsel %vm1511, %v1364, 0.0
  %v1754 = vadd.f32 %v1752, %v1753
  %v1755 = vsel %vm1511, %v1369, 0.0
  %v1756 = vadd.f32 %v1754, %v1755
  %v1757 = vsel %vm1511, %v1372, 0.0
  %v1758 = vadd.f32 %v1756, %v1757
  %v1759 = vsel %vm1511, %v1377, 0.0
  %v1760 = vadd.f32 %v1758, %v1759
  %v1761 = vsel %vm1511, %v1380, 0.0
  %v1762 = vadd.f32 %v1760, %v1761
  %v1763 = vsel %vm1511, %v1385, 0.0
  %v1764 = vadd.f32 %v1762, %v1763
  %v1765 = vsel %vm1511, %v1388, 0.0
  %v1766 = vadd.f32 %v1764, %v1765
  %v1767 = vsel %vm1511, %v1393, 0.0
  %v1768 = vadd.f32 %v1766, %v1767
  %v1769 = vsel %vm1511, %v1396, 0.0
  %v1770 = vadd.f32 %v1768, %v1769
  %v1771 = vsel %vm1511, %v1401, 0.0
  %v1772 = vadd.f32 %v1770, %v1771
  %v1773 = vsel %vm1511, %v1404, 0.0
  %v1774 = vadd.f32 %v1772, %v1773
  %v1775 = vsel %vm1511, %v1409, 0.0
  %v1776 = vadd.f32 %v1774, %v1775
  %v1777 = vsel %vm1511, %v1412, 0.0
  %v1778 = vadd.f32 %v1776, %v1777
  %v1779 = vsel %vm1511, %v1417, 0.0
  %v1780 = vadd.f32 %v1778, %v1779
  %v1781 = vsel %vm1511, %v1420, 0.0
  %v1782 = vadd.f32 %v1780, %v1781
  %v1783 = vsel %vm1511, %v1425, 0.0
  %v1784 = vadd.f32 %v1782, %v1783
  %v1785 = vsel %vm1511, %v1428, 0.0
  %v1786 = vadd.f32 %v1784, %v1785
  %v1787 = vsel %vm1511, %v1433, 0.0
  %v1788 = vadd.f32 %v1786, %v1787
  %v1789 = vsel %vm1511, %v1436, 0.0
  %v1790 = vadd.f32 %v1788, %v1789
  %v1791 = vsel %vm1511, %v1441, 0.0
  %v1792 = vadd.f32 %v1790, %v1791
  %v1793 = vsel %vm1511, %v1444, 0.0
  %v1794 = vadd.f32 %v1792, %v1793
  %v1795 = vsel %vm1511, %v1449, 0.0
  %v1796 = vadd.f32 %v1794, %v1795
  %v1797 = vsel %vm1511, %v1452, 0.0
  %v1798 = vadd.f32 %v1796, %v1797
  %v1799 = vsel %vm1511, %v1457, 0.0
  %v1800 = vadd.f32 %v1798, %v1799
  %v1801 = vsel %vm1511, %v1460, 0.0
  %v1802 = vadd.f32 %v1800, %v1801
  %v1803 = vsel %vm1511, %v1465, 0.0
  %v1804 = vadd.f32 %v1802, %v1803
  %v1805 = vsel %vm1511, %v1468, 0.0
  %v1806 = vadd.f32 %v1804, %v1805
  %v1807 = vsel %vm1511, %v1473, 0.0
  %v1808 = vadd.f32 %v1806, %v1807
  %v1809 = vsel %vm1511, %v1476, 0.0
  %v1810 = vadd.f32 %v1808, %v1809
  %v1811 = vsel %vm1511, %v1481, 0.0
  %v1812 = vadd.f32 %v1810, %v1811
  %v1813 = vsel %vm1511, %v1484, 0.0
  %v1814 = vadd.f32 %v1812, %v1813
  %v1815 = vsel %vm1511, %v1489, 0.0
  %v1816 = vadd.f32 %v1814, %v1815
  %v1817 = vsel %vm1511, %v1492, 0.0
  %v1818 = vadd.f32 %v1816, %v1817
  %v1819 = vsel %vm1511, %v1497, 0.0
  %v1820 = vadd.f32 %v1818, %v1819
  %v1821 = vsel %vm1511, %v1500, 0.0
  %v1822 = vadd.f32 %v1820, %v1821
  %v1823 = vsel %vm1511, %v1505, 0.0
  %v1824 = vadd.f32 %v1822, %v1823
  %vm1825 = vcmask 27648
  %v1826 = vsel %vm1825, %v1508, 0.0
  %v1827 = vadd.f32 %v1824, %v1826
  %v1828 = vrot.slane %v1827, 4
  %v1829 = vadd.f32 %v1827, %v1828
  %v1830 = vrot.slane %v1829, 2
  %v1831 = vadd.f32 %v1829, %v1830
  %v1832 = vrot.slane %v1831, 1
  %v1833 = vadd.f32 %v1831, %v1832
  %v1834 = vmul.f32 %v1833, 0.0007936508
  %v1835 = vsub.f32 %v881, %v1834
  %v1836 = vsub.f32 %v884, %v1834
  %v1837 = vsub.f32 %v889, %v1834
  %v1838 = vsub.f32 %v892, %v1834
  %v1839 = vsub.f32 %v897, %v1834
  %v1840 = vsub.f32 %v900, %v1834
  %v1841 = vsub.f32 %v905, %v1834
  %v1842 = vsub.f32 %v908, %v1834
  %v1843 = vsub.f32 %v913, %v1834
  %v1844 = vsub.f32 %v916, %v1834
  %v1845 = vsub.f32 %v921, %v1834
  %v1846 = vsub.f32 %v924, %v1834
  %v1847 = vsub.f32 %v929, %v1834
  %v1848 = vsub.f32 %v932, %v1834
  %v1849 = vsub.f32 %v937, %v1834
  %v1850 = vsub.f32 %v940, %v1834
  %v1851 = vsub.f32 %v945, %v1834
  %v1852 = vsub.f32 %v948, %v1834
  %v1853 = vsub.f32 %v953, %v1834
  %v1854 = vsub.f32 %v956, %v1834
  %v1855 = vsub.f32 %v961, %v1834
  %v1856 = vsub.f32 %v964, %v1834
  %v1857 = vsub.f32 %v969, %v1834
  %v1858 = vsub.f32 %v972, %v1834
  %v1859 = vsub.f32 %v977, %v1834
  %v1860 = vsub.f32 %v980, %v1834
  %v1861 = vsub.f32 %v985, %v1834
  %v1862 = vsub.f32 %v988, %v1834
  %v1863 = vsub.f32 %v993, %v1834
  %v1864 = vsub.f32 %v996, %v1834
  %v1865 = vsub.f32 %v1001, %v1834
  %v1866 = vsub.f32 %v1004, %v1834
  %v1867 = vsub.f32 %v1009, %v1834
  %v1868 = vsub.f32 %v1012, %v1834
  %v1869 = vsub.f32 %v1017, %v1834
  %v1870 = vsub.f32 %v1020, %v1834
  %v1871 = vsub.f32 %v1025, %v1834
  %v1872 = vsub.f32 %v1028, %v1834
  %v1873 = vsub.f32 %v1033, %v1834
  %v1874 = vsub.f32 %v1036, %v1834
  %v1875 = vsub.f32 %v1041, %v1834
  %v1876 = vsub.f32 %v1044, %v1834
  %v1877 = vsub.f32 %v1049, %v1834
  %v1878 = vsub.f32 %v1052, %v1834
  %v1879 = vsub.f32 %v1057, %v1834
  %v1880 = vsub.f32 %v1060, %v1834
  %v1881 = vsub.f32 %v1065, %v1834
  %v1882 = vsub.f32 %v1068, %v1834
  %v1883 = vsub.f32 %v1073, %v1834
  %v1884 = vsub.f32 %v1076, %v1834
  %v1885 = vsub.f32 %v1081, %v1834
  %v1886 = vsub.f32 %v1084, %v1834
  %v1887 = vsub.f32 %v1089, %v1834
  %v1888 = vsub.f32 %v1092, %v1834
  %v1889 = vsub.f32 %v1097, %v1834
  %v1890 = vsub.f32 %v1100, %v1834
  %v1891 = vsub.f32 %v1105, %v1834
  %v1892 = vsub.f32 %v1108, %v1834
  %v1893 = vsub.f32 %v1113, %v1834
  %v1894 = vsub.f32 %v1116, %v1834
  %v1895 = vsub.f32 %v1121, %v1834
  %v1896 = vsub.f32 %v1124, %v1834
  %v1897 = vsub.f32 %v1129, %v1834
  %v1898 = vsub.f32 %v1132, %v1834
  %v1899 = vsub.f32 %v1137, %v1834
  %v1900 = vsub.f32 %v1140, %v1834
  %v1901 = vsub.f32 %v1145, %v1834
  %v1902 = vsub.f32 %v1148, %v1834
  %v1903 = vsub.f32 %v1153, %v1834
  %v1904 = vsub.f32 %v1156, %v1834
  %v1905 = vsub.f32 %v1161, %v1834
  %v1906 = vsub.f32 %v1164, %v1834
  %v1907 = vsub.f32 %v1169, %v1834
  %v1908 = vsub.f32 %v1172, %v1834
  %v1909 = vsub.f32 %v1177, %v1834
  %v1910 = vsub.f32 %v1180, %v1834
  %v1911 = vsub.f32 %v1185, %v1834
  %v1912 = vsub.f32 %v1188, %v1834
  %v1913 = vsub.f32 %v1193, %v1834
  %v1914 = vsub.f32 %v1196, %v1834
  %v1915 = vsub.f32 %v1201, %v1834
  %v1916 = vsub.f32 %v1204, %v1834
  %v1917 = vsub.f32 %v1209, %v1834
  %v1918 = vsub.f32 %v1212, %v1834
  %v1919 = vsub.f32 %v1217, %v1834
  %v1920 = vsub.f32 %v1220, %v1834
  %v1921 = vsub.f32 %v1225, %v1834
  %v1922 = vsub.f32 %v1228, %v1834
  %v1923 = vsub.f32 %v1233, %v1834
  %v1924 = vsub.f32 %v1236, %v1834
  %v1925 = vsub.f32 %v1241, %v1834
  %v1926 = vsub.f32 %v1244, %v1834
  %v1927 = vsub.f32 %v1249, %v1834
  %v1928 = vsub.f32 %v1252, %v1834
  %v1929 = vsub.f32 %v1257, %v1834
  %v1930 = vsub.f32 %v1260, %v1834
  %v1931 = vsub.f32 %v1265, %v1834
  %v1932 = vsub.f32 %v1268, %v1834
  %v1933 = vsub.f32 %v1273, %v1834
  %v1934 = vsub.f32 %v1276, %v1834
  %v1935 = vsub.f32 %v1281, %v1834
  %v1936 = vsub.f32 %v1284, %v1834
  %v1937 = vsub.f32 %v1289, %v1834
  %v1938 = vsub.f32 %v1292, %v1834
  %v1939 = vsub.f32 %v1297, %v1834
  %v1940 = vsub.f32 %v1300, %v1834
  %v1941 = vsub.f32 %v1305, %v1834
  %v1942 = vsub.f32 %v1308, %v1834
  %v1943 = vsub.f32 %v1313, %v1834
  %v1944 = vsub.f32 %v1316, %v1834
  %v1945 = vsub.f32 %v1321, %v1834
  %v1946 = vsub.f32 %v1324, %v1834
  %v1947 = vsub.f32 %v1329, %v1834
  %v1948 = vsub.f32 %v1332, %v1834
  %v1949 = vsub.f32 %v1337, %v1834
  %v1950 = vsub.f32 %v1340, %v1834
  %v1951 = vsub.f32 %v1345, %v1834
  %v1952 = vsub.f32 %v1348, %v1834
  %v1953 = vsub.f32 %v1353, %v1834
  %v1954 = vsub.f32 %v1356, %v1834
  %v1955 = vsub.f32 %v1361, %v1834
  %v1956 = vsub.f32 %v1364, %v1834
  %v1957 = vsub.f32 %v1369, %v1834
  %v1958 = vsub.f32 %v1372, %v1834
  %v1959 = vsub.f32 %v1377, %v1834
  %v1960 = vsub.f32 %v1380, %v1834
  %v1961 = vsub.f32 %v1385, %v1834
  %v1962 = vsub.f32 %v1388, %v1834
  %v1963 = vsub.f32 %v1393, %v1834
  %v1964 = vsub.f32 %v1396, %v1834
  %v1965 = vsub.f32 %v1401, %v1834
  %v1966 = vsub.f32 %v1404, %v1834
  %v1967 = vsub.f32 %v1409, %v1834
  %v1968 = vsub.f32 %v1412, %v1834
  %v1969 = vsub.f32 %v1417, %v1834
  %v1970 = vsub.f32 %v1420, %v1834
  %v1971 = vsub.f32 %v1425, %v1834
  %v1972 = vsub.f32 %v1428, %v1834
  %v1973 = vsub.f32 %v1433, %v1834
  %v1974 = vsub.f32 %v1436, %v1834
  %v1975 = vsub.f32 %v1441, %v1834
  %v1976 = vsub.f32 %v1444, %v1834
  %v1977 = vsub.f32 %v1449, %v1834
  %v1978 = vsub.f32 %v1452, %v1834
  %v1979 = vsub.f32 %v1457, %v1834
  %v1980 = vsub.f32 %v1460, %v1834
  %v1981 = vsub.f32 %v1465, %v1834
  %v1982 = vsub.f32 %v1468, %v1834
  %v1983 = vsub.f32 %v1473, %v1834
  %v1984 = vsub.f32 %v1476, %v1834
  %v1985 = vsub.f32 %v1481, %v1834
  %v1986 = vsub.f32 %v1484, %v1834
  %v1987 = vsub.f32 %v1489, %v1834
  %v1988 = vsub.f32 %v1492, %v1834
  %v1989 = vsub.f32 %v1497, %v1834
  %v1990 = vsub.f32 %v1500, %v1834
  %v1991 = vsub.f32 %v1505, %v1834
  %v1992 = vsub.f32 %v1508, %v1834
  %v1993 = vmul.f32 %v1835, %v1835
  %v1994 = vmul.f32 %v1836, %v1836
  %v1995 = vmul.f32 %v1837, %v1837
  %v1996 = vmul.f32 %v1838, %v1838
  %v1997 = vmul.f32 %v1839, %v1839
  %v1998 = vmul.f32 %v1840, %v1840
  %v1999 = vmul.f32 %v1841, %v1841
  %v2000 = vmul.f32 %v1842, %v1842
  %v2001 = vmul.f32 %v1843, %v1843
  %v2002 = vmul.f32 %v1844, %v1844
  %v2003 = vmul.f32 %v1845, %v1845
  %v2004 = vmul.f32 %v1846, %v1846
  %v2005 = vmul.f32 %v1847, %v1847
  %v2006 = vmul.f32 %v1848, %v1848
  %v2007 = vmul.f32 %v1849, %v1849
  %v2008 = vmul.f32 %v1850, %v1850
  %v2009 = vmul.f32 %v1851, %v1851
  %v2010 = vmul.f32 %v1852, %v1852
  %v2011 = vmul.f32 %v1853, %v1853
  %v2012 = vmul.f32 %v1854, %v1854
  %v2013 = vmul.f32 %v1855, %v1855
  %v2014 = vmul.f32 %v1856, %v1856
  %v2015 = vmul.f32 %v1857, %v1857
  %v2016 = vmul.f32 %v1858, %v1858
  %v2017 = vmul.f32 %v1859, %v1859
  %v2018 = vmul.f32 %v1860, %v1860
  %v2019 = vmul.f32 %v1861, %v1861
  %v2020 = vmul.f32 %v1862, %v1862
  %v2021 = vmul.f32 %v1863, %v1863
  %v2022 = vmul.f32 %v1864, %v1864
  %v2023 = vmul.f32 %v1865, %v1865
  %v2024 = vmul.f32 %v1866, %v1866
  %v2025 = vmul.f32 %v1867, %v1867
  %v2026 = vmul.f32 %v1868, %v1868
  %v2027 = vmul.f32 %v1869, %v1869
  %v2028 = vmul.f32 %v1870, %v1870
  %v2029 = vmul.f32 %v1871, %v1871
  %v2030 = vmul.f32 %v1872, %v1872
  %v2031 = vmul.f32 %v1873, %v1873
  %v2032 = vmul.f32 %v1874, %v1874
  %v2033 = vmul.f32 %v1875, %v1875
  %v2034 = vmul.f32 %v1876, %v1876
  %v2035 = vmul.f32 %v1877, %v1877
  %v2036 = vmul.f32 %v1878, %v1878
  %v2037 = vmul.f32 %v1879, %v1879
  %v2038 = vmul.f32 %v1880, %v1880
  %v2039 = vmul.f32 %v1881, %v1881
  %v2040 = vmul.f32 %v1882, %v1882
  %v2041 = vmul.f32 %v1883, %v1883
  %v2042 = vmul.f32 %v1884, %v1884
  %v2043 = vmul.f32 %v1885, %v1885
  %v2044 = vmul.f32 %v1886, %v1886
  %v2045 = vmul.f32 %v1887, %v1887
  %v2046 = vmul.f32 %v1888, %v1888
  %v2047 = vmul.f32 %v1889, %v1889
  %v2048 = vmul.f32 %v1890, %v1890
  %v2049 = vmul.f32 %v1891, %v1891
  %v2050 = vmul.f32 %v1892, %v1892
  %v2051 = vmul.f32 %v1893, %v1893
  %v2052 = vmul.f32 %v1894, %v1894
  %v2053 = vmul.f32 %v1895, %v1895
  %v2054 = vmul.f32 %v1896, %v1896
  %v2055 = vmul.f32 %v1897, %v1897
  %v2056 = vmul.f32 %v1898, %v1898
  %v2057 = vmul.f32 %v1899, %v1899
  %v2058 = vmul.f32 %v1900, %v1900
  %v2059 = vmul.f32 %v1901, %v1901
  %v2060 = vmul.f32 %v1902, %v1902
  %v2061 = vmul.f32 %v1903, %v1903
  %v2062 = vmul.f32 %v1904, %v1904
  %v2063 = vmul.f32 %v1905, %v1905
  %v2064 = vmul.f32 %v1906, %v1906
  %v2065 = vmul.f32 %v1907, %v1907
  %v2066 = vmul.f32 %v1908, %v1908
  %v2067 = vmul.f32 %v1909, %v1909
  %v2068 = vmul.f32 %v1910, %v1910
  %v2069 = vmul.f32 %v1911, %v1911
  %v2070 = vmul.f32 %v1912, %v1912
  %v2071 = vmul.f32 %v1913, %v1913
  %v2072 = vmul.f32 %v1914, %v1914
  %v2073 = vmul.f32 %v1915, %v1915
  %v2074 = vmul.f32 %v1916, %v1916
  %v2075 = vmul.f32 %v1917, %v1917
  %v2076 = vmul.f32 %v1918, %v1918
  %v2077 = vmul.f32 %v1919, %v1919
  %v2078 = vmul.f32 %v1920, %v1920
  %v2079 = vmul.f32 %v1921, %v1921
  %v2080 = vmul.f32 %v1922, %v1922
  %v2081 = vmul.f32 %v1923, %v1923
  %v2082 = vmul.f32 %v1924, %v1924
  %v2083 = vmul.f32 %v1925, %v1925
  %v2084 = vmul.f32 %v1926, %v1926
  %v2085 = vmul.f32 %v1927, %v1927
  %v2086 = vmul.f32 %v1928, %v1928
  %v2087 = vmul.f32 %v1929, %v1929
  %v2088 = vmul.f32 %v1930, %v1930
  %v2089 = vmul.f32 %v1931, %v1931
  %v2090 = vmul.f32 %v1932, %v1932
  %v2091 = vmul.f32 %v1933, %v1933
  %v2092 = vmul.f32 %v1934, %v1934
  %v2093 = vmul.f32 %v1935, %v1935
  %v2094 = vmul.f32 %v1936, %v1936
  %v2095 = vmul.f32 %v1937, %v1937
  %v2096 = vmul.f32 %v1938, %v1938
  %v2097 = vmul.f32 %v1939, %v1939
  %v2098 = vmul.f32 %v1940, %v1940
  %v2099 = vmul.f32 %v1941, %v1941
  %v2100 = vmul.f32 %v1942, %v1942
  %v2101 = vmul.f32 %v1943, %v1943
  %v2102 = vmul.f32 %v1944, %v1944
  %v2103 = vmul.f32 %v1945, %v1945
  %v2104 = vmul.f32 %v1946, %v1946
  %v2105 = vmul.f32 %v1947, %v1947
  %v2106 = vmul.f32 %v1948, %v1948
  %v2107 = vmul.f32 %v1949, %v1949
  %v2108 = vmul.f32 %v1950, %v1950
  %v2109 = vmul.f32 %v1951, %v1951
  %v2110 = vmul.f32 %v1952, %v1952
  %v2111 = vmul.f32 %v1953, %v1953
  %v2112 = vmul.f32 %v1954, %v1954
  %v2113 = vmul.f32 %v1955, %v1955
  %v2114 = vmul.f32 %v1956, %v1956
  %v2115 = vmul.f32 %v1957, %v1957
  %v2116 = vmul.f32 %v1958, %v1958
  %v2117 = vmul.f32 %v1959, %v1959
  %v2118 = vmul.f32 %v1960, %v1960
  %v2119 = vmul.f32 %v1961, %v1961
  %v2120 = vmul.f32 %v1962, %v1962
  %v2121 = vmul.f32 %v1963, %v1963
  %v2122 = vmul.f32 %v1964, %v1964
  %v2123 = vmul.f32 %v1965, %v1965
  %v2124 = vmul.f32 %v1966, %v1966
  %v2125 = vmul.f32 %v1967, %v1967
  %v2126 = vmul.f32 %v1968, %v1968
  %v2127 = vmul.f32 %v1969, %v1969
  %v2128 = vmul.f32 %v1970, %v1970
  %v2129 = vmul.f32 %v1971, %v1971
  %v2130 = vmul.f32 %v1972, %v1972
  %v2131 = vmul.f32 %v1973, %v1973
  %v2132 = vmul.f32 %v1974, %v1974
  %v2133 = vmul.f32 %v1975, %v1975
  %v2134 = vmul.f32 %v1976, %v1976
  %v2135 = vmul.f32 %v1977, %v1977
  %v2136 = vmul.f32 %v1978, %v1978
  %v2137 = vmul.f32 %v1979, %v1979
  %v2138 = vmul.f32 %v1980, %v1980
  %v2139 = vmul.f32 %v1981, %v1981
  %v2140 = vmul.f32 %v1982, %v1982
  %v2141 = vmul.f32 %v1983, %v1983
  %v2142 = vmul.f32 %v1984, %v1984
  %v2143 = vmul.f32 %v1985, %v1985
  %v2144 = vmul.f32 %v1986, %v1986
  %v2145 = vmul.f32 %v1987, %v1987
  %v2146 = vmul.f32 %v1988, %v1988
  %v2147 = vmul.f32 %v1989, %v1989
  %v2148 = vmul.f32 %v1990, %v1990
  %v2149 = vmul.f32 %v1991, %v1991
  %v2150 = vmul.f32 %v1992, %v1992
  %v2151 = vsel %vm1511, %v1993, 0.0
  %v2152 = vsel %vm1511, %v1994, 0.0
  %v2153 = vadd.f32 %v2151, %v2152
  %v2154 = vsel %vm1511, %v1995, 0.0
  %v2155 = vadd.f32 %v2153, %v2154
  %v2156 = vsel %vm1511, %v1996, 0.0
  %v2157 = vadd.f32 %v2155, %v2156
  %v2158 = vsel %vm1511, %v1997, 0.0
  %v2159 = vadd.f32 %v2157, %v2158
  %v2160 = vsel %vm1511, %v1998, 0.0
  %v2161 = vadd.f32 %v2159, %v2160
  %v2162 = vsel %vm1511, %v1999, 0.0
  %v2163 = vadd.f32 %v2161, %v2162
  %v2164 = vsel %vm1511, %v2000, 0.0
  %v2165 = vadd.f32 %v2163, %v2164
  %v2166 = vsel %vm1511, %v2001, 0.0
  %v2167 = vadd.f32 %v2165, %v2166
  %v2168 = vsel %vm1511, %v2002, 0.0
  %v2169 = vadd.f32 %v2167, %v2168
  %v2170 = vsel %vm1511, %v2003, 0.0
  %v2171 = vadd.f32 %v2169, %v2170
  %v2172 = vsel %vm1511, %v2004, 0.0
  %v2173 = vadd.f32 %v2171, %v2172
  %v2174 = vsel %vm1511, %v2005, 0.0
  %v2175 = vadd.f32 %v2173, %v2174
  %v2176 = vsel %vm1511, %v2006, 0.0
  %v2177 = vadd.f32 %v2175, %v2176
  %v2178 = vsel %vm1511, %v2007, 0.0
  %v2179 = vadd.f32 %v2177, %v2178
  %v2180 = vsel %vm1511, %v2008, 0.0
  %v2181 = vadd.f32 %v2179, %v2180
  %v2182 = vsel %vm1511, %v2009, 0.0
  %v2183 = vadd.f32 %v2181, %v2182
  %v2184 = vsel %vm1511, %v2010, 0.0
  %v2185 = vadd.f32 %v2183, %v2184
  %v2186 = vsel %vm1511, %v2011, 0.0
  %v2187 = vadd.f32 %v2185, %v2186
  %v2188 = vsel %vm1511, %v2012, 0.0
  %v2189 = vadd.f32 %v2187, %v2188
  %v2190 = vsel %vm1511, %v2013, 0.0
  %v2191 = vadd.f32 %v2189, %v2190
  %v2192 = vsel %vm1511, %v2014, 0.0
  %v2193 = vadd.f32 %v2191, %v2192
  %v2194 = vsel %vm1511, %v2015, 0.0
  %v2195 = vadd.f32 %v2193, %v2194
  %v2196 = vsel %vm1511, %v2016, 0.0
  %v2197 = vadd.f32 %v2195, %v2196
  %v2198 = vsel %vm1511, %v2017, 0.0
  %v2199 = vadd.f32 %v2197, %v2198
  %v2200 = vsel %vm1511, %v2018, 0.0
  %v2201 = vadd.f32 %v2199, %v2200
  %v2202 = vsel %vm1511, %v2019, 0.0
  %v2203 = vadd.f32 %v2201, %v2202
  %v2204 = vsel %vm1511, %v2020, 0.0
  %v2205 = vadd.f32 %v2203, %v2204
  %v2206 = vsel %vm1511, %v2021, 0.0
  %v2207 = vadd.f32 %v2205, %v2206
  %v2208 = vsel %vm1511, %v2022, 0.0
  %v2209 = vadd.f32 %v2207, %v2208
  %v2210 = vsel %vm1511, %v2023, 0.0
  %v2211 = vadd.f32 %v2209, %v2210
  %v2212 = vsel %vm1511, %v2024, 0.0
  %v2213 = vadd.f32 %v2211, %v2212
  %v2214 = vsel %vm1511, %v2025, 0.0
  %v2215 = vadd.f32 %v2213, %v2214
  %v2216 = vsel %vm1511, %v2026, 0.0
  %v2217 = vadd.f32 %v2215, %v2216
  %v2218 = vsel %vm1511, %v2027, 0.0
  %v2219 = vadd.f32 %v2217, %v2218
  %v2220 = vsel %vm1511, %v2028, 0.0
  %v2221 = vadd.f32 %v2219, %v2220
  %v2222 = vsel %vm1511, %v2029, 0.0
  %v2223 = vadd.f32 %v2221, %v2222
  %v2224 = vsel %vm1511, %v2030, 0.0
  %v2225 = vadd.f32 %v2223, %v2224
  %v2226 = vsel %vm1511, %v2031, 0.0
  %v2227 = vadd.f32 %v2225, %v2226
  %v2228 = vsel %vm1511, %v2032, 0.0
  %v2229 = vadd.f32 %v2227, %v2228
  %v2230 = vsel %vm1511, %v2033, 0.0
  %v2231 = vadd.f32 %v2229, %v2230
  %v2232 = vsel %vm1511, %v2034, 0.0
  %v2233 = vadd.f32 %v2231, %v2232
  %v2234 = vsel %vm1511, %v2035, 0.0
  %v2235 = vadd.f32 %v2233, %v2234
  %v2236 = vsel %vm1511, %v2036, 0.0
  %v2237 = vadd.f32 %v2235, %v2236
  %v2238 = vsel %vm1511, %v2037, 0.0
  %v2239 = vadd.f32 %v2237, %v2238
  %v2240 = vsel %vm1511, %v2038, 0.0
  %v2241 = vadd.f32 %v2239, %v2240
  %v2242 = vsel %vm1511, %v2039, 0.0
  %v2243 = vadd.f32 %v2241, %v2242
  %v2244 = vsel %vm1511, %v2040, 0.0
  %v2245 = vadd.f32 %v2243, %v2244
  %v2246 = vsel %vm1511, %v2041, 0.0
  %v2247 = vadd.f32 %v2245, %v2246
  %v2248 = vsel %vm1511, %v2042, 0.0
  %v2249 = vadd.f32 %v2247, %v2248
  %v2250 = vsel %vm1511, %v2043, 0.0
  %v2251 = vadd.f32 %v2249, %v2250
  %v2252 = vsel %vm1511, %v2044, 0.0
  %v2253 = vadd.f32 %v2251, %v2252
  %v2254 = vsel %vm1511, %v2045, 0.0
  %v2255 = vadd.f32 %v2253, %v2254
  %v2256 = vsel %vm1511, %v2046, 0.0
  %v2257 = vadd.f32 %v2255, %v2256
  %v2258 = vsel %vm1511, %v2047, 0.0
  %v2259 = vadd.f32 %v2257, %v2258
  %v2260 = vsel %vm1511, %v2048, 0.0
  %v2261 = vadd.f32 %v2259, %v2260
  %v2262 = vsel %vm1511, %v2049, 0.0
  %v2263 = vadd.f32 %v2261, %v2262
  %v2264 = vsel %vm1511, %v2050, 0.0
  %v2265 = vadd.f32 %v2263, %v2264
  %v2266 = vsel %vm1511, %v2051, 0.0
  %v2267 = vadd.f32 %v2265, %v2266
  %v2268 = vsel %vm1511, %v2052, 0.0
  %v2269 = vadd.f32 %v2267, %v2268
  %v2270 = vsel %vm1511, %v2053, 0.0
  %v2271 = vadd.f32 %v2269, %v2270
  %v2272 = vsel %vm1511, %v2054, 0.0
  %v2273 = vadd.f32 %v2271, %v2272
  %v2274 = vsel %vm1511, %v2055, 0.0
  %v2275 = vadd.f32 %v2273, %v2274
  %v2276 = vsel %vm1511, %v2056, 0.0
  %v2277 = vadd.f32 %v2275, %v2276
  %v2278 = vsel %vm1511, %v2057, 0.0
  %v2279 = vadd.f32 %v2277, %v2278
  %v2280 = vsel %vm1511, %v2058, 0.0
  %v2281 = vadd.f32 %v2279, %v2280
  %v2282 = vsel %vm1511, %v2059, 0.0
  %v2283 = vadd.f32 %v2281, %v2282
  %v2284 = vsel %vm1511, %v2060, 0.0
  %v2285 = vadd.f32 %v2283, %v2284
  %v2286 = vsel %vm1511, %v2061, 0.0
  %v2287 = vadd.f32 %v2285, %v2286
  %v2288 = vsel %vm1511, %v2062, 0.0
  %v2289 = vadd.f32 %v2287, %v2288
  %v2290 = vsel %vm1511, %v2063, 0.0
  %v2291 = vadd.f32 %v2289, %v2290
  %v2292 = vsel %vm1511, %v2064, 0.0
  %v2293 = vadd.f32 %v2291, %v2292
  %v2294 = vsel %vm1511, %v2065, 0.0
  %v2295 = vadd.f32 %v2293, %v2294
  %v2296 = vsel %vm1511, %v2066, 0.0
  %v2297 = vadd.f32 %v2295, %v2296
  %v2298 = vsel %vm1511, %v2067, 0.0
  %v2299 = vadd.f32 %v2297, %v2298
  %v2300 = vsel %vm1511, %v2068, 0.0
  %v2301 = vadd.f32 %v2299, %v2300
  %v2302 = vsel %vm1511, %v2069, 0.0
  %v2303 = vadd.f32 %v2301, %v2302
  %v2304 = vsel %vm1511, %v2070, 0.0
  %v2305 = vadd.f32 %v2303, %v2304
  %v2306 = vsel %vm1511, %v2071, 0.0
  %v2307 = vadd.f32 %v2305, %v2306
  %v2308 = vsel %vm1511, %v2072, 0.0
  %v2309 = vadd.f32 %v2307, %v2308
  %v2310 = vsel %vm1511, %v2073, 0.0
  %v2311 = vadd.f32 %v2309, %v2310
  %v2312 = vsel %vm1511, %v2074, 0.0
  %v2313 = vadd.f32 %v2311, %v2312
  %v2314 = vsel %vm1511, %v2075, 0.0
  %v2315 = vadd.f32 %v2313, %v2314
  %v2316 = vsel %vm1511, %v2076, 0.0
  %v2317 = vadd.f32 %v2315, %v2316
  %v2318 = vsel %vm1511, %v2077, 0.0
  %v2319 = vadd.f32 %v2317, %v2318
  %v2320 = vsel %vm1511, %v2078, 0.0
  %v2321 = vadd.f32 %v2319, %v2320
  %v2322 = vsel %vm1511, %v2079, 0.0
  %v2323 = vadd.f32 %v2321, %v2322
  %v2324 = vsel %vm1511, %v2080, 0.0
  %v2325 = vadd.f32 %v2323, %v2324
  %v2326 = vsel %vm1511, %v2081, 0.0
  %v2327 = vadd.f32 %v2325, %v2326
  %v2328 = vsel %vm1511, %v2082, 0.0
  %v2329 = vadd.f32 %v2327, %v2328
  %v2330 = vsel %vm1511, %v2083, 0.0
  %v2331 = vadd.f32 %v2329, %v2330
  %v2332 = vsel %vm1511, %v2084, 0.0
  %v2333 = vadd.f32 %v2331, %v2332
  %v2334 = vsel %vm1511, %v2085, 0.0
  %v2335 = vadd.f32 %v2333, %v2334
  %v2336 = vsel %vm1511, %v2086, 0.0
  %v2337 = vadd.f32 %v2335, %v2336
  %v2338 = vsel %vm1511, %v2087, 0.0
  %v2339 = vadd.f32 %v2337, %v2338
  %v2340 = vsel %vm1511, %v2088, 0.0
  %v2341 = vadd.f32 %v2339, %v2340
  %v2342 = vsel %vm1511, %v2089, 0.0
  %v2343 = vadd.f32 %v2341, %v2342
  %v2344 = vsel %vm1511, %v2090, 0.0
  %v2345 = vadd.f32 %v2343, %v2344
  %v2346 = vsel %vm1511, %v2091, 0.0
  %v2347 = vadd.f32 %v2345, %v2346
  %v2348 = vsel %vm1511, %v2092, 0.0
  %v2349 = vadd.f32 %v2347, %v2348
  %v2350 = vsel %vm1511, %v2093, 0.0
  %v2351 = vadd.f32 %v2349, %v2350
  %v2352 = vsel %vm1511, %v2094, 0.0
  %v2353 = vadd.f32 %v2351, %v2352
  %v2354 = vsel %vm1511, %v2095, 0.0
  %v2355 = vadd.f32 %v2353, %v2354
  %v2356 = vsel %vm1511, %v2096, 0.0
  %v2357 = vadd.f32 %v2355, %v2356
  %v2358 = vsel %vm1511, %v2097, 0.0
  %v2359 = vadd.f32 %v2357, %v2358
  %v2360 = vsel %vm1511, %v2098, 0.0
  %v2361 = vadd.f32 %v2359, %v2360
  %v2362 = vsel %vm1511, %v2099, 0.0
  %v2363 = vadd.f32 %v2361, %v2362
  %v2364 = vsel %vm1511, %v2100, 0.0
  %v2365 = vadd.f32 %v2363, %v2364
  %v2366 = vsel %vm1511, %v2101, 0.0
  %v2367 = vadd.f32 %v2365, %v2366
  %v2368 = vsel %vm1511, %v2102, 0.0
  %v2369 = vadd.f32 %v2367, %v2368
  %v2370 = vsel %vm1511, %v2103, 0.0
  %v2371 = vadd.f32 %v2369, %v2370
  %v2372 = vsel %vm1511, %v2104, 0.0
  %v2373 = vadd.f32 %v2371, %v2372
  %v2374 = vsel %vm1511, %v2105, 0.0
  %v2375 = vadd.f32 %v2373, %v2374
  %v2376 = vsel %vm1511, %v2106, 0.0
  %v2377 = vadd.f32 %v2375, %v2376
  %v2378 = vsel %vm1511, %v2107, 0.0
  %v2379 = vadd.f32 %v2377, %v2378
  %v2380 = vsel %vm1511, %v2108, 0.0
  %v2381 = vadd.f32 %v2379, %v2380
  %v2382 = vsel %vm1511, %v2109, 0.0
  %v2383 = vadd.f32 %v2381, %v2382
  %v2384 = vsel %vm1511, %v2110, 0.0
  %v2385 = vadd.f32 %v2383, %v2384
  %v2386 = vsel %vm1511, %v2111, 0.0
  %v2387 = vadd.f32 %v2385, %v2386
  %v2388 = vsel %vm1511, %v2112, 0.0
  %v2389 = vadd.f32 %v2387, %v2388
  %v2390 = vsel %vm1511, %v2113, 0.0
  %v2391 = vadd.f32 %v2389, %v2390
  %v2392 = vsel %vm1511, %v2114, 0.0
  %v2393 = vadd.f32 %v2391, %v2392
  %v2394 = vsel %vm1511, %v2115, 0.0
  %v2395 = vadd.f32 %v2393, %v2394
  %v2396 = vsel %vm1511, %v2116, 0.0
  %v2397 = vadd.f32 %v2395, %v2396
  %v2398 = vsel %vm1511, %v2117, 0.0
  %v2399 = vadd.f32 %v2397, %v2398
  %v2400 = vsel %vm1511, %v2118, 0.0
  %v2401 = vadd.f32 %v2399, %v2400
  %v2402 = vsel %vm1511, %v2119, 0.0
  %v2403 = vadd.f32 %v2401, %v2402
  %v2404 = vsel %vm1511, %v2120, 0.0
  %v2405 = vadd.f32 %v2403, %v2404
  %v2406 = vsel %vm1511, %v2121, 0.0
  %v2407 = vadd.f32 %v2405, %v2406
  %v2408 = vsel %vm1511, %v2122, 0.0
  %v2409 = vadd.f32 %v2407, %v2408
  %v2410 = vsel %vm1511, %v2123, 0.0
  %v2411 = vadd.f32 %v2409, %v2410
  %v2412 = vsel %vm1511, %v2124, 0.0
  %v2413 = vadd.f32 %v2411, %v2412
  %v2414 = vsel %vm1511, %v2125, 0.0
  %v2415 = vadd.f32 %v2413, %v2414
  %v2416 = vsel %vm1511, %v2126, 0.0
  %v2417 = vadd.f32 %v2415, %v2416
  %v2418 = vsel %vm1511, %v2127, 0.0
  %v2419 = vadd.f32 %v2417, %v2418
  %v2420 = vsel %vm1511, %v2128, 0.0
  %v2421 = vadd.f32 %v2419, %v2420
  %v2422 = vsel %vm1511, %v2129, 0.0
  %v2423 = vadd.f32 %v2421, %v2422
  %v2424 = vsel %vm1511, %v2130, 0.0
  %v2425 = vadd.f32 %v2423, %v2424
  %v2426 = vsel %vm1511, %v2131, 0.0
  %v2427 = vadd.f32 %v2425, %v2426
  %v2428 = vsel %vm1511, %v2132, 0.0
  %v2429 = vadd.f32 %v2427, %v2428
  %v2430 = vsel %vm1511, %v2133, 0.0
  %v2431 = vadd.f32 %v2429, %v2430
  %v2432 = vsel %vm1511, %v2134, 0.0
  %v2433 = vadd.f32 %v2431, %v2432
  %v2434 = vsel %vm1511, %v2135, 0.0
  %v2435 = vadd.f32 %v2433, %v2434
  %v2436 = vsel %vm1511, %v2136, 0.0
  %v2437 = vadd.f32 %v2435, %v2436
  %v2438 = vsel %vm1511, %v2137, 0.0
  %v2439 = vadd.f32 %v2437, %v2438
  %v2440 = vsel %vm1511, %v2138, 0.0
  %v2441 = vadd.f32 %v2439, %v2440
  %v2442 = vsel %vm1511, %v2139, 0.0
  %v2443 = vadd.f32 %v2441, %v2442
  %v2444 = vsel %vm1511, %v2140, 0.0
  %v2445 = vadd.f32 %v2443, %v2444
  %v2446 = vsel %vm1511, %v2141, 0.0
  %v2447 = vadd.f32 %v2445, %v2446
  %v2448 = vsel %vm1511, %v2142, 0.0
  %v2449 = vadd.f32 %v2447, %v2448
  %v2450 = vsel %vm1511, %v2143, 0.0
  %v2451 = vadd.f32 %v2449, %v2450
  %v2452 = vsel %vm1511, %v2144, 0.0
  %v2453 = vadd.f32 %v2451, %v2452
  %v2454 = vsel %vm1511, %v2145, 0.0
  %v2455 = vadd.f32 %v2453, %v2454
  %v2456 = vsel %vm1511, %v2146, 0.0
  %v2457 = vadd.f32 %v2455, %v2456
  %v2458 = vsel %vm1511, %v2147, 0.0
  %v2459 = vadd.f32 %v2457, %v2458
  %v2460 = vsel %vm1511, %v2148, 0.0
  %v2461 = vadd.f32 %v2459, %v2460
  %v2462 = vsel %vm1511, %v2149, 0.0
  %v2463 = vadd.f32 %v2461, %v2462
  %v2464 = vsel %vm1825, %v2150, 0.0
  %v2465 = vadd.f32 %v2463, %v2464
  %v2466 = vrot.slane %v2465, 4
  %v2467 = vadd.f32 %v2465, %v2466
  %v2468 = vrot.slane %v2467, 2
  %v2469 = vadd.f32 %v2467, %v2468
  %v2470 = vrot.slane %v2469, 1
  %v2471 = vadd.f32 %v2469, %v2470
  %v2472 = vmul.f32 %v2471, 0.0007936508
  %v2473 = vld [vmem:[%s2] sm:$0x3]
  %v2474 = vadd.f32 %v2472, 1e-05
  %v2475 = vrsqrt.pop %v2474
  %v2476 = vmul.f32 %v2473, %v2475
  %v2477 = vlaneseq
  %v2478 = vshrl.u32 %v2477, 7
  %v2479 = vsub.s32 0, %v2478
  %v2480 = vrot.slane %v2476, %v2479
  %v2481 = vmul.f32 %v1835, %v2480
  %v2482 = vmul.f32 %v1836, %v2480
  %v2483 = vmul.f32 %v1837, %v2480
  %v2484 = vmul.f32 %v1838, %v2480
  %v2485 = vmul.f32 %v1839, %v2480
  %v2486 = vmul.f32 %v1840, %v2480
  %v2487 = vmul.f32 %v1841, %v2480
  %v2488 = vmul.f32 %v1842, %v2480
  %v2489 = vmul.f32 %v1843, %v2480
  %v2490 = vmul.f32 %v1844, %v2480
  %v2491 = vmul.f32 %v1845, %v2480
  %v2492 = vmul.f32 %v1846, %v2480
  %v2493 = vmul.f32 %v1847, %v2480
  %v2494 = vmul.f32 %v1848, %v2480
  %v2495 = vmul.f32 %v1849, %v2480
  %v2496 = vmul.f32 %v1850, %v2480
  %v2497 = vmul.f32 %v1851, %v2480
  %v2498 = vmul.f32 %v1852, %v2480
  %v2499 = vmul.f32 %v1853, %v2480
  %v2500 = vmul.f32 %v1854, %v2480
  %v2501 = vmul.f32 %v1855, %v2480
  %v2502 = vmul.f32 %v1856, %v2480
  %v2503 = vmul.f32 %v1857, %v2480
  %v2504 = vmul.f32 %v1858, %v2480
  %v2505 = vmul.f32 %v1859, %v2480
  %v2506 = vmul.f32 %v1860, %v2480
  %v2507 = vmul.f32 %v1861, %v2480
  %v2508 = vmul.f32 %v1862, %v2480
  %v2509 = vmul.f32 %v1863, %v2480
  %v2510 = vmul.f32 %v1864, %v2480
  %v2511 = vmul.f32 %v1865, %v2480
  %v2512 = vmul.f32 %v1866, %v2480
  %v2513 = vmul.f32 %v1867, %v2480
  %v2514 = vmul.f32 %v1868, %v2480
  %v2515 = vmul.f32 %v1869, %v2480
  %v2516 = vmul.f32 %v1870, %v2480
  %v2517 = vmul.f32 %v1871, %v2480
  %v2518 = vmul.f32 %v1872, %v2480
  %v2519 = vmul.f32 %v1873, %v2480
  %v2520 = vmul.f32 %v1874, %v2480
  %v2521 = vmul.f32 %v1875, %v2480
  %v2522 = vmul.f32 %v1876, %v2480
  %v2523 = vmul.f32 %v1877, %v2480
  %v2524 = vmul.f32 %v1878, %v2480
  %v2525 = vmul.f32 %v1879, %v2480
  %v2526 = vmul.f32 %v1880, %v2480
  %v2527 = vmul.f32 %v1881, %v2480
  %v2528 = vmul.f32 %v1882, %v2480
  %v2529 = vmul.f32 %v1883, %v2480
  %v2530 = vmul.f32 %v1884, %v2480
  %v2531 = vmul.f32 %v1885, %v2480
  %v2532 = vmul.f32 %v1886, %v2480
  %v2533 = vmul.f32 %v1887, %v2480
  %v2534 = vmul.f32 %v1888, %v2480
  %v2535 = vmul.f32 %v1889, %v2480
  %v2536 = vmul.f32 %v1890, %v2480
  %v2537 = vmul.f32 %v1891, %v2480
  %v2538 = vmul.f32 %v1892, %v2480
  %v2539 = vmul.f32 %v1893, %v2480
  %v2540 = vmul.f32 %v1894, %v2480
  %v2541 = vmul.f32 %v1895, %v2480
  %v2542 = vmul.f32 %v1896, %v2480
  %v2543 = vmul.f32 %v1897, %v2480
  %v2544 = vmul.f32 %v1898, %v2480
  %v2545 = vmul.f32 %v1899, %v2480
  %v2546 = vmul.f32 %v1900, %v2480
  %v2547 = vmul.f32 %v1901, %v2480
  %v2548 = vmul.f32 %v1902, %v2480
  %v2549 = vmul.f32 %v1903, %v2480
  %v2550 = vmul.f32 %v1904, %v2480
  %v2551 = vmul.f32 %v1905, %v2480
  %v2552 = vmul.f32 %v1906, %v2480
  %v2553 = vmul.f32 %v1907, %v2480
  %v2554 = vmul.f32 %v1908, %v2480
  %v2555 = vmul.f32 %v1909, %v2480
  %v2556 = vmul.f32 %v1910, %v2480
  %v2557 = vmul.f32 %v1911, %v2480
  %v2558 = vmul.f32 %v1912, %v2480
  %v2559 = vmul.f32 %v1913, %v2480
  %v2560 = vmul.f32 %v1914, %v2480
  %v2561 = vmul.f32 %v1915, %v2480
  %v2562 = vmul.f32 %v1916, %v2480
  %v2563 = vmul.f32 %v1917, %v2480
  %v2564 = vmul.f32 %v1918, %v2480
  %v2565 = vmul.f32 %v1919, %v2480
  %v2566 = vmul.f32 %v1920, %v2480
  %v2567 = vmul.f32 %v1921, %v2480
  %v2568 = vmul.f32 %v1922, %v2480
  %v2569 = vmul.f32 %v1923, %v2480
  %v2570 = vmul.f32 %v1924, %v2480
  %v2571 = vmul.f32 %v1925, %v2480
  %v2572 = vmul.f32 %v1926, %v2480
  %v2573 = vmul.f32 %v1927, %v2480
  %v2574 = vmul.f32 %v1928, %v2480
  %v2575 = vmul.f32 %v1929, %v2480
  %v2576 = vmul.f32 %v1930, %v2480
  %v2577 = vmul.f32 %v1931, %v2480
  %v2578 = vmul.f32 %v1932, %v2480
  %v2579 = vmul.f32 %v1933, %v2480
  %v2580 = vmul.f32 %v1934, %v2480
  %v2581 = vmul.f32 %v1935, %v2480
  %v2582 = vmul.f32 %v1936, %v2480
  %v2583 = vmul.f32 %v1937, %v2480
  %v2584 = vmul.f32 %v1938, %v2480
  %v2585 = vmul.f32 %v1939, %v2480
  %v2586 = vmul.f32 %v1940, %v2480
  %v2587 = vmul.f32 %v1941, %v2480
  %v2588 = vmul.f32 %v1942, %v2480
  %v2589 = vmul.f32 %v1943, %v2480
  %v2590 = vmul.f32 %v1944, %v2480
  %v2591 = vmul.f32 %v1945, %v2480
  %v2592 = vmul.f32 %v1946, %v2480
  %v2593 = vmul.f32 %v1947, %v2480
  %v2594 = vmul.f32 %v1948, %v2480
  %v2595 = vmul.f32 %v1949, %v2480
  %v2596 = vmul.f32 %v1950, %v2480
  %v2597 = vmul.f32 %v1951, %v2480
  %v2598 = vmul.f32 %v1952, %v2480
  %v2599 = vmul.f32 %v1953, %v2480
  %v2600 = vmul.f32 %v1954, %v2480
  %v2601 = vmul.f32 %v1955, %v2480
  %v2602 = vmul.f32 %v1956, %v2480
  %v2603 = vmul.f32 %v1957, %v2480
  %v2604 = vmul.f32 %v1958, %v2480
  %v2605 = vmul.f32 %v1959, %v2480
  %v2606 = vmul.f32 %v1960, %v2480
  %v2607 = vmul.f32 %v1961, %v2480
  %v2608 = vmul.f32 %v1962, %v2480
  %v2609 = vmul.f32 %v1963, %v2480
  %v2610 = vmul.f32 %v1964, %v2480
  %v2611 = vmul.f32 %v1965, %v2480
  %v2612 = vmul.f32 %v1966, %v2480
  %v2613 = vmul.f32 %v1967, %v2480
  %v2614 = vmul.f32 %v1968, %v2480
  %v2615 = vmul.f32 %v1969, %v2480
  %v2616 = vmul.f32 %v1970, %v2480
  %v2617 = vmul.f32 %v1971, %v2480
  %v2618 = vmul.f32 %v1972, %v2480
  %v2619 = vmul.f32 %v1973, %v2480
  %v2620 = vmul.f32 %v1974, %v2480
  %v2621 = vmul.f32 %v1975, %v2480
  %v2622 = vmul.f32 %v1976, %v2480
  %v2623 = vmul.f32 %v1977, %v2480
  %v2624 = vmul.f32 %v1978, %v2480
  %v2625 = vmul.f32 %v1979, %v2480
  %v2626 = vmul.f32 %v1980, %v2480
  %v2627 = vmul.f32 %v1981, %v2480
  %v2628 = vmul.f32 %v1982, %v2480
  %v2629 = vmul.f32 %v1983, %v2480
  %v2630 = vmul.f32 %v1984, %v2480
  %v2631 = vmul.f32 %v1985, %v2480
  %v2632 = vmul.f32 %v1986, %v2480
  %v2633 = vmul.f32 %v1987, %v2480
  %v2634 = vmul.f32 %v1988, %v2480
  %v2635 = vmul.f32 %v1989, %v2480
  %v2636 = vmul.f32 %v1990, %v2480
  %v2637 = vmul.f32 %v1991, %v2480
  %v2638 = vmul.f32 %v1992, %v2480
  %v2639 = vlaneseq
  %v2640 = vshrl.u32 %v2639, 7
  %v2641 = vsub.s32 1, %v2640
  %v2642 = vrot.slane %v2473, %v2641
  %v2643 = vadd.f32 %v2481, %v2642
  %v2644 = vadd.f32 %v2482, %v2642
  %v2645 = vadd.f32 %v2483, %v2642
  %v2646 = vadd.f32 %v2484, %v2642
  %v2647 = vadd.f32 %v2485, %v2642
  %v2648 = vadd.f32 %v2486, %v2642
  %v2649 = vadd.f32 %v2487, %v2642
  %v2650 = vadd.f32 %v2488, %v2642
  %v2651 = vadd.f32 %v2489, %v2642
  %v2652 = vadd.f32 %v2490, %v2642
  %v2653 = vadd.f32 %v2491, %v2642
  %v2654 = vadd.f32 %v2492, %v2642
  %v2655 = vadd.f32 %v2493, %v2642
  %v2656 = vadd.f32 %v2494, %v2642
  %v2657 = vadd.f32 %v2495, %v2642
  %v2658 = vadd.f32 %v2496, %v2642
  %v2659 = vadd.f32 %v2497, %v2642
  %v2660 = vadd.f32 %v2498, %v2642
  %v2661 = vadd.f32 %v2499, %v2642
  %v2662 = vadd.f32 %v2500, %v2642
  %v2663 = vadd.f32 %v2501, %v2642
  %v2664 = vadd.f32 %v2502, %v2642
  %v2665 = vadd.f32 %v2503, %v2642
  %v2666 = vadd.f32 %v2504, %v2642
  %v2667 = vadd.f32 %v2505, %v2642
  %v2668 = vadd.f32 %v2506, %v2642
  %v2669 = vadd.f32 %v2507, %v2642
  %v2670 = vadd.f32 %v2508, %v2642
  %v2671 = vadd.f32 %v2509, %v2642
  %v2672 = vadd.f32 %v2510, %v2642
  %v2673 = vadd.f32 %v2511, %v2642
  %v2674 = vadd.f32 %v2512, %v2642
  %v2675 = vadd.f32 %v2513, %v2642
  %v2676 = vadd.f32 %v2514, %v2642
  %v2677 = vadd.f32 %v2515, %v2642
  %v2678 = vadd.f32 %v2516, %v2642
  %v2679 = vadd.f32 %v2517, %v2642
  %v2680 = vadd.f32 %v2518, %v2642
  %v2681 = vadd.f32 %v2519, %v2642
  %v2682 = vadd.f32 %v2520, %v2642
  %v2683 = vadd.f32 %v2521, %v2642
  %v2684 = vadd.f32 %v2522, %v2642
  %v2685 = vadd.f32 %v2523, %v2642
  %v2686 = vadd.f32 %v2524, %v2642
  %v2687 = vadd.f32 %v2525, %v2642
  %v2688 = vadd.f32 %v2526, %v2642
  %v2689 = vadd.f32 %v2527, %v2642
  %v2690 = vadd.f32 %v2528, %v2642
  %v2691 = vadd.f32 %v2529, %v2642
  %v2692 = vadd.f32 %v2530, %v2642
  %v2693 = vadd.f32 %v2531, %v2642
  %v2694 = vadd.f32 %v2532, %v2642
  %v2695 = vadd.f32 %v2533, %v2642
  %v2696 = vadd.f32 %v2534, %v2642
  %v2697 = vadd.f32 %v2535, %v2642
  %v2698 = vadd.f32 %v2536, %v2642
  %v2699 = vadd.f32 %v2537, %v2642
  %v2700 = vadd.f32 %v2538, %v2642
  %v2701 = vadd.f32 %v2539, %v2642
  %v2702 = vadd.f32 %v2540, %v2642
  %v2703 = vadd.f32 %v2541, %v2642
  %v2704 = vadd.f32 %v2542, %v2642
  %v2705 = vadd.f32 %v2543, %v2642
  %v2706 = vadd.f32 %v2544, %v2642
  %v2707 = vadd.f32 %v2545, %v2642
  %v2708 = vadd.f32 %v2546, %v2642
  %v2709 = vadd.f32 %v2547, %v2642
  %v2710 = vadd.f32 %v2548, %v2642
  %v2711 = vadd.f32 %v2549, %v2642
  %v2712 = vadd.f32 %v2550, %v2642
  %v2713 = vadd.f32 %v2551, %v2642
  %v2714 = vadd.f32 %v2552, %v2642
  %v2715 = vadd.f32 %v2553, %v2642
  %v2716 = vadd.f32 %v2554, %v2642
  %v2717 = vadd.f32 %v2555, %v2642
  %v2718 = vadd.f32 %v2556, %v2642
  %v2719 = vadd.f32 %v2557, %v2642
  %v2720 = vadd.f32 %v2558, %v2642
  %v2721 = vadd.f32 %v2559, %v2642
  %v2722 = vadd.f32 %v2560, %v2642
  %v2723 = vadd.f32 %v2561, %v2642
  %v2724 = vadd.f32 %v2562, %v2642
  %v2725 = vadd.f32 %v2563, %v2642
  %v2726 = vadd.f32 %v2564, %v2642
  %v2727 = vadd.f32 %v2565, %v2642
  %v2728 = vadd.f32 %v2566, %v2642
  %v2729 = vadd.f32 %v2567, %v2642
  %v2730 = vadd.f32 %v2568, %v2642
  %v2731 = vadd.f32 %v2569, %v2642
  %v2732 = vadd.f32 %v2570, %v2642
  %v2733 = vadd.f32 %v2571, %v2642
  %v2734 = vadd.f32 %v2572, %v2642
  %v2735 = vadd.f32 %v2573, %v2642
  %v2736 = vadd.f32 %v2574, %v2642
  %v2737 = vadd.f32 %v2575, %v2642
  %v2738 = vadd.f32 %v2576, %v2642
  %v2739 = vadd.f32 %v2577, %v2642
  %v2740 = vadd.f32 %v2578, %v2642
  %v2741 = vadd.f32 %v2579, %v2642
  %v2742 = vadd.f32 %v2580, %v2642
  %v2743 = vadd.f32 %v2581, %v2642
  %v2744 = vadd.f32 %v2582, %v2642
  %v2745 = vadd.f32 %v2583, %v2642
  %v2746 = vadd.f32 %v2584, %v2642
  %v2747 = vadd.f32 %v2585, %v2642
  %v2748 = vadd.f32 %v2586, %v2642
  %v2749 = vadd.f32 %v2587, %v2642
  %v2750 = vadd.f32 %v2588, %v2642
  %v2751 = vadd.f32 %v2589, %v2642
  %v2752 = vadd.f32 %v2590, %v2642
  %v2753 = vadd.f32 %v2591, %v2642
  %v2754 = vadd.f32 %v2592, %v2642
  %v2755 = vadd.f32 %v2593, %v2642
  %v2756 = vadd.f32 %v2594, %v2642
  %v2757 = vadd.f32 %v2595, %v2642
  %v2758 = vadd.f32 %v2596, %v2642
  %v2759 = vadd.f32 %v2597, %v2642
  %v2760 = vadd.f32 %v2598, %v2642
  %v2761 = vadd.f32 %v2599, %v2642
  %v2762 = vadd.f32 %v2600, %v2642
  %v2763 = vadd.f32 %v2601, %v2642
  %v2764 = vadd.f32 %v2602, %v2642
  %v2765 = vadd.f32 %v2603, %v2642
  %v2766 = vadd.f32 %v2604, %v2642
  %v2767 = vadd.f32 %v2605, %v2642
  %v2768 = vadd.f32 %v2606, %v2642
  %v2769 = vadd.f32 %v2607, %v2642
  %v2770 = vadd.f32 %v2608, %v2642
  %v2771 = vadd.f32 %v2609, %v2642
  %v2772 = vadd.f32 %v2610, %v2642
  %v2773 = vadd.f32 %v2611, %v2642
  %v2774 = vadd.f32 %v2612, %v2642
  %v2775 = vadd.f32 %v2613, %v2642
  %v2776 = vadd.f32 %v2614, %v2642
  %v2777 = vadd.f32 %v2615, %v2642
  %v2778 = vadd.f32 %v2616, %v2642
  %v2779 = vadd.f32 %v2617, %v2642
  %v2780 = vadd.f32 %v2618, %v2642
  %v2781 = vadd.f32 %v2619, %v2642
  %v2782 = vadd.f32 %v2620, %v2642
  %v2783 = vadd.f32 %v2621, %v2642
  %v2784 = vadd.f32 %v2622, %v2642
  %v2785 = vadd.f32 %v2623, %v2642
  %v2786 = vadd.f32 %v2624, %v2642
  %v2787 = vadd.f32 %v2625, %v2642
  %v2788 = vadd.f32 %v2626, %v2642
  %v2789 = vadd.f32 %v2627, %v2642
  %v2790 = vadd.f32 %v2628, %v2642
  %v2791 = vadd.f32 %v2629, %v2642
  %v2792 = vadd.f32 %v2630, %v2642
  %v2793 = vadd.f32 %v2631, %v2642
  %v2794 = vadd.f32 %v2632, %v2642
  %v2795 = vadd.f32 %v2633, %v2642
  %v2796 = vadd.f32 %v2634, %v2642
  %v2797 = vadd.f32 %v2635, %v2642
  %v2798 = vadd.f32 %v2636, %v2642
  %v2799 = vadd.f32 %v2637, %v2642
  %v2800 = vadd.f32 %v2638, %v2642
  %v2801 = vmax.f32 %v2643, 0.0
  %v2802 = vmax.f32 %v2644, 0.0
  %v2803 = vmax.f32 %v2645, 0.0
  %v2804 = vmax.f32 %v2646, 0.0
  %v2805 = vmax.f32 %v2647, 0.0
  %v2806 = vmax.f32 %v2648, 0.0
  %v2807 = vmax.f32 %v2649, 0.0
  %v2808 = vmax.f32 %v2650, 0.0
  %v2809 = vmax.f32 %v2651, 0.0
  %v2810 = vmax.f32 %v2652, 0.0
  %v2811 = vmax.f32 %v2653, 0.0
  %v2812 = vmax.f32 %v2654, 0.0
  %v2813 = vmax.f32 %v2655, 0.0
  %v2814 = vmax.f32 %v2656, 0.0
  %v2815 = vmax.f32 %v2657, 0.0
  %v2816 = vmax.f32 %v2658, 0.0
  %v2817 = vmax.f32 %v2659, 0.0
  %v2818 = vmax.f32 %v2660, 0.0
  %v2819 = vmax.f32 %v2661, 0.0
  %v2820 = vmax.f32 %v2662, 0.0
  %v2821 = vmax.f32 %v2663, 0.0
  %v2822 = vmax.f32 %v2664, 0.0
  %v2823 = vmax.f32 %v2665, 0.0
  %v2824 = vmax.f32 %v2666, 0.0
  %v2825 = vmax.f32 %v2667, 0.0
  %v2826 = vmax.f32 %v2668, 0.0
  %v2827 = vmax.f32 %v2669, 0.0
  %v2828 = vmax.f32 %v2670, 0.0
  %v2829 = vmax.f32 %v2671, 0.0
  %v2830 = vmax.f32 %v2672, 0.0
  %v2831 = vmax.f32 %v2673, 0.0
  %v2832 = vmax.f32 %v2674, 0.0
  %v2833 = vmax.f32 %v2675, 0.0
  %v2834 = vmax.f32 %v2676, 0.0
  %v2835 = vmax.f32 %v2677, 0.0
  %v2836 = vmax.f32 %v2678, 0.0
  %v2837 = vmax.f32 %v2679, 0.0
  %v2838 = vmax.f32 %v2680, 0.0
  %v2839 = vmax.f32 %v2681, 0.0
  %v2840 = vmax.f32 %v2682, 0.0
  %v2841 = vmax.f32 %v2683, 0.0
  %v2842 = vmax.f32 %v2684, 0.0
  %v2843 = vmax.f32 %v2685, 0.0
  %v2844 = vmax.f32 %v2686, 0.0
  %v2845 = vmax.f32 %v2687, 0.0
  %v2846 = vmax.f32 %v2688, 0.0
  %v2847 = vmax.f32 %v2689, 0.0
  %v2848 = vmax.f32 %v2690, 0.0
  %v2849 = vmax.f32 %v2691, 0.0
  %v2850 = vmax.f32 %v2692, 0.0
  %v2851 = vmax.f32 %v2693, 0.0
  %v2852 = vmax.f32 %v2694, 0.0
  %v2853 = vmax.f32 %v2695, 0.0
  %v2854 = vmax.f32 %v2696, 0.0
  %v2855 = vmax.f32 %v2697, 0.0
  %v2856 = vmax.f32 %v2698, 0.0
  %v2857 = vmax.f32 %v2699, 0.0
  %v2858 = vmax.f32 %v2700, 0.0
  %v2859 = vmax.f32 %v2701, 0.0
  %v2860 = vmax.f32 %v2702, 0.0
  %v2861 = vmax.f32 %v2703, 0.0
  %v2862 = vmax.f32 %v2704, 0.0
  %v2863 = vmax.f32 %v2705, 0.0
  %v2864 = vmax.f32 %v2706, 0.0
  %v2865 = vmax.f32 %v2707, 0.0
  %v2866 = vmax.f32 %v2708, 0.0
  %v2867 = vmax.f32 %v2709, 0.0
  %v2868 = vmax.f32 %v2710, 0.0
  %v2869 = vmax.f32 %v2711, 0.0
  %v2870 = vmax.f32 %v2712, 0.0
  %v2871 = vmax.f32 %v2713, 0.0
  %v2872 = vmax.f32 %v2714, 0.0
  %v2873 = vmax.f32 %v2715, 0.0
  %v2874 = vmax.f32 %v2716, 0.0
  %v2875 = vmax.f32 %v2717, 0.0
  %v2876 = vmax.f32 %v2718, 0.0
  %v2877 = vmax.f32 %v2719, 0.0
  %v2878 = vmax.f32 %v2720, 0.0
  %v2879 = vmax.f32 %v2721, 0.0
  %v2880 = vmax.f32 %v2722, 0.0
  %v2881 = vmax.f32 %v2723, 0.0
  %v2882 = vmax.f32 %v2724, 0.0
  %v2883 = vmax.f32 %v2725, 0.0
  %v2884 = vmax.f32 %v2726, 0.0
  %v2885 = vmax.f32 %v2727, 0.0
  %v2886 = vmax.f32 %v2728, 0.0
  %v2887 = vmax.f32 %v2729, 0.0
  %v2888 = vmax.f32 %v2730, 0.0
  %v2889 = vmax.f32 %v2731, 0.0
  %v2890 = vmax.f32 %v2732, 0.0
  %v2891 = vmax.f32 %v2733, 0.0
  %v2892 = vmax.f32 %v2734, 0.0
  %v2893 = vmax.f32 %v2735, 0.0
  %v2894 = vmax.f32 %v2736, 0.0
  %v2895 = vmax.f32 %v2737, 0.0
  %v2896 = vmax.f32 %v2738, 0.0
  %v2897 = vmax.f32 %v2739, 0.0
  %v2898 = vmax.f32 %v2740, 0.0
  %v2899 = vmax.f32 %v2741, 0.0
  %v2900 = vmax.f32 %v2742, 0.0
  %v2901 = vmax.f32 %v2743, 0.0
  %v2902 = vmax.f32 %v2744, 0.0
  %v2903 = vmax.f32 %v2745, 0.0
  %v2904 = vmax.f32 %v2746, 0.0
  %v2905 = vmax.f32 %v2747, 0.0
  %v2906 = vmax.f32 %v2748, 0.0
  %v2907 = vmax.f32 %v2749, 0.0
  %v2908 = vmax.f32 %v2750, 0.0
  %v2909 = vmax.f32 %v2751, 0.0
  %v2910 = vmax.f32 %v2752, 0.0
  %v2911 = vmax.f32 %v2753, 0.0
  %v2912 = vmax.f32 %v2754, 0.0
  %v2913 = vmax.f32 %v2755, 0.0
  %v2914 = vmax.f32 %v2756, 0.0
  %v2915 = vmax.f32 %v2757, 0.0
  %v2916 = vmax.f32 %v2758, 0.0
  %v2917 = vmax.f32 %v2759, 0.0
  %v2918 = vmax.f32 %v2760, 0.0
  %v2919 = vmax.f32 %v2761, 0.0
  %v2920 = vmax.f32 %v2762, 0.0
  %v2921 = vmax.f32 %v2763, 0.0
  %v2922 = vmax.f32 %v2764, 0.0
  %v2923 = vmax.f32 %v2765, 0.0
  %v2924 = vmax.f32 %v2766, 0.0
  %v2925 = vmax.f32 %v2767, 0.0
  %v2926 = vmax.f32 %v2768, 0.0
  %v2927 = vmax.f32 %v2769, 0.0
  %v2928 = vmax.f32 %v2770, 0.0
  %v2929 = vmax.f32 %v2771, 0.0
  %v2930 = vmax.f32 %v2772, 0.0
  %v2931 = vmax.f32 %v2773, 0.0
  %v2932 = vmax.f32 %v2774, 0.0
  %v2933 = vmax.f32 %v2775, 0.0
  %v2934 = vmax.f32 %v2776, 0.0
  %v2935 = vmax.f32 %v2777, 0.0
  %v2936 = vmax.f32 %v2778, 0.0
  %v2937 = vmax.f32 %v2779, 0.0
  %v2938 = vmax.f32 %v2780, 0.0
  %v2939 = vmax.f32 %v2781, 0.0
  %v2940 = vmax.f32 %v2782, 0.0
  %v2941 = vmax.f32 %v2783, 0.0
  %v2942 = vmax.f32 %v2784, 0.0
  %v2943 = vmax.f32 %v2785, 0.0
  %v2944 = vmax.f32 %v2786, 0.0
  %v2945 = vmax.f32 %v2787, 0.0
  %v2946 = vmax.f32 %v2788, 0.0
  %v2947 = vmax.f32 %v2789, 0.0
  %v2948 = vmax.f32 %v2790, 0.0
  %v2949 = vmax.f32 %v2791, 0.0
  %v2950 = vmax.f32 %v2792, 0.0
  %v2951 = vmax.f32 %v2793, 0.0
  %v2952 = vmax.f32 %v2794, 0.0
  %v2953 = vmax.f32 %v2795, 0.0
  %v2954 = vmax.f32 %v2796, 0.0
  %v2955 = vmax.f32 %v2797, 0.0
  %v2956 = vmax.f32 %v2798, 0.0
  %v2957 = vmax.f32 %v2799, 0.0
  %v2958 = vmax.f32 %v2800, 0.0
  %v2959 = vtanh.pop %v2801
  %v2960 = vtanh.pop %v2802
  %v2961 = vtanh.pop %v2803
  %v2962 = vtanh.pop %v2804
  %v2963 = vtanh.pop %v2805
  %v2964 = vtanh.pop %v2806
  %v2965 = vtanh.pop %v2807
  %v2966 = vtanh.pop %v2808
  %v2967 = vtanh.pop %v2809
  %v2968 = vtanh.pop %v2810
  %v2969 = vtanh.pop %v2811
  %v2970 = vtanh.pop %v2812
  %v2971 = vtanh.pop %v2813
  %v2972 = vtanh.pop %v2814
  %v2973 = vtanh.pop %v2815
  %v2974 = vtanh.pop %v2816
  %v2975 = vtanh.pop %v2817
  %v2976 = vtanh.pop %v2818
  %v2977 = vtanh.pop %v2819
  %v2978 = vtanh.pop %v2820
  %v2979 = vtanh.pop %v2821
  %v2980 = vtanh.pop %v2822
  %v2981 = vtanh.pop %v2823
  %v2982 = vtanh.pop %v2824
  %v2983 = vtanh.pop %v2825
  %v2984 = vtanh.pop %v2826
  %v2985 = vtanh.pop %v2827
  %v2986 = vtanh.pop %v2828
  %v2987 = vtanh.pop %v2829
  %v2988 = vtanh.pop %v2830
  %v2989 = vtanh.pop %v2831
  %v2990 = vtanh.pop %v2832
  %v2991 = vtanh.pop %v2833
  %v2992 = vtanh.pop %v2834
  %v2993 = vtanh.pop %v2835
  %v2994 = vtanh.pop %v2836
  %v2995 = vtanh.pop %v2837
  %v2996 = vtanh.pop %v2838
  %v2997 = vtanh.pop %v2839
  %v2998 = vtanh.pop %v2840
  %v2999 = vtanh.pop %v2841
  %v3000 = vtanh.pop %v2842
  %v3001 = vtanh.pop %v2843
  %v3002 = vtanh.pop %v2844
  %v3003 = vtanh.pop %v2845
  %v3004 = vtanh.pop %v2846
  %v3005 = vtanh.pop %v2847
  %v3006 = vtanh.pop %v2848
  %v3007 = vtanh.pop %v2849
  %v3008 = vtanh.pop %v2850
  %v3009 = vtanh.pop %v2851
  %v3010 = vtanh.pop %v2852
  %v3011 = vtanh.pop %v2853
  %v3012 = vtanh.pop %v2854
  %v3013 = vtanh.pop %v2855
  %v3014 = vtanh.pop %v2856
  %v3015 = vtanh.pop %v2857
  %v3016 = vtanh.pop %v2858
  %v3017 = vtanh.pop %v2859
  %v3018 = vtanh.pop %v2860
  %v3019 = vtanh.pop %v2861
  %v3020 = vtanh.pop %v2862
  %v3021 = vtanh.pop %v2863
  %v3022 = vtanh.pop %v2864
  %v3023 = vtanh.pop %v2865
  %v3024 = vtanh.pop %v2866
  %v3025 = vtanh.pop %v2867
  %v3026 = vtanh.pop %v2868
  %v3027 = vtanh.pop %v2869
  %v3028 = vtanh.pop %v2870
  %v3029 = vtanh.pop %v2871
  %v3030 = vtanh.pop %v2872
  %v3031 = vtanh.pop %v2873
  %v3032 = vtanh.pop %v2874
  %v3033 = vtanh.pop %v2875
  %v3034 = vtanh.pop %v2876
  %v3035 = vtanh.pop %v2877
  %v3036 = vtanh.pop %v2878
  %v3037 = vtanh.pop %v2879
  %v3038 = vtanh.pop %v2880
  %v3039 = vtanh.pop %v2881
  %v3040 = vtanh.pop %v2882
  %v3041 = vtanh.pop %v2883
  %v3042 = vtanh.pop %v2884
  %v3043 = vtanh.pop %v2885
  %v3044 = vtanh.pop %v2886
  %v3045 = vtanh.pop %v2887
  %v3046 = vtanh.pop %v2888
  %v3047 = vtanh.pop %v2889
  %v3048 = vtanh.pop %v2890
  %v3049 = vtanh.pop %v2891
  %v3050 = vtanh.pop %v2892
  %v3051 = vtanh.pop %v2893
  %v3052 = vtanh.pop %v2894
  %v3053 = vtanh.pop %v2895
  %v3054 = vtanh.pop %v2896
  %v3055 = vtanh.pop %v2897
  %v3056 = vtanh.pop %v2898
  %v3057 = vtanh.pop %v2899
  %v3058 = vtanh.pop %v2900
  %v3059 = vtanh.pop %v2901
  %v3060 = vtanh.pop %v2902
  %v3061 = vtanh.pop %v2903
  %v3062 = vtanh.pop %v2904
  %v3063 = vtanh.pop %v2905
  %v3064 = vtanh.pop %v2906
  %v3065 = vtanh.pop %v2907
  %v3066 = vtanh.pop %v2908
  %v3067 = vtanh.pop %v2909
  %v3068 = vtanh.pop %v2910
  %v3069 = vtanh.pop %v2911
  %v3070 = vtanh.pop %v2912
  %v3071 = vtanh.pop %v2913
  %v3072 = vtanh.pop %v2914
  %v3073 = vtanh.pop %v2915
  %v3074 = vtanh.pop %v2916
  %v3075 = vtanh.pop %v2917
  %v3076 = vtanh.pop %v2918
  %v3077 = vtanh.pop %v2919
  %v3078 = vtanh.pop %v2920
  %v3079 = vtanh.pop %v2921
  %v3080 = vtanh.pop %v2922
  %v3081 = vtanh.pop %v2923
  %v3082 = vtanh.pop %v2924
  %v3083 = vtanh.pop %v2925
  %v3084 = vtanh.pop %v2926
  %v3085 = vtanh.pop %v2927
  %v3086 = vtanh.pop %v2928
  %v3087 = vtanh.pop %v2929
  %v3088 = vtanh.pop %v2930
  %v3089 = vtanh.pop %v2931
  %v3090 = vtanh.pop %v2932
  %v3091 = vtanh.pop %v2933
  %v3092 = vtanh.pop %v2934
  %v3093 = vtanh.pop %v2935
  %v3094 = vtanh.pop %v2936
  %v3095 = vtanh.pop %v2937
  %v3096 = vtanh.pop %v2938
  %v3097 = vtanh.pop %v2939
  %v3098 = vtanh.pop %v2940
  %v3099 = vtanh.pop %v2941
  %v3100 = vtanh.pop %v2942
  %v3101 = vtanh.pop %v2943
  %v3102 = vtanh.pop %v2944
  %v3103 = vtanh.pop %v2945
  %v3104 = vtanh.pop %v2946
  %v3105 = vtanh.pop %v2947
  %v3106 = vtanh.pop %v2948
  %v3107 = vtanh.pop %v2949
  %v3108 = vtanh.pop %v2950
  %v3109 = vtanh.pop %v2951
  %v3110 = vtanh.pop %v2952
  %v3111 = vtanh.pop %v2953
  %v3112 = vtanh.pop %v2954
  %v3113 = vtanh.pop %v2955
  %v3114 = vtanh.pop %v2956
  %v3115 = vtanh.pop %v2957
  %v3116 = vtanh.pop %v2958
  %3117 = vst.msk [vmem:[%s3] sm:$0xff] %vm1511, %v2959
  %3118 = vst.msk [vmem:[%s3 + $0x8] sm:$0xff] %vm1511, %v2960
  %3119 = vst.msk [vmem:[%s3 + $0x10] sm:$0xff] %vm1511, %v2961
  %3120 = vst.msk [vmem:[%s3 + $0x18] sm:$0xff] %vm1511, %v2962
  %3121 = vst.msk [vmem:[%s3 + $0x20] sm:$0xff] %vm1511, %v2963
  %3122 = vst.msk [vmem:[%s3 + $0x28] sm:$0xff] %vm1511, %v2964
  %3123 = vst.msk [vmem:[%s3 + $0x30] sm:$0xff] %vm1511, %v2965
  %3124 = vst.msk [vmem:[%s3 + $0x38] sm:$0xff] %vm1511, %v2966
  %3125 = vst.msk [vmem:[%s3 + $0x40] sm:$0xff] %vm1511, %v2967
  %3126 = vst.msk [vmem:[%s3 + $0x48] sm:$0xff] %vm1511, %v2968
  %3127 = vst.msk [vmem:[%s3 + $0x50] sm:$0xff] %vm1511, %v2969
  %3128 = vst.msk [vmem:[%s3 + $0x58] sm:$0xff] %vm1511, %v2970
  %3129 = vst.msk [vmem:[%s3 + $0x60] sm:$0xff] %vm1511, %v2971
  %3130 = vst.msk [vmem:[%s3 + $0x68] sm:$0xff] %vm1511, %v2972
  %3131 = vst.msk [vmem:[%s3 + $0x70] sm:$0xff] %vm1511, %v2973
  %3132 = vst.msk [vmem:[%s3 + $0x78] sm:$0xff] %vm1511, %v2974
  %3133 = vst.msk [vmem:[%s3 + $0x80] sm:$0xff] %vm1511, %v2975
  %3134 = vst.msk [vmem:[%s3 + $0x88] sm:$0xff] %vm1511, %v2976
  %3135 = vst.msk [vmem:[%s3 + $0x90] sm:$0xff] %vm1511, %v2977
  %3136 = vst.msk [vmem:[%s3 + $0x98] sm:$0xff] %vm1511, %v2978
  %3137 = vst.msk [vmem:[%s3 + $0xa0] sm:$0xff] %vm1511, %v2979
  %3138 = vst.msk [vmem:[%s3 + $0xa8] sm:$0xff] %vm1511, %v2980
  %3139 = vst.msk [vmem:[%s3 + $0xb0] sm:$0xff] %vm1511, %v2981
  %3140 = vst.msk [vmem:[%s3 + $0xb8] sm:$0xff] %vm1511, %v2982
  %3141 = vst.msk [vmem:[%s3 + $0xc0] sm:$0xff] %vm1511, %v2983
  %3142 = vst.msk [vmem:[%s3 + $0xc8] sm:$0xff] %vm1511, %v2984
  %3143 = vst.msk [vmem:[%s3 + $0xd0] sm:$0xff] %vm1511, %v2985
  %3144 = vst.msk [vmem:[%s3 + $0xd8] sm:$0xff] %vm1511, %v2986
  %3145 = vst.msk [vmem:[%s3 + $0xe0] sm:$0xff] %vm1511, %v2987
  %3146 = vst.msk [vmem:[%s3 + $0xe8] sm:$0xff] %vm1511, %v2988
  %3147 = vst.msk [vmem:[%s3 + $0xf0] sm:$0xff] %vm1511, %v2989
  %3148 = vst.msk [vmem:[%s3 + $0xf8] sm:$0xff] %vm1511, %v2990
  %3149 = vst.msk [vmem:[%s3 + $0x100] sm:$0xff] %vm1511, %v2991
  %3150 = vst.msk [vmem:[%s3 + $0x108] sm:$0xff] %vm1511, %v2992
  %3151 = vst.msk [vmem:[%s3 + $0x110] sm:$0xff] %vm1511, %v2993
  %3152 = vst.msk [vmem:[%s3 + $0x118] sm:$0xff] %vm1511, %v2994
  %3153 = vst.msk [vmem:[%s3 + $0x120] sm:$0xff] %vm1511, %v2995
  %3154 = vst.msk [vmem:[%s3 + $0x128] sm:$0xff] %vm1511, %v2996
  %3155 = vst.msk [vmem:[%s3 + $0x130] sm:$0xff] %vm1511, %v2997
  %3156 = vst.msk [vmem:[%s3 + $0x138] sm:$0xff] %vm1511, %v2998
  %3157 = vst.msk [vmem:[%s3 + $0x140] sm:$0xff] %vm1511, %v2999
  %3158 = vst.msk [vmem:[%s3 + $0x148] sm:$0xff] %vm1511, %v3000
  %3159 = vst.msk [vmem:[%s3 + $0x150] sm:$0xff] %vm1511, %v3001
  %3160 = vst.msk [vmem:[%s3 + $0x158] sm:$0xff] %vm1511, %v3002
  %3161 = vst.msk [vmem:[%s3 + $0x160] sm:$0xff] %vm1511, %v3003
  %3162 = vst.msk [vmem:[%s3 + $0x168] sm:$0xff] %vm1511, %v3004
  %3163 = vst.msk [vmem:[%s3 + $0x170] sm:$0xff] %vm1511, %v3005
  %3164 = vst.msk [vmem:[%s3 + $0x178] sm:$0xff] %vm1511, %v3006
  %3165 = vst.msk [vmem:[%s3 + $0x180] sm:$0xff] %vm1511, %v3007
  %3166 = vst.msk [vmem:[%s3 + $0x188] sm:$0xff] %vm1511, %v3008
  %3167 = vst.msk [vmem:[%s3 + $0x190] sm:$0xff] %vm1511, %v3009
  %3168 = vst.msk [vmem:[%s3 + $0x198] sm:$0xff] %vm1511, %v3010
  %3169 = vst.msk [vmem:[%s3 + $0x1a0] sm:$0xff] %vm1511, %v3011
  %3170 = vst.msk [vmem:[%s3 + $0x1a8] sm:$0xff] %vm1511, %v3012
  %3171 = vst.msk [vmem:[%s3 + $0x1b0] sm:$0xff] %vm1511, %v3013
  %3172 = vst.msk [vmem:[%s3 + $0x1b8] sm:$0xff] %vm1511, %v3014
  %3173 = vst.msk [vmem:[%s3 + $0x1c0] sm:$0xff] %vm1511, %v3015
  %3174 = vst.msk [vmem:[%s3 + $0x1c8] sm:$0xff] %vm1511, %v3016
  %3175 = vst.msk [vmem:[%s3 + $0x1d0] sm:$0xff] %vm1511, %v3017
  %3176 = vst.msk [vmem:[%s3 + $0x1d8] sm:$0xff] %vm1511, %v3018
  %3177 = vst.msk [vmem:[%s3 + $0x1e0] sm:$0xff] %vm1511, %v3019
  %3178 = vst.msk [vmem:[%s3 + $0x1e8] sm:$0xff] %vm1511, %v3020
  %3179 = vst.msk [vmem:[%s3 + $0x1f0] sm:$0xff] %vm1511, %v3021
  %3180 = vst.msk [vmem:[%s3 + $0x1f8] sm:$0xff] %vm1511, %v3022
  %3181 = vst.msk [vmem:[%s3 + $0x200] sm:$0xff] %vm1511, %v3023
  %3182 = vst.msk [vmem:[%s3 + $0x208] sm:$0xff] %vm1511, %v3024
  %3183 = vst.msk [vmem:[%s3 + $0x210] sm:$0xff] %vm1511, %v3025
  %3184 = vst.msk [vmem:[%s3 + $0x218] sm:$0xff] %vm1511, %v3026
  %3185 = vst.msk [vmem:[%s3 + $0x220] sm:$0xff] %vm1511, %v3027
  %3186 = vst.msk [vmem:[%s3 + $0x228] sm:$0xff] %vm1511, %v3028
  %3187 = vst.msk [vmem:[%s3 + $0x230] sm:$0xff] %vm1511, %v3029
  %3188 = vst.msk [vmem:[%s3 + $0x238] sm:$0xff] %vm1511, %v3030
  %3189 = vst.msk [vmem:[%s3 + $0x240] sm:$0xff] %vm1511, %v3031
  %3190 = vst.msk [vmem:[%s3 + $0x248] sm:$0xff] %vm1511, %v3032
  %3191 = vst.msk [vmem:[%s3 + $0x250] sm:$0xff] %vm1511, %v3033
  %3192 = vst.msk [vmem:[%s3 + $0x258] sm:$0xff] %vm1511, %v3034
  %3193 = vst.msk [vmem:[%s3 + $0x260] sm:$0xff] %vm1511, %v3035
  %3194 = vst.msk [vmem:[%s3 + $0x268] sm:$0xff] %vm1511, %v3036
  %3195 = vst.msk [vmem:[%s3 + $0x270] sm:$0xff] %vm1511, %v3037
  %3196 = vst.msk [vmem:[%s3 + $0x278] sm:$0xff] %vm1511, %v3038
  %3197 = vst.msk [vmem:[%s3 + $0x280] sm:$0xff] %vm1511, %v3039
  %3198 = vst.msk [vmem:[%s3 + $0x288] sm:$0xff] %vm1511, %v3040
  %3199 = vst.msk [vmem:[%s3 + $0x290] sm:$0xff] %vm1511, %v3041
  %3200 = vst.msk [vmem:[%s3 + $0x298] sm:$0xff] %vm1511, %v3042
  %3201 = vst.msk [vmem:[%s3 + $0x2a0] sm:$0xff] %vm1511, %v3043
  %3202 = vst.msk [vmem:[%s3 + $0x2a8] sm:$0xff] %vm1511, %v3044
  %3203 = vst.msk [vmem:[%s3 + $0x2b0] sm:$0xff] %vm1511, %v3045
  %3204 = vst.msk [vmem:[%s3 + $0x2b8] sm:$0xff] %vm1511, %v3046
  %3205 = vst.msk [vmem:[%s3 + $0x2c0] sm:$0xff] %vm1511, %v3047
  %3206 = vst.msk [vmem:[%s3 + $0x2c8] sm:$0xff] %vm1511, %v3048
  %3207 = vst.msk [vmem:[%s3 + $0x2d0] sm:$0xff] %vm1511, %v3049
  %3208 = vst.msk [vmem:[%s3 + $0x2d8] sm:$0xff] %vm1511, %v3050
  %3209 = vst.msk [vmem:[%s3 + $0x2e0] sm:$0xff] %vm1511, %v3051
  %3210 = vst.msk [vmem:[%s3 + $0x2e8] sm:$0xff] %vm1511, %v3052
  %3211 = vst.msk [vmem:[%s3 + $0x2f0] sm:$0xff] %vm1511, %v3053
  %3212 = vst.msk [vmem:[%s3 + $0x2f8] sm:$0xff] %vm1511, %v3054
  %3213 = vst.msk [vmem:[%s3 + $0x300] sm:$0xff] %vm1511, %v3055
  %3214 = vst.msk [vmem:[%s3 + $0x308] sm:$0xff] %vm1511, %v3056
  %3215 = vst.msk [vmem:[%s3 + $0x310] sm:$0xff] %vm1511, %v3057
  %3216 = vst.msk [vmem:[%s3 + $0x318] sm:$0xff] %vm1511, %v3058
  %3217 = vst.msk [vmem:[%s3 + $0x320] sm:$0xff] %vm1511, %v3059
  %3218 = vst.msk [vmem:[%s3 + $0x328] sm:$0xff] %vm1511, %v3060
  %3219 = vst.msk [vmem:[%s3 + $0x330] sm:$0xff] %vm1511, %v3061
  %3220 = vst.msk [vmem:[%s3 + $0x338] sm:$0xff] %vm1511, %v3062
  %3221 = vst.msk [vmem:[%s3 + $0x340] sm:$0xff] %vm1511, %v3063
  %3222 = vst.msk [vmem:[%s3 + $0x348] sm:$0xff] %vm1511, %v3064
  %3223 = vst.msk [vmem:[%s3 + $0x350] sm:$0xff] %vm1511, %v3065
  %3224 = vst.msk [vmem:[%s3 + $0x358] sm:$0xff] %vm1511, %v3066
  %3225 = vst.msk [vmem:[%s3 + $0x360] sm:$0xff] %vm1511, %v3067
  %3226 = vst.msk [vmem:[%s3 + $0x368] sm:$0xff] %vm1511, %v3068
  %3227 = vst.msk [vmem:[%s3 + $0x370] sm:$0xff] %vm1511, %v3069
  %3228 = vst.msk [vmem:[%s3 + $0x378] sm:$0xff] %vm1511, %v3070
  %3229 = vst.msk [vmem:[%s3 + $0x380] sm:$0xff] %vm1511, %v3071
  %3230 = vst.msk [vmem:[%s3 + $0x388] sm:$0xff] %vm1511, %v3072
  %3231 = vst.msk [vmem:[%s3 + $0x390] sm:$0xff] %vm1511, %v3073
  %3232 = vst.msk [vmem:[%s3 + $0x398] sm:$0xff] %vm1511, %v3074
  %3233 = vst.msk [vmem:[%s3 + $0x3a0] sm:$0xff] %vm1511, %v3075
  %3234 = vst.msk [vmem:[%s3 + $0x3a8] sm:$0xff] %vm1511, %v3076
  %3235 = vst.msk [vmem:[%s3 + $0x3b0] sm:$0xff] %vm1511, %v3077
  %3236 = vst.msk [vmem:[%s3 + $0x3b8] sm:$0xff] %vm1511, %v3078
  %3237 = vst.msk [vmem:[%s3 + $0x3c0] sm:$0xff] %vm1511, %v3079
  %3238 = vst.msk [vmem:[%s3 + $0x3c8] sm:$0xff] %vm1511, %v3080
  %3239 = vst.msk [vmem:[%s3 + $0x3d0] sm:$0xff] %vm1511, %v3081
  %3240 = vst.msk [vmem:[%s3 + $0x3d8] sm:$0xff] %vm1511, %v3082
  %3241 = vst.msk [vmem:[%s3 + $0x3e0] sm:$0xff] %vm1511, %v3083
  %3242 = vst.msk [vmem:[%s3 + $0x3e8] sm:$0xff] %vm1511, %v3084
  %3243 = vst.msk [vmem:[%s3 + $0x3f0] sm:$0xff] %vm1511, %v3085
  %3244 = vst.msk [vmem:[%s3 + $0x3f8] sm:$0xff] %vm1511, %v3086
  %3245 = vst.msk [vmem:[%s3 + $0x400] sm:$0xff] %vm1511, %v3087
  %3246 = vst.msk [vmem:[%s3 + $0x408] sm:$0xff] %vm1511, %v3088
  %3247 = vst.msk [vmem:[%s3 + $0x410] sm:$0xff] %vm1511, %v3089
  %3248 = vst.msk [vmem:[%s3 + $0x418] sm:$0xff] %vm1511, %v3090
  %3249 = vst.msk [vmem:[%s3 + $0x420] sm:$0xff] %vm1511, %v3091
  %3250 = vst.msk [vmem:[%s3 + $0x428] sm:$0xff] %vm1511, %v3092
  %3251 = vst.msk [vmem:[%s3 + $0x430] sm:$0xff] %vm1511, %v3093
  %3252 = vst.msk [vmem:[%s3 + $0x438] sm:$0xff] %vm1511, %v3094
  %3253 = vst.msk [vmem:[%s3 + $0x440] sm:$0xff] %vm1511, %v3095
  %3254 = vst.msk [vmem:[%s3 + $0x448] sm:$0xff] %vm1511, %v3096
  %3255 = vst.msk [vmem:[%s3 + $0x450] sm:$0xff] %vm1511, %v3097
  %3256 = vst.msk [vmem:[%s3 + $0x458] sm:$0xff] %vm1511, %v3098
  %3257 = vst.msk [vmem:[%s3 + $0x460] sm:$0xff] %vm1511, %v3099
  %3258 = vst.msk [vmem:[%s3 + $0x468] sm:$0xff] %vm1511, %v3100
  %3259 = vst.msk [vmem:[%s3 + $0x470] sm:$0xff] %vm1511, %v3101
  %3260 = vst.msk [vmem:[%s3 + $0x478] sm:$0xff] %vm1511, %v3102
  %3261 = vst.msk [vmem:[%s3 + $0x480] sm:$0xff] %vm1511, %v3103
  %3262 = vst.msk [vmem:[%s3 + $0x488] sm:$0xff] %vm1511, %v3104
  %3263 = vst.msk [vmem:[%s3 + $0x490] sm:$0xff] %vm1511, %v3105
  %3264 = vst.msk [vmem:[%s3 + $0x498] sm:$0xff] %vm1511, %v3106
  %3265 = vst.msk [vmem:[%s3 + $0x4a0] sm:$0xff] %vm1511, %v3107
  %3266 = vst.msk [vmem:[%s3 + $0x4a8] sm:$0xff] %vm1511, %v3108
  %3267 = vst.msk [vmem:[%s3 + $0x4b0] sm:$0xff] %vm1511, %v3109
  %3268 = vst.msk [vmem:[%s3 + $0x4b8] sm:$0xff] %vm1511, %v3110
  %3269 = vst.msk [vmem:[%s3 + $0x4c0] sm:$0xff] %vm1511, %v3111
  %3270 = vst.msk [vmem:[%s3 + $0x4c8] sm:$0xff] %vm1511, %v3112
  %3271 = vst.msk [vmem:[%s3 + $0x4d0] sm:$0xff] %vm1511, %v3113
  %3272 = vst.msk [vmem:[%s3 + $0x4d8] sm:$0xff] %vm1511, %v3114
  %3273 = vst.msk [vmem:[%s3 + $0x4e0] sm:$0xff] %vm1511, %v3115
  %3274 = vst.msk [vmem:[%s3 + $0x4e8] sm:$0xf] %vm1825, %v3116
  // Predicated region
  $region14: #{_lambda_.9} parent=0 // pred_check
    _
  $region15: #{_lambda_.9} parent=0 // pred_check_branch
    %3276 = sbr.rel (0) target = $region17
  $region16: #{_lambda_.9} parent=0 // pred_region
    _
  $region17: #{_lambda_.9} parent=0 // pred_fallthru
    _
  // Predicated region
  $region18: #{_lambda_.9} parent=0 // pred_check
    _
  $region19: #{_lambda_.9} parent=0 // pred_check_branch
    %3278 = sbr.rel (0) target = $region21
  $region20: #{_lambda_.9} parent=0 // pred_region
    _
  $region21: #{_lambda_.9} parent=0 // pred_fallthru
    _

</llo_original>
